<compile_context>
chip_gen: v5e
topology: v5e:2x2
jax: 0.10.0
libtpu: 0.0.40
codegen_flags: <defaults>
</compile_context>

<pallas_src>
import functools

import jax
import jax.numpy as jnp
from jax.experimental import pallas as pl
from jax.experimental.pallas import tpu as pltpu


_LEAKY_SLOPE = 0.01          # nn.LeakyReLU default negative_slope
_SOFTPLUS_THRESHOLD = 20.0   # nn.Softplus(beta=1, threshold=20)

# layer order: in->4in (tanh), 4in->8in ... 64in->128in (leaky x5), [BN folded into next],
#              128in->256in, 256in->512in (leaky x2), [Dropout identity],
#              512in->1024in (leaky), 1024in->out (softplus)
_ACTS = ("tanh",) + ("leaky_relu",) * 8 + ("softplus",)
_STREAM_IDX = (7, 8)   # layers whose (large) weights are HBM-streamed / DMA-overlapped


def _apply_act(y, act):
    if act == "tanh":
        return jnp.tanh(y)
    if act == "leaky_relu":
        # one VALU max per element instead of compare+select
        return jnp.maximum(y, _LEAKY_SLOPE * y)
    if act == "softplus":
        # linear above threshold, log1p(exp(y)) below (clamped arg for safety)
        return jnp.where(y > _SOFTPLUS_THRESHOLD, y,
                         jnp.log1p(jnp.exp(jnp.minimum(y, _SOFTPLUS_THRESHOLD))))
    if act == "none":
        return y
    raise ValueError(act)


def _round_up(x, m):
    return ((x + m - 1) // m) * m


# ----------------------------------------------------------------------------
# Single fused kernel: the entire MLP forward. Small weights/biases are VMEM-resident
# inputs; the two largest weights are raw HBM refs whose copies into VMEM scratch
# overlap the compute of the earlier layers. Activations never touch HBM.
# ----------------------------------------------------------------------------
def _fused_mlp_kernel(x_ref, *refs, acts, stream_idx):
    n_layers = len(acts)
    n_stream = len(stream_idx)
    w_refs = refs[:n_layers]
    b_refs = refs[n_layers:2 * n_layers]
    o_ref = refs[2 * n_layers]
    w_bufs = refs[2 * n_layers + 1: 2 * n_layers + 1 + n_stream]
    sems = refs[2 * n_layers + 1 + n_stream]

    copies = [pltpu.make_async_copy(w_refs[li], w_bufs[j], sems.at[j])
              for j, li in enumerate(stream_idx)]

    # Kick off HBM->VMEM fetch of the big weights; it runs under layers 0..6 compute.
    # Only on grid step 0 — the scratch buffers persist across (sequential) steps.
    @pl.when(pl.program_id(0) == 0)
    def _start():
        for cp in copies:
            cp.start()

    h = x_ref[...]                                   # f32 (tm, in_dim)
    for i in range(n_layers):                        # static unroll over layers
        if i in stream_idx:
            j = stream_idx.index(i)

            @pl.when(pl.program_id(0) == 0)
            def _wait(cp=copies[j]):                 # wait right before this layer
                cp.wait()

            w = w_bufs[j][...]                       # bf16 (K, N) from scratch
        else:
            w = w_refs[i][...]                       # bf16 (K, N) VMEM-resident
        y = jnp.dot(h.astype(w.dtype), w,
                    preferred_element_type=jnp.float32) + b_refs[i][...]
        h = _apply_act(y, acts[i])
    o_ref[...] = h.astype(o_ref.dtype)


def fused_mlp_forward(x, weights, biases, acts=_ACTS, stream_idx=_STREAM_IDX,
                      block_m=256):
    """Full MLP forward as a single Pallas call with overlapped weight streaming."""
    M, in_dim = x.shape
    n_layers = len(weights)
    assert len(biases) == n_layers == len(acts)
    n_out = weights[-1].shape[1]

    # Batch tiling: pad M to a sublane multiple; tile at block_m rows so large batches
    # amortize the per-call weight streaming (the main throughput lever at small M).
    tm = block_m if M >= block_m else _round_up(M, 8)
    m_pad = _round_up(M, tm)
    if m_pad != M:
        x = jnp.pad(x, ((0, m_pad - M), (0, 0)))
    grid = (m_pad // tm,)

    biases_2d = [b.reshape(1, -1).astype(jnp.float32) for b in biases]

    in_specs = [pl.BlockSpec((tm, in_dim), lambda i: (i, 0))]
    for li, w in enumerate(weights):
        if li in stream_idx:
            in_specs.append(pl.BlockSpec(memory_space=pl.ANY))        # raw HBM ref
        else:
            in_specs.append(pl.BlockSpec(w.shape, lambda i: (0, 0)))  # VMEM resident
    for b in biases_2d:
        in_specs.append(pl.BlockSpec(b.shape, lambda i: (0, 0)))

    out_specs = pl.BlockSpec((tm, n_out), lambda i: (i, 0))

    scratch_shapes = [pltpu.VMEM(weights[li].shape, weights[li].dtype)
                      for li in stream_idx]
    scratch_shapes.append(pltpu.SemaphoreType.DMA((len(stream_idx),)))

    # VMEM budget: resident weights + streamed-weight scratch + live activations,
    # with 2x margin (min 32 MiB); ~32 MiB here, well under v7x's 64 MiB physical VMEM.
    def _nbytes(a):
        return a.size * a.dtype.itemsize
    resident = sum(_nbytes(w) for li, w in enumerate(weights) if li not in stream_idx)
    streamed = sum(_nbytes(weights[li]) for li in stream_idx)
    widest = max(w.shape[1] for w in weights)
    need = (resident + streamed + sum(_nbytes(b) for b in biases_2d)
            + 2 * tm * widest * 4                       # a couple of live activations
            + 2 * (tm * in_dim + tm * n_out) * 4)       # pipelined x / out tiles
    vmem_limit = int(max(2 * need, 32 << 20))
    # TODO(synk): for larger input_dim where a single weight exceeds VMEM (e.g. v7x at
    #             input_dim>=4), add a K-tiled streamed matmul path for layers 8/9.

    kernel = functools.partial(_fused_mlp_kernel, acts=tuple(acts),
                               stream_idx=tuple(stream_idx))

    out = pl.pallas_call(
        kernel,
        out_shape=jax.ShapeDtypeStruct((m_pad, n_out), jnp.float32),
        grid=grid,
        in_specs=in_specs,
        out_specs=out_specs,
        scratch_shapes=scratch_shapes,
        compiler_params=pltpu.CompilerParams(
            # "arbitrary": the big-weight DMA is issued/awaited only on grid step 0 and
            # its scratch is reused by later steps, which requires sequential steps.
            # TODO(synk): v7x megacore (parallel M axis with per-core / VMEM_SHARED
            #             weight staging) not implemented.
            dimension_semantics=("arbitrary",),
            vmem_limit_bytes=vmem_limit,
        ),
    )(x, *weights, *biases_2d)
    return out[:M]


# ----------------------------------------------------------------------------
# Parameter init (Xavier-uniform weights, zero biases), deterministic
# ----------------------------------------------------------------------------
def xavier_uniform(key, fan_in, fan_out):
    bound = (6.0 / (fan_in + fan_out)) ** 0.5
    # stored as (in, out) so the kernel does x @ W
    return jax.random.uniform(key, (fan_in, fan_out), jnp.float32, -bound, bound)


def init_params(key, input_dim, output_dim):
    dims = [input_dim,
            4 * input_dim, 8 * input_dim, 16 * input_dim, 32 * input_dim,
            64 * input_dim, 128 * input_dim, 256 * input_dim, 512 * input_dim,
            1024 * input_dim, output_dim]
    keys = jax.random.split(key, len(dims) - 1)
    layers = []
    for i in range(len(dims) - 1):
        w = xavier_uniform(keys[i], dims[i], dims[i + 1])
        b = jnp.zeros((dims[i + 1],), jnp.float32)
        layers.append((w, b))
    bn_c = 128 * input_dim
    bn = dict(gamma=jnp.ones((bn_c,), jnp.float32),
              beta=jnp.zeros((bn_c,), jnp.float32),
              running_mean=jnp.zeros((bn_c,), jnp.float32),
              running_var=jnp.ones((bn_c,), jnp.float32))
    return layers, bn


def fold_bn_into_next_linear(w, b, gamma, beta, running_mean, running_var, eps=1e-5):
    """Eval-mode BN followed by Linear:  Linear(BN(h)) == h @ (diag(s) W) + (t @ W + b)."""
    scale = gamma * jax.lax.rsqrt(running_var + eps)   # (C,)
    shift = beta - running_mean * scale                # (C,)
    w_folded = w * scale[:, None]                      # scale rows of (in, out) weight
    b_folded = b + shift @ w                           # push shift through the linear
    return w_folded, b_folded


def prepare_params(layers, bn):
    """Fold BN into layers[6] (the Linear right after BN) and cast weights to bf16."""
    weights = [w for (w, _) in layers]
    biases = [b for (_, b) in layers]
    weights[6], biases[6] = fold_bn_into_next_linear(
        weights[6], biases[6],
        bn["gamma"], bn["beta"], bn["running_mean"], bn["running_var"])
    # TODO(synk): optional int8 (v5e/v6e) / fp8-e4m3 (v7x) weight quantization with
    #             per-output-channel scales would halve weight traffic again; kept bf16
    #             here for numerical fidelity to the f32 reference.
    weights = [w.astype(jnp.bfloat16) for w in weights]   # halve HBM weight traffic
    return weights, biases


# ----------------------------------------------------------------------------
# Forward pass (mirrors the nn.Sequential order; BN folded, Dropout = identity)
# ----------------------------------------------------------------------------
# TODO(synk): training-mode Dropout / BatchNorm batch-stat updates intentionally not
#             reproduced (eval semantics only).
def base_model_forward(x, weights, biases):
    return fused_mlp_forward(x, weights, biases, _ACTS)


if __name__ == "__main__":
    input_dim = 2     # hidden widths 8, 16, 32, ..., 2048; all weights fit VMEM
    output_dim = 16
    batch = 8         # small demo batch; throughput scales ~free up to M~128-256
                      # (the pass is weight-streaming bound) — larger M just works.

    key = jax.random.PRNGKey(0)
    k_params, k_x = jax.random.split(key)
    layers, bn = init_params(k_params, input_dim, output_dim)
    weights, biases = prepare_params(layers, bn)
    x = jax.random.normal(k_x, (batch, input_dim), jnp.float32)

    out = base_model_forward(x, weights, biases)
    out = jax.block_until_ready(out)

    assert out.shape == (batch, output_dim)
    assert bool(jnp.all(jnp.isfinite(out)))
    assert bool(jnp.all(out >= 0.0))   # Softplus output is non-negative
    print("KERNEL_OK")
</pallas_src>

<mosaic_0001>
module attributes {stable_mosaic.version = 11 : i64} {
  func.func @_fused_mlp_kernel(%arg0: i32, %arg1: memref<8x2xf32, #tpu.memory_space<vmem>>, %arg2: memref<2x8xbf16, #tpu.memory_space<vmem>>, %arg3: memref<8x16xbf16, #tpu.memory_space<vmem>>, %arg4: memref<16x32xbf16, #tpu.memory_space<vmem>>, %arg5: memref<32x64xbf16, #tpu.memory_space<vmem>>, %arg6: memref<64x128xbf16, #tpu.memory_space<vmem>>, %arg7: memref<128x256xbf16, #tpu.memory_space<vmem>>, %arg8: memref<256x512xbf16, #tpu.memory_space<vmem>>, %arg9: memref<512x1024xbf16, #tpu.memory_space<any>>, %arg10: memref<1024x2048xbf16, #tpu.memory_space<any>>, %arg11: memref<2048x16xbf16, #tpu.memory_space<vmem>>, %arg12: memref<1x8xf32, #tpu.memory_space<vmem>>, %arg13: memref<1x16xf32, #tpu.memory_space<vmem>>, %arg14: memref<1x32xf32, #tpu.memory_space<vmem>>, %arg15: memref<1x64xf32, #tpu.memory_space<vmem>>, %arg16: memref<1x128xf32, #tpu.memory_space<vmem>>, %arg17: memref<1x256xf32, #tpu.memory_space<vmem>>, %arg18: memref<1x512xf32, #tpu.memory_space<vmem>>, %arg19: memref<1x1024xf32, #tpu.memory_space<vmem>>, %arg20: memref<1x2048xf32, #tpu.memory_space<vmem>>, %arg21: memref<1x16xf32, #tpu.memory_space<vmem>>, %arg22: memref<8x16xf32, #tpu.memory_space<vmem>>, %arg23: memref<512x1024xbf16, #tpu.memory_space<vmem>>, %arg24: memref<1024x2048xbf16, #tpu.memory_space<vmem>>, %arg25: memref<2x!tpu.dma_semaphore, #tpu.memory_space<semaphore_mem>>) attributes {dimension_semantics = [#tpu.dimension_semantics<arbitrary>], iteration_bounds = array<i64: 1>, scalar_prefetch = 0 : i64, scratch_operands = 3 : i64, tpu.core_type = #tpu.core_type<tc>, window_params = [{transform_indices = @transform_0, window_bounds = array<i64: 8, 2>}, {pipeline_mode = #tpu.pipeline_mode<synchronous>, transform_indices = @transform_1, window_bounds = array<i64: 2, 8>}, {pipeline_mode = #tpu.pipeline_mode<synchronous>, transform_indices = @transform_2, window_bounds = array<i64: 8, 16>}, {pipeline_mode = #tpu.pipeline_mode<synchronous>, transform_indices = @transform_3, window_bounds = array<i64: 16, 32>}, {pipeline_mode = #tpu.pipeline_mode<synchronous>, transform_indices = @transform_4, window_bounds = array<i64: 32, 64>}, {pipeline_mode = #tpu.pipeline_mode<synchronous>, transform_indices = @transform_5, window_bounds = array<i64: 64, 128>}, {pipeline_mode = #tpu.pipeline_mode<synchronous>, transform_indices = @transform_6, window_bounds = array<i64: 128, 256>}, {pipeline_mode = #tpu.pipeline_mode<synchronous>, transform_indices = @transform_7, window_bounds = array<i64: 256, 512>}, {}, {}, {pipeline_mode = #tpu.pipeline_mode<synchronous>, transform_indices = @transform_10, window_bounds = array<i64: 2048, 16>}, {pipeline_mode = #tpu.pipeline_mode<synchronous>, transform_indices = @transform_11, window_bounds = array<i64: 1, 8>}, {pipeline_mode = #tpu.pipeline_mode<synchronous>, transform_indices = @transform_12, window_bounds = array<i64: 1, 16>}, {pipeline_mode = #tpu.pipeline_mode<synchronous>, transform_indices = @transform_13, window_bounds = array<i64: 1, 32>}, {pipeline_mode = #tpu.pipeline_mode<synchronous>, transform_indices = @transform_14, window_bounds = array<i64: 1, 64>}, {pipeline_mode = #tpu.pipeline_mode<synchronous>, transform_indices = @transform_15, window_bounds = array<i64: 1, 128>}, {pipeline_mode = #tpu.pipeline_mode<synchronous>, transform_indices = @transform_16, window_bounds = array<i64: 1, 256>}, {pipeline_mode = #tpu.pipeline_mode<synchronous>, transform_indices = @transform_17, window_bounds = array<i64: 1, 512>}, {pipeline_mode = #tpu.pipeline_mode<synchronous>, transform_indices = @transform_18, window_bounds = array<i64: 1, 1024>}, {pipeline_mode = #tpu.pipeline_mode<synchronous>, transform_indices = @transform_19, window_bounds = array<i64: 1, 2048>}, {pipeline_mode = #tpu.pipeline_mode<synchronous>, transform_indices = @transform_20, window_bounds = array<i64: 1, 16>}, {transform_indices = @transform_21, window_bounds = array<i64: 8, 16>}]} {
    %c0_i32 = arith.constant 0 : i32
    %0 = arith.cmpi eq, %arg0, %c0_i32 : i32
    %1 = arith.extui %0 : i1 to i32
    %c0_i32_0 = arith.constant 0 : i32
    %c1_i32 = arith.constant 1 : i32
    %c0_i32_1 = arith.constant 0 : i32
    %2 = arith.cmpi ne, %1, %c0_i32_1 : i32
    scf.if %2 {
      %103 = tpu.memref_slice %arg25[%c0_i32_0] : memref<2x!tpu.dma_semaphore, #tpu.memory_space<semaphore_mem>> -> memref<1x!tpu.dma_semaphore, #tpu.memory_space<semaphore_mem>>
      %104 = tpu.memref_squeeze %103 : memref<1x!tpu.dma_semaphore, #tpu.memory_space<semaphore_mem>> -> memref<!tpu.dma_semaphore, #tpu.memory_space<semaphore_mem>>
      tpu.enqueue_dma source(%arg9 : memref<512x1024xbf16, #tpu.memory_space<any>>) target(%arg23 : memref<512x1024xbf16, #tpu.memory_space<vmem>>) target_semaphore(%104 : memref<!tpu.dma_semaphore, #tpu.memory_space<semaphore_mem>>)
      %105 = tpu.memref_slice %arg25[%c1_i32] : memref<2x!tpu.dma_semaphore, #tpu.memory_space<semaphore_mem>> -> memref<1x!tpu.dma_semaphore, #tpu.memory_space<semaphore_mem>>
      %106 = tpu.memref_squeeze %105 : memref<1x!tpu.dma_semaphore, #tpu.memory_space<semaphore_mem>> -> memref<!tpu.dma_semaphore, #tpu.memory_space<semaphore_mem>>
      tpu.enqueue_dma source(%arg10 : memref<1024x2048xbf16, #tpu.memory_space<any>>) target(%arg24 : memref<1024x2048xbf16, #tpu.memory_space<vmem>>) target_semaphore(%106 : memref<!tpu.dma_semaphore, #tpu.memory_space<semaphore_mem>>)
    } else {
    }
    %c0 = arith.constant 0 : index
    %c0_2 = arith.constant 0 : index
    %3 = vector.load %arg1[%c0, %c0_2] : memref<8x2xf32, #tpu.memory_space<vmem>>, vector<8x2xf32>
    %c0_3 = arith.constant 0 : index
    %c0_4 = arith.constant 0 : index
    %4 = vector.load %arg2[%c0_3, %c0_4] : memref<2x8xbf16, #tpu.memory_space<vmem>>, vector<2x8xbf16>
    %5 = arith.truncf %3 : vector<8x2xf32> to vector<8x2xbf16>
    %cst = arith.constant dense<0.000000e+00> : vector<8x8xf32>
    %6 = tpu.matmul %5, %4, %cst {dimension_numbers = #tpu.dot_dimension_numbers<[1], [0], [0], [1], [0, 0, 1, 1], [], []>} : vector<8x2xbf16>, vector<2x8xbf16>, vector<8x8xf32> -> vector<8x8xf32>
    %c0_5 = arith.constant 0 : index
    %c0_6 = arith.constant 0 : index
    %7 = vector.load %arg12[%c0_5, %c0_6] : memref<1x8xf32, #tpu.memory_space<vmem>>, vector<1x8xf32>
    %8 = vector.broadcast %7 : vector<1x8xf32> to vector<8x8xf32>
    %9 = arith.addf %6, %8 : vector<8x8xf32>
    %10 = math.tanh %9 : vector<8x8xf32>
    %c0_7 = arith.constant 0 : index
    %c0_8 = arith.constant 0 : index
    %11 = vector.load %arg3[%c0_7, %c0_8] : memref<8x16xbf16, #tpu.memory_space<vmem>>, vector<8x16xbf16>
    %12 = arith.truncf %10 : vector<8x8xf32> to vector<8x8xbf16>
    %cst_9 = arith.constant dense<0.000000e+00> : vector<8x16xf32>
    %13 = tpu.matmul %12, %11, %cst_9 {dimension_numbers = #tpu.dot_dimension_numbers<[1], [0], [0], [1], [0, 0, 1, 1], [], []>} : vector<8x8xbf16>, vector<8x16xbf16>, vector<8x16xf32> -> vector<8x16xf32>
    %c0_10 = arith.constant 0 : index
    %c0_11 = arith.constant 0 : index
    %14 = vector.load %arg13[%c0_10, %c0_11] : memref<1x16xf32, #tpu.memory_space<vmem>>, vector<1x16xf32>
    %15 = vector.broadcast %14 : vector<1x16xf32> to vector<8x16xf32>
    %16 = arith.addf %13, %15 : vector<8x16xf32>
    %cst_12 = arith.constant 0.00999999977 : f32
    %17 = vector.broadcast %cst_12 : f32 to vector<8x16xf32>
    %18 = arith.mulf %17, %16 : vector<8x16xf32>
    %19 = arith.maximumf %16, %18 : vector<8x16xf32>
    %c0_13 = arith.constant 0 : index
    %c0_14 = arith.constant 0 : index
    %20 = vector.load %arg4[%c0_13, %c0_14] : memref<16x32xbf16, #tpu.memory_space<vmem>>, vector<16x32xbf16>
    %21 = arith.truncf %19 : vector<8x16xf32> to vector<8x16xbf16>
    %cst_15 = arith.constant dense<0.000000e+00> : vector<8x32xf32>
    %22 = tpu.matmul %21, %20, %cst_15 {dimension_numbers = #tpu.dot_dimension_numbers<[1], [0], [0], [1], [0, 0, 1, 1], [], []>} : vector<8x16xbf16>, vector<16x32xbf16>, vector<8x32xf32> -> vector<8x32xf32>
    %c0_16 = arith.constant 0 : index
    %c0_17 = arith.constant 0 : index
    %23 = vector.load %arg14[%c0_16, %c0_17] : memref<1x32xf32, #tpu.memory_space<vmem>>, vector<1x32xf32>
    %24 = vector.broadcast %23 : vector<1x32xf32> to vector<8x32xf32>
    %25 = arith.addf %22, %24 : vector<8x32xf32>
    %cst_18 = arith.constant 0.00999999977 : f32
    %26 = vector.broadcast %cst_18 : f32 to vector<8x32xf32>
    %27 = arith.mulf %26, %25 : vector<8x32xf32>
    %28 = arith.maximumf %25, %27 : vector<8x32xf32>
    %c0_19 = arith.constant 0 : index
    %c0_20 = arith.constant 0 : index
    %29 = vector.load %arg5[%c0_19, %c0_20] : memref<32x64xbf16, #tpu.memory_space<vmem>>, vector<32x64xbf16>
    %30 = arith.truncf %28 : vector<8x32xf32> to vector<8x32xbf16>
    %cst_21 = arith.constant dense<0.000000e+00> : vector<8x64xf32>
    %31 = tpu.matmul %30, %29, %cst_21 {dimension_numbers = #tpu.dot_dimension_numbers<[1], [0], [0], [1], [0, 0, 1, 1], [], []>} : vector<8x32xbf16>, vector<32x64xbf16>, vector<8x64xf32> -> vector<8x64xf32>
    %c0_22 = arith.constant 0 : index
    %c0_23 = arith.constant 0 : index
    %32 = vector.load %arg15[%c0_22, %c0_23] : memref<1x64xf32, #tpu.memory_space<vmem>>, vector<1x64xf32>
    %33 = vector.broadcast %32 : vector<1x64xf32> to vector<8x64xf32>
    %34 = arith.addf %31, %33 : vector<8x64xf32>
    %cst_24 = arith.constant 0.00999999977 : f32
    %35 = vector.broadcast %cst_24 : f32 to vector<8x64xf32>
    %36 = arith.mulf %35, %34 : vector<8x64xf32>
    %37 = arith.maximumf %34, %36 : vector<8x64xf32>
    %c0_25 = arith.constant 0 : index
    %c0_26 = arith.constant 0 : index
    %38 = vector.load %arg6[%c0_25, %c0_26] : memref<64x128xbf16, #tpu.memory_space<vmem>>, vector<64x128xbf16>
    %39 = arith.truncf %37 : vector<8x64xf32> to vector<8x64xbf16>
    %cst_27 = arith.constant dense<0.000000e+00> : vector<8x128xf32>
    %40 = tpu.matmul %39, %38, %cst_27 {dimension_numbers = #tpu.dot_dimension_numbers<[1], [0], [0], [1], [0, 0, 1, 1], [], []>} : vector<8x64xbf16>, vector<64x128xbf16>, vector<8x128xf32> -> vector<8x128xf32>
    %c0_28 = arith.constant 0 : index
    %c0_29 = arith.constant 0 : index
    %41 = vector.load %arg16[%c0_28, %c0_29] : memref<1x128xf32, #tpu.memory_space<vmem>>, vector<1x128xf32>
    %42 = vector.broadcast %41 : vector<1x128xf32> to vector<8x128xf32>
    %43 = arith.addf %40, %42 : vector<8x128xf32>
    %cst_30 = arith.constant 0.00999999977 : f32
    %44 = vector.broadcast %cst_30 : f32 to vector<8x128xf32>
    %45 = arith.mulf %44, %43 : vector<8x128xf32>
    %46 = arith.maximumf %43, %45 : vector<8x128xf32>
    %c0_31 = arith.constant 0 : index
    %c0_32 = arith.constant 0 : index
    %47 = vector.load %arg7[%c0_31, %c0_32] : memref<128x256xbf16, #tpu.memory_space<vmem>>, vector<128x256xbf16>
    %48 = arith.truncf %46 : vector<8x128xf32> to vector<8x128xbf16>
    %cst_33 = arith.constant dense<0.000000e+00> : vector<8x256xf32>
    %49 = tpu.matmul %48, %47, %cst_33 {dimension_numbers = #tpu.dot_dimension_numbers<[1], [0], [0], [1], [0, 0, 1, 1], [], []>} : vector<8x128xbf16>, vector<128x256xbf16>, vector<8x256xf32> -> vector<8x256xf32>
    %c0_34 = arith.constant 0 : index
    %c0_35 = arith.constant 0 : index
    %50 = vector.load %arg17[%c0_34, %c0_35] : memref<1x256xf32, #tpu.memory_space<vmem>>, vector<1x256xf32>
    %51 = vector.broadcast %50 : vector<1x256xf32> to vector<8x256xf32>
    %52 = arith.addf %49, %51 : vector<8x256xf32>
    %cst_36 = arith.constant 0.00999999977 : f32
    %53 = vector.broadcast %cst_36 : f32 to vector<8x256xf32>
    %54 = arith.mulf %53, %52 : vector<8x256xf32>
    %55 = arith.maximumf %52, %54 : vector<8x256xf32>
    %c0_37 = arith.constant 0 : index
    %c0_38 = arith.constant 0 : index
    %56 = vector.load %arg8[%c0_37, %c0_38] : memref<256x512xbf16, #tpu.memory_space<vmem>>, vector<256x512xbf16>
    %57 = arith.truncf %55 : vector<8x256xf32> to vector<8x256xbf16>
    %cst_39 = arith.constant dense<0.000000e+00> : vector<8x512xf32>
    %58 = tpu.matmul %57, %56, %cst_39 {dimension_numbers = #tpu.dot_dimension_numbers<[1], [0], [0], [1], [0, 0, 1, 1], [], []>} : vector<8x256xbf16>, vector<256x512xbf16>, vector<8x512xf32> -> vector<8x512xf32>
    %c0_40 = arith.constant 0 : index
    %c0_41 = arith.constant 0 : index
    %59 = vector.load %arg18[%c0_40, %c0_41] : memref<1x512xf32, #tpu.memory_space<vmem>>, vector<1x512xf32>
    %60 = vector.broadcast %59 : vector<1x512xf32> to vector<8x512xf32>
    %61 = arith.addf %58, %60 : vector<8x512xf32>
    %cst_42 = arith.constant 0.00999999977 : f32
    %62 = vector.broadcast %cst_42 : f32 to vector<8x512xf32>
    %63 = arith.mulf %62, %61 : vector<8x512xf32>
    %64 = arith.maximumf %61, %63 : vector<8x512xf32>
    %c0_i32_43 = arith.constant 0 : i32
    %65 = arith.cmpi eq, %arg0, %c0_i32_43 : i32
    %66 = arith.extui %65 : i1 to i32
    %c0_i32_44 = arith.constant 0 : i32
    %c0_i32_45 = arith.constant 0 : i32
    %67 = arith.cmpi ne, %66, %c0_i32_45 : i32
    scf.if %67 {
      %103 = tpu.memref_slice %arg25[%c0_i32_44] : memref<2x!tpu.dma_semaphore, #tpu.memory_space<semaphore_mem>> -> memref<1x!tpu.dma_semaphore, #tpu.memory_space<semaphore_mem>>
      %104 = tpu.memref_squeeze %103 : memref<1x!tpu.dma_semaphore, #tpu.memory_space<semaphore_mem>> -> memref<!tpu.dma_semaphore, #tpu.memory_space<semaphore_mem>>
      tpu.wait_dma2 semaphore(%104 : memref<!tpu.dma_semaphore, #tpu.memory_space<semaphore_mem>>) src(%arg9 : memref<512x1024xbf16, #tpu.memory_space<any>>) dst(%arg23 : memref<512x1024xbf16, #tpu.memory_space<vmem>>)
    } else {
    }
    %c0_46 = arith.constant 0 : index
    %c0_47 = arith.constant 0 : index
    %68 = vector.load %arg23[%c0_46, %c0_47] : memref<512x1024xbf16, #tpu.memory_space<vmem>>, vector<512x1024xbf16>
    %69 = arith.truncf %64 : vector<8x512xf32> to vector<8x512xbf16>
    %cst_48 = arith.constant dense<0.000000e+00> : vector<8x1024xf32>
    %70 = tpu.matmul %69, %68, %cst_48 {dimension_numbers = #tpu.dot_dimension_numbers<[1], [0], [0], [1], [0, 0, 1, 1], [], []>} : vector<8x512xbf16>, vector<512x1024xbf16>, vector<8x1024xf32> -> vector<8x1024xf32>
    %c0_49 = arith.constant 0 : index
    %c0_50 = arith.constant 0 : index
    %71 = vector.load %arg19[%c0_49, %c0_50] : memref<1x1024xf32, #tpu.memory_space<vmem>>, vector<1x1024xf32>
    %72 = vector.broadcast %71 : vector<1x1024xf32> to vector<8x1024xf32>
    %73 = arith.addf %70, %72 : vector<8x1024xf32>
    %cst_51 = arith.constant 0.00999999977 : f32
    %74 = vector.broadcast %cst_51 : f32 to vector<8x1024xf32>
    %75 = arith.mulf %74, %73 : vector<8x1024xf32>
    %76 = arith.maximumf %73, %75 : vector<8x1024xf32>
    %c0_i32_52 = arith.constant 0 : i32
    %77 = arith.cmpi eq, %arg0, %c0_i32_52 : i32
    %78 = arith.extui %77 : i1 to i32
    %c1_i32_53 = arith.constant 1 : i32
    %c0_i32_54 = arith.constant 0 : i32
    %79 = arith.cmpi ne, %78, %c0_i32_54 : i32
    scf.if %79 {
      %103 = tpu.memref_slice %arg25[%c1_i32_53] : memref<2x!tpu.dma_semaphore, #tpu.memory_space<semaphore_mem>> -> memref<1x!tpu.dma_semaphore, #tpu.memory_space<semaphore_mem>>
      %104 = tpu.memref_squeeze %103 : memref<1x!tpu.dma_semaphore, #tpu.memory_space<semaphore_mem>> -> memref<!tpu.dma_semaphore, #tpu.memory_space<semaphore_mem>>
      tpu.wait_dma2 semaphore(%104 : memref<!tpu.dma_semaphore, #tpu.memory_space<semaphore_mem>>) src(%arg10 : memref<1024x2048xbf16, #tpu.memory_space<any>>) dst(%arg24 : memref<1024x2048xbf16, #tpu.memory_space<vmem>>)
    } else {
    }
    %c0_55 = arith.constant 0 : index
    %c0_56 = arith.constant 0 : index
    %80 = vector.load %arg24[%c0_55, %c0_56] : memref<1024x2048xbf16, #tpu.memory_space<vmem>>, vector<1024x2048xbf16>
    %81 = arith.truncf %76 : vector<8x1024xf32> to vector<8x1024xbf16>
    %cst_57 = arith.constant dense<0.000000e+00> : vector<8x2048xf32>
    %82 = tpu.matmul %81, %80, %cst_57 {dimension_numbers = #tpu.dot_dimension_numbers<[1], [0], [0], [1], [0, 0, 1, 1], [], []>} : vector<8x1024xbf16>, vector<1024x2048xbf16>, vector<8x2048xf32> -> vector<8x2048xf32>
    %c0_58 = arith.constant 0 : index
    %c0_59 = arith.constant 0 : index
    %83 = vector.load %arg20[%c0_58, %c0_59] : memref<1x2048xf32, #tpu.memory_space<vmem>>, vector<1x2048xf32>
    %84 = vector.broadcast %83 : vector<1x2048xf32> to vector<8x2048xf32>
    %85 = arith.addf %82, %84 : vector<8x2048xf32>
    %cst_60 = arith.constant 0.00999999977 : f32
    %86 = vector.broadcast %cst_60 : f32 to vector<8x2048xf32>
    %87 = arith.mulf %86, %85 : vector<8x2048xf32>
    %88 = arith.maximumf %85, %87 : vector<8x2048xf32>
    %c0_61 = arith.constant 0 : index
    %c0_62 = arith.constant 0 : index
    %89 = vector.load %arg11[%c0_61, %c0_62] : memref<2048x16xbf16, #tpu.memory_space<vmem>>, vector<2048x16xbf16>
    %90 = arith.truncf %88 : vector<8x2048xf32> to vector<8x2048xbf16>
    %cst_63 = arith.constant dense<0.000000e+00> : vector<8x16xf32>
    %91 = tpu.matmul %90, %89, %cst_63 {dimension_numbers = #tpu.dot_dimension_numbers<[1], [0], [0], [1], [0, 0, 1, 1], [], []>} : vector<8x2048xbf16>, vector<2048x16xbf16>, vector<8x16xf32> -> vector<8x16xf32>
    %c0_64 = arith.constant 0 : index
    %c0_65 = arith.constant 0 : index
    %92 = vector.load %arg21[%c0_64, %c0_65] : memref<1x16xf32, #tpu.memory_space<vmem>>, vector<1x16xf32>
    %93 = vector.broadcast %92 : vector<1x16xf32> to vector<8x16xf32>
    %94 = arith.addf %91, %93 : vector<8x16xf32>
    %cst_66 = arith.constant 2.000000e+01 : f32
    %95 = vector.broadcast %cst_66 : f32 to vector<8x16xf32>
    %96 = arith.cmpf ogt, %94, %95 : vector<8x16xf32>
    %cst_67 = arith.constant 2.000000e+01 : f32
    %97 = vector.broadcast %cst_67 : f32 to vector<8x16xf32>
    %98 = arith.minimumf %94, %97 : vector<8x16xf32>
    %99 = math.exp %98 : vector<8x16xf32>
    %100 = math.log1p %99 : vector<8x16xf32>
    %101 = arith.select %96, %94, %100 : vector<8x16xi1>, vector<8x16xf32>
    %c0_68 = arith.constant 0 : index
    %c0_69 = arith.constant 0 : index
    %102 = vector.load %arg22[%c0_68, %c0_69] : memref<8x16xf32, #tpu.memory_space<vmem>>, vector<8x16xf32>
    tpu.vector_store %arg22[%c0_68, %c0_69], %101 {strides = array<i32>} : memref<8x16xf32, #tpu.memory_space<vmem>>, vector<8x16xf32>,
    return
  }
  func.func @transform_0(%arg0: i32) -> (i32, i32) {
    %c0_i32 = arith.constant 0 : i32
    %c0_i32_0 = arith.constant 0 : i32
    return %arg0, %c0_i32 : i32, i32
  }
  func.func @transform_1(%arg0: i32) -> (i32, i32) {
    %c0_i32 = arith.constant 0 : i32
    %c0_i32_0 = arith.constant 0 : i32
    %c0_i32_1 = arith.constant 0 : i32
    return %c0_i32, %c0_i32_0 : i32, i32
  }
  func.func @transform_2(%arg0: i32) -> (i32, i32) {
    %c0_i32 = arith.constant 0 : i32
    %c0_i32_0 = arith.constant 0 : i32
    %c0_i32_1 = arith.constant 0 : i32
    return %c0_i32, %c0_i32_0 : i32, i32
  }
  func.func @transform_3(%arg0: i32) -> (i32, i32) {
    %c0_i32 = arith.constant 0 : i32
    %c0_i32_0 = arith.constant 0 : i32
    %c0_i32_1 = arith.constant 0 : i32
    return %c0_i32, %c0_i32_0 : i32, i32
  }
  func.func @transform_4(%arg0: i32) -> (i32, i32) {
    %c0_i32 = arith.constant 0 : i32
    %c0_i32_0 = arith.constant 0 : i32
    %c0_i32_1 = arith.constant 0 : i32
    return %c0_i32, %c0_i32_0 : i32, i32
  }
  func.func @transform_5(%arg0: i32) -> (i32, i32) {
    %c0_i32 = arith.constant 0 : i32
    %c0_i32_0 = arith.constant 0 : i32
    %c0_i32_1 = arith.constant 0 : i32
    return %c0_i32, %c0_i32_0 : i32, i32
  }
  func.func @transform_6(%arg0: i32) -> (i32, i32) {
    %c0_i32 = arith.constant 0 : i32
    %c0_i32_0 = arith.constant 0 : i32
    %c0_i32_1 = arith.constant 0 : i32
    return %c0_i32, %c0_i32_0 : i32, i32
  }
  func.func @transform_7(%arg0: i32) -> (i32, i32) {
    %c0_i32 = arith.constant 0 : i32
    %c0_i32_0 = arith.constant 0 : i32
    %c0_i32_1 = arith.constant 0 : i32
    return %c0_i32, %c0_i32_0 : i32, i32
  }
  func.func @transform_10(%arg0: i32) -> (i32, i32) {
    %c0_i32 = arith.constant 0 : i32
    %c0_i32_0 = arith.constant 0 : i32
    %c0_i32_1 = arith.constant 0 : i32
    return %c0_i32, %c0_i32_0 : i32, i32
  }
  func.func @transform_11(%arg0: i32) -> (i32, i32) {
    %c0_i32 = arith.constant 0 : i32
    %c0_i32_0 = arith.constant 0 : i32
    %c0_i32_1 = arith.constant 0 : i32
    return %c0_i32, %c0_i32_0 : i32, i32
  }
  func.func @transform_12(%arg0: i32) -> (i32, i32) {
    %c0_i32 = arith.constant 0 : i32
    %c0_i32_0 = arith.constant 0 : i32
    %c0_i32_1 = arith.constant 0 : i32
    return %c0_i32, %c0_i32_0 : i32, i32
  }
  func.func @transform_13(%arg0: i32) -> (i32, i32) {
    %c0_i32 = arith.constant 0 : i32
    %c0_i32_0 = arith.constant 0 : i32
    %c0_i32_1 = arith.constant 0 : i32
    return %c0_i32, %c0_i32_0 : i32, i32
  }
  func.func @transform_14(%arg0: i32) -> (i32, i32) {
    %c0_i32 = arith.constant 0 : i32
    %c0_i32_0 = arith.constant 0 : i32
    %c0_i32_1 = arith.constant 0 : i32
    return %c0_i32, %c0_i32_0 : i32, i32
  }
  func.func @transform_15(%arg0: i32) -> (i32, i32) {
    %c0_i32 = arith.constant 0 : i32
    %c0_i32_0 = arith.constant 0 : i32
    %c0_i32_1 = arith.constant 0 : i32
    return %c0_i32, %c0_i32_0 : i32, i32
  }
  func.func @transform_16(%arg0: i32) -> (i32, i32) {
    %c0_i32 = arith.constant 0 : i32
    %c0_i32_0 = arith.constant 0 : i32
    %c0_i32_1 = arith.constant 0 : i32
    return %c0_i32, %c0_i32_0 : i32, i32
  }
  func.func @transform_17(%arg0: i32) -> (i32, i32) {
    %c0_i32 = arith.constant 0 : i32
    %c0_i32_0 = arith.constant 0 : i32
    %c0_i32_1 = arith.constant 0 : i32
    return %c0_i32, %c0_i32_0 : i32, i32
  }
  func.func @transform_18(%arg0: i32) -> (i32, i32) {
    %c0_i32 = arith.constant 0 : i32
    %c0_i32_0 = arith.constant 0 : i32
    %c0_i32_1 = arith.constant 0 : i32
    return %c0_i32, %c0_i32_0 : i32, i32
  }
  func.func @transform_19(%arg0: i32) -> (i32, i32) {
    %c0_i32 = arith.constant 0 : i32
    %c0_i32_0 = arith.constant 0 : i32
    %c0_i32_1 = arith.constant 0 : i32
    return %c0_i32, %c0_i32_0 : i32, i32
  }
  func.func @transform_20(%arg0: i32) -> (i32, i32) {
    %c0_i32 = arith.constant 0 : i32
    %c0_i32_0 = arith.constant 0 : i32
    %c0_i32_1 = arith.constant 0 : i32
    return %c0_i32, %c0_i32_0 : i32, i32
  }
  func.func @transform_21(%arg0: i32) -> (i32, i32) {
    %c0_i32 = arith.constant 0 : i32
    %c0_i32_0 = arith.constant 0 : i32
    return %arg0, %c0_i32 : i32, i32
  }
}

</mosaic_0001>

<llo_original>
// kernel: tpu_custom_call.1
$region0: #{tpu_custom_call.1}
  #allocation0 [shape = 'u32[]', space=smem, size = 0x4, offset = 0x4, fixed_abs, tag = 'smem constant byte address 0x4 - core index']
  #allocation1 [shape = 'u32[72,128]{1,0:T(1,128)}', space=vmem, size = 0x9000, scoped, tag = 'internal scratch']
  #allocation2 [shape = 'bf16[512,1024]{1,0:T(8,128)(2,1)}', space=vmem, size = 0x100000, scoped, tag = 'scratch operand']
  #allocation3 [shape = 'bf16[1024,2048]{1,0:T(8,128)(2,1)}', space=vmem, size = 0x400000, scoped, tag = 'scratch operand']
  #allocation4 [shape = 's32[2]{0}', space=sflag, size = 0x8, scoped, tag = 'scratch operand']
  #allocation33 [shape = 's32[]', space=sflag, size = 0x4, offset = 0, fixed_abs, tag = 'sflag constant byte address 0x0 - dummy sync flag']
  #allocation34 [shape = 's32[]', space=sflag, size = 0x4, offset = 0, fixed_abs, tag = 'sflag constant byte address 0x0 - dummy sync flag']
  #allocation35 [shape = 'u32[]', space=smem, size = 0x4, offset = 0x44, fixed_abs, tag = 'smem constant byte address 0x44 - assertion arg 0']
  #allocation36 [shape = 'u32[]', space=smem, size = 0x4, offset = 0x48, fixed_abs, tag = 'smem constant byte address 0x48 - assertion arg 1']
  #allocation37 [shape = 's32[]', space=sflag, size = 0x4, offset = 0, fixed_abs, tag = 'sflag constant byte address 0x0 - dummy sync flag']
  #allocation38 [shape = 's32[]', space=sflag, size = 0x4, offset = 0, fixed_abs, tag = 'sflag constant byte address 0x0 - dummy sync flag']
  %s0 = inlined_call_operand.vmem [shape: f32[8,2], index: 0, kind: input, shape index: {}]
  %s1 = inlined_call_operand.hbm [shape: bf16[2,8], index: 1, kind: input, shape index: {}]
  %s2 = inlined_call_operand.hbm [shape: bf16[8,16], index: 2, kind: input, shape index: {}]
  %s3 = inlined_call_operand.hbm [shape: bf16[16,32], index: 3, kind: input, shape index: {}]
  %s4 = inlined_call_operand.hbm [shape: bf16[32,64], index: 4, kind: input, shape index: {}]
  %s5 = inlined_call_operand.hbm [shape: bf16[64,128], index: 5, kind: input, shape index: {}]
  %s6 = inlined_call_operand.hbm [shape: bf16[128,256], index: 6, kind: input, shape index: {}]
  %s7 = inlined_call_operand.hbm [shape: bf16[256,512], index: 7, kind: input, shape index: {}]
  %s8 = inlined_call_operand.hbm [shape: bf16[512,1024], index: 8, kind: input, shape index: {}]
  %s9 = inlined_call_operand.hbm [shape: bf16[1024,2048], index: 9, kind: input, shape index: {}]
  %s10 = inlined_call_operand.vmem [shape: bf16[2048,16], index: 10, kind: input, shape index: {}]
  %s11 = inlined_call_operand.hbm [shape: f32[1,8], index: 11, kind: input, shape index: {}]
  %s12 = inlined_call_operand.hbm [shape: f32[1,16], index: 12, kind: input, shape index: {}]
  %s13 = inlined_call_operand.hbm [shape: f32[1,32], index: 13, kind: input, shape index: {}]
  %s14 = inlined_call_operand.hbm [shape: f32[1,64], index: 14, kind: input, shape index: {}]
  %s15 = inlined_call_operand.hbm [shape: f32[1,128], index: 15, kind: input, shape index: {}]
  %s16 = inlined_call_operand.hbm [shape: f32[1,256], index: 16, kind: input, shape index: {}]
  %s17 = inlined_call_operand.hbm [shape: f32[1,512], index: 17, kind: input, shape index: {}]
  %s18 = inlined_call_operand.hbm [shape: f32[1,1024], index: 18, kind: input, shape index: {}]
  %s19 = inlined_call_operand.hbm [shape: f32[1,2048], index: 19, kind: input, shape index: {}]
  %s20 = inlined_call_operand.hbm [shape: f32[1,16], index: 20, kind: input, shape index: {}]
  %s21 = inlined_call_operand.hbm [shape: f32[8,16], index: 21, kind: output, shape index: {}]
  %s22 = sld [smem:[#allocation0]]
  $region174: #{tpu_custom_call.1} parent=0
    _
  %s24 = ssub.s32 1, %s22
  %s25 = scalar_select 0, %s24, %s22
  $region1: #{tpu_custom_call.1} parent=0
    #allocation5 [shape = 'u8[512]{0}', space=vmem, size = 0x400, scoped, tag = 'input window, operand 1, single buffered']
    #allocation6 [shape = 's32[1]{0}', space=sflag, size = 0x4, scoped, tag = 'scoped memory for tpu_custom_call.1']
    #allocation7 [shape = 's32[1]{0}', space=sflag, size = 0x4, scoped, tag = 'scoped memory for tpu_custom_call.1']
    #allocation8 [shape = 'u8[2048]{0}', space=vmem, size = 0x800, scoped, tag = 'input window, operand 2, single buffered']
    #allocation9 [shape = 's32[1]{0}', space=sflag, size = 0x4, scoped, tag = 'scoped memory for tpu_custom_call.1']
    #allocation10 [shape = 'u8[4096]{0}', space=vmem, size = 0x1000, scoped, tag = 'input window, operand 3, single buffered']
    #allocation11 [shape = 'u8[8192]{0}', space=vmem, size = 0x2000, scoped, tag = 'input window, operand 4, single buffered']
    #allocation12 [shape = 's32[1]{0}', space=sflag, size = 0x4, scoped, tag = 'scoped memory for tpu_custom_call.1']
    #allocation13 [shape = 'u8[16384]{0}', space=vmem, size = 0x4000, scoped, tag = 'input window, operand 5, single buffered']
    #allocation14 [shape = 'u8[65536]{0}', space=vmem, size = 0x10000, scoped, tag = 'input window, operand 6, single buffered']
    #allocation15 [shape = 's32[1]{0}', space=sflag, size = 0x4, scoped, tag = 'scoped memory for tpu_custom_call.1']
    #allocation16 [shape = 'u8[262144]{0}', space=vmem, size = 0x40000, scoped, tag = 'input window, operand 7, single buffered']
    #allocation17 [shape = 'u8[512]{0}', space=vmem, size = 0x400, scoped, tag = 'input window, operand 11, single buffered']
    #allocation18 [shape = 's32[1]{0}', space=sflag, size = 0x4, scoped, tag = 'scoped memory for tpu_custom_call.1']
    #allocation19 [shape = 'u8[512]{0}', space=vmem, size = 0x400, scoped, tag = 'input window, operand 12, single buffered']
    #allocation20 [shape = 'u8[512]{0}', space=vmem, size = 0x400, scoped, tag = 'input window, operand 13, single buffered']
    #allocation21 [shape = 's32[1]{0}', space=sflag, size = 0x4, scoped, tag = 'scoped memory for tpu_custom_call.1']
    #allocation22 [shape = 'u8[512]{0}', space=vmem, size = 0x400, scoped, tag = 'input window, operand 14, single buffered']
    #allocation23 [shape = 'u8[512]{0}', space=vmem, size = 0x400, scoped, tag = 'input window, operand 15, single buffered']
    #allocation24 [shape = 's32[1]{0}', space=sflag, size = 0x4, scoped, tag = 'scoped memory for tpu_custom_call.1']
    #allocation25 [shape = 'u8[1024]{0}', space=vmem, size = 0x400, scoped, tag = 'input window, operand 16, single buffered']
    #allocation26 [shape = 'u8[2048]{0}', space=vmem, size = 0x800, scoped, tag = 'input window, operand 17, single buffered']
    #allocation27 [shape = 's32[1]{0}', space=sflag, size = 0x4, scoped, tag = 'scoped memory for tpu_custom_call.1']
    #allocation28 [shape = 'u8[4096]{0}', space=vmem, size = 0x1000, scoped, tag = 'input window, operand 18, single buffered']
    #allocation29 [shape = 'u8[8192]{0}', space=vmem, size = 0x2000, scoped, tag = 'input window, operand 19, single buffered']
    #allocation30 [shape = 's32[1]{0}', space=sflag, size = 0x4, scoped, tag = 'scoped memory for tpu_custom_call.1']
    #allocation31 [shape = 'u8[512]{0}', space=vmem, size = 0x400, scoped, tag = 'input window, operand 20, single buffered']
    #allocation32 [shape = 'u8[4096]{0}', space=vmem, size = 0x1000, scoped, tag = 'output window, operand 0, single buffered']
    %26 = vsyncpa [#allocation6], 0
    %27 = vsyncpa [#allocation9], 0
    %28 = vsyncpa [#allocation12], 0
    %29 = vsyncpa [#allocation15], 0
    %30 = vsyncpa [#allocation18], 0
    %31 = vsyncpa [#allocation21], 0
    %32 = vsyncpa [#allocation24], 0
    %33 = vsyncpa [#allocation27], 0
    %34 = vsyncpa [#allocation30], 0
    %35 = vsyncpa [#allocation7], 0
    // Predicated region
    $region2: #{tpu_custom_call.1} parent=1 // pred_check
      _
    $region3: #{tpu_custom_call.1} parent=1 // pred_check_branch
      %37 = sbr.rel (0) target = $region5
    $region4: #{tpu_custom_call.1} parent=1 // pred_region
      _
    $region5: #{tpu_custom_call.1} parent=1 // pred_fallthru
      _
    // Predicated region
    $region6: #{tpu_custom_call.1} parent=1 // pred_check
      _
    $region7: #{tpu_custom_call.1} parent=1 // pred_check_branch
      %39 = sbr.rel (0) target = $region9
    $region8: #{tpu_custom_call.1} parent=1 // pred_region
      %41 = vsyncadd [#allocation6], 0
      %s43 = sshll.u32 %s1, 4
      %s44 = int_to_ptr.hbm [resolvable:$true] %s43
      %s45 = sshll.u32 [#allocation5], 4
      %s46 = int_to_ptr.vmem [resolvable:$true] %s45
      %48 = dma.hbm_to_vmem [thread:$0]  %s44, 16, %s46, [#allocation6]
    $region9: #{tpu_custom_call.1} parent=1 // pred_fallthru
      _
    // Predicated region
    $region10: #{tpu_custom_call.1} parent=1 // pred_check
      _
    $region11: #{tpu_custom_call.1} parent=1 // pred_check_branch
      %50 = sbr.rel (0) target = $region13
    $region12: #{tpu_custom_call.1} parent=1 // pred_region
      %52 = vsyncadd [#allocation9], 0
      %s54 = sshll.u32 %s2, 4
      %s55 = int_to_ptr.hbm [resolvable:$true] %s54
      %s56 = sshll.u32 [#allocation8], 4
      %s57 = int_to_ptr.vmem [resolvable:$true] %s56
      %59 = dma.hbm_to_vmem [thread:$0]  %s55, 64, %s57, [#allocation9]
    $region13: #{tpu_custom_call.1} parent=1 // pred_fallthru
      _
    // Predicated region
    $region14: #{tpu_custom_call.1} parent=1 // pred_check
      _
    $region15: #{tpu_custom_call.1} parent=1 // pred_check_branch
      %61 = sbr.rel (0) target = $region17
    $region16: #{tpu_custom_call.1} parent=1 // pred_region
      %63 = vsyncadd [#allocation9], 0
      %s64 = sshll.u32 %s3, 4
      %s65 = int_to_ptr.hbm [resolvable:$true] %s64
      %s66 = sshll.u32 [#allocation10], 4
      %s67 = int_to_ptr.vmem [resolvable:$true] %s66
      %72 = dma.hbm_to_vmem [thread:$0]  %s65, 128, %s67, [#allocation9], 64, 64, 4
    $region17: #{tpu_custom_call.1} parent=1 // pred_fallthru
      _
    // Predicated region
    $region18: #{tpu_custom_call.1} parent=1 // pred_check
      _
    $region19: #{tpu_custom_call.1} parent=1 // pred_check_branch
      %74 = sbr.rel (0) target = $region21
    $region20: #{tpu_custom_call.1} parent=1 // pred_region
      %76 = vsyncadd [#allocation12], 0
      %s77 = sshll.u32 %s4, 4
      %s78 = int_to_ptr.hbm [resolvable:$true] %s77
      %s79 = sshll.u32 [#allocation11], 4
      %s80 = int_to_ptr.vmem [resolvable:$true] %s79
      %85 = dma.hbm_to_vmem [thread:$0]  %s78, 256, %s80, [#allocation12], 64, 64, 4
    $region21: #{tpu_custom_call.1} parent=1 // pred_fallthru
      _
    // Predicated region
    $region22: #{tpu_custom_call.1} parent=1 // pred_check
      _
    $region23: #{tpu_custom_call.1} parent=1 // pred_check_branch
      %87 = sbr.rel (0) target = $region25
    $region24: #{tpu_custom_call.1} parent=1 // pred_region
      %89 = vsyncadd [#allocation12], 0
      %s90 = sshll.u32 %s5, 4
      %s91 = int_to_ptr.hbm [resolvable:$true] %s90
      %s92 = sshll.u32 [#allocation13], 4
      %s93 = int_to_ptr.vmem [resolvable:$true] %s92
      %98 = dma.hbm_to_vmem [thread:$0]  %s91, 512, %s93, [#allocation12], 64, 64, 4
    $region25: #{tpu_custom_call.1} parent=1 // pred_fallthru
      _
    // Predicated region
    $region26: #{tpu_custom_call.1} parent=1 // pred_check
      _
    $region27: #{tpu_custom_call.1} parent=1 // pred_check_branch
      %100 = sbr.rel (0) target = $region29
    $region28: #{tpu_custom_call.1} parent=1 // pred_region
      %102 = vsyncadd [#allocation15], 0
      %s103 = sshll.u32 %s6, 4
      %s104 = int_to_ptr.hbm [resolvable:$true] %s103
      %s105 = sshll.u32 [#allocation14], 4
      %s106 = int_to_ptr.vmem [resolvable:$true] %s105
      %111 = dma.hbm_to_vmem [thread:$0]  %s104, 2048, %s106, [#allocation15], 128, 128, 8
    $region29: #{tpu_custom_call.1} parent=1 // pred_fallthru
      _
    // Predicated region
    $region30: #{tpu_custom_call.1} parent=1 // pred_check
      _
    $region31: #{tpu_custom_call.1} parent=1 // pred_check_branch
      %113 = sbr.rel (0) target = $region33
    $region32: #{tpu_custom_call.1} parent=1 // pred_region
      %115 = vsyncadd [#allocation15], 0
      %s116 = sshll.u32 %s7, 4
      %s117 = int_to_ptr.hbm [resolvable:$true] %s116
      %s118 = sshll.u32 [#allocation16], 4
      %s119 = int_to_ptr.vmem [resolvable:$true] %s118
      %124 = dma.hbm_to_vmem [thread:$0]  %s117, 8192, %s119, [#allocation15], 256, 256, 16
    $region33: #{tpu_custom_call.1} parent=1 // pred_fallthru
      _
    // Predicated region
    $region34: #{tpu_custom_call.1} parent=1 // pred_check
      _
    $region35: #{tpu_custom_call.1} parent=1 // pred_check_branch
      %126 = sbr.rel (0) target = $region37
    $region36: #{tpu_custom_call.1} parent=1 // pred_region
      _
    $region37: #{tpu_custom_call.1} parent=1 // pred_fallthru
      _
    // Predicated region
    $region38: #{tpu_custom_call.1} parent=1 // pred_check
      _
    $region39: #{tpu_custom_call.1} parent=1 // pred_check_branch
      %128 = sbr.rel (0) target = $region41
    $region40: #{tpu_custom_call.1} parent=1 // pred_region
      %130 = vsyncadd [#allocation18], 0
      %s132 = sshll.u32 %s11, 4
      %s133 = int_to_ptr.hbm [resolvable:$true] %s132
      %s134 = sshll.u32 [#allocation17], 4
      %s135 = int_to_ptr.vmem [resolvable:$true] %s134
      %137 = dma.hbm_to_vmem [thread:$0]  %s133, 16, %s135, [#allocation18]
    $region41: #{tpu_custom_call.1} parent=1 // pred_fallthru
      _
    // Predicated region
    $region42: #{tpu_custom_call.1} parent=1 // pred_check
      _
    $region43: #{tpu_custom_call.1} parent=1 // pred_check_branch
      %139 = sbr.rel (0) target = $region45
    $region44: #{tpu_custom_call.1} parent=1 // pred_region
      %141 = vsyncadd [#allocation18], 0
      %s143 = sshll.u32 %s12, 4
      %s144 = int_to_ptr.hbm [resolvable:$true] %s143
      %s145 = sshll.u32 [#allocation19], 4
      %s146 = int_to_ptr.vmem [resolvable:$true] %s145
      %148 = dma.hbm_to_vmem [thread:$0]  %s144, 16, %s146, [#allocation18]
    $region45: #{tpu_custom_call.1} parent=1 // pred_fallthru
      _
    // Predicated region
    $region46: #{tpu_custom_call.1} parent=1 // pred_check
      _
    $region47: #{tpu_custom_call.1} parent=1 // pred_check_branch
      %150 = sbr.rel (0) target = $region49
    $region48: #{tpu_custom_call.1} parent=1 // pred_region
      %152 = vsyncadd [#allocation21], 0
      %s154 = sshll.u32 %s13, 4
      %s155 = int_to_ptr.hbm [resolvable:$true] %s154
      %s156 = sshll.u32 [#allocation20], 4
      %s157 = int_to_ptr.vmem [resolvable:$true] %s156
      %159 = dma.hbm_to_vmem [thread:$0]  %s155, 16, %s157, [#allocation21]
    $region49: #{tpu_custom_call.1} parent=1 // pred_fallthru
      _
    // Predicated region
    $region50: #{tpu_custom_call.1} parent=1 // pred_check
      _
    $region51: #{tpu_custom_call.1} parent=1 // pred_check_branch
      %161 = sbr.rel (0) target = $region53
    $region52: #{tpu_custom_call.1} parent=1 // pred_region
      %163 = vsyncadd [#allocation21], 0
      %s165 = sshll.u32 %s14, 4
      %s166 = int_to_ptr.hbm [resolvable:$true] %s165
      %s167 = sshll.u32 [#allocation22], 4
      %s168 = int_to_ptr.vmem [resolvable:$true] %s167
      %170 = dma.hbm_to_vmem [thread:$0]  %s166, 16, %s168, [#allocation21]
    $region53: #{tpu_custom_call.1} parent=1 // pred_fallthru
      _
    // Predicated region
    $region54: #{tpu_custom_call.1} parent=1 // pred_check
      _
    $region55: #{tpu_custom_call.1} parent=1 // pred_check_branch
      %172 = sbr.rel (0) target = $region57
    $region56: #{tpu_custom_call.1} parent=1 // pred_region
      %174 = vsyncadd [#allocation24], 0
      %s176 = sshll.u32 %s15, 4
      %s177 = int_to_ptr.hbm [resolvable:$true] %s176
      %s178 = sshll.u32 [#allocation23], 4
      %s179 = int_to_ptr.vmem [resolvable:$true] %s178
      %181 = dma.hbm_to_vmem [thread:$0]  %s177, 16, %s179, [#allocation24]
    $region57: #{tpu_custom_call.1} parent=1 // pred_fallthru
      _
    // Predicated region
    $region58: #{tpu_custom_call.1} parent=1 // pred_check
      _
    $region59: #{tpu_custom_call.1} parent=1 // pred_check_branch
      %183 = sbr.rel (0) target = $region61
    $region60: #{tpu_custom_call.1} parent=1 // pred_region
      %185 = vsyncadd [#allocation24], 0
      %s187 = sshll.u32 %s16, 4
      %s188 = int_to_ptr.hbm [resolvable:$true] %s187
      %s189 = sshll.u32 [#allocation25], 4
      %s190 = int_to_ptr.vmem [resolvable:$true] %s189
      %192 = dma.hbm_to_vmem [thread:$0]  %s188, 32, %s190, [#allocation24]
    $region61: #{tpu_custom_call.1} parent=1 // pred_fallthru
      _
    // Predicated region
    $region62: #{tpu_custom_call.1} parent=1 // pred_check
      _
    $region63: #{tpu_custom_call.1} parent=1 // pred_check_branch
      %194 = sbr.rel (0) target = $region65
    $region64: #{tpu_custom_call.1} parent=1 // pred_region
      %196 = vsyncadd [#allocation27], 0
      %s198 = sshll.u32 %s17, 4
      %s199 = int_to_ptr.hbm [resolvable:$true] %s198
      %s200 = sshll.u32 [#allocation26], 4
      %s201 = int_to_ptr.vmem [resolvable:$true] %s200
      %203 = dma.hbm_to_vmem [thread:$0]  %s199, 64, %s201, [#allocation27]
    $region65: #{tpu_custom_call.1} parent=1 // pred_fallthru
      _
    // Predicated region
    $region66: #{tpu_custom_call.1} parent=1 // pred_check
      _
    $region67: #{tpu_custom_call.1} parent=1 // pred_check_branch
      %205 = sbr.rel (0) target = $region69
    $region68: #{tpu_custom_call.1} parent=1 // pred_region
      %207 = vsyncadd [#allocation27], 0
      %s209 = sshll.u32 %s18, 4
      %s210 = int_to_ptr.hbm [resolvable:$true] %s209
      %s211 = sshll.u32 [#allocation28], 4
      %s212 = int_to_ptr.vmem [resolvable:$true] %s211
      %214 = dma.hbm_to_vmem [thread:$0]  %s210, 128, %s212, [#allocation27]
    $region69: #{tpu_custom_call.1} parent=1 // pred_fallthru
      _
    // Predicated region
    $region70: #{tpu_custom_call.1} parent=1 // pred_check
      _
    $region71: #{tpu_custom_call.1} parent=1 // pred_check_branch
      %216 = sbr.rel (0) target = $region73
    $region72: #{tpu_custom_call.1} parent=1 // pred_region
      %218 = vsyncadd [#allocation30], 0
      %s220 = sshll.u32 %s19, 4
      %s221 = int_to_ptr.hbm [resolvable:$true] %s220
      %s222 = sshll.u32 [#allocation29], 4
      %s223 = int_to_ptr.vmem [resolvable:$true] %s222
      %225 = dma.hbm_to_vmem [thread:$0]  %s221, 256, %s223, [#allocation30]
    $region73: #{tpu_custom_call.1} parent=1 // pred_fallthru
      _
    // Predicated region
    $region74: #{tpu_custom_call.1} parent=1 // pred_check
      _
    $region75: #{tpu_custom_call.1} parent=1 // pred_check_branch
      %227 = sbr.rel (0) target = $region77
    $region76: #{tpu_custom_call.1} parent=1 // pred_region
      %229 = vsyncadd [#allocation30], 0
      %s231 = sshll.u32 %s20, 4
      %s232 = int_to_ptr.hbm [resolvable:$true] %s231
      %s233 = sshll.u32 [#allocation31], 4
      %s234 = int_to_ptr.vmem [resolvable:$true] %s233
      %236 = dma.hbm_to_vmem [thread:$0]  %s232, 16, %s234, [#allocation30]
    $region77: #{tpu_custom_call.1} parent=1 // pred_fallthru
      _
    // Predicated region
    $region78: #{tpu_custom_call.1} parent=1 // pred_check
      _
    $region79: #{tpu_custom_call.1} parent=1 // pred_check_branch
      %238 = sbr.rel (0) target = $region81
    $region80: #{tpu_custom_call.1} parent=1 // pred_region
      %240 = dma.done [#allocation6], 16
    $region81: #{tpu_custom_call.1} parent=1 // pred_fallthru
      _
    // Predicated region
    $region82: #{tpu_custom_call.1} parent=1 // pred_check
      _
    $region83: #{tpu_custom_call.1} parent=1 // pred_check_branch
      %242 = sbr.rel (0) target = $region85
    $region84: #{tpu_custom_call.1} parent=1 // pred_region
      %244 = dma.done [#allocation9], 64
    $region85: #{tpu_custom_call.1} parent=1 // pred_fallthru
      _
    // Predicated region
    $region86: #{tpu_custom_call.1} parent=1 // pred_check
      _
    $region87: #{tpu_custom_call.1} parent=1 // pred_check_branch
      %246 = sbr.rel (0) target = $region89
    $region88: #{tpu_custom_call.1} parent=1 // pred_region
      %248 = dma.done [#allocation9], 128
    $region89: #{tpu_custom_call.1} parent=1 // pred_fallthru
      _
    // Predicated region
    $region90: #{tpu_custom_call.1} parent=1 // pred_check
      _
    $region91: #{tpu_custom_call.1} parent=1 // pred_check_branch
      %250 = sbr.rel (0) target = $region93
    $region92: #{tpu_custom_call.1} parent=1 // pred_region
      %252 = dma.done [#allocation12], 256
    $region93: #{tpu_custom_call.1} parent=1 // pred_fallthru
      _
    // Predicated region
    $region94: #{tpu_custom_call.1} parent=1 // pred_check
      _
    $region95: #{tpu_custom_call.1} parent=1 // pred_check_branch
      %254 = sbr.rel (0) target = $region97
    $region96: #{tpu_custom_call.1} parent=1 // pred_region
      %256 = dma.done [#allocation12], 512
    $region97: #{tpu_custom_call.1} parent=1 // pred_fallthru
      _
    // Predicated region
    $region98: #{tpu_custom_call.1} parent=1 // pred_check
      _
    $region99: #{tpu_custom_call.1} parent=1 // pred_check_branch
      %258 = sbr.rel (0) target = $region101
    $region100: #{tpu_custom_call.1} parent=1 // pred_region
      %260 = dma.done [#allocation15], 2048
    $region101: #{tpu_custom_call.1} parent=1 // pred_fallthru
      _
    // Predicated region
    $region102: #{tpu_custom_call.1} parent=1 // pred_check
      _
    $region103: #{tpu_custom_call.1} parent=1 // pred_check_branch
      %262 = sbr.rel (0) target = $region105
    $region104: #{tpu_custom_call.1} parent=1 // pred_region
      %264 = dma.done [#allocation15], 8192
    $region105: #{tpu_custom_call.1} parent=1 // pred_fallthru
      _
    // Predicated region
    $region106: #{tpu_custom_call.1} parent=1 // pred_check
      _
    $region107: #{tpu_custom_call.1} parent=1 // pred_check_branch
      %266 = sbr.rel (0) target = $region109
    $region108: #{tpu_custom_call.1} parent=1 // pred_region
      %268 = dma.done [#allocation18], 16
    $region109: #{tpu_custom_call.1} parent=1 // pred_fallthru
      _
    // Predicated region
    $region110: #{tpu_custom_call.1} parent=1 // pred_check
      _
    $region111: #{tpu_custom_call.1} parent=1 // pred_check_branch
      %270 = sbr.rel (0) target = $region113
    $region112: #{tpu_custom_call.1} parent=1 // pred_region
      %272 = dma.done [#allocation18], 16
    $region113: #{tpu_custom_call.1} parent=1 // pred_fallthru
      _
    // Predicated region
    $region114: #{tpu_custom_call.1} parent=1 // pred_check
      _
    $region115: #{tpu_custom_call.1} parent=1 // pred_check_branch
      %274 = sbr.rel (0) target = $region117
    $region116: #{tpu_custom_call.1} parent=1 // pred_region
      %276 = dma.done [#allocation21], 16
    $region117: #{tpu_custom_call.1} parent=1 // pred_fallthru
      _
    // Predicated region
    $region118: #{tpu_custom_call.1} parent=1 // pred_check
      _
    $region119: #{tpu_custom_call.1} parent=1 // pred_check_branch
      %278 = sbr.rel (0) target = $region121
    $region120: #{tpu_custom_call.1} parent=1 // pred_region
      %280 = dma.done [#allocation21], 16
    $region121: #{tpu_custom_call.1} parent=1 // pred_fallthru
      _
    // Predicated region
    $region122: #{tpu_custom_call.1} parent=1 // pred_check
      _
    $region123: #{tpu_custom_call.1} parent=1 // pred_check_branch
      %282 = sbr.rel (0) target = $region125
    $region124: #{tpu_custom_call.1} parent=1 // pred_region
      %284 = dma.done [#allocation24], 16
    $region125: #{tpu_custom_call.1} parent=1 // pred_fallthru
      _
    // Predicated region
    $region126: #{tpu_custom_call.1} parent=1 // pred_check
      _
    $region127: #{tpu_custom_call.1} parent=1 // pred_check_branch
      %286 = sbr.rel (0) target = $region129
    $region128: #{tpu_custom_call.1} parent=1 // pred_region
      %288 = dma.done [#allocation24], 32
    $region129: #{tpu_custom_call.1} parent=1 // pred_fallthru
      _
    // Predicated region
    $region130: #{tpu_custom_call.1} parent=1 // pred_check
      _
    $region131: #{tpu_custom_call.1} parent=1 // pred_check_branch
      %290 = sbr.rel (0) target = $region133
    $region132: #{tpu_custom_call.1} parent=1 // pred_region
      %292 = dma.done [#allocation27], 64
    $region133: #{tpu_custom_call.1} parent=1 // pred_fallthru
      _
    // Predicated region
    $region134: #{tpu_custom_call.1} parent=1 // pred_check
      _
    $region135: #{tpu_custom_call.1} parent=1 // pred_check_branch
      %294 = sbr.rel (0) target = $region137
    $region136: #{tpu_custom_call.1} parent=1 // pred_region
      %296 = dma.done [#allocation27], 128
    $region137: #{tpu_custom_call.1} parent=1 // pred_fallthru
      _
    // Predicated region
    $region138: #{tpu_custom_call.1} parent=1 // pred_check
      _
    $region139: #{tpu_custom_call.1} parent=1 // pred_check_branch
      %298 = sbr.rel (0) target = $region141
    $region140: #{tpu_custom_call.1} parent=1 // pred_region
      %300 = dma.done [#allocation30], 256
    $region141: #{tpu_custom_call.1} parent=1 // pred_fallthru
      _
    // Predicated region
    $region142: #{tpu_custom_call.1} parent=1 // pred_check
      _
    $region143: #{tpu_custom_call.1} parent=1 // pred_check_branch
      %302 = sbr.rel (0) target = $region145
    $region144: #{tpu_custom_call.1} parent=1 // pred_region
      %304 = dma.done [#allocation30], 16
    $region145: #{tpu_custom_call.1} parent=1 // pred_fallthru
      _
    %p306 = scmp.eq.s32.totalorder 0, 0
    // Predicated region
    $region146: #{tpu_custom_call.1} parent=1 // pred_check
      %p307 = pneg %p306
    $region147: #{tpu_custom_call.1} parent=1 // pred_check_branch
      %309 = sbr.rel (%p307) target = $region149
    $region148: #{tpu_custom_call.1} parent=1 // pred_region
      // Predicated region
      $region150: #{tpu_custom_call.1} parent=148 // pred_check
        _
      $region151: #{tpu_custom_call.1} parent=148 // pred_check_branch
        %311 = sbr.rel target = $region153
      $region152: #{tpu_custom_call.1} parent=148 // pred_region
        %312 = sst [smem:[#allocation35]] [#allocation34]
        %313 = sst [smem:[#allocation36]] [#allocation33]
      $region153: #{tpu_custom_call.1} parent=148 // pred_fallthru
        _
      %315 = shalt.err (0)
      %s317 = sshll.u32 %s8, 4
      %s318 = int_to_ptr.hbm [resolvable:$true] %s317
      %s319 = sshll.u32 [#allocation2], 4
      %s320 = int_to_ptr.vmem [resolvable:$true] %s319
      %322 = dma.hbm_to_vmem [thread:$0]  %s318, 32768, %s320, [#allocation4]
      %s323 = scalar_lea.sflag [#allocation4], 1
      // Predicated region
      $region154: #{tpu_custom_call.1} parent=148 // pred_check
        _
      $region155: #{tpu_custom_call.1} parent=148 // pred_check_branch
        %325 = sbr.rel target = $region157
      $region156: #{tpu_custom_call.1} parent=148 // pred_region
        %326 = sst [smem:[#allocation35]] [#allocation38]
        %327 = sst [smem:[#allocation36]] [#allocation37]
      $region157: #{tpu_custom_call.1} parent=148 // pred_fallthru
        _
      %329 = shalt.err (0)
      %s331 = sshll.u32 %s9, 4
      %s332 = int_to_ptr.hbm [resolvable:$true] %s331
      %s333 = sshll.u32 [#allocation3], 4
      %s334 = int_to_ptr.vmem [resolvable:$true] %s333
      %336 = dma.hbm_to_vmem [thread:$0]  %s332, 131072, %s334, %s323
    $region149: #{tpu_custom_call.1} parent=1 // pred_fallthru
      _
    %v337 = vld [vmem:[%s0] sm:$0xff]
    %v338 = vld [vmem:[#allocation5] sm:$0x1]
    %v339 = vpack.c.bf16 %v337, %v337
    %v340 = vld [vmem:[#allocation17] sm:$0x1]
    %v342 = vperm.slane %v340, 0
    %vm344 = vcmask 15360
    %v346 = vsel %vm344, %v339, 0
    %vm348 = vcmask 1040384
    %v350 = vsel %vm348, %v338, 0
    %352 = vmatpush.bf16.msra.mxu0 0
    %353 = vmatpush.bf16.msra.mxu0 0
    %354 = vmatpush.bf16.msra.mxu0 0
    %355 = vmatpush.bf16.msra.mxu0 0
    %356 = vmatpush.bf16.msra.mxu0 0
    %357 = vmatpush.bf16.msra.mxu0 0
    %358 = vmatpush.bf16.msra.mxu0 0
    %359 = vmatpush.bf16.msra.mxu0 %v350
    %360 = vmatmul.bf16.gmra.mxu0 %v346
    %v361 = vpop.f32.mrf.mxu0
    %v362 = vadd.f32 %v342, %v361
    %v363 = vpop.f32.mrf.mxu0
    %364 = vdwg.mxu0
    %v365 = vtanh.pop %v362
    %v366 = vld [vmem:[#allocation8] sm:$0xf]
    %v367 = vpack.c.bf16 %v365, %v365
    %v368 = vld [vmem:[#allocation19] sm:$0x1]
    %v370 = vperm.slane %v368, 0
    %vm372 = vcmask 64512
    %v374 = vsel %vm372, %v367, 0
    %vm376 = vcmask 1043456
    %v378 = vsel %vm376, %v366, 0
    %380 = vmatpush.bf16.msra.mxu0 0
    %381 = vmatpush.bf16.msra.mxu0 0
    %382 = vmatpush.bf16.msra.mxu0 0
    %383 = vmatpush.bf16.msra.mxu0 0
    %384 = vmatpush.bf16.msra.mxu0 0
    %385 = vmatpush.bf16.msra.mxu0 0
    %386 = vmatpush.bf16.msra.mxu0 0
    %387 = vmatpush.bf16.msra.mxu0 %v378
    %388 = vmatmul.bf16.gmra.mxu0 %v374
    %v389 = vpop.f32.mrf.mxu0
    %v390 = vadd.f32 %v370, %v389
    %v391 = vpop.f32.mrf.mxu0
    %392 = vdwg.mxu0
    %v393 = vmul.f32 %v390, 0.01
    %v394 = vmax.f32 %v390, %v393
    %v395 = vld [vmem:[#allocation10] sm:$0xf]
    %v396 = vld [vmem:[#allocation10 + $0x4] sm:$0xf]
    %v397 = vpack.c.bf16 %v394, %v394
    %v398 = vld [vmem:[#allocation20] sm:$0x1]
    %v400 = vperm.slane %v398, 0
    %v404 = vunpack.c.l.b16 %v395
    %v405 = vunpack.c.l.b16 %v396
    %v406 = vpack.c.b16 %v405, %v404
    %vm408 = vcmask 130048
    %v410 = vsel %vm408, %v397, 0
    %412 = vmatpush.bf16.msra.mxu0 0
    %413 = vmatpush.bf16.msra.mxu0 0
    %414 = vmatpush.bf16.msra.mxu0 0
    %415 = vmatpush.bf16.msra.mxu0 0
    %416 = vmatpush.bf16.msra.mxu0 0
    %417 = vmatpush.bf16.msra.mxu0 0
    %418 = vmatpush.bf16.msra.mxu0 0
    %419 = vmatpush.bf16.msra.mxu0 %v406
    %420 = vmatmul.bf16.gmra.mxu0 %v410
    %v421 = vpop.f32.mrf.mxu0
    %v422 = vadd.f32 %v400, %v421
    %v423 = vpop.f32.mrf.mxu0
    %424 = vdwg.mxu0
    %v425 = vmul.f32 %v422, 0.01
    %v426 = vmax.f32 %v422, %v425
    %v427 = vld [vmem:[#allocation11] sm:$0xf]
    %v428 = vld [vmem:[#allocation11 + $0x4] sm:$0xf]
    %v429 = vld [vmem:[#allocation11 + $0x8] sm:$0xf]
    %v430 = vld [vmem:[#allocation11 + $0xc] sm:$0xf]
    %v431 = vpack.c.bf16 %v426, %v426
    %v432 = vld [vmem:[#allocation22] sm:$0x1]
    %v434 = vperm.slane %v432, 0
    %v440 = vunpack.c.l.b16 %v427
    %v441 = vunpack.c.l.b16 %v428
    %v442 = vunpack.c.l.b16 %v429
    %v443 = vunpack.c.l.b16 %v430
    %v444 = vpack.c.b16 %v441, %v440
    %v445 = vpack.c.b16 %v443, %v442
    %vm448 = vcmask 261120
    %v450 = vsel %vm448, %v431, 0
    %452 = vmatpush.bf16.msra.mxu0 0
    %453 = vmatpush.bf16.msra.mxu0 0
    %454 = vmatpush.bf16.msra.mxu0 0
    %455 = vmatpush.bf16.msra.mxu0 0
    %456 = vmatpush.bf16.msra.mxu0 0
    %457 = vmatpush.bf16.msra.mxu0 0
    %458 = vmatpush.bf16.msra.mxu0 %v445
    %459 = vmatpush.bf16.msra.mxu0 %v444
    %460 = vmatmul.bf16.gmra.mxu0 %v450
    %v461 = vpop.f32.mrf.mxu0
    %v462 = vadd.f32 %v434, %v461
    %v463 = vpop.f32.mrf.mxu0
    %464 = vdwg.mxu0
    %v465 = vmul.f32 %v462, 0.01
    %v466 = vmax.f32 %v462, %v465
    %v467 = vld [vmem:[#allocation13] sm:$0xf]
    %v468 = vld [vmem:[#allocation13 + $0x4] sm:$0xf]
    %v469 = vld [vmem:[#allocation13 + $0x8] sm:$0xf]
    %v470 = vld [vmem:[#allocation13 + $0xc] sm:$0xf]
    %v471 = vld [vmem:[#allocation13 + $0x10] sm:$0xf]
    %v472 = vld [vmem:[#allocation13 + $0x14] sm:$0xf]
    %v473 = vld [vmem:[#allocation13 + $0x18] sm:$0xf]
    %v474 = vld [vmem:[#allocation13 + $0x1c] sm:$0xf]
    %v475 = vpack.c.bf16 %v466, %v466
    %v476 = vld [vmem:[#allocation23] sm:$0x1]
    %v478 = vperm.slane %v476, 0
    %v488 = vunpack.c.l.b16 %v467
    %v489 = vunpack.c.l.b16 %v468
    %v490 = vunpack.c.l.b16 %v469
    %v491 = vunpack.c.l.b16 %v470
    %v492 = vunpack.c.l.b16 %v471
    %v493 = vunpack.c.l.b16 %v472
    %v494 = vunpack.c.l.b16 %v473
    %v495 = vunpack.c.l.b16 %v474
    %v496 = vpack.c.b16 %v489, %v488
    %v497 = vpack.c.b16 %v491, %v490
    %v498 = vpack.c.b16 %v493, %v492
    %v499 = vpack.c.b16 %v495, %v494
    %vm504 = vcmask 523264
    %v506 = vsel %vm504, %v475, 0
    %508 = vmatpush.bf16.msra.mxu0 0
    %509 = vmatpush.bf16.msra.mxu0 0
    %510 = vmatpush.bf16.msra.mxu0 0
    %511 = vmatpush.bf16.msra.mxu0 0
    %512 = vmatpush.bf16.msra.mxu0 %v499
    %513 = vmatpush.bf16.msra.mxu0 %v498
    %514 = vmatpush.bf16.msra.mxu0 %v497
    %515 = vmatpush.bf16.msra.mxu0 %v496
    %516 = vmatmul.bf16.gmra.mxu0 %v506
    %v517 = vpop.f32.mrf.mxu0
    %v518 = vadd.f32 %v478, %v517
    %v519 = vpop.f32.mrf.mxu0
    %520 = vdwg.mxu0
    %v521 = vmul.f32 %v518, 0.01
    %v522 = vmax.f32 %v518, %v521
    %v523 = vld [vmem:[#allocation14] sm:$0xff]
    %v524 = vld [vmem:[#allocation14 + $0x8] sm:$0xff]
    %v525 = vld [vmem:[#allocation14 + $0x10] sm:$0xff]
    %v526 = vld [vmem:[#allocation14 + $0x18] sm:$0xff]
    %v527 = vld [vmem:[#allocation14 + $0x20] sm:$0xff]
    %v528 = vld [vmem:[#allocation14 + $0x28] sm:$0xff]
    %v529 = vld [vmem:[#allocation14 + $0x30] sm:$0xff]
    %v530 = vld [vmem:[#allocation14 + $0x38] sm:$0xff]
    %v531 = vld [vmem:[#allocation14 + $0x40] sm:$0xff]
    %v532 = vld [vmem:[#allocation14 + $0x48] sm:$0xff]
    %v533 = vld [vmem:[#allocation14 + $0x50] sm:$0xff]
    %v534 = vld [vmem:[#allocation14 + $0x58] sm:$0xff]
    %v535 = vld [vmem:[#allocation14 + $0x60] sm:$0xff]
    %v536 = vld [vmem:[#allocation14 + $0x68] sm:$0xff]
    %v537 = vld [vmem:[#allocation14 + $0x70] sm:$0xff]
    %v538 = vld [vmem:[#allocation14 + $0x78] sm:$0xff]
    %v539 = vpack.c.bf16 %v522, %v522
    %v540 = vld [vmem:[#allocation25] sm:$0x3]
    %v542 = vperm.slane %v540, 0
    %v543 = vperm.slane %v540, 1
    %v562 = vunpack.c.l.b16 %v523
    %v563 = vunpack.c.h.b16 %v523
    %v564 = vunpack.c.l.b16 %v524
    %v565 = vunpack.c.h.b16 %v524
    %v566 = vunpack.c.l.b16 %v525
    %v567 = vunpack.c.h.b16 %v525
    %v568 = vunpack.c.l.b16 %v526
    %v569 = vunpack.c.h.b16 %v526
    %v570 = vunpack.c.l.b16 %v527
    %v571 = vunpack.c.h.b16 %v527
    %v572 = vunpack.c.l.b16 %v528
    %v573 = vunpack.c.h.b16 %v528
    %v574 = vunpack.c.l.b16 %v529
    %v575 = vunpack.c.h.b16 %v529
    %v576 = vunpack.c.l.b16 %v530
    %v577 = vunpack.c.h.b16 %v530
    %v578 = vunpack.c.l.b16 %v531
    %v579 = vunpack.c.h.b16 %v531
    %v580 = vunpack.c.l.b16 %v532
    %v581 = vunpack.c.h.b16 %v532
    %v582 = vunpack.c.l.b16 %v533
    %v583 = vunpack.c.h.b16 %v533
    %v584 = vunpack.c.l.b16 %v534
    %v585 = vunpack.c.h.b16 %v534
    %v586 = vunpack.c.l.b16 %v535
    %v587 = vunpack.c.h.b16 %v535
    %v588 = vunpack.c.l.b16 %v536
    %v589 = vunpack.c.h.b16 %v536
    %v590 = vunpack.c.l.b16 %v537
    %v591 = vunpack.c.h.b16 %v537
    %v592 = vunpack.c.l.b16 %v538
    %v593 = vunpack.c.h.b16 %v538
    %v594 = vpack.c.b16 %v564, %v562
    %v595 = vpack.c.b16 %v565, %v563
    %v596 = vpack.c.b16 %v568, %v566
    %v597 = vpack.c.b16 %v569, %v567
    %v598 = vpack.c.b16 %v572, %v570
    %v599 = vpack.c.b16 %v573, %v571
    %v600 = vpack.c.b16 %v576, %v574
    %v601 = vpack.c.b16 %v577, %v575
    %v602 = vpack.c.b16 %v580, %v578
    %v603 = vpack.c.b16 %v581, %v579
    %v604 = vpack.c.b16 %v584, %v582
    %v605 = vpack.c.b16 %v585, %v583
    %v606 = vpack.c.b16 %v588, %v586
    %v607 = vpack.c.b16 %v589, %v587
    %v608 = vpack.c.b16 %v592, %v590
    %v609 = vpack.c.b16 %v593, %v591
    %626 = vmatpush.bf16.msra.mxu0 %v608
    %627 = vmatpush.bf16.msra.mxu0 %v606
    %628 = vmatpush.bf16.msra.mxu0 %v604
    %629 = vmatpush.bf16.msra.mxu0 %v602
    %630 = vmatpush.bf16.msra.mxu0 %v600
    %631 = vmatpush.bf16.msra.mxu0 %v598
    %632 = vmatpush.bf16.msra.mxu0 %v596
    %633 = vmatpush.bf16.msra.mxu0 %v594
    %634 = vmatmul.bf16.gmra.mxu0 %v539
    %v635 = vpop.f32.mrf.mxu0
    %v636 = vadd.f32 %v542, %v635
    %v637 = vpop.f32.mrf.mxu0
    %638 = vdwg.mxu0
    %639 = vmatpush.bf16.msra.mxu0 %v609
    %640 = vmatpush.bf16.msra.mxu0 %v607
    %641 = vmatpush.bf16.msra.mxu0 %v605
    %642 = vmatpush.bf16.msra.mxu0 %v603
    %643 = vmatpush.bf16.msra.mxu0 %v601
    %644 = vmatpush.bf16.msra.mxu0 %v599
    %645 = vmatpush.bf16.msra.mxu0 %v597
    %646 = vmatpush.bf16.msra.mxu0 %v595
    %647 = vmatmul.bf16.gmra.mxu0 %v539
    %v648 = vpop.f32.mrf.mxu0
    %v649 = vadd.f32 %v543, %v648
    %v650 = vpop.f32.mrf.mxu0
    %651 = vdwg.mxu0
    %v652 = vmul.f32 %v636, 0.01
    %v653 = vmul.f32 %v649, 0.01
    %v654 = vmax.f32 %v636, %v652
    %v655 = vmax.f32 %v649, %v653
    %v656 = vld [vmem:[#allocation16] sm:$0xff]
    %v657 = vld [vmem:[#allocation16 + $0x8] sm:$0xff]
    %v658 = vld [vmem:[#allocation16 + $0x10] sm:$0xff]
    %v659 = vld [vmem:[#allocation16 + $0x18] sm:$0xff]
    %v660 = vld [vmem:[#allocation16 + $0x20] sm:$0xff]
    %v661 = vld [vmem:[#allocation16 + $0x28] sm:$0xff]
    %v662 = vld [vmem:[#allocation16 + $0x30] sm:$0xff]
    %v663 = vld [vmem:[#allocation16 + $0x38] sm:$0xff]
    %v664 = vld [vmem:[#allocation16 + $0x40] sm:$0xff]
    %v665 = vld [vmem:[#allocation16 + $0x48] sm:$0xff]
    %v666 = vld [vmem:[#allocation16 + $0x50] sm:$0xff]
    %v667 = vld [vmem:[#allocation16 + $0x58] sm:$0xff]
    %v668 = vld [vmem:[#allocation16 + $0x60] sm:$0xff]
    %v669 = vld [vmem:[#allocation16 + $0x68] sm:$0xff]
    %v670 = vld [vmem:[#allocation16 + $0x70] sm:$0xff]
    %v671 = vld [vmem:[#allocation16 + $0x78] sm:$0xff]
    %v672 = vld [vmem:[#allocation16 + $0x80] sm:$0xff]
    %v673 = vld [vmem:[#allocation16 + $0x88] sm:$0xff]
    %v674 = vld [vmem:[#allocation16 + $0x90] sm:$0xff]
    %v675 = vld [vmem:[#allocation16 + $0x98] sm:$0xff]
    %v676 = vld [vmem:[#allocation16 + $0xa0] sm:$0xff]
    %v677 = vld [vmem:[#allocation16 + $0xa8] sm:$0xff]
    %v678 = vld [vmem:[#allocation16 + $0xb0] sm:$0xff]
    %v679 = vld [vmem:[#allocation16 + $0xb8] sm:$0xff]
    %v680 = vld [vmem:[#allocation16 + $0xc0] sm:$0xff]
    %v681 = vld [vmem:[#allocation16 + $0xc8] sm:$0xff]
    %v682 = vld [vmem:[#allocation16 + $0xd0] sm:$0xff]
    %v683 = vld [vmem:[#allocation16 + $0xd8] sm:$0xff]
    %v684 = vld [vmem:[#allocation16 + $0xe0] sm:$0xff]
    %v685 = vld [vmem:[#allocation16 + $0xe8] sm:$0xff]
    %v686 = vld [vmem:[#allocation16 + $0xf0] sm:$0xff]
    %v687 = vld [vmem:[#allocation16 + $0xf8] sm:$0xff]
    %v688 = vld [vmem:[#allocation16 + $0x100] sm:$0xff]
    %v689 = vld [vmem:[#allocation16 + $0x108] sm:$0xff]
    %v690 = vld [vmem:[#allocation16 + $0x110] sm:$0xff]
    %v691 = vld [vmem:[#allocation16 + $0x118] sm:$0xff]
    %v692 = vld [vmem:[#allocation16 + $0x120] sm:$0xff]
    %v693 = vld [vmem:[#allocation16 + $0x128] sm:$0xff]
    %v694 = vld [vmem:[#allocation16 + $0x130] sm:$0xff]
    %v695 = vld [vmem:[#allocation16 + $0x138] sm:$0xff]
    %v696 = vld [vmem:[#allocation16 + $0x140] sm:$0xff]
    %v697 = vld [vmem:[#allocation16 + $0x148] sm:$0xff]
    %v698 = vld [vmem:[#allocation16 + $0x150] sm:$0xff]
    %v699 = vld [vmem:[#allocation16 + $0x158] sm:$0xff]
    %v700 = vld [vmem:[#allocation16 + $0x160] sm:$0xff]
    %v701 = vld [vmem:[#allocation16 + $0x168] sm:$0xff]
    %v702 = vld [vmem:[#allocation16 + $0x170] sm:$0xff]
    %v703 = vld [vmem:[#allocation16 + $0x178] sm:$0xff]
    %v704 = vld [vmem:[#allocation16 + $0x180] sm:$0xff]
    %v705 = vld [vmem:[#allocation16 + $0x188] sm:$0xff]
    %v706 = vld [vmem:[#allocation16 + $0x190] sm:$0xff]
    %v707 = vld [vmem:[#allocation16 + $0x198] sm:$0xff]
    %v708 = vld [vmem:[#allocation16 + $0x1a0] sm:$0xff]
    %v709 = vld [vmem:[#allocation16 + $0x1a8] sm:$0xff]
    %v710 = vld [vmem:[#allocation16 + $0x1b0] sm:$0xff]
    %v711 = vld [vmem:[#allocation16 + $0x1b8] sm:$0xff]
    %v712 = vld [vmem:[#allocation16 + $0x1c0] sm:$0xff]
    %v713 = vld [vmem:[#allocation16 + $0x1c8] sm:$0xff]
    %v714 = vld [vmem:[#allocation16 + $0x1d0] sm:$0xff]
    %v715 = vld [vmem:[#allocation16 + $0x1d8] sm:$0xff]
    %v716 = vld [vmem:[#allocation16 + $0x1e0] sm:$0xff]
    %v717 = vld [vmem:[#allocation16 + $0x1e8] sm:$0xff]
    %v718 = vld [vmem:[#allocation16 + $0x1f0] sm:$0xff]
    %v719 = vld [vmem:[#allocation16 + $0x1f8] sm:$0xff]
    %v720 = vpack.c.bf16 %v654, %v654
    %v721 = vpack.c.bf16 %v655, %v655
    %v722 = vld [vmem:[#allocation26] sm:$0xf]
    %v724 = vperm.slane %v722, 0
    %v725 = vperm.slane %v722, 1
    %v726 = vperm.slane %v722, 2
    %v727 = vperm.slane %v722, 3
    %v796 = vunpack.c.l.b16 %v656
    %v797 = vunpack.c.h.b16 %v656
    %v798 = vunpack.c.l.b16 %v657
    %v799 = vunpack.c.h.b16 %v657
    %v800 = vunpack.c.l.b16 %v658
    %v801 = vunpack.c.h.b16 %v658
    %v802 = vunpack.c.l.b16 %v659
    %v803 = vunpack.c.h.b16 %v659
    %v804 = vunpack.c.l.b16 %v660
    %v805 = vunpack.c.h.b16 %v660
    %v806 = vunpack.c.l.b16 %v661
    %v807 = vunpack.c.h.b16 %v661
    %v808 = vunpack.c.l.b16 %v662
    %v809 = vunpack.c.h.b16 %v662
    %v810 = vunpack.c.l.b16 %v663
    %v811 = vunpack.c.h.b16 %v663
    %v812 = vunpack.c.l.b16 %v664
    %v813 = vunpack.c.h.b16 %v664
    %v814 = vunpack.c.l.b16 %v665
    %v815 = vunpack.c.h.b16 %v665
    %v816 = vunpack.c.l.b16 %v666
    %v817 = vunpack.c.h.b16 %v666
    %v818 = vunpack.c.l.b16 %v667
    %v819 = vunpack.c.h.b16 %v667
    %v820 = vunpack.c.l.b16 %v668
    %v821 = vunpack.c.h.b16 %v668
    %v822 = vunpack.c.l.b16 %v669
    %v823 = vunpack.c.h.b16 %v669
    %v824 = vunpack.c.l.b16 %v670
    %v825 = vunpack.c.h.b16 %v670
    %v826 = vunpack.c.l.b16 %v671
    %v827 = vunpack.c.h.b16 %v671
    %v828 = vunpack.c.l.b16 %v672
    %v829 = vunpack.c.h.b16 %v672
    %v830 = vunpack.c.l.b16 %v673
    %v831 = vunpack.c.h.b16 %v673
    %v832 = vunpack.c.l.b16 %v674
    %v833 = vunpack.c.h.b16 %v674
    %v834 = vunpack.c.l.b16 %v675
    %v835 = vunpack.c.h.b16 %v675
    %v836 = vunpack.c.l.b16 %v676
    %v837 = vunpack.c.h.b16 %v676
    %v838 = vunpack.c.l.b16 %v677
    %v839 = vunpack.c.h.b16 %v677
    %v840 = vunpack.c.l.b16 %v678
    %v841 = vunpack.c.h.b16 %v678
    %v842 = vunpack.c.l.b16 %v679
    %v843 = vunpack.c.h.b16 %v679
    %v844 = vunpack.c.l.b16 %v680
    %v845 = vunpack.c.h.b16 %v680
    %v846 = vunpack.c.l.b16 %v681
    %v847 = vunpack.c.h.b16 %v681
    %v848 = vunpack.c.l.b16 %v682
    %v849 = vunpack.c.h.b16 %v682
    %v850 = vunpack.c.l.b16 %v683
    %v851 = vunpack.c.h.b16 %v683
    %v852 = vunpack.c.l.b16 %v684
    %v853 = vunpack.c.h.b16 %v684
    %v854 = vunpack.c.l.b16 %v685
    %v855 = vunpack.c.h.b16 %v685
    %v856 = vunpack.c.l.b16 %v686
    %v857 = vunpack.c.h.b16 %v686
    %v858 = vunpack.c.l.b16 %v687
    %v859 = vunpack.c.h.b16 %v687
    %v860 = vunpack.c.l.b16 %v688
    %v861 = vunpack.c.h.b16 %v688
    %v862 = vunpack.c.l.b16 %v689
    %v863 = vunpack.c.h.b16 %v689
    %v864 = vunpack.c.l.b16 %v690
    %v865 = vunpack.c.h.b16 %v690
    %v866 = vunpack.c.l.b16 %v691
    %v867 = vunpack.c.h.b16 %v691
    %v868 = vunpack.c.l.b16 %v692
    %v869 = vunpack.c.h.b16 %v692
    %v870 = vunpack.c.l.b16 %v693
    %v871 = vunpack.c.h.b16 %v693
    %v872 = vunpack.c.l.b16 %v694
    %v873 = vunpack.c.h.b16 %v694
    %v874 = vunpack.c.l.b16 %v695
    %v875 = vunpack.c.h.b16 %v695
    %v876 = vunpack.c.l.b16 %v696
    %v877 = vunpack.c.h.b16 %v696
    %v878 = vunpack.c.l.b16 %v697
    %v879 = vunpack.c.h.b16 %v697
    %v880 = vunpack.c.l.b16 %v698
    %v881 = vunpack.c.h.b16 %v698
    %v882 = vunpack.c.l.b16 %v699
    %v883 = vunpack.c.h.b16 %v699
    %v884 = vunpack.c.l.b16 %v700
    %v885 = vunpack.c.h.b16 %v700
    %v886 = vunpack.c.l.b16 %v701
    %v887 = vunpack.c.h.b16 %v701
    %v888 = vunpack.c.l.b16 %v702
    %v889 = vunpack.c.h.b16 %v702
    %v890 = vunpack.c.l.b16 %v703
    %v891 = vunpack.c.h.b16 %v703
    %v892 = vunpack.c.l.b16 %v704
    %v893 = vunpack.c.h.b16 %v704
    %v894 = vunpack.c.l.b16 %v705
    %v895 = vunpack.c.h.b16 %v705
    %v896 = vunpack.c.l.b16 %v706
    %v897 = vunpack.c.h.b16 %v706
    %v898 = vunpack.c.l.b16 %v707
    %v899 = vunpack.c.h.b16 %v707
    %v900 = vunpack.c.l.b16 %v708
    %v901 = vunpack.c.h.b16 %v708
    %v902 = vunpack.c.l.b16 %v709
    %v903 = vunpack.c.h.b16 %v709
    %v904 = vunpack.c.l.b16 %v710
    %v905 = vunpack.c.h.b16 %v710
    %v906 = vunpack.c.l.b16 %v711
    %v907 = vunpack.c.h.b16 %v711
    %v908 = vunpack.c.l.b16 %v712
    %v909 = vunpack.c.h.b16 %v712
    %v910 = vunpack.c.l.b16 %v713
    %v911 = vunpack.c.h.b16 %v713
    %v912 = vunpack.c.l.b16 %v714
    %v913 = vunpack.c.h.b16 %v714
    %v914 = vunpack.c.l.b16 %v715
    %v915 = vunpack.c.h.b16 %v715
    %v916 = vunpack.c.l.b16 %v716
    %v917 = vunpack.c.h.b16 %v716
    %v918 = vunpack.c.l.b16 %v717
    %v919 = vunpack.c.h.b16 %v717
    %v920 = vunpack.c.l.b16 %v718
    %v921 = vunpack.c.h.b16 %v718
    %v922 = vunpack.c.l.b16 %v719
    %v923 = vunpack.c.h.b16 %v719
    %v924 = vpack.c.b16 %v800, %v796
    %v925 = vpack.c.b16 %v801, %v797
    %v926 = vpack.c.b16 %v802, %v798
    %v927 = vpack.c.b16 %v803, %v799
    %v928 = vpack.c.b16 %v808, %v804
    %v929 = vpack.c.b16 %v809, %v805
    %v930 = vpack.c.b16 %v810, %v806
    %v931 = vpack.c.b16 %v811, %v807
    %v932 = vpack.c.b16 %v816, %v812
    %v933 = vpack.c.b16 %v817, %v813
    %v934 = vpack.c.b16 %v818, %v814
    %v935 = vpack.c.b16 %v819, %v815
    %v936 = vpack.c.b16 %v824, %v820
    %v937 = vpack.c.b16 %v825, %v821
    %v938 = vpack.c.b16 %v826, %v822
    %v939 = vpack.c.b16 %v827, %v823
    %v940 = vpack.c.b16 %v832, %v828
    %v941 = vpack.c.b16 %v833, %v829
    %v942 = vpack.c.b16 %v834, %v830
    %v943 = vpack.c.b16 %v835, %v831
    %v944 = vpack.c.b16 %v840, %v836
    %v945 = vpack.c.b16 %v841, %v837
    %v946 = vpack.c.b16 %v842, %v838
    %v947 = vpack.c.b16 %v843, %v839
    %v948 = vpack.c.b16 %v848, %v844
    %v949 = vpack.c.b16 %v849, %v845
    %v950 = vpack.c.b16 %v850, %v846
    %v951 = vpack.c.b16 %v851, %v847
    %v952 = vpack.c.b16 %v856, %v852
    %v953 = vpack.c.b16 %v857, %v853
    %v954 = vpack.c.b16 %v858, %v854
    %v955 = vpack.c.b16 %v859, %v855
    %v956 = vpack.c.b16 %v864, %v860
    %v957 = vpack.c.b16 %v865, %v861
    %v958 = vpack.c.b16 %v866, %v862
    %v959 = vpack.c.b16 %v867, %v863
    %v960 = vpack.c.b16 %v872, %v868
    %v961 = vpack.c.b16 %v873, %v869
    %v962 = vpack.c.b16 %v874, %v870
    %v963 = vpack.c.b16 %v875, %v871
    %v964 = vpack.c.b16 %v880, %v876
    %v965 = vpack.c.b16 %v881, %v877
    %v966 = vpack.c.b16 %v882, %v878
    %v967 = vpack.c.b16 %v883, %v879
    %v968 = vpack.c.b16 %v888, %v884
    %v969 = vpack.c.b16 %v889, %v885
    %v970 = vpack.c.b16 %v890, %v886
    %v971 = vpack.c.b16 %v891, %v887
    %v972 = vpack.c.b16 %v896, %v892
    %v973 = vpack.c.b16 %v897, %v893
    %v974 = vpack.c.b16 %v898, %v894
    %v975 = vpack.c.b16 %v899, %v895
    %v976 = vpack.c.b16 %v904, %v900
    %v977 = vpack.c.b16 %v905, %v901
    %v978 = vpack.c.b16 %v906, %v902
    %v979 = vpack.c.b16 %v907, %v903
    %v980 = vpack.c.b16 %v912, %v908
    %v981 = vpack.c.b16 %v913, %v909
    %v982 = vpack.c.b16 %v914, %v910
    %v983 = vpack.c.b16 %v915, %v911
    %v984 = vpack.c.b16 %v920, %v916
    %v985 = vpack.c.b16 %v921, %v917
    %v986 = vpack.c.b16 %v922, %v918
    %v987 = vpack.c.b16 %v923, %v919
    %1052 = vmatpush.bf16.msra.mxu0 %v952
    %1053 = vmatpush.bf16.msra.mxu0 %v948
    %1054 = vmatpush.bf16.msra.mxu0 %v944
    %1055 = vmatpush.bf16.msra.mxu0 %v940
    %1056 = vmatpush.bf16.msra.mxu0 %v936
    %1057 = vmatpush.bf16.msra.mxu0 %v932
    %1058 = vmatpush.bf16.msra.mxu0 %v928
    %1059 = vmatpush.bf16.msra.mxu0 %v924
    %1060 = vmatmul.bf16.gmra.mxu0 %v720
    %v1061 = vpop.f32.mrf.mxu0
    %v1062 = vadd.f32 %v724, %v1061
    %v1063 = vpop.f32.mrf.mxu0
    %1064 = vdwg.mxu0
    %1065 = vmatpush.bf16.msra.mxu0 %v984
    %1066 = vmatpush.bf16.msra.mxu0 %v980
    %1067 = vmatpush.bf16.msra.mxu0 %v976
    %1068 = vmatpush.bf16.msra.mxu0 %v972
    %1069 = vmatpush.bf16.msra.mxu0 %v968
    %1070 = vmatpush.bf16.msra.mxu0 %v964
    %1071 = vmatpush.bf16.msra.mxu0 %v960
    %1072 = vmatpush.bf16.msra.mxu0 %v956
    %1073 = vmatmul.bf16.gmra.mxu0 %v721
    %v1074 = vpop.f32.mrf.mxu0
    %v1075 = vadd.f32 %v1062, %v1074
    %v1076 = vpop.f32.mrf.mxu0
    %1077 = vdwg.mxu0
    %1078 = vmatpush.bf16.msra.mxu0 %v953
    %1079 = vmatpush.bf16.msra.mxu0 %v949
    %1080 = vmatpush.bf16.msra.mxu0 %v945
    %1081 = vmatpush.bf16.msra.mxu0 %v941
    %1082 = vmatpush.bf16.msra.mxu0 %v937
    %1083 = vmatpush.bf16.msra.mxu0 %v933
    %1084 = vmatpush.bf16.msra.mxu0 %v929
    %1085 = vmatpush.bf16.msra.mxu0 %v925
    %1086 = vmatmul.bf16.gmra.mxu0 %v720
    %v1087 = vpop.f32.mrf.mxu0
    %v1088 = vadd.f32 %v725, %v1087
    %v1089 = vpop.f32.mrf.mxu0
    %1090 = vdwg.mxu0
    %1091 = vmatpush.bf16.msra.mxu0 %v985
    %1092 = vmatpush.bf16.msra.mxu0 %v981
    %1093 = vmatpush.bf16.msra.mxu0 %v977
    %1094 = vmatpush.bf16.msra.mxu0 %v973
    %1095 = vmatpush.bf16.msra.mxu0 %v969
    %1096 = vmatpush.bf16.msra.mxu0 %v965
    %1097 = vmatpush.bf16.msra.mxu0 %v961
    %1098 = vmatpush.bf16.msra.mxu0 %v957
    %1099 = vmatmul.bf16.gmra.mxu0 %v721
    %v1100 = vpop.f32.mrf.mxu0
    %v1101 = vadd.f32 %v1088, %v1100
    %v1102 = vpop.f32.mrf.mxu0
    %1103 = vdwg.mxu0
    %1104 = vmatpush.bf16.msra.mxu0 %v954
    %1105 = vmatpush.bf16.msra.mxu0 %v950
    %1106 = vmatpush.bf16.msra.mxu0 %v946
    %1107 = vmatpush.bf16.msra.mxu0 %v942
    %1108 = vmatpush.bf16.msra.mxu0 %v938
    %1109 = vmatpush.bf16.msra.mxu0 %v934
    %1110 = vmatpush.bf16.msra.mxu0 %v930
    %1111 = vmatpush.bf16.msra.mxu0 %v926
    %1112 = vmatmul.bf16.gmra.mxu0 %v720
    %v1113 = vpop.f32.mrf.mxu0
    %v1114 = vadd.f32 %v726, %v1113
    %v1115 = vpop.f32.mrf.mxu0
    %1116 = vdwg.mxu0
    %1117 = vmatpush.bf16.msra.mxu0 %v986
    %1118 = vmatpush.bf16.msra.mxu0 %v982
    %1119 = vmatpush.bf16.msra.mxu0 %v978
    %1120 = vmatpush.bf16.msra.mxu0 %v974
    %1121 = vmatpush.bf16.msra.mxu0 %v970
    %1122 = vmatpush.bf16.msra.mxu0 %v966
    %1123 = vmatpush.bf16.msra.mxu0 %v962
    %1124 = vmatpush.bf16.msra.mxu0 %v958
    %1125 = vmatmul.bf16.gmra.mxu0 %v721
    %v1126 = vpop.f32.mrf.mxu0
    %v1127 = vadd.f32 %v1114, %v1126
    %v1128 = vpop.f32.mrf.mxu0
    %1129 = vdwg.mxu0
    %1130 = vmatpush.bf16.msra.mxu0 %v955
    %1131 = vmatpush.bf16.msra.mxu0 %v951
    %1132 = vmatpush.bf16.msra.mxu0 %v947
    %1133 = vmatpush.bf16.msra.mxu0 %v943
    %1134 = vmatpush.bf16.msra.mxu0 %v939
    %1135 = vmatpush.bf16.msra.mxu0 %v935
    %1136 = vmatpush.bf16.msra.mxu0 %v931
    %1137 = vmatpush.bf16.msra.mxu0 %v927
    %1138 = vmatmul.bf16.gmra.mxu0 %v720
    %v1139 = vpop.f32.mrf.mxu0
    %v1140 = vadd.f32 %v727, %v1139
    %v1141 = vpop.f32.mrf.mxu0
    %1142 = vdwg.mxu0
    %1143 = vmatpush.bf16.msra.mxu0 %v987
    %1144 = vmatpush.bf16.msra.mxu0 %v983
    %1145 = vmatpush.bf16.msra.mxu0 %v979
    %1146 = vmatpush.bf16.msra.mxu0 %v975
    %1147 = vmatpush.bf16.msra.mxu0 %v971
    %1148 = vmatpush.bf16.msra.mxu0 %v967
    %1149 = vmatpush.bf16.msra.mxu0 %v963
    %1150 = vmatpush.bf16.msra.mxu0 %v959
    %1151 = vmatmul.bf16.gmra.mxu0 %v721
    %v1152 = vpop.f32.mrf.mxu0
    %v1153 = vadd.f32 %v1140, %v1152
    %v1154 = vpop.f32.mrf.mxu0
    %1155 = vdwg.mxu0
    %v1156 = vmul.f32 %v1075, 0.01
    %v1157 = vmul.f32 %v1101, 0.01
    %v1158 = vmul.f32 %v1127, 0.01
    %v1159 = vmul.f32 %v1153, 0.01
    %v1160 = vmax.f32 %v1075, %v1156
    %v1161 = vmax.f32 %v1101, %v1157
    %v1162 = vmax.f32 %v1127, %v1158
    %v1163 = vmax.f32 %v1153, %v1159
    // Predicated region
    $region158: #{tpu_custom_call.1} parent=1 // pred_check
      %p1164 = pneg %p306
    $region159: #{tpu_custom_call.1} parent=1 // pred_check_branch
      %1166 = sbr.rel (%p1164) target = $region161
    $region160: #{tpu_custom_call.1} parent=1 // pred_region
      %s1167 = smul.u32 4, 64
      %s1168 = smul.u32 %s1167, 8
      %s1169 = sshll.u32 %s1168, 4
      %1170 = dma.done [#allocation4], %s1169
    $region161: #{tpu_custom_call.1} parent=1 // pred_fallthru
      _
    %v1171 = vld [vmem:[#allocation2] sm:$0xff]
    %v1172 = vld [vmem:[#allocation2 + $0x8] sm:$0xff]
    %v1173 = vld [vmem:[#allocation2 + $0x10] sm:$0xff]
    %v1174 = vld [vmem:[#allocation2 + $0x18] sm:$0xff]
    %v1175 = vld [vmem:[#allocation2 + $0x20] sm:$0xff]
    %v1176 = vld [vmem:[#allocation2 + $0x28] sm:$0xff]
    %v1177 = vld [vmem:[#allocation2 + $0x30] sm:$0xff]
    %v1178 = vld [vmem:[#allocation2 + $0x38] sm:$0xff]
    %v1179 = vld [vmem:[#allocation2 + $0x40] sm:$0xff]
    %v1180 = vld [vmem:[#allocation2 + $0x48] sm:$0xff]
    %v1181 = vld [vmem:[#allocation2 + $0x50] sm:$0xff]
    %v1182 = vld [vmem:[#allocation2 + $0x58] sm:$0xff]
    %v1183 = vld [vmem:[#allocation2 + $0x60] sm:$0xff]
    %v1184 = vld [vmem:[#allocation2 + $0x68] sm:$0xff]
    %v1185 = vld [vmem:[#allocation2 + $0x70] sm:$0xff]
    %v1186 = vld [vmem:[#allocation2 + $0x78] sm:$0xff]
    %v1187 = vld [vmem:[#allocation2 + $0x80] sm:$0xff]
    %v1188 = vld [vmem:[#allocation2 + $0x88] sm:$0xff]
    %v1189 = vld [vmem:[#allocation2 + $0x90] sm:$0xff]
    %v1190 = vld [vmem:[#allocation2 + $0x98] sm:$0xff]
    %v1191 = vld [vmem:[#allocation2 + $0xa0] sm:$0xff]
    %v1192 = vld [vmem:[#allocation2 + $0xa8] sm:$0xff]
    %v1193 = vld [vmem:[#allocation2 + $0xb0] sm:$0xff]
    %v1194 = vld [vmem:[#allocation2 + $0xb8] sm:$0xff]
    %v1195 = vld [vmem:[#allocation2 + $0xc0] sm:$0xff]
    %v1196 = vld [vmem:[#allocation2 + $0xc8] sm:$0xff]
    %v1197 = vld [vmem:[#allocation2 + $0xd0] sm:$0xff]
    %v1198 = vld [vmem:[#allocation2 + $0xd8] sm:$0xff]
    %v1199 = vld [vmem:[#allocation2 + $0xe0] sm:$0xff]
    %v1200 = vld [vmem:[#allocation2 + $0xe8] sm:$0xff]
    %v1201 = vld [vmem:[#allocation2 + $0xf0] sm:$0xff]
    %v1202 = vld [vmem:[#allocation2 + $0xf8] sm:$0xff]
    %v1203 = vld [vmem:[#allocation2 + $0x100] sm:$0xff]
    %v1204 = vld [vmem:[#allocation2 + $0x108] sm:$0xff]
    %v1205 = vld [vmem:[#allocation2 + $0x110] sm:$0xff]
    %v1206 = vld [vmem:[#allocation2 + $0x118] sm:$0xff]
    %v1207 = vld [vmem:[#allocation2 + $0x120] sm:$0xff]
    %v1208 = vld [vmem:[#allocation2 + $0x128] sm:$0xff]
    %v1209 = vld [vmem:[#allocation2 + $0x130] sm:$0xff]
    %v1210 = vld [vmem:[#allocation2 + $0x138] sm:$0xff]
    %v1211 = vld [vmem:[#allocation2 + $0x140] sm:$0xff]
    %v1212 = vld [vmem:[#allocation2 + $0x148] sm:$0xff]
    %v1213 = vld [vmem:[#allocation2 + $0x150] sm:$0xff]
    %v1214 = vld [vmem:[#allocation2 + $0x158] sm:$0xff]
    %v1215 = vld [vmem:[#allocation2 + $0x160] sm:$0xff]
    %v1216 = vld [vmem:[#allocation2 + $0x168] sm:$0xff]
    %v1217 = vld [vmem:[#allocation2 + $0x170] sm:$0xff]
    %v1218 = vld [vmem:[#allocation2 + $0x178] sm:$0xff]
    %v1219 = vld [vmem:[#allocation2 + $0x180] sm:$0xff]
    %v1220 = vld [vmem:[#allocation2 + $0x188] sm:$0xff]
    %v1221 = vld [vmem:[#allocation2 + $0x190] sm:$0xff]
    %v1222 = vld [vmem:[#allocation2 + $0x198] sm:$0xff]
    %v1223 = vld [vmem:[#allocation2 + $0x1a0] sm:$0xff]
    %v1224 = vld [vmem:[#allocation2 + $0x1a8] sm:$0xff]
    %v1225 = vld [vmem:[#allocation2 + $0x1b0] sm:$0xff]
    %v1226 = vld [vmem:[#allocation2 + $0x1b8] sm:$0xff]
    %v1227 = vld [vmem:[#allocation2 + $0x1c0] sm:$0xff]
    %v1228 = vld [vmem:[#allocation2 + $0x1c8] sm:$0xff]
    %v1229 = vld [vmem:[#allocation2 + $0x1d0] sm:$0xff]
    %v1230 = vld [vmem:[#allocation2 + $0x1d8] sm:$0xff]
    %v1231 = vld [vmem:[#allocation2 + $0x1e0] sm:$0xff]
    %v1232 = vld [vmem:[#allocation2 + $0x1e8] sm:$0xff]
    %v1233 = vld [vmem:[#allocation2 + $0x1f0] sm:$0xff]
    %v1234 = vld [vmem:[#allocation2 + $0x1f8] sm:$0xff]
    %v1235 = vld [vmem:[#allocation2 + $0x200] sm:$0xff]
    %v1236 = vld [vmem:[#allocation2 + $0x208] sm:$0xff]
    %v1237 = vld [vmem:[#allocation2 + $0x210] sm:$0xff]
    %v1238 = vld [vmem:[#allocation2 + $0x218] sm:$0xff]
    %v1239 = vld [vmem:[#allocation2 + $0x220] sm:$0xff]
    %v1240 = vld [vmem:[#allocation2 + $0x228] sm:$0xff]
    %v1241 = vld [vmem:[#allocation2 + $0x230] sm:$0xff]
    %v1242 = vld [vmem:[#allocation2 + $0x238] sm:$0xff]
    %v1243 = vld [vmem:[#allocation2 + $0x240] sm:$0xff]
    %v1244 = vld [vmem:[#allocation2 + $0x248] sm:$0xff]
    %v1245 = vld [vmem:[#allocation2 + $0x250] sm:$0xff]
    %v1246 = vld [vmem:[#allocation2 + $0x258] sm:$0xff]
    %v1247 = vld [vmem:[#allocation2 + $0x260] sm:$0xff]
    %v1248 = vld [vmem:[#allocation2 + $0x268] sm:$0xff]
    %v1249 = vld [vmem:[#allocation2 + $0x270] sm:$0xff]
    %v1250 = vld [vmem:[#allocation2 + $0x278] sm:$0xff]
    %v1251 = vld [vmem:[#allocation2 + $0x280] sm:$0xff]
    %v1252 = vld [vmem:[#allocation2 + $0x288] sm:$0xff]
    %v1253 = vld [vmem:[#allocation2 + $0x290] sm:$0xff]
    %v1254 = vld [vmem:[#allocation2 + $0x298] sm:$0xff]
    %v1255 = vld [vmem:[#allocation2 + $0x2a0] sm:$0xff]
    %v1256 = vld [vmem:[#allocation2 + $0x2a8] sm:$0xff]
    %v1257 = vld [vmem:[#allocation2 + $0x2b0] sm:$0xff]
    %v1258 = vld [vmem:[#allocation2 + $0x2b8] sm:$0xff]
    %v1259 = vld [vmem:[#allocation2 + $0x2c0] sm:$0xff]
    %v1260 = vld [vmem:[#allocation2 + $0x2c8] sm:$0xff]
    %v1261 = vld [vmem:[#allocation2 + $0x2d0] sm:$0xff]
    %v1262 = vld [vmem:[#allocation2 + $0x2d8] sm:$0xff]
    %v1263 = vld [vmem:[#allocation2 + $0x2e0] sm:$0xff]
    %v1264 = vld [vmem:[#allocation2 + $0x2e8] sm:$0xff]
    %v1265 = vld [vmem:[#allocation2 + $0x2f0] sm:$0xff]
    %v1266 = vld [vmem:[#allocation2 + $0x2f8] sm:$0xff]
    %v1267 = vld [vmem:[#allocation2 + $0x300] sm:$0xff]
    %v1268 = vld [vmem:[#allocation2 + $0x308] sm:$0xff]
    %v1269 = vld [vmem:[#allocation2 + $0x310] sm:$0xff]
    %v1270 = vld [vmem:[#allocation2 + $0x318] sm:$0xff]
    %v1271 = vld [vmem:[#allocation2 + $0x320] sm:$0xff]
    %v1272 = vld [vmem:[#allocation2 + $0x328] sm:$0xff]
    %v1273 = vld [vmem:[#allocation2 + $0x330] sm:$0xff]
    %v1274 = vld [vmem:[#allocation2 + $0x338] sm:$0xff]
    %v1275 = vld [vmem:[#allocation2 + $0x340] sm:$0xff]
    %v1276 = vld [vmem:[#allocation2 + $0x348] sm:$0xff]
    %v1277 = vld [vmem:[#allocation2 + $0x350] sm:$0xff]
    %v1278 = vld [vmem:[#allocation2 + $0x358] sm:$0xff]
    %v1279 = vld [vmem:[#allocation2 + $0x360] sm:$0xff]
    %v1280 = vld [vmem:[#allocation2 + $0x368] sm:$0xff]
    %v1281 = vld [vmem:[#allocation2 + $0x370] sm:$0xff]
    %v1282 = vld [vmem:[#allocation2 + $0x378] sm:$0xff]
    %v1283 = vld [vmem:[#allocation2 + $0x380] sm:$0xff]
    %v1284 = vld [vmem:[#allocation2 + $0x388] sm:$0xff]
    %v1285 = vld [vmem:[#allocation2 + $0x390] sm:$0xff]
    %v1286 = vld [vmem:[#allocation2 + $0x398] sm:$0xff]
    %v1287 = vld [vmem:[#allocation2 + $0x3a0] sm:$0xff]
    %v1288 = vld [vmem:[#allocation2 + $0x3a8] sm:$0xff]
    %v1289 = vld [vmem:[#allocation2 + $0x3b0] sm:$0xff]
    %v1290 = vld [vmem:[#allocation2 + $0x3b8] sm:$0xff]
    %v1291 = vld [vmem:[#allocation2 + $0x3c0] sm:$0xff]
    %v1292 = vld [vmem:[#allocation2 + $0x3c8] sm:$0xff]
    %v1293 = vld [vmem:[#allocation2 + $0x3d0] sm:$0xff]
    %v1294 = vld [vmem:[#allocation2 + $0x3d8] sm:$0xff]
    %v1295 = vld [vmem:[#allocation2 + $0x3e0] sm:$0xff]
    %v1296 = vld [vmem:[#allocation2 + $0x3e8] sm:$0xff]
    %v1297 = vld [vmem:[#allocation2 + $0x3f0] sm:$0xff]
    %v1298 = vld [vmem:[#allocation2 + $0x3f8] sm:$0xff]
    %v1299 = vld [vmem:[#allocation2 + $0x400] sm:$0xff]
    %v1300 = vld [vmem:[#allocation2 + $0x408] sm:$0xff]
    %v1301 = vld [vmem:[#allocation2 + $0x410] sm:$0xff]
    %v1302 = vld [vmem:[#allocation2 + $0x418] sm:$0xff]
    %v1303 = vld [vmem:[#allocation2 + $0x420] sm:$0xff]
    %v1304 = vld [vmem:[#allocation2 + $0x428] sm:$0xff]
    %v1305 = vld [vmem:[#allocation2 + $0x430] sm:$0xff]
    %v1306 = vld [vmem:[#allocation2 + $0x438] sm:$0xff]
    %v1307 = vld [vmem:[#allocation2 + $0x440] sm:$0xff]
    %v1308 = vld [vmem:[#allocation2 + $0x448] sm:$0xff]
    %v1309 = vld [vmem:[#allocation2 + $0x450] sm:$0xff]
    %v1310 = vld [vmem:[#allocation2 + $0x458] sm:$0xff]
    %v1311 = vld [vmem:[#allocation2 + $0x460] sm:$0xff]
    %v1312 = vld [vmem:[#allocation2 + $0x468] sm:$0xff]
    %v1313 = vld [vmem:[#allocation2 + $0x470] sm:$0xff]
    %v1314 = vld [vmem:[#allocation2 + $0x478] sm:$0xff]
    %v1315 = vld [vmem:[#allocation2 + $0x480] sm:$0xff]
    %v1316 = vld [vmem:[#allocation2 + $0x488] sm:$0xff]
    %v1317 = vld [vmem:[#allocation2 + $0x490] sm:$0xff]
    %v1318 = vld [vmem:[#allocation2 + $0x498] sm:$0xff]
    %v1319 = vld [vmem:[#allocation2 + $0x4a0] sm:$0xff]
    %v1320 = vld [vmem:[#allocation2 + $0x4a8] sm:$0xff]
    %v1321 = vld [vmem:[#allocation2 + $0x4b0] sm:$0xff]
    %v1322 = vld [vmem:[#allocation2 + $0x4b8] sm:$0xff]
    %v1323 = vld [vmem:[#allocation2 + $0x4c0] sm:$0xff]
    %v1324 = vld [vmem:[#allocation2 + $0x4c8] sm:$0xff]
    %v1325 = vld [vmem:[#allocation2 + $0x4d0] sm:$0xff]
    %v1326 = vld [vmem:[#allocation2 + $0x4d8] sm:$0xff]
    %v1327 = vld [vmem:[#allocation2 + $0x4e0] sm:$0xff]
    %v1328 = vld [vmem:[#allocation2 + $0x4e8] sm:$0xff]
    %v1329 = vld [vmem:[#allocation2 + $0x4f0] sm:$0xff]
    %v1330 = vld [vmem:[#allocation2 + $0x4f8] sm:$0xff]
    %v1331 = vld [vmem:[#allocation2 + $0x500] sm:$0xff]
    %v1332 = vld [vmem:[#allocation2 + $0x508] sm:$0xff]
    %v1333 = vld [vmem:[#allocation2 + $0x510] sm:$0xff]
    %v1334 = vld [vmem:[#allocation2 + $0x518] sm:$0xff]
    %v1335 = vld [vmem:[#allocation2 + $0x520] sm:$0xff]
    %v1336 = vld [vmem:[#allocation2 + $0x528] sm:$0xff]
    %v1337 = vld [vmem:[#allocation2 + $0x530] sm:$0xff]
    %v1338 = vld [vmem:[#allocation2 + $0x538] sm:$0xff]
    %v1339 = vld [vmem:[#allocation2 + $0x540] sm:$0xff]
    %v1340 = vld [vmem:[#allocation2 + $0x548] sm:$0xff]
    %v1341 = vld [vmem:[#allocation2 + $0x550] sm:$0xff]
    %v1342 = vld [vmem:[#allocation2 + $0x558] sm:$0xff]
    %v1343 = vld [vmem:[#allocation2 + $0x560] sm:$0xff]
    %v1344 = vld [vmem:[#allocation2 + $0x568] sm:$0xff]
    %v1345 = vld [vmem:[#allocation2 + $0x570] sm:$0xff]
    %v1346 = vld [vmem:[#allocation2 + $0x578] sm:$0xff]
    %v1347 = vld [vmem:[#allocation2 + $0x580] sm:$0xff]
    %v1348 = vld [vmem:[#allocation2 + $0x588] sm:$0xff]
    %v1349 = vld [vmem:[#allocation2 + $0x590] sm:$0xff]
    %v1350 = vld [vmem:[#allocation2 + $0x598] sm:$0xff]
    %v1351 = vld [vmem:[#allocation2 + $0x5a0] sm:$0xff]
    %v1352 = vld [vmem:[#allocation2 + $0x5a8] sm:$0xff]
    %v1353 = vld [vmem:[#allocation2 + $0x5b0] sm:$0xff]
    %v1354 = vld [vmem:[#allocation2 + $0x5b8] sm:$0xff]
    %v1355 = vld [vmem:[#allocation2 + $0x5c0] sm:$0xff]
    %v1356 = vld [vmem:[#allocation2 + $0x5c8] sm:$0xff]
    %v1357 = vld [vmem:[#allocation2 + $0x5d0] sm:$0xff]
    %v1358 = vld [vmem:[#allocation2 + $0x5d8] sm:$0xff]
    %v1359 = vld [vmem:[#allocation2 + $0x5e0] sm:$0xff]
    %v1360 = vld [vmem:[#allocation2 + $0x5e8] sm:$0xff]
    %v1361 = vld [vmem:[#allocation2 + $0x5f0] sm:$0xff]
    %v1362 = vld [vmem:[#allocation2 + $0x5f8] sm:$0xff]
    %v1363 = vld [vmem:[#allocation2 + $0x600] sm:$0xff]
    %v1364 = vld [vmem:[#allocation2 + $0x608] sm:$0xff]
    %v1365 = vld [vmem:[#allocation2 + $0x610] sm:$0xff]
    %v1366 = vld [vmem:[#allocation2 + $0x618] sm:$0xff]
    %v1367 = vld [vmem:[#allocation2 + $0x620] sm:$0xff]
    %v1368 = vld [vmem:[#allocation2 + $0x628] sm:$0xff]
    %v1369 = vld [vmem:[#allocation2 + $0x630] sm:$0xff]
    %v1370 = vld [vmem:[#allocation2 + $0x638] sm:$0xff]
    %v1371 = vld [vmem:[#allocation2 + $0x640] sm:$0xff]
    %v1372 = vld [vmem:[#allocation2 + $0x648] sm:$0xff]
    %v1373 = vld [vmem:[#allocation2 + $0x650] sm:$0xff]
    %v1374 = vld [vmem:[#allocation2 + $0x658] sm:$0xff]
    %v1375 = vld [vmem:[#allocation2 + $0x660] sm:$0xff]
    %v1376 = vld [vmem:[#allocation2 + $0x668] sm:$0xff]
    %v1377 = vld [vmem:[#allocation2 + $0x670] sm:$0xff]
    %v1378 = vld [vmem:[#allocation2 + $0x678] sm:$0xff]
    %v1379 = vld [vmem:[#allocation2 + $0x680] sm:$0xff]
    %v1380 = vld [vmem:[#allocation2 + $0x688] sm:$0xff]
    %v1381 = vld [vmem:[#allocation2 + $0x690] sm:$0xff]
    %v1382 = vld [vmem:[#allocation2 + $0x698] sm:$0xff]
    %v1383 = vld [vmem:[#allocation2 + $0x6a0] sm:$0xff]
    %v1384 = vld [vmem:[#allocation2 + $0x6a8] sm:$0xff]
    %v1385 = vld [vmem:[#allocation2 + $0x6b0] sm:$0xff]
    %v1386 = vld [vmem:[#allocation2 + $0x6b8] sm:$0xff]
    %v1387 = vld [vmem:[#allocation2 + $0x6c0] sm:$0xff]
    %v1388 = vld [vmem:[#allocation2 + $0x6c8] sm:$0xff]
    %v1389 = vld [vmem:[#allocation2 + $0x6d0] sm:$0xff]
    %v1390 = vld [vmem:[#allocation2 + $0x6d8] sm:$0xff]
    %v1391 = vld [vmem:[#allocation2 + $0x6e0] sm:$0xff]
    %v1392 = vld [vmem:[#allocation2 + $0x6e8] sm:$0xff]
    %v1393 = vld [vmem:[#allocation2 + $0x6f0] sm:$0xff]
    %v1394 = vld [vmem:[#allocation2 + $0x6f8] sm:$0xff]
    %v1395 = vld [vmem:[#allocation2 + $0x700] sm:$0xff]
    %v1396 = vld [vmem:[#allocation2 + $0x708] sm:$0xff]
    %v1397 = vld [vmem:[#allocation2 + $0x710] sm:$0xff]
    %v1398 = vld [vmem:[#allocation2 + $0x718] sm:$0xff]
    %v1399 = vld [vmem:[#allocation2 + $0x720] sm:$0xff]
    %v1400 = vld [vmem:[#allocation2 + $0x728] sm:$0xff]
    %v1401 = vld [vmem:[#allocation2 + $0x730] sm:$0xff]
    %v1402 = vld [vmem:[#allocation2 + $0x738] sm:$0xff]
    %v1403 = vld [vmem:[#allocation2 + $0x740] sm:$0xff]
    %v1404 = vld [vmem:[#allocation2 + $0x748] sm:$0xff]
    %v1405 = vld [vmem:[#allocation2 + $0x750] sm:$0xff]
    %v1406 = vld [vmem:[#allocation2 + $0x758] sm:$0xff]
    %v1407 = vld [vmem:[#allocation2 + $0x760] sm:$0xff]
    %v1408 = vld [vmem:[#allocation2 + $0x768] sm:$0xff]
    %v1409 = vld [vmem:[#allocation2 + $0x770] sm:$0xff]
    %v1410 = vld [vmem:[#allocation2 + $0x778] sm:$0xff]
    %v1411 = vld [vmem:[#allocation2 + $0x780] sm:$0xff]
    %v1412 = vld [vmem:[#allocation2 + $0x788] sm:$0xff]
    %v1413 = vld [vmem:[#allocation2 + $0x790] sm:$0xff]
    %v1414 = vld [vmem:[#allocation2 + $0x798] sm:$0xff]
    %v1415 = vld [vmem:[#allocation2 + $0x7a0] sm:$0xff]
    %v1416 = vld [vmem:[#allocation2 + $0x7a8] sm:$0xff]
    %v1417 = vld [vmem:[#allocation2 + $0x7b0] sm:$0xff]
    %v1418 = vld [vmem:[#allocation2 + $0x7b8] sm:$0xff]
    %v1419 = vld [vmem:[#allocation2 + $0x7c0] sm:$0xff]
    %v1420 = vld [vmem:[#allocation2 + $0x7c8] sm:$0xff]
    %v1421 = vld [vmem:[#allocation2 + $0x7d0] sm:$0xff]
    %v1422 = vld [vmem:[#allocation2 + $0x7d8] sm:$0xff]
    %v1423 = vld [vmem:[#allocation2 + $0x7e0] sm:$0xff]
    %v1424 = vld [vmem:[#allocation2 + $0x7e8] sm:$0xff]
    %v1425 = vld [vmem:[#allocation2 + $0x7f0] sm:$0xff]
    %v1426 = vld [vmem:[#allocation2 + $0x7f8] sm:$0xff]
    %v1427 = vpack.c.bf16 %v1160, %v1160
    %v1428 = vpack.c.bf16 %v1161, %v1161
    %v1429 = vpack.c.bf16 %v1162, %v1162
    %v1430 = vpack.c.bf16 %v1163, %v1163
    %v1431 = vld [vmem:[#allocation28] sm:$0xff]
    %v1433 = vperm.slane %v1431, 0
    %v1434 = vperm.slane %v1431, 1
    %v1435 = vperm.slane %v1431, 2
    %v1436 = vperm.slane %v1431, 3
    %v1437 = vperm.slane %v1431, 4
    %v1438 = vperm.slane %v1431, 5
    %v1439 = vperm.slane %v1431, 6
    %v1440 = vperm.slane %v1431, 7
    %v1705 = vunpack.c.l.b16 %v1171
    %v1706 = vunpack.c.h.b16 %v1171
    %v1707 = vunpack.c.l.b16 %v1172
    %v1708 = vunpack.c.h.b16 %v1172
    %v1709 = vunpack.c.l.b16 %v1173
    %v1710 = vunpack.c.h.b16 %v1173
    %v1711 = vunpack.c.l.b16 %v1174
    %v1712 = vunpack.c.h.b16 %v1174
    %v1713 = vunpack.c.l.b16 %v1175
    %v1714 = vunpack.c.h.b16 %v1175
    %v1715 = vunpack.c.l.b16 %v1176
    %v1716 = vunpack.c.h.b16 %v1176
    %v1717 = vunpack.c.l.b16 %v1177
    %v1718 = vunpack.c.h.b16 %v1177
    %v1719 = vunpack.c.l.b16 %v1178
    %v1720 = vunpack.c.h.b16 %v1178
    %v1721 = vunpack.c.l.b16 %v1179
    %v1722 = vunpack.c.h.b16 %v1179
    %v1723 = vunpack.c.l.b16 %v1180
    %v1724 = vunpack.c.h.b16 %v1180
    %v1725 = vunpack.c.l.b16 %v1181
    %v1726 = vunpack.c.h.b16 %v1181
    %v1727 = vunpack.c.l.b16 %v1182
    %v1728 = vunpack.c.h.b16 %v1182
    %v1729 = vunpack.c.l.b16 %v1183
    %v1730 = vunpack.c.h.b16 %v1183
    %v1731 = vunpack.c.l.b16 %v1184
    %v1732 = vunpack.c.h.b16 %v1184
    %v1733 = vunpack.c.l.b16 %v1185
    %v1734 = vunpack.c.h.b16 %v1185
    %v1735 = vunpack.c.l.b16 %v1186
    %v1736 = vunpack.c.h.b16 %v1186
    %v1737 = vunpack.c.l.b16 %v1187
    %v1738 = vunpack.c.h.b16 %v1187
    %v1739 = vunpack.c.l.b16 %v1188
    %v1740 = vunpack.c.h.b16 %v1188
    %v1741 = vunpack.c.l.b16 %v1189
    %v1742 = vunpack.c.h.b16 %v1189
    %v1743 = vunpack.c.l.b16 %v1190
    %v1744 = vunpack.c.h.b16 %v1190
    %v1745 = vunpack.c.l.b16 %v1191
    %v1746 = vunpack.c.h.b16 %v1191
    %v1747 = vunpack.c.l.b16 %v1192
    %v1748 = vunpack.c.h.b16 %v1192
    %v1749 = vunpack.c.l.b16 %v1193
    %v1750 = vunpack.c.h.b16 %v1193
    %v1751 = vunpack.c.l.b16 %v1194
    %v1752 = vunpack.c.h.b16 %v1194
    %v1753 = vunpack.c.l.b16 %v1195
    %v1754 = vunpack.c.h.b16 %v1195
    %v1755 = vunpack.c.l.b16 %v1196
    %v1756 = vunpack.c.h.b16 %v1196
    %v1757 = vunpack.c.l.b16 %v1197
    %v1758 = vunpack.c.h.b16 %v1197
    %v1759 = vunpack.c.l.b16 %v1198
    %v1760 = vunpack.c.h.b16 %v1198
    %v1761 = vunpack.c.l.b16 %v1199
    %v1762 = vunpack.c.h.b16 %v1199
    %v1763 = vunpack.c.l.b16 %v1200
    %v1764 = vunpack.c.h.b16 %v1200
    %v1765 = vunpack.c.l.b16 %v1201
    %v1766 = vunpack.c.h.b16 %v1201
    %v1767 = vunpack.c.l.b16 %v1202
    %v1768 = vunpack.c.h.b16 %v1202
    %v1769 = vunpack.c.l.b16 %v1203
    %v1770 = vunpack.c.h.b16 %v1203
    %v1771 = vunpack.c.l.b16 %v1204
    %v1772 = vunpack.c.h.b16 %v1204
    %v1773 = vunpack.c.l.b16 %v1205
    %v1774 = vunpack.c.h.b16 %v1205
    %v1775 = vunpack.c.l.b16 %v1206
    %v1776 = vunpack.c.h.b16 %v1206
    %v1777 = vunpack.c.l.b16 %v1207
    %v1778 = vunpack.c.h.b16 %v1207
    %v1779 = vunpack.c.l.b16 %v1208
    %v1780 = vunpack.c.h.b16 %v1208
    %v1781 = vunpack.c.l.b16 %v1209
    %v1782 = vunpack.c.h.b16 %v1209
    %v1783 = vunpack.c.l.b16 %v1210
    %v1784 = vunpack.c.h.b16 %v1210
    %v1785 = vunpack.c.l.b16 %v1211
    %v1786 = vunpack.c.h.b16 %v1211
    %v1787 = vunpack.c.l.b16 %v1212
    %v1788 = vunpack.c.h.b16 %v1212
    %v1789 = vunpack.c.l.b16 %v1213
    %v1790 = vunpack.c.h.b16 %v1213
    %v1791 = vunpack.c.l.b16 %v1214
    %v1792 = vunpack.c.h.b16 %v1214
    %v1793 = vunpack.c.l.b16 %v1215
    %v1794 = vunpack.c.h.b16 %v1215
    %v1795 = vunpack.c.l.b16 %v1216
    %v1796 = vunpack.c.h.b16 %v1216
    %v1797 = vunpack.c.l.b16 %v1217
    %v1798 = vunpack.c.h.b16 %v1217
    %v1799 = vunpack.c.l.b16 %v1218
    %v1800 = vunpack.c.h.b16 %v1218
    %v1801 = vunpack.c.l.b16 %v1219
    %v1802 = vunpack.c.h.b16 %v1219
    %v1803 = vunpack.c.l.b16 %v1220
    %v1804 = vunpack.c.h.b16 %v1220
    %v1805 = vunpack.c.l.b16 %v1221
    %v1806 = vunpack.c.h.b16 %v1221
    %v1807 = vunpack.c.l.b16 %v1222
    %v1808 = vunpack.c.h.b16 %v1222
    %v1809 = vunpack.c.l.b16 %v1223
    %v1810 = vunpack.c.h.b16 %v1223
    %v1811 = vunpack.c.l.b16 %v1224
    %v1812 = vunpack.c.h.b16 %v1224
    %v1813 = vunpack.c.l.b16 %v1225
    %v1814 = vunpack.c.h.b16 %v1225
    %v1815 = vunpack.c.l.b16 %v1226
    %v1816 = vunpack.c.h.b16 %v1226
    %v1817 = vunpack.c.l.b16 %v1227
    %v1818 = vunpack.c.h.b16 %v1227
    %v1819 = vunpack.c.l.b16 %v1228
    %v1820 = vunpack.c.h.b16 %v1228
    %v1821 = vunpack.c.l.b16 %v1229
    %v1822 = vunpack.c.h.b16 %v1229
    %v1823 = vunpack.c.l.b16 %v1230
    %v1824 = vunpack.c.h.b16 %v1230
    %v1825 = vunpack.c.l.b16 %v1231
    %v1826 = vunpack.c.h.b16 %v1231
    %v1827 = vunpack.c.l.b16 %v1232
    %v1828 = vunpack.c.h.b16 %v1232
    %v1829 = vunpack.c.l.b16 %v1233
    %v1830 = vunpack.c.h.b16 %v1233
    %v1831 = vunpack.c.l.b16 %v1234
    %v1832 = vunpack.c.h.b16 %v1234
    %v1833 = vunpack.c.l.b16 %v1235
    %v1834 = vunpack.c.h.b16 %v1235
    %v1835 = vunpack.c.l.b16 %v1236
    %v1836 = vunpack.c.h.b16 %v1236
    %v1837 = vunpack.c.l.b16 %v1237
    %v1838 = vunpack.c.h.b16 %v1237
    %v1839 = vunpack.c.l.b16 %v1238
    %v1840 = vunpack.c.h.b16 %v1238
    %v1841 = vunpack.c.l.b16 %v1239
    %v1842 = vunpack.c.h.b16 %v1239
    %v1843 = vunpack.c.l.b16 %v1240
    %v1844 = vunpack.c.h.b16 %v1240
    %v1845 = vunpack.c.l.b16 %v1241
    %v1846 = vunpack.c.h.b16 %v1241
    %v1847 = vunpack.c.l.b16 %v1242
    %v1848 = vunpack.c.h.b16 %v1242
    %v1849 = vunpack.c.l.b16 %v1243
    %v1850 = vunpack.c.h.b16 %v1243
    %v1851 = vunpack.c.l.b16 %v1244
    %v1852 = vunpack.c.h.b16 %v1244
    %v1853 = vunpack.c.l.b16 %v1245
    %v1854 = vunpack.c.h.b16 %v1245
    %v1855 = vunpack.c.l.b16 %v1246
    %v1856 = vunpack.c.h.b16 %v1246
    %v1857 = vunpack.c.l.b16 %v1247
    %v1858 = vunpack.c.h.b16 %v1247
    %v1859 = vunpack.c.l.b16 %v1248
    %v1860 = vunpack.c.h.b16 %v1248
    %v1861 = vunpack.c.l.b16 %v1249
    %v1862 = vunpack.c.h.b16 %v1249
    %v1863 = vunpack.c.l.b16 %v1250
    %v1864 = vunpack.c.h.b16 %v1250
    %v1865 = vunpack.c.l.b16 %v1251
    %v1866 = vunpack.c.h.b16 %v1251
    %v1867 = vunpack.c.l.b16 %v1252
    %v1868 = vunpack.c.h.b16 %v1252
    %v1869 = vunpack.c.l.b16 %v1253
    %v1870 = vunpack.c.h.b16 %v1253
    %v1871 = vunpack.c.l.b16 %v1254
    %v1872 = vunpack.c.h.b16 %v1254
    %v1873 = vunpack.c.l.b16 %v1255
    %v1874 = vunpack.c.h.b16 %v1255
    %v1875 = vunpack.c.l.b16 %v1256
    %v1876 = vunpack.c.h.b16 %v1256
    %v1877 = vunpack.c.l.b16 %v1257
    %v1878 = vunpack.c.h.b16 %v1257
    %v1879 = vunpack.c.l.b16 %v1258
    %v1880 = vunpack.c.h.b16 %v1258
    %v1881 = vunpack.c.l.b16 %v1259
    %v1882 = vunpack.c.h.b16 %v1259
    %v1883 = vunpack.c.l.b16 %v1260
    %v1884 = vunpack.c.h.b16 %v1260
    %v1885 = vunpack.c.l.b16 %v1261
    %v1886 = vunpack.c.h.b16 %v1261
    %v1887 = vunpack.c.l.b16 %v1262
    %v1888 = vunpack.c.h.b16 %v1262
    %v1889 = vunpack.c.l.b16 %v1263
    %v1890 = vunpack.c.h.b16 %v1263
    %v1891 = vunpack.c.l.b16 %v1264
    %v1892 = vunpack.c.h.b16 %v1264
    %v1893 = vunpack.c.l.b16 %v1265
    %v1894 = vunpack.c.h.b16 %v1265
    %v1895 = vunpack.c.l.b16 %v1266
    %v1896 = vunpack.c.h.b16 %v1266
    %v1897 = vunpack.c.l.b16 %v1267
    %v1898 = vunpack.c.h.b16 %v1267
    %v1899 = vunpack.c.l.b16 %v1268
    %v1900 = vunpack.c.h.b16 %v1268
    %v1901 = vunpack.c.l.b16 %v1269
    %v1902 = vunpack.c.h.b16 %v1269
    %v1903 = vunpack.c.l.b16 %v1270
    %v1904 = vunpack.c.h.b16 %v1270
    %v1905 = vunpack.c.l.b16 %v1271
    %v1906 = vunpack.c.h.b16 %v1271
    %v1907 = vunpack.c.l.b16 %v1272
    %v1908 = vunpack.c.h.b16 %v1272
    %v1909 = vunpack.c.l.b16 %v1273
    %v1910 = vunpack.c.h.b16 %v1273
    %v1911 = vunpack.c.l.b16 %v1274
    %v1912 = vunpack.c.h.b16 %v1274
    %v1913 = vunpack.c.l.b16 %v1275
    %v1914 = vunpack.c.h.b16 %v1275
    %v1915 = vunpack.c.l.b16 %v1276
    %v1916 = vunpack.c.h.b16 %v1276
    %v1917 = vunpack.c.l.b16 %v1277
    %v1918 = vunpack.c.h.b16 %v1277
    %v1919 = vunpack.c.l.b16 %v1278
    %v1920 = vunpack.c.h.b16 %v1278
    %v1921 = vunpack.c.l.b16 %v1279
    %v1922 = vunpack.c.h.b16 %v1279
    %v1923 = vunpack.c.l.b16 %v1280
    %v1924 = vunpack.c.h.b16 %v1280
    %v1925 = vunpack.c.l.b16 %v1281
    %v1926 = vunpack.c.h.b16 %v1281
    %v1927 = vunpack.c.l.b16 %v1282
    %v1928 = vunpack.c.h.b16 %v1282
    %v1929 = vunpack.c.l.b16 %v1283
    %v1930 = vunpack.c.h.b16 %v1283
    %v1931 = vunpack.c.l.b16 %v1284
    %v1932 = vunpack.c.h.b16 %v1284
    %v1933 = vunpack.c.l.b16 %v1285
    %v1934 = vunpack.c.h.b16 %v1285
    %v1935 = vunpack.c.l.b16 %v1286
    %v1936 = vunpack.c.h.b16 %v1286
    %v1937 = vunpack.c.l.b16 %v1287
    %v1938 = vunpack.c.h.b16 %v1287
    %v1939 = vunpack.c.l.b16 %v1288
    %v1940 = vunpack.c.h.b16 %v1288
    %v1941 = vunpack.c.l.b16 %v1289
    %v1942 = vunpack.c.h.b16 %v1289
    %v1943 = vunpack.c.l.b16 %v1290
    %v1944 = vunpack.c.h.b16 %v1290
    %v1945 = vunpack.c.l.b16 %v1291
    %v1946 = vunpack.c.h.b16 %v1291
    %v1947 = vunpack.c.l.b16 %v1292
    %v1948 = vunpack.c.h.b16 %v1292
    %v1949 = vunpack.c.l.b16 %v1293
    %v1950 = vunpack.c.h.b16 %v1293
    %v1951 = vunpack.c.l.b16 %v1294
    %v1952 = vunpack.c.h.b16 %v1294
    %v1953 = vunpack.c.l.b16 %v1295
    %v1954 = vunpack.c.h.b16 %v1295
    %v1955 = vunpack.c.l.b16 %v1296
    %v1956 = vunpack.c.h.b16 %v1296
    %v1957 = vunpack.c.l.b16 %v1297
    %v1958 = vunpack.c.h.b16 %v1297
    %v1959 = vunpack.c.l.b16 %v1298
    %v1960 = vunpack.c.h.b16 %v1298
    %v1961 = vunpack.c.l.b16 %v1299
    %v1962 = vunpack.c.h.b16 %v1299
    %v1963 = vunpack.c.l.b16 %v1300
    %v1964 = vunpack.c.h.b16 %v1300
    %v1965 = vunpack.c.l.b16 %v1301
    %v1966 = vunpack.c.h.b16 %v1301
    %v1967 = vunpack.c.l.b16 %v1302
    %v1968 = vunpack.c.h.b16 %v1302
    %v1969 = vunpack.c.l.b16 %v1303
    %v1970 = vunpack.c.h.b16 %v1303
    %v1971 = vunpack.c.l.b16 %v1304
    %v1972 = vunpack.c.h.b16 %v1304
    %v1973 = vunpack.c.l.b16 %v1305
    %v1974 = vunpack.c.h.b16 %v1305
    %v1975 = vunpack.c.l.b16 %v1306
    %v1976 = vunpack.c.h.b16 %v1306
    %v1977 = vunpack.c.l.b16 %v1307
    %v1978 = vunpack.c.h.b16 %v1307
    %v1979 = vunpack.c.l.b16 %v1308
    %v1980 = vunpack.c.h.b16 %v1308
    %v1981 = vunpack.c.l.b16 %v1309
    %v1982 = vunpack.c.h.b16 %v1309
    %v1983 = vunpack.c.l.b16 %v1310
    %v1984 = vunpack.c.h.b16 %v1310
    %v1985 = vunpack.c.l.b16 %v1311
    %v1986 = vunpack.c.h.b16 %v1311
    %v1987 = vunpack.c.l.b16 %v1312
    %v1988 = vunpack.c.h.b16 %v1312
    %v1989 = vunpack.c.l.b16 %v1313
    %v1990 = vunpack.c.h.b16 %v1313
    %v1991 = vunpack.c.l.b16 %v1314
    %v1992 = vunpack.c.h.b16 %v1314
    %v1993 = vunpack.c.l.b16 %v1315
    %v1994 = vunpack.c.h.b16 %v1315
    %v1995 = vunpack.c.l.b16 %v1316
    %v1996 = vunpack.c.h.b16 %v1316
    %v1997 = vunpack.c.l.b16 %v1317
    %v1998 = vunpack.c.h.b16 %v1317
    %v1999 = vunpack.c.l.b16 %v1318
    %v2000 = vunpack.c.h.b16 %v1318
    %v2001 = vunpack.c.l.b16 %v1319
    %v2002 = vunpack.c.h.b16 %v1319
    %v2003 = vunpack.c.l.b16 %v1320
    %v2004 = vunpack.c.h.b16 %v1320
    %v2005 = vunpack.c.l.b16 %v1321
    %v2006 = vunpack.c.h.b16 %v1321
    %v2007 = vunpack.c.l.b16 %v1322
    %v2008 = vunpack.c.h.b16 %v1322
    %v2009 = vunpack.c.l.b16 %v1323
    %v2010 = vunpack.c.h.b16 %v1323
    %v2011 = vunpack.c.l.b16 %v1324
    %v2012 = vunpack.c.h.b16 %v1324
    %v2013 = vunpack.c.l.b16 %v1325
    %v2014 = vunpack.c.h.b16 %v1325
    %v2015 = vunpack.c.l.b16 %v1326
    %v2016 = vunpack.c.h.b16 %v1326
    %v2017 = vunpack.c.l.b16 %v1327
    %v2018 = vunpack.c.h.b16 %v1327
    %v2019 = vunpack.c.l.b16 %v1328
    %v2020 = vunpack.c.h.b16 %v1328
    %v2021 = vunpack.c.l.b16 %v1329
    %v2022 = vunpack.c.h.b16 %v1329
    %v2023 = vunpack.c.l.b16 %v1330
    %v2024 = vunpack.c.h.b16 %v1330
    %v2025 = vunpack.c.l.b16 %v1331
    %v2026 = vunpack.c.h.b16 %v1331
    %v2027 = vunpack.c.l.b16 %v1332
    %v2028 = vunpack.c.h.b16 %v1332
    %v2029 = vunpack.c.l.b16 %v1333
    %v2030 = vunpack.c.h.b16 %v1333
    %v2031 = vunpack.c.l.b16 %v1334
    %v2032 = vunpack.c.h.b16 %v1334
    %v2033 = vunpack.c.l.b16 %v1335
    %v2034 = vunpack.c.h.b16 %v1335
    %v2035 = vunpack.c.l.b16 %v1336
    %v2036 = vunpack.c.h.b16 %v1336
    %v2037 = vunpack.c.l.b16 %v1337
    %v2038 = vunpack.c.h.b16 %v1337
    %v2039 = vunpack.c.l.b16 %v1338
    %v2040 = vunpack.c.h.b16 %v1338
    %v2041 = vunpack.c.l.b16 %v1339
    %v2042 = vunpack.c.h.b16 %v1339
    %v2043 = vunpack.c.l.b16 %v1340
    %v2044 = vunpack.c.h.b16 %v1340
    %v2045 = vunpack.c.l.b16 %v1341
    %v2046 = vunpack.c.h.b16 %v1341
    %v2047 = vunpack.c.l.b16 %v1342
    %v2048 = vunpack.c.h.b16 %v1342
    %v2049 = vunpack.c.l.b16 %v1343
    %v2050 = vunpack.c.h.b16 %v1343
    %v2051 = vunpack.c.l.b16 %v1344
    %v2052 = vunpack.c.h.b16 %v1344
    %v2053 = vunpack.c.l.b16 %v1345
    %v2054 = vunpack.c.h.b16 %v1345
    %v2055 = vunpack.c.l.b16 %v1346
    %v2056 = vunpack.c.h.b16 %v1346
    %v2057 = vunpack.c.l.b16 %v1347
    %v2058 = vunpack.c.h.b16 %v1347
    %v2059 = vunpack.c.l.b16 %v1348
    %v2060 = vunpack.c.h.b16 %v1348
    %v2061 = vunpack.c.l.b16 %v1349
    %v2062 = vunpack.c.h.b16 %v1349
    %v2063 = vunpack.c.l.b16 %v1350
    %v2064 = vunpack.c.h.b16 %v1350
    %v2065 = vunpack.c.l.b16 %v1351
    %v2066 = vunpack.c.h.b16 %v1351
    %v2067 = vunpack.c.l.b16 %v1352
    %v2068 = vunpack.c.h.b16 %v1352
    %v2069 = vunpack.c.l.b16 %v1353
    %v2070 = vunpack.c.h.b16 %v1353
    %v2071 = vunpack.c.l.b16 %v1354
    %v2072 = vunpack.c.h.b16 %v1354
    %v2073 = vunpack.c.l.b16 %v1355
    %v2074 = vunpack.c.h.b16 %v1355
    %v2075 = vunpack.c.l.b16 %v1356
    %v2076 = vunpack.c.h.b16 %v1356
    %v2077 = vunpack.c.l.b16 %v1357
    %v2078 = vunpack.c.h.b16 %v1357
    %v2079 = vunpack.c.l.b16 %v1358
    %v2080 = vunpack.c.h.b16 %v1358
    %v2081 = vunpack.c.l.b16 %v1359
    %v2082 = vunpack.c.h.b16 %v1359
    %v2083 = vunpack.c.l.b16 %v1360
    %v2084 = vunpack.c.h.b16 %v1360
    %v2085 = vunpack.c.l.b16 %v1361
    %v2086 = vunpack.c.h.b16 %v1361
    %v2087 = vunpack.c.l.b16 %v1362
    %v2088 = vunpack.c.h.b16 %v1362
    %v2089 = vunpack.c.l.b16 %v1363
    %v2090 = vunpack.c.h.b16 %v1363
    %v2091 = vunpack.c.l.b16 %v1364
    %v2092 = vunpack.c.h.b16 %v1364
    %v2093 = vunpack.c.l.b16 %v1365
    %v2094 = vunpack.c.h.b16 %v1365
    %v2095 = vunpack.c.l.b16 %v1366
    %v2096 = vunpack.c.h.b16 %v1366
    %v2097 = vunpack.c.l.b16 %v1367
    %v2098 = vunpack.c.h.b16 %v1367
    %v2099 = vunpack.c.l.b16 %v1368
    %v2100 = vunpack.c.h.b16 %v1368
    %v2101 = vunpack.c.l.b16 %v1369
    %v2102 = vunpack.c.h.b16 %v1369
    %v2103 = vunpack.c.l.b16 %v1370
    %v2104 = vunpack.c.h.b16 %v1370
    %v2105 = vunpack.c.l.b16 %v1371
    %v2106 = vunpack.c.h.b16 %v1371
    %v2107 = vunpack.c.l.b16 %v1372
    %v2108 = vunpack.c.h.b16 %v1372
    %v2109 = vunpack.c.l.b16 %v1373
    %v2110 = vunpack.c.h.b16 %v1373
    %v2111 = vunpack.c.l.b16 %v1374
    %v2112 = vunpack.c.h.b16 %v1374
    %v2113 = vunpack.c.l.b16 %v1375
    %v2114 = vunpack.c.h.b16 %v1375
    %v2115 = vunpack.c.l.b16 %v1376
    %v2116 = vunpack.c.h.b16 %v1376
    %v2117 = vunpack.c.l.b16 %v1377
    %v2118 = vunpack.c.h.b16 %v1377
    %v2119 = vunpack.c.l.b16 %v1378
    %v2120 = vunpack.c.h.b16 %v1378
    %v2121 = vunpack.c.l.b16 %v1379
    %v2122 = vunpack.c.h.b16 %v1379
    %v2123 = vunpack.c.l.b16 %v1380
    %v2124 = vunpack.c.h.b16 %v1380
    %v2125 = vunpack.c.l.b16 %v1381
    %v2126 = vunpack.c.h.b16 %v1381
    %v2127 = vunpack.c.l.b16 %v1382
    %v2128 = vunpack.c.h.b16 %v1382
    %v2129 = vunpack.c.l.b16 %v1383
    %v2130 = vunpack.c.h.b16 %v1383
    %v2131 = vunpack.c.l.b16 %v1384
    %v2132 = vunpack.c.h.b16 %v1384
    %v2133 = vunpack.c.l.b16 %v1385
    %v2134 = vunpack.c.h.b16 %v1385
    %v2135 = vunpack.c.l.b16 %v1386
    %v2136 = vunpack.c.h.b16 %v1386
    %v2137 = vunpack.c.l.b16 %v1387
    %v2138 = vunpack.c.h.b16 %v1387
    %v2139 = vunpack.c.l.b16 %v1388
    %v2140 = vunpack.c.h.b16 %v1388
    %v2141 = vunpack.c.l.b16 %v1389
    %v2142 = vunpack.c.h.b16 %v1389
    %v2143 = vunpack.c.l.b16 %v1390
    %v2144 = vunpack.c.h.b16 %v1390
    %v2145 = vunpack.c.l.b16 %v1391
    %v2146 = vunpack.c.h.b16 %v1391
    %v2147 = vunpack.c.l.b16 %v1392
    %v2148 = vunpack.c.h.b16 %v1392
    %v2149 = vunpack.c.l.b16 %v1393
    %v2150 = vunpack.c.h.b16 %v1393
    %v2151 = vunpack.c.l.b16 %v1394
    %v2152 = vunpack.c.h.b16 %v1394
    %v2153 = vunpack.c.l.b16 %v1395
    %v2154 = vunpack.c.h.b16 %v1395
    %v2155 = vunpack.c.l.b16 %v1396
    %v2156 = vunpack.c.h.b16 %v1396
    %v2157 = vunpack.c.l.b16 %v1397
    %v2158 = vunpack.c.h.b16 %v1397
    %v2159 = vunpack.c.l.b16 %v1398
    %v2160 = vunpack.c.h.b16 %v1398
    %v2161 = vunpack.c.l.b16 %v1399
    %v2162 = vunpack.c.h.b16 %v1399
    %v2163 = vunpack.c.l.b16 %v1400
    %v2164 = vunpack.c.h.b16 %v1400
    %v2165 = vunpack.c.l.b16 %v1401
    %v2166 = vunpack.c.h.b16 %v1401
    %v2167 = vunpack.c.l.b16 %v1402
    %v2168 = vunpack.c.h.b16 %v1402
    %v2169 = vunpack.c.l.b16 %v1403
    %v2170 = vunpack.c.h.b16 %v1403
    %v2171 = vunpack.c.l.b16 %v1404
    %v2172 = vunpack.c.h.b16 %v1404
    %v2173 = vunpack.c.l.b16 %v1405
    %v2174 = vunpack.c.h.b16 %v1405
    %v2175 = vunpack.c.l.b16 %v1406
    %v2176 = vunpack.c.h.b16 %v1406
    %v2177 = vunpack.c.l.b16 %v1407
    %v2178 = vunpack.c.h.b16 %v1407
    %v2179 = vunpack.c.l.b16 %v1408
    %v2180 = vunpack.c.h.b16 %v1408
    %v2181 = vunpack.c.l.b16 %v1409
    %v2182 = vunpack.c.h.b16 %v1409
    %v2183 = vunpack.c.l.b16 %v1410
    %v2184 = vunpack.c.h.b16 %v1410
    %v2185 = vunpack.c.l.b16 %v1411
    %v2186 = vunpack.c.h.b16 %v1411
    %v2187 = vunpack.c.l.b16 %v1412
    %v2188 = vunpack.c.h.b16 %v1412
    %v2189 = vunpack.c.l.b16 %v1413
    %v2190 = vunpack.c.h.b16 %v1413
    %v2191 = vunpack.c.l.b16 %v1414
    %v2192 = vunpack.c.h.b16 %v1414
    %v2193 = vunpack.c.l.b16 %v1415
    %v2194 = vunpack.c.h.b16 %v1415
    %v2195 = vunpack.c.l.b16 %v1416
    %v2196 = vunpack.c.h.b16 %v1416
    %v2197 = vunpack.c.l.b16 %v1417
    %v2198 = vunpack.c.h.b16 %v1417
    %v2199 = vunpack.c.l.b16 %v1418
    %v2200 = vunpack.c.h.b16 %v1418
    %v2201 = vunpack.c.l.b16 %v1419
    %v2202 = vunpack.c.h.b16 %v1419
    %v2203 = vunpack.c.l.b16 %v1420
    %v2204 = vunpack.c.h.b16 %v1420
    %v2205 = vunpack.c.l.b16 %v1421
    %v2206 = vunpack.c.h.b16 %v1421
    %v2207 = vunpack.c.l.b16 %v1422
    %v2208 = vunpack.c.h.b16 %v1422
    %v2209 = vunpack.c.l.b16 %v1423
    %v2210 = vunpack.c.h.b16 %v1423
    %v2211 = vunpack.c.l.b16 %v1424
    %v2212 = vunpack.c.h.b16 %v1424
    %v2213 = vunpack.c.l.b16 %v1425
    %v2214 = vunpack.c.h.b16 %v1425
    %v2215 = vunpack.c.l.b16 %v1426
    %v2216 = vunpack.c.h.b16 %v1426
    %v2217 = vpack.c.b16 %v1713, %v1705
    %v2218 = vpack.c.b16 %v1714, %v1706
    %v2219 = vpack.c.b16 %v1715, %v1707
    %v2220 = vpack.c.b16 %v1716, %v1708
    %v2221 = vpack.c.b16 %v1717, %v1709
    %v2222 = vpack.c.b16 %v1718, %v1710
    %v2223 = vpack.c.b16 %v1719, %v1711
    %v2224 = vpack.c.b16 %v1720, %v1712
    %v2225 = vpack.c.b16 %v1729, %v1721
    %v2226 = vpack.c.b16 %v1730, %v1722
    %v2227 = vpack.c.b16 %v1731, %v1723
    %v2228 = vpack.c.b16 %v1732, %v1724
    %v2229 = vpack.c.b16 %v1733, %v1725
    %v2230 = vpack.c.b16 %v1734, %v1726
    %v2231 = vpack.c.b16 %v1735, %v1727
    %v2232 = vpack.c.b16 %v1736, %v1728
    %v2233 = vpack.c.b16 %v1745, %v1737
    %v2234 = vpack.c.b16 %v1746, %v1738
    %v2235 = vpack.c.b16 %v1747, %v1739
    %v2236 = vpack.c.b16 %v1748, %v1740
    %v2237 = vpack.c.b16 %v1749, %v1741
    %v2238 = vpack.c.b16 %v1750, %v1742
    %v2239 = vpack.c.b16 %v1751, %v1743
    %v2240 = vpack.c.b16 %v1752, %v1744
    %v2241 = vpack.c.b16 %v1761, %v1753
    %v2242 = vpack.c.b16 %v1762, %v1754
    %v2243 = vpack.c.b16 %v1763, %v1755
    %v2244 = vpack.c.b16 %v1764, %v1756
    %v2245 = vpack.c.b16 %v1765, %v1757
    %v2246 = vpack.c.b16 %v1766, %v1758
    %v2247 = vpack.c.b16 %v1767, %v1759
    %v2248 = vpack.c.b16 %v1768, %v1760
    %v2249 = vpack.c.b16 %v1777, %v1769
    %v2250 = vpack.c.b16 %v1778, %v1770
    %v2251 = vpack.c.b16 %v1779, %v1771
    %v2252 = vpack.c.b16 %v1780, %v1772
    %v2253 = vpack.c.b16 %v1781, %v1773
    %v2254 = vpack.c.b16 %v1782, %v1774
    %v2255 = vpack.c.b16 %v1783, %v1775
    %v2256 = vpack.c.b16 %v1784, %v1776
    %v2257 = vpack.c.b16 %v1793, %v1785
    %v2258 = vpack.c.b16 %v1794, %v1786
    %v2259 = vpack.c.b16 %v1795, %v1787
    %v2260 = vpack.c.b16 %v1796, %v1788
    %v2261 = vpack.c.b16 %v1797, %v1789
    %v2262 = vpack.c.b16 %v1798, %v1790
    %v2263 = vpack.c.b16 %v1799, %v1791
    %v2264 = vpack.c.b16 %v1800, %v1792
    %v2265 = vpack.c.b16 %v1809, %v1801
    %v2266 = vpack.c.b16 %v1810, %v1802
    %v2267 = vpack.c.b16 %v1811, %v1803
    %v2268 = vpack.c.b16 %v1812, %v1804
    %v2269 = vpack.c.b16 %v1813, %v1805
    %v2270 = vpack.c.b16 %v1814, %v1806
    %v2271 = vpack.c.b16 %v1815, %v1807
    %v2272 = vpack.c.b16 %v1816, %v1808
    %v2273 = vpack.c.b16 %v1825, %v1817
    %v2274 = vpack.c.b16 %v1826, %v1818
    %v2275 = vpack.c.b16 %v1827, %v1819
    %v2276 = vpack.c.b16 %v1828, %v1820
    %v2277 = vpack.c.b16 %v1829, %v1821
    %v2278 = vpack.c.b16 %v1830, %v1822
    %v2279 = vpack.c.b16 %v1831, %v1823
    %v2280 = vpack.c.b16 %v1832, %v1824
    %v2281 = vpack.c.b16 %v1841, %v1833
    %v2282 = vpack.c.b16 %v1842, %v1834
    %v2283 = vpack.c.b16 %v1843, %v1835
    %v2284 = vpack.c.b16 %v1844, %v1836
    %v2285 = vpack.c.b16 %v1845, %v1837
    %v2286 = vpack.c.b16 %v1846, %v1838
    %v2287 = vpack.c.b16 %v1847, %v1839
    %v2288 = vpack.c.b16 %v1848, %v1840
    %v2289 = vpack.c.b16 %v1857, %v1849
    %v2290 = vpack.c.b16 %v1858, %v1850
    %v2291 = vpack.c.b16 %v1859, %v1851
    %v2292 = vpack.c.b16 %v1860, %v1852
    %v2293 = vpack.c.b16 %v1861, %v1853
    %v2294 = vpack.c.b16 %v1862, %v1854
    %v2295 = vpack.c.b16 %v1863, %v1855
    %v2296 = vpack.c.b16 %v1864, %v1856
    %v2297 = vpack.c.b16 %v1873, %v1865
    %v2298 = vpack.c.b16 %v1874, %v1866
    %v2299 = vpack.c.b16 %v1875, %v1867
    %v2300 = vpack.c.b16 %v1876, %v1868
    %v2301 = vpack.c.b16 %v1877, %v1869
    %v2302 = vpack.c.b16 %v1878, %v1870
    %v2303 = vpack.c.b16 %v1879, %v1871
    %v2304 = vpack.c.b16 %v1880, %v1872
    %v2305 = vpack.c.b16 %v1889, %v1881
    %v2306 = vpack.c.b16 %v1890, %v1882
    %v2307 = vpack.c.b16 %v1891, %v1883
    %v2308 = vpack.c.b16 %v1892, %v1884
    %v2309 = vpack.c.b16 %v1893, %v1885
    %v2310 = vpack.c.b16 %v1894, %v1886
    %v2311 = vpack.c.b16 %v1895, %v1887
    %v2312 = vpack.c.b16 %v1896, %v1888
    %v2313 = vpack.c.b16 %v1905, %v1897
    %v2314 = vpack.c.b16 %v1906, %v1898
    %v2315 = vpack.c.b16 %v1907, %v1899
    %v2316 = vpack.c.b16 %v1908, %v1900
    %v2317 = vpack.c.b16 %v1909, %v1901
    %v2318 = vpack.c.b16 %v1910, %v1902
    %v2319 = vpack.c.b16 %v1911, %v1903
    %v2320 = vpack.c.b16 %v1912, %v1904
    %v2321 = vpack.c.b16 %v1921, %v1913
    %v2322 = vpack.c.b16 %v1922, %v1914
    %v2323 = vpack.c.b16 %v1923, %v1915
    %v2324 = vpack.c.b16 %v1924, %v1916
    %v2325 = vpack.c.b16 %v1925, %v1917
    %v2326 = vpack.c.b16 %v1926, %v1918
    %v2327 = vpack.c.b16 %v1927, %v1919
    %v2328 = vpack.c.b16 %v1928, %v1920
    %v2329 = vpack.c.b16 %v1937, %v1929
    %v2330 = vpack.c.b16 %v1938, %v1930
    %v2331 = vpack.c.b16 %v1939, %v1931
    %v2332 = vpack.c.b16 %v1940, %v1932
    %v2333 = vpack.c.b16 %v1941, %v1933
    %v2334 = vpack.c.b16 %v1942, %v1934
    %v2335 = vpack.c.b16 %v1943, %v1935
    %v2336 = vpack.c.b16 %v1944, %v1936
    %v2337 = vpack.c.b16 %v1953, %v1945
    %v2338 = vpack.c.b16 %v1954, %v1946
    %v2339 = vpack.c.b16 %v1955, %v1947
    %v2340 = vpack.c.b16 %v1956, %v1948
    %v2341 = vpack.c.b16 %v1957, %v1949
    %v2342 = vpack.c.b16 %v1958, %v1950
    %v2343 = vpack.c.b16 %v1959, %v1951
    %v2344 = vpack.c.b16 %v1960, %v1952
    %v2345 = vpack.c.b16 %v1969, %v1961
    %v2346 = vpack.c.b16 %v1970, %v1962
    %v2347 = vpack.c.b16 %v1971, %v1963
    %v2348 = vpack.c.b16 %v1972, %v1964
    %v2349 = vpack.c.b16 %v1973, %v1965
    %v2350 = vpack.c.b16 %v1974, %v1966
    %v2351 = vpack.c.b16 %v1975, %v1967
    %v2352 = vpack.c.b16 %v1976, %v1968
    %v2353 = vpack.c.b16 %v1985, %v1977
    %v2354 = vpack.c.b16 %v1986, %v1978
    %v2355 = vpack.c.b16 %v1987, %v1979
    %v2356 = vpack.c.b16 %v1988, %v1980
    %v2357 = vpack.c.b16 %v1989, %v1981
    %v2358 = vpack.c.b16 %v1990, %v1982
    %v2359 = vpack.c.b16 %v1991, %v1983
    %v2360 = vpack.c.b16 %v1992, %v1984
    %v2361 = vpack.c.b16 %v2001, %v1993
    %v2362 = vpack.c.b16 %v2002, %v1994
    %v2363 = vpack.c.b16 %v2003, %v1995
    %v2364 = vpack.c.b16 %v2004, %v1996
    %v2365 = vpack.c.b16 %v2005, %v1997
    %v2366 = vpack.c.b16 %v2006, %v1998
    %v2367 = vpack.c.b16 %v2007, %v1999
    %v2368 = vpack.c.b16 %v2008, %v2000
    %v2369 = vpack.c.b16 %v2017, %v2009
    %v2370 = vpack.c.b16 %v2018, %v2010
    %v2371 = vpack.c.b16 %v2019, %v2011
    %v2372 = vpack.c.b16 %v2020, %v2012
    %v2373 = vpack.c.b16 %v2021, %v2013
    %v2374 = vpack.c.b16 %v2022, %v2014
    %v2375 = vpack.c.b16 %v2023, %v2015
    %v2376 = vpack.c.b16 %v2024, %v2016
    %v2377 = vpack.c.b16 %v2033, %v2025
    %v2378 = vpack.c.b16 %v2034, %v2026
    %v2379 = vpack.c.b16 %v2035, %v2027
    %v2380 = vpack.c.b16 %v2036, %v2028
    %v2381 = vpack.c.b16 %v2037, %v2029
    %v2382 = vpack.c.b16 %v2038, %v2030
    %v2383 = vpack.c.b16 %v2039, %v2031
    %v2384 = vpack.c.b16 %v2040, %v2032
    %v2385 = vpack.c.b16 %v2049, %v2041
    %v2386 = vpack.c.b16 %v2050, %v2042
    %v2387 = vpack.c.b16 %v2051, %v2043
    %v2388 = vpack.c.b16 %v2052, %v2044
    %v2389 = vpack.c.b16 %v2053, %v2045
    %v2390 = vpack.c.b16 %v2054, %v2046
    %v2391 = vpack.c.b16 %v2055, %v2047
    %v2392 = vpack.c.b16 %v2056, %v2048
    %v2393 = vpack.c.b16 %v2065, %v2057
    %v2394 = vpack.c.b16 %v2066, %v2058
    %v2395 = vpack.c.b16 %v2067, %v2059
    %v2396 = vpack.c.b16 %v2068, %v2060
    %v2397 = vpack.c.b16 %v2069, %v2061
    %v2398 = vpack.c.b16 %v2070, %v2062
    %v2399 = vpack.c.b16 %v2071, %v2063
    %v2400 = vpack.c.b16 %v2072, %v2064
    %v2401 = vpack.c.b16 %v2081, %v2073
    %v2402 = vpack.c.b16 %v2082, %v2074
    %v2403 = vpack.c.b16 %v2083, %v2075
    %v2404 = vpack.c.b16 %v2084, %v2076
    %v2405 = vpack.c.b16 %v2085, %v2077
    %v2406 = vpack.c.b16 %v2086, %v2078
    %v2407 = vpack.c.b16 %v2087, %v2079
    %v2408 = vpack.c.b16 %v2088, %v2080
    %v2409 = vpack.c.b16 %v2097, %v2089
    %v2410 = vpack.c.b16 %v2098, %v2090
    %v2411 = vpack.c.b16 %v2099, %v2091
    %v2412 = vpack.c.b16 %v2100, %v2092
    %v2413 = vpack.c.b16 %v2101, %v2093
    %v2414 = vpack.c.b16 %v2102, %v2094
    %v2415 = vpack.c.b16 %v2103, %v2095
    %v2416 = vpack.c.b16 %v2104, %v2096
    %v2417 = vpack.c.b16 %v2113, %v2105
    %v2418 = vpack.c.b16 %v2114, %v2106
    %v2419 = vpack.c.b16 %v2115, %v2107
    %v2420 = vpack.c.b16 %v2116, %v2108
    %v2421 = vpack.c.b16 %v2117, %v2109
    %v2422 = vpack.c.b16 %v2118, %v2110
    %v2423 = vpack.c.b16 %v2119, %v2111
    %v2424 = vpack.c.b16 %v2120, %v2112
    %v2425 = vpack.c.b16 %v2129, %v2121
    %v2426 = vpack.c.b16 %v2130, %v2122
    %v2427 = vpack.c.b16 %v2131, %v2123
    %v2428 = vpack.c.b16 %v2132, %v2124
    %v2429 = vpack.c.b16 %v2133, %v2125
    %v2430 = vpack.c.b16 %v2134, %v2126
    %v2431 = vpack.c.b16 %v2135, %v2127
    %v2432 = vpack.c.b16 %v2136, %v2128
    %v2433 = vpack.c.b16 %v2145, %v2137
    %v2434 = vpack.c.b16 %v2146, %v2138
    %v2435 = vpack.c.b16 %v2147, %v2139
    %v2436 = vpack.c.b16 %v2148, %v2140
    %v2437 = vpack.c.b16 %v2149, %v2141
    %v2438 = vpack.c.b16 %v2150, %v2142
    %v2439 = vpack.c.b16 %v2151, %v2143
    %v2440 = vpack.c.b16 %v2152, %v2144
    %v2441 = vpack.c.b16 %v2161, %v2153
    %v2442 = vpack.c.b16 %v2162, %v2154
    %v2443 = vpack.c.b16 %v2163, %v2155
    %v2444 = vpack.c.b16 %v2164, %v2156
    %v2445 = vpack.c.b16 %v2165, %v2157
    %v2446 = vpack.c.b16 %v2166, %v2158
    %v2447 = vpack.c.b16 %v2167, %v2159
    %v2448 = vpack.c.b16 %v2168, %v2160
    %v2449 = vpack.c.b16 %v2177, %v2169
    %v2450 = vpack.c.b16 %v2178, %v2170
    %v2451 = vpack.c.b16 %v2179, %v2171
    %v2452 = vpack.c.b16 %v2180, %v2172
    %v2453 = vpack.c.b16 %v2181, %v2173
    %v2454 = vpack.c.b16 %v2182, %v2174
    %v2455 = vpack.c.b16 %v2183, %v2175
    %v2456 = vpack.c.b16 %v2184, %v2176
    %v2457 = vpack.c.b16 %v2193, %v2185
    %v2458 = vpack.c.b16 %v2194, %v2186
    %v2459 = vpack.c.b16 %v2195, %v2187
    %v2460 = vpack.c.b16 %v2196, %v2188
    %v2461 = vpack.c.b16 %v2197, %v2189
    %v2462 = vpack.c.b16 %v2198, %v2190
    %v2463 = vpack.c.b16 %v2199, %v2191
    %v2464 = vpack.c.b16 %v2200, %v2192
    %v2465 = vpack.c.b16 %v2209, %v2201
    %v2466 = vpack.c.b16 %v2210, %v2202
    %v2467 = vpack.c.b16 %v2211, %v2203
    %v2468 = vpack.c.b16 %v2212, %v2204
    %v2469 = vpack.c.b16 %v2213, %v2205
    %v2470 = vpack.c.b16 %v2214, %v2206
    %v2471 = vpack.c.b16 %v2215, %v2207
    %v2472 = vpack.c.b16 %v2216, %v2208
    %2729 = vmatpush.bf16.msra.mxu0 %v2273
    %2730 = vmatpush.bf16.msra.mxu0 %v2265
    %2731 = vmatpush.bf16.msra.mxu0 %v2257
    %2732 = vmatpush.bf16.msra.mxu0 %v2249
    %2733 = vmatpush.bf16.msra.mxu0 %v2241
    %2734 = vmatpush.bf16.msra.mxu0 %v2233
    %2735 = vmatpush.bf16.msra.mxu0 %v2225
    %2736 = vmatpush.bf16.msra.mxu0 %v2217
    %2737 = vmatmul.bf16.gmra.mxu0 %v1427
    %v2738 = vpop.f32.mrf.mxu0
    %v2739 = vadd.f32 %v1433, %v2738
    %v2740 = vpop.f32.mrf.mxu0
    %2741 = vdwg.mxu0
    %2742 = vmatpush.bf16.msra.mxu0 %v2337
    %2743 = vmatpush.bf16.msra.mxu0 %v2329
    %2744 = vmatpush.bf16.msra.mxu0 %v2321
    %2745 = vmatpush.bf16.msra.mxu0 %v2313
    %2746 = vmatpush.bf16.msra.mxu0 %v2305
    %2747 = vmatpush.bf16.msra.mxu0 %v2297
    %2748 = vmatpush.bf16.msra.mxu0 %v2289
    %2749 = vmatpush.bf16.msra.mxu0 %v2281
    %2750 = vmatmul.bf16.gmra.mxu0 %v1428
    %v2751 = vpop.f32.mrf.mxu0
    %v2752 = vadd.f32 %v2739, %v2751
    %v2753 = vpop.f32.mrf.mxu0
    %2754 = vdwg.mxu0
    %2755 = vmatpush.bf16.msra.mxu0 %v2401
    %2756 = vmatpush.bf16.msra.mxu0 %v2393
    %2757 = vmatpush.bf16.msra.mxu0 %v2385
    %2758 = vmatpush.bf16.msra.mxu0 %v2377
    %2759 = vmatpush.bf16.msra.mxu0 %v2369
    %2760 = vmatpush.bf16.msra.mxu0 %v2361
    %2761 = vmatpush.bf16.msra.mxu0 %v2353
    %2762 = vmatpush.bf16.msra.mxu0 %v2345
    %2763 = vmatmul.bf16.gmra.mxu0 %v1429
    %v2764 = vpop.f32.mrf.mxu0
    %v2765 = vadd.f32 %v2752, %v2764
    %v2766 = vpop.f32.mrf.mxu0
    %2767 = vdwg.mxu0
    %2768 = vmatpush.bf16.msra.mxu0 %v2465
    %2769 = vmatpush.bf16.msra.mxu0 %v2457
    %2770 = vmatpush.bf16.msra.mxu0 %v2449
    %2771 = vmatpush.bf16.msra.mxu0 %v2441
    %2772 = vmatpush.bf16.msra.mxu0 %v2433
    %2773 = vmatpush.bf16.msra.mxu0 %v2425
    %2774 = vmatpush.bf16.msra.mxu0 %v2417
    %2775 = vmatpush.bf16.msra.mxu0 %v2409
    %2776 = vmatmul.bf16.gmra.mxu0 %v1430
    %v2777 = vpop.f32.mrf.mxu0
    %v2778 = vadd.f32 %v2765, %v2777
    %v2779 = vpop.f32.mrf.mxu0
    %2780 = vdwg.mxu0
    %2781 = vmatpush.bf16.msra.mxu0 %v2274
    %2782 = vmatpush.bf16.msra.mxu0 %v2266
    %2783 = vmatpush.bf16.msra.mxu0 %v2258
    %2784 = vmatpush.bf16.msra.mxu0 %v2250
    %2785 = vmatpush.bf16.msra.mxu0 %v2242
    %2786 = vmatpush.bf16.msra.mxu0 %v2234
    %2787 = vmatpush.bf16.msra.mxu0 %v2226
    %2788 = vmatpush.bf16.msra.mxu0 %v2218
    %2789 = vmatmul.bf16.gmra.mxu0 %v1427
    %v2790 = vpop.f32.mrf.mxu0
    %v2791 = vadd.f32 %v1434, %v2790
    %v2792 = vpop.f32.mrf.mxu0
    %2793 = vdwg.mxu0
    %2794 = vmatpush.bf16.msra.mxu0 %v2338
    %2795 = vmatpush.bf16.msra.mxu0 %v2330
    %2796 = vmatpush.bf16.msra.mxu0 %v2322
    %2797 = vmatpush.bf16.msra.mxu0 %v2314
    %2798 = vmatpush.bf16.msra.mxu0 %v2306
    %2799 = vmatpush.bf16.msra.mxu0 %v2298
    %2800 = vmatpush.bf16.msra.mxu0 %v2290
    %2801 = vmatpush.bf16.msra.mxu0 %v2282
    %2802 = vmatmul.bf16.gmra.mxu0 %v1428
    %v2803 = vpop.f32.mrf.mxu0
    %v2804 = vadd.f32 %v2791, %v2803
    %v2805 = vpop.f32.mrf.mxu0
    %2806 = vdwg.mxu0
    %2807 = vmatpush.bf16.msra.mxu0 %v2402
    %2808 = vmatpush.bf16.msra.mxu0 %v2394
    %2809 = vmatpush.bf16.msra.mxu0 %v2386
    %2810 = vmatpush.bf16.msra.mxu0 %v2378
    %2811 = vmatpush.bf16.msra.mxu0 %v2370
    %2812 = vmatpush.bf16.msra.mxu0 %v2362
    %2813 = vmatpush.bf16.msra.mxu0 %v2354
    %2814 = vmatpush.bf16.msra.mxu0 %v2346
    %2815 = vmatmul.bf16.gmra.mxu0 %v1429
    %v2816 = vpop.f32.mrf.mxu0
    %v2817 = vadd.f32 %v2804, %v2816
    %v2818 = vpop.f32.mrf.mxu0
    %2819 = vdwg.mxu0
    %2820 = vmatpush.bf16.msra.mxu0 %v2466
    %2821 = vmatpush.bf16.msra.mxu0 %v2458
    %2822 = vmatpush.bf16.msra.mxu0 %v2450
    %2823 = vmatpush.bf16.msra.mxu0 %v2442
    %2824 = vmatpush.bf16.msra.mxu0 %v2434
    %2825 = vmatpush.bf16.msra.mxu0 %v2426
    %2826 = vmatpush.bf16.msra.mxu0 %v2418
    %2827 = vmatpush.bf16.msra.mxu0 %v2410
    %2828 = vmatmul.bf16.gmra.mxu0 %v1430
    %v2829 = vpop.f32.mrf.mxu0
    %v2830 = vadd.f32 %v2817, %v2829
    %v2831 = vpop.f32.mrf.mxu0
    %2832 = vdwg.mxu0
    %2833 = vmatpush.bf16.msra.mxu0 %v2275
    %2834 = vmatpush.bf16.msra.mxu0 %v2267
    %2835 = vmatpush.bf16.msra.mxu0 %v2259
    %2836 = vmatpush.bf16.msra.mxu0 %v2251
    %2837 = vmatpush.bf16.msra.mxu0 %v2243
    %2838 = vmatpush.bf16.msra.mxu0 %v2235
    %2839 = vmatpush.bf16.msra.mxu0 %v2227
    %2840 = vmatpush.bf16.msra.mxu0 %v2219
    %2841 = vmatmul.bf16.gmra.mxu0 %v1427
    %v2842 = vpop.f32.mrf.mxu0
    %v2843 = vadd.f32 %v1435, %v2842
    %v2844 = vpop.f32.mrf.mxu0
    %2845 = vdwg.mxu0
    %2846 = vmatpush.bf16.msra.mxu0 %v2339
    %2847 = vmatpush.bf16.msra.mxu0 %v2331
    %2848 = vmatpush.bf16.msra.mxu0 %v2323
    %2849 = vmatpush.bf16.msra.mxu0 %v2315
    %2850 = vmatpush.bf16.msra.mxu0 %v2307
    %2851 = vmatpush.bf16.msra.mxu0 %v2299
    %2852 = vmatpush.bf16.msra.mxu0 %v2291
    %2853 = vmatpush.bf16.msra.mxu0 %v2283
    %2854 = vmatmul.bf16.gmra.mxu0 %v1428
    %v2855 = vpop.f32.mrf.mxu0
    %v2856 = vadd.f32 %v2843, %v2855
    %v2857 = vpop.f32.mrf.mxu0
    %2858 = vdwg.mxu0
    %2859 = vmatpush.bf16.msra.mxu0 %v2403
    %2860 = vmatpush.bf16.msra.mxu0 %v2395
    %2861 = vmatpush.bf16.msra.mxu0 %v2387
    %2862 = vmatpush.bf16.msra.mxu0 %v2379
    %2863 = vmatpush.bf16.msra.mxu0 %v2371
    %2864 = vmatpush.bf16.msra.mxu0 %v2363
    %2865 = vmatpush.bf16.msra.mxu0 %v2355
    %2866 = vmatpush.bf16.msra.mxu0 %v2347
    %2867 = vmatmul.bf16.gmra.mxu0 %v1429
    %v2868 = vpop.f32.mrf.mxu0
    %v2869 = vadd.f32 %v2856, %v2868
    %v2870 = vpop.f32.mrf.mxu0
    %2871 = vdwg.mxu0
    %2872 = vmatpush.bf16.msra.mxu0 %v2467
    %2873 = vmatpush.bf16.msra.mxu0 %v2459
    %2874 = vmatpush.bf16.msra.mxu0 %v2451
    %2875 = vmatpush.bf16.msra.mxu0 %v2443
    %2876 = vmatpush.bf16.msra.mxu0 %v2435
    %2877 = vmatpush.bf16.msra.mxu0 %v2427
    %2878 = vmatpush.bf16.msra.mxu0 %v2419
    %2879 = vmatpush.bf16.msra.mxu0 %v2411
    %2880 = vmatmul.bf16.gmra.mxu0 %v1430
    %v2881 = vpop.f32.mrf.mxu0
    %v2882 = vadd.f32 %v2869, %v2881
    %v2883 = vpop.f32.mrf.mxu0
    %2884 = vdwg.mxu0
    %2885 = vmatpush.bf16.msra.mxu0 %v2276
    %2886 = vmatpush.bf16.msra.mxu0 %v2268
    %2887 = vmatpush.bf16.msra.mxu0 %v2260
    %2888 = vmatpush.bf16.msra.mxu0 %v2252
    %2889 = vmatpush.bf16.msra.mxu0 %v2244
    %2890 = vmatpush.bf16.msra.mxu0 %v2236
    %2891 = vmatpush.bf16.msra.mxu0 %v2228
    %2892 = vmatpush.bf16.msra.mxu0 %v2220
    %2893 = vmatmul.bf16.gmra.mxu0 %v1427
    %v2894 = vpop.f32.mrf.mxu0
    %v2895 = vadd.f32 %v1436, %v2894
    %v2896 = vpop.f32.mrf.mxu0
    %2897 = vdwg.mxu0
    %2898 = vmatpush.bf16.msra.mxu0 %v2340
    %2899 = vmatpush.bf16.msra.mxu0 %v2332
    %2900 = vmatpush.bf16.msra.mxu0 %v2324
    %2901 = vmatpush.bf16.msra.mxu0 %v2316
    %2902 = vmatpush.bf16.msra.mxu0 %v2308
    %2903 = vmatpush.bf16.msra.mxu0 %v2300
    %2904 = vmatpush.bf16.msra.mxu0 %v2292
    %2905 = vmatpush.bf16.msra.mxu0 %v2284
    %2906 = vmatmul.bf16.gmra.mxu0 %v1428
    %v2907 = vpop.f32.mrf.mxu0
    %v2908 = vadd.f32 %v2895, %v2907
    %v2909 = vpop.f32.mrf.mxu0
    %2910 = vdwg.mxu0
    %2911 = vmatpush.bf16.msra.mxu0 %v2404
    %2912 = vmatpush.bf16.msra.mxu0 %v2396
    %2913 = vmatpush.bf16.msra.mxu0 %v2388
    %2914 = vmatpush.bf16.msra.mxu0 %v2380
    %2915 = vmatpush.bf16.msra.mxu0 %v2372
    %2916 = vmatpush.bf16.msra.mxu0 %v2364
    %2917 = vmatpush.bf16.msra.mxu0 %v2356
    %2918 = vmatpush.bf16.msra.mxu0 %v2348
    %2919 = vmatmul.bf16.gmra.mxu0 %v1429
    %v2920 = vpop.f32.mrf.mxu0
    %v2921 = vadd.f32 %v2908, %v2920
    %v2922 = vpop.f32.mrf.mxu0
    %2923 = vdwg.mxu0
    %2924 = vmatpush.bf16.msra.mxu0 %v2468
    %2925 = vmatpush.bf16.msra.mxu0 %v2460
    %2926 = vmatpush.bf16.msra.mxu0 %v2452
    %2927 = vmatpush.bf16.msra.mxu0 %v2444
    %2928 = vmatpush.bf16.msra.mxu0 %v2436
    %2929 = vmatpush.bf16.msra.mxu0 %v2428
    %2930 = vmatpush.bf16.msra.mxu0 %v2420
    %2931 = vmatpush.bf16.msra.mxu0 %v2412
    %2932 = vmatmul.bf16.gmra.mxu0 %v1430
    %v2933 = vpop.f32.mrf.mxu0
    %v2934 = vadd.f32 %v2921, %v2933
    %v2935 = vpop.f32.mrf.mxu0
    %2936 = vdwg.mxu0
    %2937 = vmatpush.bf16.msra.mxu0 %v2277
    %2938 = vmatpush.bf16.msra.mxu0 %v2269
    %2939 = vmatpush.bf16.msra.mxu0 %v2261
    %2940 = vmatpush.bf16.msra.mxu0 %v2253
    %2941 = vmatpush.bf16.msra.mxu0 %v2245
    %2942 = vmatpush.bf16.msra.mxu0 %v2237
    %2943 = vmatpush.bf16.msra.mxu0 %v2229
    %2944 = vmatpush.bf16.msra.mxu0 %v2221
    %2945 = vmatmul.bf16.gmra.mxu0 %v1427
    %v2946 = vpop.f32.mrf.mxu0
    %v2947 = vadd.f32 %v1437, %v2946
    %v2948 = vpop.f32.mrf.mxu0
    %2949 = vdwg.mxu0
    %2950 = vmatpush.bf16.msra.mxu0 %v2341
    %2951 = vmatpush.bf16.msra.mxu0 %v2333
    %2952 = vmatpush.bf16.msra.mxu0 %v2325
    %2953 = vmatpush.bf16.msra.mxu0 %v2317
    %2954 = vmatpush.bf16.msra.mxu0 %v2309
    %2955 = vmatpush.bf16.msra.mxu0 %v2301
    %2956 = vmatpush.bf16.msra.mxu0 %v2293
    %2957 = vmatpush.bf16.msra.mxu0 %v2285
    %2958 = vmatmul.bf16.gmra.mxu0 %v1428
    %v2959 = vpop.f32.mrf.mxu0
    %v2960 = vadd.f32 %v2947, %v2959
    %v2961 = vpop.f32.mrf.mxu0
    %2962 = vdwg.mxu0
    %2963 = vmatpush.bf16.msra.mxu0 %v2405
    %2964 = vmatpush.bf16.msra.mxu0 %v2397
    %2965 = vmatpush.bf16.msra.mxu0 %v2389
    %2966 = vmatpush.bf16.msra.mxu0 %v2381
    %2967 = vmatpush.bf16.msra.mxu0 %v2373
    %2968 = vmatpush.bf16.msra.mxu0 %v2365
    %2969 = vmatpush.bf16.msra.mxu0 %v2357
    %2970 = vmatpush.bf16.msra.mxu0 %v2349
    %2971 = vmatmul.bf16.gmra.mxu0 %v1429
    %v2972 = vpop.f32.mrf.mxu0
    %v2973 = vadd.f32 %v2960, %v2972
    %v2974 = vpop.f32.mrf.mxu0
    %2975 = vdwg.mxu0
    %2976 = vmatpush.bf16.msra.mxu0 %v2469
    %2977 = vmatpush.bf16.msra.mxu0 %v2461
    %2978 = vmatpush.bf16.msra.mxu0 %v2453
    %2979 = vmatpush.bf16.msra.mxu0 %v2445
    %2980 = vmatpush.bf16.msra.mxu0 %v2437
    %2981 = vmatpush.bf16.msra.mxu0 %v2429
    %2982 = vmatpush.bf16.msra.mxu0 %v2421
    %2983 = vmatpush.bf16.msra.mxu0 %v2413
    %2984 = vmatmul.bf16.gmra.mxu0 %v1430
    %v2985 = vpop.f32.mrf.mxu0
    %v2986 = vadd.f32 %v2973, %v2985
    %v2987 = vpop.f32.mrf.mxu0
    %2988 = vdwg.mxu0
    %2989 = vmatpush.bf16.msra.mxu0 %v2278
    %2990 = vmatpush.bf16.msra.mxu0 %v2270
    %2991 = vmatpush.bf16.msra.mxu0 %v2262
    %2992 = vmatpush.bf16.msra.mxu0 %v2254
    %2993 = vmatpush.bf16.msra.mxu0 %v2246
    %2994 = vmatpush.bf16.msra.mxu0 %v2238
    %2995 = vmatpush.bf16.msra.mxu0 %v2230
    %2996 = vmatpush.bf16.msra.mxu0 %v2222
    %2997 = vmatmul.bf16.gmra.mxu0 %v1427
    %v2998 = vpop.f32.mrf.mxu0
    %v2999 = vadd.f32 %v1438, %v2998
    %v3000 = vpop.f32.mrf.mxu0
    %3001 = vdwg.mxu0
    %3002 = vmatpush.bf16.msra.mxu0 %v2342
    %3003 = vmatpush.bf16.msra.mxu0 %v2334
    %3004 = vmatpush.bf16.msra.mxu0 %v2326
    %3005 = vmatpush.bf16.msra.mxu0 %v2318
    %3006 = vmatpush.bf16.msra.mxu0 %v2310
    %3007 = vmatpush.bf16.msra.mxu0 %v2302
    %3008 = vmatpush.bf16.msra.mxu0 %v2294
    %3009 = vmatpush.bf16.msra.mxu0 %v2286
    %3010 = vmatmul.bf16.gmra.mxu0 %v1428
    %v3011 = vpop.f32.mrf.mxu0
    %v3012 = vadd.f32 %v2999, %v3011
    %v3013 = vpop.f32.mrf.mxu0
    %3014 = vdwg.mxu0
    %3015 = vmatpush.bf16.msra.mxu0 %v2406
    %3016 = vmatpush.bf16.msra.mxu0 %v2398
    %3017 = vmatpush.bf16.msra.mxu0 %v2390
    %3018 = vmatpush.bf16.msra.mxu0 %v2382
    %3019 = vmatpush.bf16.msra.mxu0 %v2374
    %3020 = vmatpush.bf16.msra.mxu0 %v2366
    %3021 = vmatpush.bf16.msra.mxu0 %v2358
    %3022 = vmatpush.bf16.msra.mxu0 %v2350
    %3023 = vmatmul.bf16.gmra.mxu0 %v1429
    %v3024 = vpop.f32.mrf.mxu0
    %v3025 = vadd.f32 %v3012, %v3024
    %v3026 = vpop.f32.mrf.mxu0
    %3027 = vdwg.mxu0
    %3028 = vmatpush.bf16.msra.mxu0 %v2470
    %3029 = vmatpush.bf16.msra.mxu0 %v2462
    %3030 = vmatpush.bf16.msra.mxu0 %v2454
    %3031 = vmatpush.bf16.msra.mxu0 %v2446
    %3032 = vmatpush.bf16.msra.mxu0 %v2438
    %3033 = vmatpush.bf16.msra.mxu0 %v2430
    %3034 = vmatpush.bf16.msra.mxu0 %v2422
    %3035 = vmatpush.bf16.msra.mxu0 %v2414
    %3036 = vmatmul.bf16.gmra.mxu0 %v1430
    %v3037 = vpop.f32.mrf.mxu0
    %v3038 = vadd.f32 %v3025, %v3037
    %v3039 = vpop.f32.mrf.mxu0
    %3040 = vdwg.mxu0
    %3041 = vmatpush.bf16.msra.mxu0 %v2279
    %3042 = vmatpush.bf16.msra.mxu0 %v2271
    %3043 = vmatpush.bf16.msra.mxu0 %v2263
    %3044 = vmatpush.bf16.msra.mxu0 %v2255
    %3045 = vmatpush.bf16.msra.mxu0 %v2247
    %3046 = vmatpush.bf16.msra.mxu0 %v2239
    %3047 = vmatpush.bf16.msra.mxu0 %v2231
    %3048 = vmatpush.bf16.msra.mxu0 %v2223
    %3049 = vmatmul.bf16.gmra.mxu0 %v1427
    %v3050 = vpop.f32.mrf.mxu0
    %v3051 = vadd.f32 %v1439, %v3050
    %v3052 = vpop.f32.mrf.mxu0
    %3053 = vdwg.mxu0
    %3054 = vmatpush.bf16.msra.mxu0 %v2343
    %3055 = vmatpush.bf16.msra.mxu0 %v2335
    %3056 = vmatpush.bf16.msra.mxu0 %v2327
    %3057 = vmatpush.bf16.msra.mxu0 %v2319
    %3058 = vmatpush.bf16.msra.mxu0 %v2311
    %3059 = vmatpush.bf16.msra.mxu0 %v2303
    %3060 = vmatpush.bf16.msra.mxu0 %v2295
    %3061 = vmatpush.bf16.msra.mxu0 %v2287
    %3062 = vmatmul.bf16.gmra.mxu0 %v1428
    %v3063 = vpop.f32.mrf.mxu0
    %v3064 = vadd.f32 %v3051, %v3063
    %v3065 = vpop.f32.mrf.mxu0
    %3066 = vdwg.mxu0
    %3067 = vmatpush.bf16.msra.mxu0 %v2407
    %3068 = vmatpush.bf16.msra.mxu0 %v2399
    %3069 = vmatpush.bf16.msra.mxu0 %v2391
    %3070 = vmatpush.bf16.msra.mxu0 %v2383
    %3071 = vmatpush.bf16.msra.mxu0 %v2375
    %3072 = vmatpush.bf16.msra.mxu0 %v2367
    %3073 = vmatpush.bf16.msra.mxu0 %v2359
    %3074 = vmatpush.bf16.msra.mxu0 %v2351
    %3075 = vmatmul.bf16.gmra.mxu0 %v1429
    %v3076 = vpop.f32.mrf.mxu0
    %v3077 = vadd.f32 %v3064, %v3076
    %v3078 = vpop.f32.mrf.mxu0
    %3079 = vdwg.mxu0
    %3080 = vmatpush.bf16.msra.mxu0 %v2471
    %3081 = vmatpush.bf16.msra.mxu0 %v2463
    %3082 = vmatpush.bf16.msra.mxu0 %v2455
    %3083 = vmatpush.bf16.msra.mxu0 %v2447
    %3084 = vmatpush.bf16.msra.mxu0 %v2439
    %3085 = vmatpush.bf16.msra.mxu0 %v2431
    %3086 = vmatpush.bf16.msra.mxu0 %v2423
    %3087 = vmatpush.bf16.msra.mxu0 %v2415
    %3088 = vmatmul.bf16.gmra.mxu0 %v1430
    %v3089 = vpop.f32.mrf.mxu0
    %v3090 = vadd.f32 %v3077, %v3089
    %v3091 = vpop.f32.mrf.mxu0
    %3092 = vdwg.mxu0
    %3093 = vmatpush.bf16.msra.mxu0 %v2280
    %3094 = vmatpush.bf16.msra.mxu0 %v2272
    %3095 = vmatpush.bf16.msra.mxu0 %v2264
    %3096 = vmatpush.bf16.msra.mxu0 %v2256
    %3097 = vmatpush.bf16.msra.mxu0 %v2248
    %3098 = vmatpush.bf16.msra.mxu0 %v2240
    %3099 = vmatpush.bf16.msra.mxu0 %v2232
    %3100 = vmatpush.bf16.msra.mxu0 %v2224
    %3101 = vmatmul.bf16.gmra.mxu0 %v1427
    %v3102 = vpop.f32.mrf.mxu0
    %v3103 = vadd.f32 %v1440, %v3102
    %v3104 = vpop.f32.mrf.mxu0
    %3105 = vdwg.mxu0
    %3106 = vmatpush.bf16.msra.mxu0 %v2344
    %3107 = vmatpush.bf16.msra.mxu0 %v2336
    %3108 = vmatpush.bf16.msra.mxu0 %v2328
    %3109 = vmatpush.bf16.msra.mxu0 %v2320
    %3110 = vmatpush.bf16.msra.mxu0 %v2312
    %3111 = vmatpush.bf16.msra.mxu0 %v2304
    %3112 = vmatpush.bf16.msra.mxu0 %v2296
    %3113 = vmatpush.bf16.msra.mxu0 %v2288
    %3114 = vmatmul.bf16.gmra.mxu0 %v1428
    %v3115 = vpop.f32.mrf.mxu0
    %v3116 = vadd.f32 %v3103, %v3115
    %v3117 = vpop.f32.mrf.mxu0
    %3118 = vdwg.mxu0
    %3119 = vmatpush.bf16.msra.mxu0 %v2408
    %3120 = vmatpush.bf16.msra.mxu0 %v2400
    %3121 = vmatpush.bf16.msra.mxu0 %v2392
    %3122 = vmatpush.bf16.msra.mxu0 %v2384
    %3123 = vmatpush.bf16.msra.mxu0 %v2376
    %3124 = vmatpush.bf16.msra.mxu0 %v2368
    %3125 = vmatpush.bf16.msra.mxu0 %v2360
    %3126 = vmatpush.bf16.msra.mxu0 %v2352
    %3127 = vmatmul.bf16.gmra.mxu0 %v1429
    %v3128 = vpop.f32.mrf.mxu0
    %v3129 = vadd.f32 %v3116, %v3128
    %v3130 = vpop.f32.mrf.mxu0
    %3131 = vdwg.mxu0
    %3132 = vmatpush.bf16.msra.mxu0 %v2472
    %3133 = vmatpush.bf16.msra.mxu0 %v2464
    %3134 = vmatpush.bf16.msra.mxu0 %v2456
    %3135 = vmatpush.bf16.msra.mxu0 %v2448
    %3136 = vmatpush.bf16.msra.mxu0 %v2440
    %3137 = vmatpush.bf16.msra.mxu0 %v2432
    %3138 = vmatpush.bf16.msra.mxu0 %v2424
    %3139 = vmatpush.bf16.msra.mxu0 %v2416
    %3140 = vmatmul.bf16.gmra.mxu0 %v1430
    %v3141 = vpop.f32.mrf.mxu0
    %v3142 = vadd.f32 %v3129, %v3141
    %v3143 = vpop.f32.mrf.mxu0
    %3144 = vdwg.mxu0
    %v3145 = vmul.f32 %v2778, 0.01
    %v3146 = vmul.f32 %v2830, 0.01
    %v3147 = vmul.f32 %v2882, 0.01
    %v3148 = vmul.f32 %v2934, 0.01
    %v3149 = vmul.f32 %v2986, 0.01
    %v3150 = vmul.f32 %v3038, 0.01
    %v3151 = vmul.f32 %v3090, 0.01
    %v3152 = vmul.f32 %v3142, 0.01
    %v3153 = vmax.f32 %v2778, %v3145
    %v3154 = vmax.f32 %v2830, %v3146
    %v3155 = vmax.f32 %v2882, %v3147
    %v3156 = vmax.f32 %v2934, %v3148
    %v3157 = vmax.f32 %v2986, %v3149
    %v3158 = vmax.f32 %v3038, %v3150
    %v3159 = vmax.f32 %v3090, %v3151
    %v3160 = vmax.f32 %v3142, %v3152
    // Predicated region
    $region162: #{tpu_custom_call.1} parent=1 // pred_check
      %p3161 = pneg %p306
    $region163: #{tpu_custom_call.1} parent=1 // pred_check_branch
      %3163 = sbr.rel (%p3161) target = $region165
    $region164: #{tpu_custom_call.1} parent=1 // pred_region
      %s3164 = scalar_lea.sflag [#allocation4], 1
      %s3165 = smul.u32 4, 128
      %s3166 = smul.u32 %s3165, 16
      %s3167 = sshll.u32 %s3166, 4
      %3168 = dma.done %s3164, %s3167
    $region165: #{tpu_custom_call.1} parent=1 // pred_fallthru
      _
    %v3169 = vld [vmem:[#allocation3] sm:$0xff]
    %v3170 = vld [vmem:[#allocation3 + $0x8] sm:$0xff]
    %v3171 = vld [vmem:[#allocation3 + $0x10] sm:$0xff]
    %v3172 = vld [vmem:[#allocation3 + $0x18] sm:$0xff]
    %v3173 = vld [vmem:[#allocation3 + $0x20] sm:$0xff]
    %v3174 = vld [vmem:[#allocation3 + $0x28] sm:$0xff]
    %v3175 = vld [vmem:[#allocation3 + $0x30] sm:$0xff]
    %v3176 = vld [vmem:[#allocation3 + $0x38] sm:$0xff]
    %v3177 = vld [vmem:[#allocation3 + $0x40] sm:$0xff]
    %v3178 = vld [vmem:[#allocation3 + $0x48] sm:$0xff]
    %v3179 = vld [vmem:[#allocation3 + $0x50] sm:$0xff]
    %v3180 = vld [vmem:[#allocation3 + $0x58] sm:$0xff]
    %v3181 = vld [vmem:[#allocation3 + $0x60] sm:$0xff]
    %v3182 = vld [vmem:[#allocation3 + $0x68] sm:$0xff]
    %v3183 = vld [vmem:[#allocation3 + $0x70] sm:$0xff]
    %v3184 = vld [vmem:[#allocation3 + $0x78] sm:$0xff]
    %v3185 = vld [vmem:[#allocation3 + $0x80] sm:$0xff]
    %v3186 = vld [vmem:[#allocation3 + $0x88] sm:$0xff]
    %v3187 = vld [vmem:[#allocation3 + $0x90] sm:$0xff]
    %v3188 = vld [vmem:[#allocation3 + $0x98] sm:$0xff]
    %v3189 = vld [vmem:[#allocation3 + $0xa0] sm:$0xff]
    %v3190 = vld [vmem:[#allocation3 + $0xa8] sm:$0xff]
    %v3191 = vld [vmem:[#allocation3 + $0xb0] sm:$0xff]
    %v3192 = vld [vmem:[#allocation3 + $0xb8] sm:$0xff]
    %v3193 = vld [vmem:[#allocation3 + $0xc0] sm:$0xff]
    %v3194 = vld [vmem:[#allocation3 + $0xc8] sm:$0xff]
    %v3195 = vld [vmem:[#allocation3 + $0xd0] sm:$0xff]
    %v3196 = vld [vmem:[#allocation3 + $0xd8] sm:$0xff]
    %v3197 = vld [vmem:[#allocation3 + $0xe0] sm:$0xff]
    %v3198 = vld [vmem:[#allocation3 + $0xe8] sm:$0xff]
    %v3199 = vld [vmem:[#allocation3 + $0xf0] sm:$0xff]
    %v3200 = vld [vmem:[#allocation3 + $0xf8] sm:$0xff]
    %v3201 = vld [vmem:[#allocation3 + $0x100] sm:$0xff]
    %v3202 = vld [vmem:[#allocation3 + $0x108] sm:$0xff]
    %v3203 = vld [vmem:[#allocation3 + $0x110] sm:$0xff]
    %v3204 = vld [vmem:[#allocation3 + $0x118] sm:$0xff]
    %v3205 = vld [vmem:[#allocation3 + $0x120] sm:$0xff]
    %v3206 = vld [vmem:[#allocation3 + $0x128] sm:$0xff]
    %v3207 = vld [vmem:[#allocation3 + $0x130] sm:$0xff]
    %v3208 = vld [vmem:[#allocation3 + $0x138] sm:$0xff]
    %v3209 = vld [vmem:[#allocation3 + $0x140] sm:$0xff]
    %v3210 = vld [vmem:[#allocation3 + $0x148] sm:$0xff]
    %v3211 = vld [vmem:[#allocation3 + $0x150] sm:$0xff]
    %v3212 = vld [vmem:[#allocation3 + $0x158] sm:$0xff]
    %v3213 = vld [vmem:[#allocation3 + $0x160] sm:$0xff]
    %v3214 = vld [vmem:[#allocation3 + $0x168] sm:$0xff]
    %v3215 = vld [vmem:[#allocation3 + $0x170] sm:$0xff]
    %v3216 = vld [vmem:[#allocation3 + $0x178] sm:$0xff]
    %v3217 = vld [vmem:[#allocation3 + $0x180] sm:$0xff]
    %v3218 = vld [vmem:[#allocation3 + $0x188] sm:$0xff]
    %v3219 = vld [vmem:[#allocation3 + $0x190] sm:$0xff]
    %v3220 = vld [vmem:[#allocation3 + $0x198] sm:$0xff]
    %v3221 = vld [vmem:[#allocation3 + $0x1a0] sm:$0xff]
    %v3222 = vld [vmem:[#allocation3 + $0x1a8] sm:$0xff]
    %v3223 = vld [vmem:[#allocation3 + $0x1b0] sm:$0xff]
    %v3224 = vld [vmem:[#allocation3 + $0x1b8] sm:$0xff]
    %v3225 = vld [vmem:[#allocation3 + $0x1c0] sm:$0xff]
    %v3226 = vld [vmem:[#allocation3 + $0x1c8] sm:$0xff]
    %v3227 = vld [vmem:[#allocation3 + $0x1d0] sm:$0xff]
    %v3228 = vld [vmem:[#allocation3 + $0x1d8] sm:$0xff]
    %v3229 = vld [vmem:[#allocation3 + $0x1e0] sm:$0xff]
    %v3230 = vld [vmem:[#allocation3 + $0x1e8] sm:$0xff]
    %v3231 = vld [vmem:[#allocation3 + $0x1f0] sm:$0xff]
    %v3232 = vld [vmem:[#allocation3 + $0x1f8] sm:$0xff]
    %v3233 = vld [vmem:[#allocation3 + $0x200] sm:$0xff]
    %v3234 = vld [vmem:[#allocation3 + $0x208] sm:$0xff]
    %v3235 = vld [vmem:[#allocation3 + $0x210] sm:$0xff]
    %v3236 = vld [vmem:[#allocation3 + $0x218] sm:$0xff]
    %v3237 = vld [vmem:[#allocation3 + $0x220] sm:$0xff]
    %v3238 = vld [vmem:[#allocation3 + $0x228] sm:$0xff]
    %v3239 = vld [vmem:[#allocation3 + $0x230] sm:$0xff]
    %v3240 = vld [vmem:[#allocation3 + $0x238] sm:$0xff]
    %v3241 = vld [vmem:[#allocation3 + $0x240] sm:$0xff]
    %v3242 = vld [vmem:[#allocation3 + $0x248] sm:$0xff]
    %v3243 = vld [vmem:[#allocation3 + $0x250] sm:$0xff]
    %v3244 = vld [vmem:[#allocation3 + $0x258] sm:$0xff]
    %v3245 = vld [vmem:[#allocation3 + $0x260] sm:$0xff]
    %v3246 = vld [vmem:[#allocation3 + $0x268] sm:$0xff]
    %v3247 = vld [vmem:[#allocation3 + $0x270] sm:$0xff]
    %v3248 = vld [vmem:[#allocation3 + $0x278] sm:$0xff]
    %v3249 = vld [vmem:[#allocation3 + $0x280] sm:$0xff]
    %v3250 = vld [vmem:[#allocation3 + $0x288] sm:$0xff]
    %v3251 = vld [vmem:[#allocation3 + $0x290] sm:$0xff]
    %v3252 = vld [vmem:[#allocation3 + $0x298] sm:$0xff]
    %v3253 = vld [vmem:[#allocation3 + $0x2a0] sm:$0xff]
    %v3254 = vld [vmem:[#allocation3 + $0x2a8] sm:$0xff]
    %v3255 = vld [vmem:[#allocation3 + $0x2b0] sm:$0xff]
    %v3256 = vld [vmem:[#allocation3 + $0x2b8] sm:$0xff]
    %v3257 = vld [vmem:[#allocation3 + $0x2c0] sm:$0xff]
    %v3258 = vld [vmem:[#allocation3 + $0x2c8] sm:$0xff]
    %v3259 = vld [vmem:[#allocation3 + $0x2d0] sm:$0xff]
    %v3260 = vld [vmem:[#allocation3 + $0x2d8] sm:$0xff]
    %v3261 = vld [vmem:[#allocation3 + $0x2e0] sm:$0xff]
    %v3262 = vld [vmem:[#allocation3 + $0x2e8] sm:$0xff]
    %v3263 = vld [vmem:[#allocation3 + $0x2f0] sm:$0xff]
    %v3264 = vld [vmem:[#allocation3 + $0x2f8] sm:$0xff]
    %v3265 = vld [vmem:[#allocation3 + $0x300] sm:$0xff]
    %v3266 = vld [vmem:[#allocation3 + $0x308] sm:$0xff]
    %v3267 = vld [vmem:[#allocation3 + $0x310] sm:$0xff]
    %v3268 = vld [vmem:[#allocation3 + $0x318] sm:$0xff]
    %v3269 = vld [vmem:[#allocation3 + $0x320] sm:$0xff]
    %v3270 = vld [vmem:[#allocation3 + $0x328] sm:$0xff]
    %v3271 = vld [vmem:[#allocation3 + $0x330] sm:$0xff]
    %v3272 = vld [vmem:[#allocation3 + $0x338] sm:$0xff]
    %v3273 = vld [vmem:[#allocation3 + $0x340] sm:$0xff]
    %v3274 = vld [vmem:[#allocation3 + $0x348] sm:$0xff]
    %v3275 = vld [vmem:[#allocation3 + $0x350] sm:$0xff]
    %v3276 = vld [vmem:[#allocation3 + $0x358] sm:$0xff]
    %v3277 = vld [vmem:[#allocation3 + $0x360] sm:$0xff]
    %v3278 = vld [vmem:[#allocation3 + $0x368] sm:$0xff]
    %v3279 = vld [vmem:[#allocation3 + $0x370] sm:$0xff]
    %v3280 = vld [vmem:[#allocation3 + $0x378] sm:$0xff]
    %v3281 = vld [vmem:[#allocation3 + $0x380] sm:$0xff]
    %v3282 = vld [vmem:[#allocation3 + $0x388] sm:$0xff]
    %v3283 = vld [vmem:[#allocation3 + $0x390] sm:$0xff]
    %v3284 = vld [vmem:[#allocation3 + $0x398] sm:$0xff]
    %v3285 = vld [vmem:[#allocation3 + $0x3a0] sm:$0xff]
    %v3286 = vld [vmem:[#allocation3 + $0x3a8] sm:$0xff]
    %v3287 = vld [vmem:[#allocation3 + $0x3b0] sm:$0xff]
    %v3288 = vld [vmem:[#allocation3 + $0x3b8] sm:$0xff]
    %v3289 = vld [vmem:[#allocation3 + $0x3c0] sm:$0xff]
    %v3290 = vld [vmem:[#allocation3 + $0x3c8] sm:$0xff]
    %v3291 = vld [vmem:[#allocation3 + $0x3d0] sm:$0xff]
    %v3292 = vld [vmem:[#allocation3 + $0x3d8] sm:$0xff]
    %v3293 = vld [vmem:[#allocation3 + $0x3e0] sm:$0xff]
    %v3294 = vld [vmem:[#allocation3 + $0x3e8] sm:$0xff]
    %v3295 = vld [vmem:[#allocation3 + $0x3f0] sm:$0xff]
    %v3296 = vld [vmem:[#allocation3 + $0x3f8] sm:$0xff]
    %v3297 = vld [vmem:[#allocation3 + $0x400] sm:$0xff]
    %v3298 = vld [vmem:[#allocation3 + $0x408] sm:$0xff]
    %v3299 = vld [vmem:[#allocation3 + $0x410] sm:$0xff]
    %v3300 = vld [vmem:[#allocation3 + $0x418] sm:$0xff]
    %v3301 = vld [vmem:[#allocation3 + $0x420] sm:$0xff]
    %v3302 = vld [vmem:[#allocation3 + $0x428] sm:$0xff]
    %v3303 = vld [vmem:[#allocation3 + $0x430] sm:$0xff]
    %v3304 = vld [vmem:[#allocation3 + $0x438] sm:$0xff]
    %v3305 = vld [vmem:[#allocation3 + $0x440] sm:$0xff]
    %v3306 = vld [vmem:[#allocation3 + $0x448] sm:$0xff]
    %v3307 = vld [vmem:[#allocation3 + $0x450] sm:$0xff]
    %v3308 = vld [vmem:[#allocation3 + $0x458] sm:$0xff]
    %v3309 = vld [vmem:[#allocation3 + $0x460] sm:$0xff]
    %v3310 = vld [vmem:[#allocation3 + $0x468] sm:$0xff]
    %v3311 = vld [vmem:[#allocation3 + $0x470] sm:$0xff]
    %v3312 = vld [vmem:[#allocation3 + $0x478] sm:$0xff]
    %v3313 = vld [vmem:[#allocation3 + $0x480] sm:$0xff]
    %v3314 = vld [vmem:[#allocation3 + $0x488] sm:$0xff]
    %v3315 = vld [vmem:[#allocation3 + $0x490] sm:$0xff]
    %v3316 = vld [vmem:[#allocation3 + $0x498] sm:$0xff]
    %v3317 = vld [vmem:[#allocation3 + $0x4a0] sm:$0xff]
    %v3318 = vld [vmem:[#allocation3 + $0x4a8] sm:$0xff]
    %v3319 = vld [vmem:[#allocation3 + $0x4b0] sm:$0xff]
    %v3320 = vld [vmem:[#allocation3 + $0x4b8] sm:$0xff]
    %v3321 = vld [vmem:[#allocation3 + $0x4c0] sm:$0xff]
    %v3322 = vld [vmem:[#allocation3 + $0x4c8] sm:$0xff]
    %v3323 = vld [vmem:[#allocation3 + $0x4d0] sm:$0xff]
    %v3324 = vld [vmem:[#allocation3 + $0x4d8] sm:$0xff]
    %v3325 = vld [vmem:[#allocation3 + $0x4e0] sm:$0xff]
    %v3326 = vld [vmem:[#allocation3 + $0x4e8] sm:$0xff]
    %v3327 = vld [vmem:[#allocation3 + $0x4f0] sm:$0xff]
    %v3328 = vld [vmem:[#allocation3 + $0x4f8] sm:$0xff]
    %v3329 = vld [vmem:[#allocation3 + $0x500] sm:$0xff]
    %v3330 = vld [vmem:[#allocation3 + $0x508] sm:$0xff]
    %v3331 = vld [vmem:[#allocation3 + $0x510] sm:$0xff]
    %v3332 = vld [vmem:[#allocation3 + $0x518] sm:$0xff]
    %v3333 = vld [vmem:[#allocation3 + $0x520] sm:$0xff]
    %v3334 = vld [vmem:[#allocation3 + $0x528] sm:$0xff]
    %v3335 = vld [vmem:[#allocation3 + $0x530] sm:$0xff]
    %v3336 = vld [vmem:[#allocation3 + $0x538] sm:$0xff]
    %v3337 = vld [vmem:[#allocation3 + $0x540] sm:$0xff]
    %v3338 = vld [vmem:[#allocation3 + $0x548] sm:$0xff]
    %v3339 = vld [vmem:[#allocation3 + $0x550] sm:$0xff]
    %v3340 = vld [vmem:[#allocation3 + $0x558] sm:$0xff]
    %v3341 = vld [vmem:[#allocation3 + $0x560] sm:$0xff]
    %v3342 = vld [vmem:[#allocation3 + $0x568] sm:$0xff]
    %v3343 = vld [vmem:[#allocation3 + $0x570] sm:$0xff]
    %v3344 = vld [vmem:[#allocation3 + $0x578] sm:$0xff]
    %v3345 = vld [vmem:[#allocation3 + $0x580] sm:$0xff]
    %v3346 = vld [vmem:[#allocation3 + $0x588] sm:$0xff]
    %v3347 = vld [vmem:[#allocation3 + $0x590] sm:$0xff]
    %v3348 = vld [vmem:[#allocation3 + $0x598] sm:$0xff]
    %v3349 = vld [vmem:[#allocation3 + $0x5a0] sm:$0xff]
    %v3350 = vld [vmem:[#allocation3 + $0x5a8] sm:$0xff]
    %v3351 = vld [vmem:[#allocation3 + $0x5b0] sm:$0xff]
    %v3352 = vld [vmem:[#allocation3 + $0x5b8] sm:$0xff]
    %v3353 = vld [vmem:[#allocation3 + $0x5c0] sm:$0xff]
    %v3354 = vld [vmem:[#allocation3 + $0x5c8] sm:$0xff]
    %v3355 = vld [vmem:[#allocation3 + $0x5d0] sm:$0xff]
    %v3356 = vld [vmem:[#allocation3 + $0x5d8] sm:$0xff]
    %v3357 = vld [vmem:[#allocation3 + $0x5e0] sm:$0xff]
    %v3358 = vld [vmem:[#allocation3 + $0x5e8] sm:$0xff]
    %v3359 = vld [vmem:[#allocation3 + $0x5f0] sm:$0xff]
    %v3360 = vld [vmem:[#allocation3 + $0x5f8] sm:$0xff]
    %v3361 = vld [vmem:[#allocation3 + $0x600] sm:$0xff]
    %v3362 = vld [vmem:[#allocation3 + $0x608] sm:$0xff]
    %v3363 = vld [vmem:[#allocation3 + $0x610] sm:$0xff]
    %v3364 = vld [vmem:[#allocation3 + $0x618] sm:$0xff]
    %v3365 = vld [vmem:[#allocation3 + $0x620] sm:$0xff]
    %v3366 = vld [vmem:[#allocation3 + $0x628] sm:$0xff]
    %v3367 = vld [vmem:[#allocation3 + $0x630] sm:$0xff]
    %v3368 = vld [vmem:[#allocation3 + $0x638] sm:$0xff]
    %v3369 = vld [vmem:[#allocation3 + $0x640] sm:$0xff]
    %v3370 = vld [vmem:[#allocation3 + $0x648] sm:$0xff]
    %v3371 = vld [vmem:[#allocation3 + $0x650] sm:$0xff]
    %v3372 = vld [vmem:[#allocation3 + $0x658] sm:$0xff]
    %v3373 = vld [vmem:[#allocation3 + $0x660] sm:$0xff]
    %v3374 = vld [vmem:[#allocation3 + $0x668] sm:$0xff]
    %v3375 = vld [vmem:[#allocation3 + $0x670] sm:$0xff]
    %v3376 = vld [vmem:[#allocation3 + $0x678] sm:$0xff]
    %v3377 = vld [vmem:[#allocation3 + $0x680] sm:$0xff]
    %v3378 = vld [vmem:[#allocation3 + $0x688] sm:$0xff]
    %v3379 = vld [vmem:[#allocation3 + $0x690] sm:$0xff]
    %v3380 = vld [vmem:[#allocation3 + $0x698] sm:$0xff]
    %v3381 = vld [vmem:[#allocation3 + $0x6a0] sm:$0xff]
    %v3382 = vld [vmem:[#allocation3 + $0x6a8] sm:$0xff]
    %v3383 = vld [vmem:[#allocation3 + $0x6b0] sm:$0xff]
    %v3384 = vld [vmem:[#allocation3 + $0x6b8] sm:$0xff]
    %v3385 = vld [vmem:[#allocation3 + $0x6c0] sm:$0xff]
    %v3386 = vld [vmem:[#allocation3 + $0x6c8] sm:$0xff]
    %v3387 = vld [vmem:[#allocation3 + $0x6d0] sm:$0xff]
    %v3388 = vld [vmem:[#allocation3 + $0x6d8] sm:$0xff]
    %v3389 = vld [vmem:[#allocation3 + $0x6e0] sm:$0xff]
    %v3390 = vld [vmem:[#allocation3 + $0x6e8] sm:$0xff]
    %v3391 = vld [vmem:[#allocation3 + $0x6f0] sm:$0xff]
    %v3392 = vld [vmem:[#allocation3 + $0x6f8] sm:$0xff]
    %v3393 = vld [vmem:[#allocation3 + $0x700] sm:$0xff]
    %v3394 = vld [vmem:[#allocation3 + $0x708] sm:$0xff]
    %v3395 = vld [vmem:[#allocation3 + $0x710] sm:$0xff]
    %v3396 = vld [vmem:[#allocation3 + $0x718] sm:$0xff]
    %v3397 = vld [vmem:[#allocation3 + $0x720] sm:$0xff]
    %v3398 = vld [vmem:[#allocation3 + $0x728] sm:$0xff]
    %v3399 = vld [vmem:[#allocation3 + $0x730] sm:$0xff]
    %v3400 = vld [vmem:[#allocation3 + $0x738] sm:$0xff]
    %v3401 = vld [vmem:[#allocation3 + $0x740] sm:$0xff]
    %v3402 = vld [vmem:[#allocation3 + $0x748] sm:$0xff]
    %v3403 = vld [vmem:[#allocation3 + $0x750] sm:$0xff]
    %v3404 = vld [vmem:[#allocation3 + $0x758] sm:$0xff]
    %v3405 = vld [vmem:[#allocation3 + $0x760] sm:$0xff]
    %v3406 = vld [vmem:[#allocation3 + $0x768] sm:$0xff]
    %v3407 = vld [vmem:[#allocation3 + $0x770] sm:$0xff]
    %v3408 = vld [vmem:[#allocation3 + $0x778] sm:$0xff]
    %v3409 = vld [vmem:[#allocation3 + $0x780] sm:$0xff]
    %v3410 = vld [vmem:[#allocation3 + $0x788] sm:$0xff]
    %v3411 = vld [vmem:[#allocation3 + $0x790] sm:$0xff]
    %v3412 = vld [vmem:[#allocation3 + $0x798] sm:$0xff]
    %v3413 = vld [vmem:[#allocation3 + $0x7a0] sm:$0xff]
    %v3414 = vld [vmem:[#allocation3 + $0x7a8] sm:$0xff]
    %v3415 = vld [vmem:[#allocation3 + $0x7b0] sm:$0xff]
    %v3416 = vld [vmem:[#allocation3 + $0x7b8] sm:$0xff]
    %v3417 = vld [vmem:[#allocation3 + $0x7c0] sm:$0xff]
    %v3418 = vld [vmem:[#allocation3 + $0x7c8] sm:$0xff]
    %v3419 = vld [vmem:[#allocation3 + $0x7d0] sm:$0xff]
    %v3420 = vld [vmem:[#allocation3 + $0x7d8] sm:$0xff]
    %v3421 = vld [vmem:[#allocation3 + $0x7e0] sm:$0xff]
    %v3422 = vld [vmem:[#allocation3 + $0x7e8] sm:$0xff]
    %v3423 = vld [vmem:[#allocation3 + $0x7f0] sm:$0xff]
    %v3424 = vld [vmem:[#allocation3 + $0x7f8] sm:$0xff]
    %v3425 = vld [vmem:[#allocation3 + $0x800] sm:$0xff]
    %v3426 = vld [vmem:[#allocation3 + $0x808] sm:$0xff]
    %v3427 = vld [vmem:[#allocation3 + $0x810] sm:$0xff]
    %v3428 = vld [vmem:[#allocation3 + $0x818] sm:$0xff]
    %v3429 = vld [vmem:[#allocation3 + $0x820] sm:$0xff]
    %v3430 = vld [vmem:[#allocation3 + $0x828] sm:$0xff]
    %v3431 = vld [vmem:[#allocation3 + $0x830] sm:$0xff]
    %v3432 = vld [vmem:[#allocation3 + $0x838] sm:$0xff]
    %v3433 = vld [vmem:[#allocation3 + $0x840] sm:$0xff]
    %v3434 = vld [vmem:[#allocation3 + $0x848] sm:$0xff]
    %v3435 = vld [vmem:[#allocation3 + $0x850] sm:$0xff]
    %v3436 = vld [vmem:[#allocation3 + $0x858] sm:$0xff]
    %v3437 = vld [vmem:[#allocation3 + $0x860] sm:$0xff]
    %v3438 = vld [vmem:[#allocation3 + $0x868] sm:$0xff]
    %v3439 = vld [vmem:[#allocation3 + $0x870] sm:$0xff]
    %v3440 = vld [vmem:[#allocation3 + $0x878] sm:$0xff]
    %v3441 = vld [vmem:[#allocation3 + $0x880] sm:$0xff]
    %v3442 = vld [vmem:[#allocation3 + $0x888] sm:$0xff]
    %v3443 = vld [vmem:[#allocation3 + $0x890] sm:$0xff]
    %v3444 = vld [vmem:[#allocation3 + $0x898] sm:$0xff]
    %v3445 = vld [vmem:[#allocation3 + $0x8a0] sm:$0xff]
    %v3446 = vld [vmem:[#allocation3 + $0x8a8] sm:$0xff]
    %v3447 = vld [vmem:[#allocation3 + $0x8b0] sm:$0xff]
    %v3448 = vld [vmem:[#allocation3 + $0x8b8] sm:$0xff]
    %v3449 = vld [vmem:[#allocation3 + $0x8c0] sm:$0xff]
    %v3450 = vld [vmem:[#allocation3 + $0x8c8] sm:$0xff]
    %v3451 = vld [vmem:[#allocation3 + $0x8d0] sm:$0xff]
    %v3452 = vld [vmem:[#allocation3 + $0x8d8] sm:$0xff]
    %v3453 = vld [vmem:[#allocation3 + $0x8e0] sm:$0xff]
    %v3454 = vld [vmem:[#allocation3 + $0x8e8] sm:$0xff]
    %v3455 = vld [vmem:[#allocation3 + $0x8f0] sm:$0xff]
    %v3456 = vld [vmem:[#allocation3 + $0x8f8] sm:$0xff]
    %v3457 = vld [vmem:[#allocation3 + $0x900] sm:$0xff]
    %v3458 = vld [vmem:[#allocation3 + $0x908] sm:$0xff]
    %v3459 = vld [vmem:[#allocation3 + $0x910] sm:$0xff]
    %v3460 = vld [vmem:[#allocation3 + $0x918] sm:$0xff]
    %v3461 = vld [vmem:[#allocation3 + $0x920] sm:$0xff]
    %v3462 = vld [vmem:[#allocation3 + $0x928] sm:$0xff]
    %v3463 = vld [vmem:[#allocation3 + $0x930] sm:$0xff]
    %v3464 = vld [vmem:[#allocation3 + $0x938] sm:$0xff]
    %v3465 = vld [vmem:[#allocation3 + $0x940] sm:$0xff]
    %v3466 = vld [vmem:[#allocation3 + $0x948] sm:$0xff]
    %v3467 = vld [vmem:[#allocation3 + $0x950] sm:$0xff]
    %v3468 = vld [vmem:[#allocation3 + $0x958] sm:$0xff]
    %v3469 = vld [vmem:[#allocation3 + $0x960] sm:$0xff]
    %v3470 = vld [vmem:[#allocation3 + $0x968] sm:$0xff]
    %v3471 = vld [vmem:[#allocation3 + $0x970] sm:$0xff]
    %v3472 = vld [vmem:[#allocation3 + $0x978] sm:$0xff]
    %v3473 = vld [vmem:[#allocation3 + $0x980] sm:$0xff]
    %v3474 = vld [vmem:[#allocation3 + $0x988] sm:$0xff]
    %v3475 = vld [vmem:[#allocation3 + $0x990] sm:$0xff]
    %v3476 = vld [vmem:[#allocation3 + $0x998] sm:$0xff]
    %v3477 = vld [vmem:[#allocation3 + $0x9a0] sm:$0xff]
    %v3478 = vld [vmem:[#allocation3 + $0x9a8] sm:$0xff]
    %v3479 = vld [vmem:[#allocation3 + $0x9b0] sm:$0xff]
    %v3480 = vld [vmem:[#allocation3 + $0x9b8] sm:$0xff]
    %v3481 = vld [vmem:[#allocation3 + $0x9c0] sm:$0xff]
    %v3482 = vld [vmem:[#allocation3 + $0x9c8] sm:$0xff]
    %v3483 = vld [vmem:[#allocation3 + $0x9d0] sm:$0xff]
    %v3484 = vld [vmem:[#allocation3 + $0x9d8] sm:$0xff]
    %v3485 = vld [vmem:[#allocation3 + $0x9e0] sm:$0xff]
    %v3486 = vld [vmem:[#allocation3 + $0x9e8] sm:$0xff]
    %v3487 = vld [vmem:[#allocation3 + $0x9f0] sm:$0xff]
    %v3488 = vld [vmem:[#allocation3 + $0x9f8] sm:$0xff]
    %v3489 = vld [vmem:[#allocation3 + $0xa00] sm:$0xff]
    %v3490 = vld [vmem:[#allocation3 + $0xa08] sm:$0xff]
    %v3491 = vld [vmem:[#allocation3 + $0xa10] sm:$0xff]
    %v3492 = vld [vmem:[#allocation3 + $0xa18] sm:$0xff]
    %v3493 = vld [vmem:[#allocation3 + $0xa20] sm:$0xff]
    %v3494 = vld [vmem:[#allocation3 + $0xa28] sm:$0xff]
    %v3495 = vld [vmem:[#allocation3 + $0xa30] sm:$0xff]
    %v3496 = vld [vmem:[#allocation3 + $0xa38] sm:$0xff]
    %v3497 = vld [vmem:[#allocation3 + $0xa40] sm:$0xff]
    %v3498 = vld [vmem:[#allocation3 + $0xa48] sm:$0xff]
    %v3499 = vld [vmem:[#allocation3 + $0xa50] sm:$0xff]
    %v3500 = vld [vmem:[#allocation3 + $0xa58] sm:$0xff]
    %v3501 = vld [vmem:[#allocation3 + $0xa60] sm:$0xff]
    %v3502 = vld [vmem:[#allocation3 + $0xa68] sm:$0xff]
    %v3503 = vld [vmem:[#allocation3 + $0xa70] sm:$0xff]
    %v3504 = vld [vmem:[#allocation3 + $0xa78] sm:$0xff]
    %v3505 = vld [vmem:[#allocation3 + $0xa80] sm:$0xff]
    %v3506 = vld [vmem:[#allocation3 + $0xa88] sm:$0xff]
    %v3507 = vld [vmem:[#allocation3 + $0xa90] sm:$0xff]
    %v3508 = vld [vmem:[#allocation3 + $0xa98] sm:$0xff]
    %v3509 = vld [vmem:[#allocation3 + $0xaa0] sm:$0xff]
    %v3510 = vld [vmem:[#allocation3 + $0xaa8] sm:$0xff]
    %v3511 = vld [vmem:[#allocation3 + $0xab0] sm:$0xff]
    %v3512 = vld [vmem:[#allocation3 + $0xab8] sm:$0xff]
    %v3513 = vld [vmem:[#allocation3 + $0xac0] sm:$0xff]
    %v3514 = vld [vmem:[#allocation3 + $0xac8] sm:$0xff]
    %v3515 = vld [vmem:[#allocation3 + $0xad0] sm:$0xff]
    %v3516 = vld [vmem:[#allocation3 + $0xad8] sm:$0xff]
    %v3517 = vld [vmem:[#allocation3 + $0xae0] sm:$0xff]
    %v3518 = vld [vmem:[#allocation3 + $0xae8] sm:$0xff]
    %v3519 = vld [vmem:[#allocation3 + $0xaf0] sm:$0xff]
    %v3520 = vld [vmem:[#allocation3 + $0xaf8] sm:$0xff]
    %v3521 = vld [vmem:[#allocation3 + $0xb00] sm:$0xff]
    %v3522 = vld [vmem:[#allocation3 + $0xb08] sm:$0xff]
    %v3523 = vld [vmem:[#allocation3 + $0xb10] sm:$0xff]
    %v3524 = vld [vmem:[#allocation3 + $0xb18] sm:$0xff]
    %v3525 = vld [vmem:[#allocation3 + $0xb20] sm:$0xff]
    %v3526 = vld [vmem:[#allocation3 + $0xb28] sm:$0xff]
    %v3527 = vld [vmem:[#allocation3 + $0xb30] sm:$0xff]
    %v3528 = vld [vmem:[#allocation3 + $0xb38] sm:$0xff]
    %v3529 = vld [vmem:[#allocation3 + $0xb40] sm:$0xff]
    %v3530 = vld [vmem:[#allocation3 + $0xb48] sm:$0xff]
    %v3531 = vld [vmem:[#allocation3 + $0xb50] sm:$0xff]
    %v3532 = vld [vmem:[#allocation3 + $0xb58] sm:$0xff]
    %v3533 = vld [vmem:[#allocation3 + $0xb60] sm:$0xff]
    %v3534 = vld [vmem:[#allocation3 + $0xb68] sm:$0xff]
    %v3535 = vld [vmem:[#allocation3 + $0xb70] sm:$0xff]
    %v3536 = vld [vmem:[#allocation3 + $0xb78] sm:$0xff]
    %v3537 = vld [vmem:[#allocation3 + $0xb80] sm:$0xff]
    %v3538 = vld [vmem:[#allocation3 + $0xb88] sm:$0xff]
    %v3539 = vld [vmem:[#allocation3 + $0xb90] sm:$0xff]
    %v3540 = vld [vmem:[#allocation3 + $0xb98] sm:$0xff]
    %v3541 = vld [vmem:[#allocation3 + $0xba0] sm:$0xff]
    %v3542 = vld [vmem:[#allocation3 + $0xba8] sm:$0xff]
    %v3543 = vld [vmem:[#allocation3 + $0xbb0] sm:$0xff]
    %v3544 = vld [vmem:[#allocation3 + $0xbb8] sm:$0xff]
    %v3545 = vld [vmem:[#allocation3 + $0xbc0] sm:$0xff]
    %v3546 = vld [vmem:[#allocation3 + $0xbc8] sm:$0xff]
    %v3547 = vld [vmem:[#allocation3 + $0xbd0] sm:$0xff]
    %v3548 = vld [vmem:[#allocation3 + $0xbd8] sm:$0xff]
    %v3549 = vld [vmem:[#allocation3 + $0xbe0] sm:$0xff]
    %v3550 = vld [vmem:[#allocation3 + $0xbe8] sm:$0xff]
    %v3551 = vld [vmem:[#allocation3 + $0xbf0] sm:$0xff]
    %v3552 = vld [vmem:[#allocation3 + $0xbf8] sm:$0xff]
    %v3553 = vld [vmem:[#allocation3 + $0xc00] sm:$0xff]
    %v3554 = vld [vmem:[#allocation3 + $0xc08] sm:$0xff]
    %v3555 = vld [vmem:[#allocation3 + $0xc10] sm:$0xff]
    %v3556 = vld [vmem:[#allocation3 + $0xc18] sm:$0xff]
    %v3557 = vld [vmem:[#allocation3 + $0xc20] sm:$0xff]
    %v3558 = vld [vmem:[#allocation3 + $0xc28] sm:$0xff]
    %v3559 = vld [vmem:[#allocation3 + $0xc30] sm:$0xff]
    %v3560 = vld [vmem:[#allocation3 + $0xc38] sm:$0xff]
    %v3561 = vld [vmem:[#allocation3 + $0xc40] sm:$0xff]
    %v3562 = vld [vmem:[#allocation3 + $0xc48] sm:$0xff]
    %v3563 = vld [vmem:[#allocation3 + $0xc50] sm:$0xff]
    %v3564 = vld [vmem:[#allocation3 + $0xc58] sm:$0xff]
    %v3565 = vld [vmem:[#allocation3 + $0xc60] sm:$0xff]
    %v3566 = vld [vmem:[#allocation3 + $0xc68] sm:$0xff]
    %v3567 = vld [vmem:[#allocation3 + $0xc70] sm:$0xff]
    %v3568 = vld [vmem:[#allocation3 + $0xc78] sm:$0xff]
    %v3569 = vld [vmem:[#allocation3 + $0xc80] sm:$0xff]
    %v3570 = vld [vmem:[#allocation3 + $0xc88] sm:$0xff]
    %v3571 = vld [vmem:[#allocation3 + $0xc90] sm:$0xff]
    %v3572 = vld [vmem:[#allocation3 + $0xc98] sm:$0xff]
    %v3573 = vld [vmem:[#allocation3 + $0xca0] sm:$0xff]
    %v3574 = vld [vmem:[#allocation3 + $0xca8] sm:$0xff]
    %v3575 = vld [vmem:[#allocation3 + $0xcb0] sm:$0xff]
    %v3576 = vld [vmem:[#allocation3 + $0xcb8] sm:$0xff]
    %v3577 = vld [vmem:[#allocation3 + $0xcc0] sm:$0xff]
    %v3578 = vld [vmem:[#allocation3 + $0xcc8] sm:$0xff]
    %v3579 = vld [vmem:[#allocation3 + $0xcd0] sm:$0xff]
    %v3580 = vld [vmem:[#allocation3 + $0xcd8] sm:$0xff]
    %v3581 = vld [vmem:[#allocation3 + $0xce0] sm:$0xff]
    %v3582 = vld [vmem:[#allocation3 + $0xce8] sm:$0xff]
    %v3583 = vld [vmem:[#allocation3 + $0xcf0] sm:$0xff]
    %v3584 = vld [vmem:[#allocation3 + $0xcf8] sm:$0xff]
    %v3585 = vld [vmem:[#allocation3 + $0xd00] sm:$0xff]
    %v3586 = vld [vmem:[#allocation3 + $0xd08] sm:$0xff]
    %v3587 = vld [vmem:[#allocation3 + $0xd10] sm:$0xff]
    %v3588 = vld [vmem:[#allocation3 + $0xd18] sm:$0xff]
    %v3589 = vld [vmem:[#allocation3 + $0xd20] sm:$0xff]
    %v3590 = vld [vmem:[#allocation3 + $0xd28] sm:$0xff]
    %v3591 = vld [vmem:[#allocation3 + $0xd30] sm:$0xff]
    %v3592 = vld [vmem:[#allocation3 + $0xd38] sm:$0xff]
    %v3593 = vld [vmem:[#allocation3 + $0xd40] sm:$0xff]
    %v3594 = vld [vmem:[#allocation3 + $0xd48] sm:$0xff]
    %v3595 = vld [vmem:[#allocation3 + $0xd50] sm:$0xff]
    %v3596 = vld [vmem:[#allocation3 + $0xd58] sm:$0xff]
    %v3597 = vld [vmem:[#allocation3 + $0xd60] sm:$0xff]
    %v3598 = vld [vmem:[#allocation3 + $0xd68] sm:$0xff]
    %v3599 = vld [vmem:[#allocation3 + $0xd70] sm:$0xff]
    %v3600 = vld [vmem:[#allocation3 + $0xd78] sm:$0xff]
    %v3601 = vld [vmem:[#allocation3 + $0xd80] sm:$0xff]
    %v3602 = vld [vmem:[#allocation3 + $0xd88] sm:$0xff]
    %v3603 = vld [vmem:[#allocation3 + $0xd90] sm:$0xff]
    %v3604 = vld [vmem:[#allocation3 + $0xd98] sm:$0xff]
    %v3605 = vld [vmem:[#allocation3 + $0xda0] sm:$0xff]
    %v3606 = vld [vmem:[#allocation3 + $0xda8] sm:$0xff]
    %v3607 = vld [vmem:[#allocation3 + $0xdb0] sm:$0xff]
    %v3608 = vld [vmem:[#allocation3 + $0xdb8] sm:$0xff]
    %v3609 = vld [vmem:[#allocation3 + $0xdc0] sm:$0xff]
    %v3610 = vld [vmem:[#allocation3 + $0xdc8] sm:$0xff]
    %v3611 = vld [vmem:[#allocation3 + $0xdd0] sm:$0xff]
    %v3612 = vld [vmem:[#allocation3 + $0xdd8] sm:$0xff]
    %v3613 = vld [vmem:[#allocation3 + $0xde0] sm:$0xff]
    %v3614 = vld [vmem:[#allocation3 + $0xde8] sm:$0xff]
    %v3615 = vld [vmem:[#allocation3 + $0xdf0] sm:$0xff]
    %v3616 = vld [vmem:[#allocation3 + $0xdf8] sm:$0xff]
    %v3617 = vld [vmem:[#allocation3 + $0xe00] sm:$0xff]
    %v3618 = vld [vmem:[#allocation3 + $0xe08] sm:$0xff]
    %v3619 = vld [vmem:[#allocation3 + $0xe10] sm:$0xff]
    %v3620 = vld [vmem:[#allocation3 + $0xe18] sm:$0xff]
    %v3621 = vld [vmem:[#allocation3 + $0xe20] sm:$0xff]
    %v3622 = vld [vmem:[#allocation3 + $0xe28] sm:$0xff]
    %v3623 = vld [vmem:[#allocation3 + $0xe30] sm:$0xff]
    %v3624 = vld [vmem:[#allocation3 + $0xe38] sm:$0xff]
    %v3625 = vld [vmem:[#allocation3 + $0xe40] sm:$0xff]
    %v3626 = vld [vmem:[#allocation3 + $0xe48] sm:$0xff]
    %v3627 = vld [vmem:[#allocation3 + $0xe50] sm:$0xff]
    %v3628 = vld [vmem:[#allocation3 + $0xe58] sm:$0xff]
    %v3629 = vld [vmem:[#allocation3 + $0xe60] sm:$0xff]
    %v3630 = vld [vmem:[#allocation3 + $0xe68] sm:$0xff]
    %v3631 = vld [vmem:[#allocation3 + $0xe70] sm:$0xff]
    %v3632 = vld [vmem:[#allocation3 + $0xe78] sm:$0xff]
    %v3633 = vld [vmem:[#allocation3 + $0xe80] sm:$0xff]
    %v3634 = vld [vmem:[#allocation3 + $0xe88] sm:$0xff]
    %v3635 = vld [vmem:[#allocation3 + $0xe90] sm:$0xff]
    %v3636 = vld [vmem:[#allocation3 + $0xe98] sm:$0xff]
    %v3637 = vld [vmem:[#allocation3 + $0xea0] sm:$0xff]
    %v3638 = vld [vmem:[#allocation3 + $0xea8] sm:$0xff]
    %v3639 = vld [vmem:[#allocation3 + $0xeb0] sm:$0xff]
    %v3640 = vld [vmem:[#allocation3 + $0xeb8] sm:$0xff]
    %v3641 = vld [vmem:[#allocation3 + $0xec0] sm:$0xff]
    %v3642 = vld [vmem:[#allocation3 + $0xec8] sm:$0xff]
    %v3643 = vld [vmem:[#allocation3 + $0xed0] sm:$0xff]
    %v3644 = vld [vmem:[#allocation3 + $0xed8] sm:$0xff]
    %v3645 = vld [vmem:[#allocation3 + $0xee0] sm:$0xff]
    %v3646 = vld [vmem:[#allocation3 + $0xee8] sm:$0xff]
    %v3647 = vld [vmem:[#allocation3 + $0xef0] sm:$0xff]
    %v3648 = vld [vmem:[#allocation3 + $0xef8] sm:$0xff]
    %v3649 = vld [vmem:[#allocation3 + $0xf00] sm:$0xff]
    %v3650 = vld [vmem:[#allocation3 + $0xf08] sm:$0xff]
    %v3651 = vld [vmem:[#allocation3 + $0xf10] sm:$0xff]
    %v3652 = vld [vmem:[#allocation3 + $0xf18] sm:$0xff]
    %v3653 = vld [vmem:[#allocation3 + $0xf20] sm:$0xff]
    %v3654 = vld [vmem:[#allocation3 + $0xf28] sm:$0xff]
    %v3655 = vld [vmem:[#allocation3 + $0xf30] sm:$0xff]
    %v3656 = vld [vmem:[#allocation3 + $0xf38] sm:$0xff]
    %v3657 = vld [vmem:[#allocation3 + $0xf40] sm:$0xff]
    %v3658 = vld [vmem:[#allocation3 + $0xf48] sm:$0xff]
    %v3659 = vld [vmem:[#allocation3 + $0xf50] sm:$0xff]
    %v3660 = vld [vmem:[#allocation3 + $0xf58] sm:$0xff]
    %v3661 = vld [vmem:[#allocation3 + $0xf60] sm:$0xff]
    %v3662 = vld [vmem:[#allocation3 + $0xf68] sm:$0xff]
    %v3663 = vld [vmem:[#allocation3 + $0xf70] sm:$0xff]
    %v3664 = vld [vmem:[#allocation3 + $0xf78] sm:$0xff]
    %v3665 = vld [vmem:[#allocation3 + $0xf80] sm:$0xff]
    %v3666 = vld [vmem:[#allocation3 + $0xf88] sm:$0xff]
    %v3667 = vld [vmem:[#allocation3 + $0xf90] sm:$0xff]
    %v3668 = vld [vmem:[#allocation3 + $0xf98] sm:$0xff]
    %v3669 = vld [vmem:[#allocation3 + $0xfa0] sm:$0xff]
    %v3670 = vld [vmem:[#allocation3 + $0xfa8] sm:$0xff]
    %v3671 = vld [vmem:[#allocation3 + $0xfb0] sm:$0xff]
    %v3672 = vld [vmem:[#allocation3 + $0xfb8] sm:$0xff]
    %v3673 = vld [vmem:[#allocation3 + $0xfc0] sm:$0xff]
    %v3674 = vld [vmem:[#allocation3 + $0xfc8] sm:$0xff]
    %v3675 = vld [vmem:[#allocation3 + $0xfd0] sm:$0xff]
    %v3676 = vld [vmem:[#allocation3 + $0xfd8] sm:$0xff]
    %v3677 = vld [vmem:[#allocation3 + $0xfe0] sm:$0xff]
    %v3678 = vld [vmem:[#allocation3 + $0xfe8] sm:$0xff]
    %v3679 = vld [vmem:[#allocation3 + $0xff0] sm:$0xff]
    %v3680 = vld [vmem:[#allocation3 + $0xff8] sm:$0xff]
    %v3681 = vld [vmem:[#allocation3 + $0x1000] sm:$0xff]
    %v3682 = vld [vmem:[#allocation3 + $0x1008] sm:$0xff]
    %v3683 = vld [vmem:[#allocation3 + $0x1010] sm:$0xff]
    %v3684 = vld [vmem:[#allocation3 + $0x1018] sm:$0xff]
    %v3685 = vld [vmem:[#allocation3 + $0x1020] sm:$0xff]
    %v3686 = vld [vmem:[#allocation3 + $0x1028] sm:$0xff]
    %v3687 = vld [vmem:[#allocation3 + $0x1030] sm:$0xff]
    %v3688 = vld [vmem:[#allocation3 + $0x1038] sm:$0xff]
    %v3689 = vld [vmem:[#allocation3 + $0x1040] sm:$0xff]
    %v3690 = vld [vmem:[#allocation3 + $0x1048] sm:$0xff]
    %v3691 = vld [vmem:[#allocation3 + $0x1050] sm:$0xff]
    %v3692 = vld [vmem:[#allocation3 + $0x1058] sm:$0xff]
    %v3693 = vld [vmem:[#allocation3 + $0x1060] sm:$0xff]
    %v3694 = vld [vmem:[#allocation3 + $0x1068] sm:$0xff]
    %v3695 = vld [vmem:[#allocation3 + $0x1070] sm:$0xff]
    %v3696 = vld [vmem:[#allocation3 + $0x1078] sm:$0xff]
    %v3697 = vld [vmem:[#allocation3 + $0x1080] sm:$0xff]
    %v3698 = vld [vmem:[#allocation3 + $0x1088] sm:$0xff]
    %v3699 = vld [vmem:[#allocation3 + $0x1090] sm:$0xff]
    %v3700 = vld [vmem:[#allocation3 + $0x1098] sm:$0xff]
    %v3701 = vld [vmem:[#allocation3 + $0x10a0] sm:$0xff]
    %v3702 = vld [vmem:[#allocation3 + $0x10a8] sm:$0xff]
    %v3703 = vld [vmem:[#allocation3 + $0x10b0] sm:$0xff]
    %v3704 = vld [vmem:[#allocation3 + $0x10b8] sm:$0xff]
    %v3705 = vld [vmem:[#allocation3 + $0x10c0] sm:$0xff]
    %v3706 = vld [vmem:[#allocation3 + $0x10c8] sm:$0xff]
    %v3707 = vld [vmem:[#allocation3 + $0x10d0] sm:$0xff]
    %v3708 = vld [vmem:[#allocation3 + $0x10d8] sm:$0xff]
    %v3709 = vld [vmem:[#allocation3 + $0x10e0] sm:$0xff]
    %v3710 = vld [vmem:[#allocation3 + $0x10e8] sm:$0xff]
    %v3711 = vld [vmem:[#allocation3 + $0x10f0] sm:$0xff]
    %v3712 = vld [vmem:[#allocation3 + $0x10f8] sm:$0xff]
    %v3713 = vld [vmem:[#allocation3 + $0x1100] sm:$0xff]
    %v3714 = vld [vmem:[#allocation3 + $0x1108] sm:$0xff]
    %v3715 = vld [vmem:[#allocation3 + $0x1110] sm:$0xff]
    %v3716 = vld [vmem:[#allocation3 + $0x1118] sm:$0xff]
    %v3717 = vld [vmem:[#allocation3 + $0x1120] sm:$0xff]
    %v3718 = vld [vmem:[#allocation3 + $0x1128] sm:$0xff]
    %v3719 = vld [vmem:[#allocation3 + $0x1130] sm:$0xff]
    %v3720 = vld [vmem:[#allocation3 + $0x1138] sm:$0xff]
    %v3721 = vld [vmem:[#allocation3 + $0x1140] sm:$0xff]
    %v3722 = vld [vmem:[#allocation3 + $0x1148] sm:$0xff]
    %v3723 = vld [vmem:[#allocation3 + $0x1150] sm:$0xff]
    %v3724 = vld [vmem:[#allocation3 + $0x1158] sm:$0xff]
    %v3725 = vld [vmem:[#allocation3 + $0x1160] sm:$0xff]
    %v3726 = vld [vmem:[#allocation3 + $0x1168] sm:$0xff]
    %v3727 = vld [vmem:[#allocation3 + $0x1170] sm:$0xff]
    %v3728 = vld [vmem:[#allocation3 + $0x1178] sm:$0xff]
    %v3729 = vld [vmem:[#allocation3 + $0x1180] sm:$0xff]
    %v3730 = vld [vmem:[#allocation3 + $0x1188] sm:$0xff]
    %v3731 = vld [vmem:[#allocation3 + $0x1190] sm:$0xff]
    %v3732 = vld [vmem:[#allocation3 + $0x1198] sm:$0xff]
    %v3733 = vld [vmem:[#allocation3 + $0x11a0] sm:$0xff]
    %v3734 = vld [vmem:[#allocation3 + $0x11a8] sm:$0xff]
    %v3735 = vld [vmem:[#allocation3 + $0x11b0] sm:$0xff]
    %v3736 = vld [vmem:[#allocation3 + $0x11b8] sm:$0xff]
    %v3737 = vld [vmem:[#allocation3 + $0x11c0] sm:$0xff]
    %v3738 = vld [vmem:[#allocation3 + $0x11c8] sm:$0xff]
    %v3739 = vld [vmem:[#allocation3 + $0x11d0] sm:$0xff]
    %v3740 = vld [vmem:[#allocation3 + $0x11d8] sm:$0xff]
    %v3741 = vld [vmem:[#allocation3 + $0x11e0] sm:$0xff]
    %v3742 = vld [vmem:[#allocation3 + $0x11e8] sm:$0xff]
    %v3743 = vld [vmem:[#allocation3 + $0x11f0] sm:$0xff]
    %v3744 = vld [vmem:[#allocation3 + $0x11f8] sm:$0xff]
    %v3745 = vld [vmem:[#allocation3 + $0x1200] sm:$0xff]
    %v3746 = vld [vmem:[#allocation3 + $0x1208] sm:$0xff]
    %v3747 = vld [vmem:[#allocation3 + $0x1210] sm:$0xff]
    %v3748 = vld [vmem:[#allocation3 + $0x1218] sm:$0xff]
    %v3749 = vld [vmem:[#allocation3 + $0x1220] sm:$0xff]
    %v3750 = vld [vmem:[#allocation3 + $0x1228] sm:$0xff]
    %v3751 = vld [vmem:[#allocation3 + $0x1230] sm:$0xff]
    %v3752 = vld [vmem:[#allocation3 + $0x1238] sm:$0xff]
    %v3753 = vld [vmem:[#allocation3 + $0x1240] sm:$0xff]
    %v3754 = vld [vmem:[#allocation3 + $0x1248] sm:$0xff]
    %v3755 = vld [vmem:[#allocation3 + $0x1250] sm:$0xff]
    %v3756 = vld [vmem:[#allocation3 + $0x1258] sm:$0xff]
    %v3757 = vld [vmem:[#allocation3 + $0x1260] sm:$0xff]
    %v3758 = vld [vmem:[#allocation3 + $0x1268] sm:$0xff]
    %v3759 = vld [vmem:[#allocation3 + $0x1270] sm:$0xff]
    %v3760 = vld [vmem:[#allocation3 + $0x1278] sm:$0xff]
    %v3761 = vld [vmem:[#allocation3 + $0x1280] sm:$0xff]
    %v3762 = vld [vmem:[#allocation3 + $0x1288] sm:$0xff]
    %v3763 = vld [vmem:[#allocation3 + $0x1290] sm:$0xff]
    %v3764 = vld [vmem:[#allocation3 + $0x1298] sm:$0xff]
    %v3765 = vld [vmem:[#allocation3 + $0x12a0] sm:$0xff]
    %v3766 = vld [vmem:[#allocation3 + $0x12a8] sm:$0xff]
    %v3767 = vld [vmem:[#allocation3 + $0x12b0] sm:$0xff]
    %v3768 = vld [vmem:[#allocation3 + $0x12b8] sm:$0xff]
    %v3769 = vld [vmem:[#allocation3 + $0x12c0] sm:$0xff]
    %v3770 = vld [vmem:[#allocation3 + $0x12c8] sm:$0xff]
    %v3771 = vld [vmem:[#allocation3 + $0x12d0] sm:$0xff]
    %v3772 = vld [vmem:[#allocation3 + $0x12d8] sm:$0xff]
    %v3773 = vld [vmem:[#allocation3 + $0x12e0] sm:$0xff]
    %v3774 = vld [vmem:[#allocation3 + $0x12e8] sm:$0xff]
    %v3775 = vld [vmem:[#allocation3 + $0x12f0] sm:$0xff]
    %v3776 = vld [vmem:[#allocation3 + $0x12f8] sm:$0xff]
    %v3777 = vld [vmem:[#allocation3 + $0x1300] sm:$0xff]
    %v3778 = vld [vmem:[#allocation3 + $0x1308] sm:$0xff]
    %v3779 = vld [vmem:[#allocation3 + $0x1310] sm:$0xff]
    %v3780 = vld [vmem:[#allocation3 + $0x1318] sm:$0xff]
    %v3781 = vld [vmem:[#allocation3 + $0x1320] sm:$0xff]
    %v3782 = vld [vmem:[#allocation3 + $0x1328] sm:$0xff]
    %v3783 = vld [vmem:[#allocation3 + $0x1330] sm:$0xff]
    %v3784 = vld [vmem:[#allocation3 + $0x1338] sm:$0xff]
    %v3785 = vld [vmem:[#allocation3 + $0x1340] sm:$0xff]
    %v3786 = vld [vmem:[#allocation3 + $0x1348] sm:$0xff]
    %v3787 = vld [vmem:[#allocation3 + $0x1350] sm:$0xff]
    %v3788 = vld [vmem:[#allocation3 + $0x1358] sm:$0xff]
    %v3789 = vld [vmem:[#allocation3 + $0x1360] sm:$0xff]
    %v3790 = vld [vmem:[#allocation3 + $0x1368] sm:$0xff]
    %v3791 = vld [vmem:[#allocation3 + $0x1370] sm:$0xff]
    %v3792 = vld [vmem:[#allocation3 + $0x1378] sm:$0xff]
    %v3793 = vld [vmem:[#allocation3 + $0x1380] sm:$0xff]
    %v3794 = vld [vmem:[#allocation3 + $0x1388] sm:$0xff]
    %v3795 = vld [vmem:[#allocation3 + $0x1390] sm:$0xff]
    %v3796 = vld [vmem:[#allocation3 + $0x1398] sm:$0xff]
    %v3797 = vld [vmem:[#allocation3 + $0x13a0] sm:$0xff]
    %v3798 = vld [vmem:[#allocation3 + $0x13a8] sm:$0xff]
    %v3799 = vld [vmem:[#allocation3 + $0x13b0] sm:$0xff]
    %v3800 = vld [vmem:[#allocation3 + $0x13b8] sm:$0xff]
    %v3801 = vld [vmem:[#allocation3 + $0x13c0] sm:$0xff]
    %v3802 = vld [vmem:[#allocation3 + $0x13c8] sm:$0xff]
    %v3803 = vld [vmem:[#allocation3 + $0x13d0] sm:$0xff]
    %v3804 = vld [vmem:[#allocation3 + $0x13d8] sm:$0xff]
    %v3805 = vld [vmem:[#allocation3 + $0x13e0] sm:$0xff]
    %v3806 = vld [vmem:[#allocation3 + $0x13e8] sm:$0xff]
    %v3807 = vld [vmem:[#allocation3 + $0x13f0] sm:$0xff]
    %v3808 = vld [vmem:[#allocation3 + $0x13f8] sm:$0xff]
    %v3809 = vld [vmem:[#allocation3 + $0x1400] sm:$0xff]
    %v3810 = vld [vmem:[#allocation3 + $0x1408] sm:$0xff]
    %v3811 = vld [vmem:[#allocation3 + $0x1410] sm:$0xff]
    %v3812 = vld [vmem:[#allocation3 + $0x1418] sm:$0xff]
    %v3813 = vld [vmem:[#allocation3 + $0x1420] sm:$0xff]
    %v3814 = vld [vmem:[#allocation3 + $0x1428] sm:$0xff]
    %v3815 = vld [vmem:[#allocation3 + $0x1430] sm:$0xff]
    %v3816 = vld [vmem:[#allocation3 + $0x1438] sm:$0xff]
    %v3817 = vld [vmem:[#allocation3 + $0x1440] sm:$0xff]
    %v3818 = vld [vmem:[#allocation3 + $0x1448] sm:$0xff]
    %v3819 = vld [vmem:[#allocation3 + $0x1450] sm:$0xff]
    %v3820 = vld [vmem:[#allocation3 + $0x1458] sm:$0xff]
    %v3821 = vld [vmem:[#allocation3 + $0x1460] sm:$0xff]
    %v3822 = vld [vmem:[#allocation3 + $0x1468] sm:$0xff]
    %v3823 = vld [vmem:[#allocation3 + $0x1470] sm:$0xff]
    %v3824 = vld [vmem:[#allocation3 + $0x1478] sm:$0xff]
    %v3825 = vld [vmem:[#allocation3 + $0x1480] sm:$0xff]
    %v3826 = vld [vmem:[#allocation3 + $0x1488] sm:$0xff]
    %v3827 = vld [vmem:[#allocation3 + $0x1490] sm:$0xff]
    %v3828 = vld [vmem:[#allocation3 + $0x1498] sm:$0xff]
    %v3829 = vld [vmem:[#allocation3 + $0x14a0] sm:$0xff]
    %v3830 = vld [vmem:[#allocation3 + $0x14a8] sm:$0xff]
    %v3831 = vld [vmem:[#allocation3 + $0x14b0] sm:$0xff]
    %v3832 = vld [vmem:[#allocation3 + $0x14b8] sm:$0xff]
    %v3833 = vld [vmem:[#allocation3 + $0x14c0] sm:$0xff]
    %v3834 = vld [vmem:[#allocation3 + $0x14c8] sm:$0xff]
    %v3835 = vld [vmem:[#allocation3 + $0x14d0] sm:$0xff]
    %v3836 = vld [vmem:[#allocation3 + $0x14d8] sm:$0xff]
    %v3837 = vld [vmem:[#allocation3 + $0x14e0] sm:$0xff]
    %v3838 = vld [vmem:[#allocation3 + $0x14e8] sm:$0xff]
    %v3839 = vld [vmem:[#allocation3 + $0x14f0] sm:$0xff]
    %v3840 = vld [vmem:[#allocation3 + $0x14f8] sm:$0xff]
    %v3841 = vld [vmem:[#allocation3 + $0x1500] sm:$0xff]
    %v3842 = vld [vmem:[#allocation3 + $0x1508] sm:$0xff]
    %v3843 = vld [vmem:[#allocation3 + $0x1510] sm:$0xff]
    %v3844 = vld [vmem:[#allocation3 + $0x1518] sm:$0xff]
    %v3845 = vld [vmem:[#allocation3 + $0x1520] sm:$0xff]
    %v3846 = vld [vmem:[#allocation3 + $0x1528] sm:$0xff]
    %v3847 = vld [vmem:[#allocation3 + $0x1530] sm:$0xff]
    %v3848 = vld [vmem:[#allocation3 + $0x1538] sm:$0xff]
    %v3849 = vld [vmem:[#allocation3 + $0x1540] sm:$0xff]
    %v3850 = vld [vmem:[#allocation3 + $0x1548] sm:$0xff]
    %v3851 = vld [vmem:[#allocation3 + $0x1550] sm:$0xff]
    %v3852 = vld [vmem:[#allocation3 + $0x1558] sm:$0xff]
    %v3853 = vld [vmem:[#allocation3 + $0x1560] sm:$0xff]
    %v3854 = vld [vmem:[#allocation3 + $0x1568] sm:$0xff]
    %v3855 = vld [vmem:[#allocation3 + $0x1570] sm:$0xff]
    %v3856 = vld [vmem:[#allocation3 + $0x1578] sm:$0xff]
    %v3857 = vld [vmem:[#allocation3 + $0x1580] sm:$0xff]
    %v3858 = vld [vmem:[#allocation3 + $0x1588] sm:$0xff]
    %v3859 = vld [vmem:[#allocation3 + $0x1590] sm:$0xff]
    %v3860 = vld [vmem:[#allocation3 + $0x1598] sm:$0xff]
    %v3861 = vld [vmem:[#allocation3 + $0x15a0] sm:$0xff]
    %v3862 = vld [vmem:[#allocation3 + $0x15a8] sm:$0xff]
    %v3863 = vld [vmem:[#allocation3 + $0x15b0] sm:$0xff]
    %v3864 = vld [vmem:[#allocation3 + $0x15b8] sm:$0xff]
    %v3865 = vld [vmem:[#allocation3 + $0x15c0] sm:$0xff]
    %v3866 = vld [vmem:[#allocation3 + $0x15c8] sm:$0xff]
    %v3867 = vld [vmem:[#allocation3 + $0x15d0] sm:$0xff]
    %v3868 = vld [vmem:[#allocation3 + $0x15d8] sm:$0xff]
    %v3869 = vld [vmem:[#allocation3 + $0x15e0] sm:$0xff]
    %v3870 = vld [vmem:[#allocation3 + $0x15e8] sm:$0xff]
    %v3871 = vld [vmem:[#allocation3 + $0x15f0] sm:$0xff]
    %v3872 = vld [vmem:[#allocation3 + $0x15f8] sm:$0xff]
    %v3873 = vld [vmem:[#allocation3 + $0x1600] sm:$0xff]
    %v3874 = vld [vmem:[#allocation3 + $0x1608] sm:$0xff]
    %v3875 = vld [vmem:[#allocation3 + $0x1610] sm:$0xff]
    %v3876 = vld [vmem:[#allocation3 + $0x1618] sm:$0xff]
    %v3877 = vld [vmem:[#allocation3 + $0x1620] sm:$0xff]
    %v3878 = vld [vmem:[#allocation3 + $0x1628] sm:$0xff]
    %v3879 = vld [vmem:[#allocation3 + $0x1630] sm:$0xff]
    %v3880 = vld [vmem:[#allocation3 + $0x1638] sm:$0xff]
    %v3881 = vld [vmem:[#allocation3 + $0x1640] sm:$0xff]
    %v3882 = vld [vmem:[#allocation3 + $0x1648] sm:$0xff]
    %v3883 = vld [vmem:[#allocation3 + $0x1650] sm:$0xff]
    %v3884 = vld [vmem:[#allocation3 + $0x1658] sm:$0xff]
    %v3885 = vld [vmem:[#allocation3 + $0x1660] sm:$0xff]
    %v3886 = vld [vmem:[#allocation3 + $0x1668] sm:$0xff]
    %v3887 = vld [vmem:[#allocation3 + $0x1670] sm:$0xff]
    %v3888 = vld [vmem:[#allocation3 + $0x1678] sm:$0xff]
    %v3889 = vld [vmem:[#allocation3 + $0x1680] sm:$0xff]
    %v3890 = vld [vmem:[#allocation3 + $0x1688] sm:$0xff]
    %v3891 = vld [vmem:[#allocation3 + $0x1690] sm:$0xff]
    %v3892 = vld [vmem:[#allocation3 + $0x1698] sm:$0xff]
    %v3893 = vld [vmem:[#allocation3 + $0x16a0] sm:$0xff]
    %v3894 = vld [vmem:[#allocation3 + $0x16a8] sm:$0xff]
    %v3895 = vld [vmem:[#allocation3 + $0x16b0] sm:$0xff]
    %v3896 = vld [vmem:[#allocation3 + $0x16b8] sm:$0xff]
    %v3897 = vld [vmem:[#allocation3 + $0x16c0] sm:$0xff]
    %v3898 = vld [vmem:[#allocation3 + $0x16c8] sm:$0xff]
    %v3899 = vld [vmem:[#allocation3 + $0x16d0] sm:$0xff]
    %v3900 = vld [vmem:[#allocation3 + $0x16d8] sm:$0xff]
    %v3901 = vld [vmem:[#allocation3 + $0x16e0] sm:$0xff]
    %v3902 = vld [vmem:[#allocation3 + $0x16e8] sm:$0xff]
    %v3903 = vld [vmem:[#allocation3 + $0x16f0] sm:$0xff]
    %v3904 = vld [vmem:[#allocation3 + $0x16f8] sm:$0xff]
    %v3905 = vld [vmem:[#allocation3 + $0x1700] sm:$0xff]
    %v3906 = vld [vmem:[#allocation3 + $0x1708] sm:$0xff]
    %v3907 = vld [vmem:[#allocation3 + $0x1710] sm:$0xff]
    %v3908 = vld [vmem:[#allocation3 + $0x1718] sm:$0xff]
    %v3909 = vld [vmem:[#allocation3 + $0x1720] sm:$0xff]
    %v3910 = vld [vmem:[#allocation3 + $0x1728] sm:$0xff]
    %v3911 = vld [vmem:[#allocation3 + $0x1730] sm:$0xff]
    %v3912 = vld [vmem:[#allocation3 + $0x1738] sm:$0xff]
    %v3913 = vld [vmem:[#allocation3 + $0x1740] sm:$0xff]
    %v3914 = vld [vmem:[#allocation3 + $0x1748] sm:$0xff]
    %v3915 = vld [vmem:[#allocation3 + $0x1750] sm:$0xff]
    %v3916 = vld [vmem:[#allocation3 + $0x1758] sm:$0xff]
    %v3917 = vld [vmem:[#allocation3 + $0x1760] sm:$0xff]
    %v3918 = vld [vmem:[#allocation3 + $0x1768] sm:$0xff]
    %v3919 = vld [vmem:[#allocation3 + $0x1770] sm:$0xff]
    %v3920 = vld [vmem:[#allocation3 + $0x1778] sm:$0xff]
    %v3921 = vld [vmem:[#allocation3 + $0x1780] sm:$0xff]
    %v3922 = vld [vmem:[#allocation3 + $0x1788] sm:$0xff]
    %v3923 = vld [vmem:[#allocation3 + $0x1790] sm:$0xff]
    %v3924 = vld [vmem:[#allocation3 + $0x1798] sm:$0xff]
    %v3925 = vld [vmem:[#allocation3 + $0x17a0] sm:$0xff]
    %v3926 = vld [vmem:[#allocation3 + $0x17a8] sm:$0xff]
    %v3927 = vld [vmem:[#allocation3 + $0x17b0] sm:$0xff]
    %v3928 = vld [vmem:[#allocation3 + $0x17b8] sm:$0xff]
    %v3929 = vld [vmem:[#allocation3 + $0x17c0] sm:$0xff]
    %v3930 = vld [vmem:[#allocation3 + $0x17c8] sm:$0xff]
    %v3931 = vld [vmem:[#allocation3 + $0x17d0] sm:$0xff]
    %v3932 = vld [vmem:[#allocation3 + $0x17d8] sm:$0xff]
    %v3933 = vld [vmem:[#allocation3 + $0x17e0] sm:$0xff]
    %v3934 = vld [vmem:[#allocation3 + $0x17e8] sm:$0xff]
    %v3935 = vld [vmem:[#allocation3 + $0x17f0] sm:$0xff]
    %v3936 = vld [vmem:[#allocation3 + $0x17f8] sm:$0xff]
    %v3937 = vld [vmem:[#allocation3 + $0x1800] sm:$0xff]
    %v3938 = vld [vmem:[#allocation3 + $0x1808] sm:$0xff]
    %v3939 = vld [vmem:[#allocation3 + $0x1810] sm:$0xff]
    %v3940 = vld [vmem:[#allocation3 + $0x1818] sm:$0xff]
    %v3941 = vld [vmem:[#allocation3 + $0x1820] sm:$0xff]
    %v3942 = vld [vmem:[#allocation3 + $0x1828] sm:$0xff]
    %v3943 = vld [vmem:[#allocation3 + $0x1830] sm:$0xff]
    %v3944 = vld [vmem:[#allocation3 + $0x1838] sm:$0xff]
    %v3945 = vld [vmem:[#allocation3 + $0x1840] sm:$0xff]
    %v3946 = vld [vmem:[#allocation3 + $0x1848] sm:$0xff]
    %v3947 = vld [vmem:[#allocation3 + $0x1850] sm:$0xff]
    %v3948 = vld [vmem:[#allocation3 + $0x1858] sm:$0xff]
    %v3949 = vld [vmem:[#allocation3 + $0x1860] sm:$0xff]
    %v3950 = vld [vmem:[#allocation3 + $0x1868] sm:$0xff]
    %v3951 = vld [vmem:[#allocation3 + $0x1870] sm:$0xff]
    %v3952 = vld [vmem:[#allocation3 + $0x1878] sm:$0xff]
    %v3953 = vld [vmem:[#allocation3 + $0x1880] sm:$0xff]
    %v3954 = vld [vmem:[#allocation3 + $0x1888] sm:$0xff]
    %v3955 = vld [vmem:[#allocation3 + $0x1890] sm:$0xff]
    %v3956 = vld [vmem:[#allocation3 + $0x1898] sm:$0xff]
    %v3957 = vld [vmem:[#allocation3 + $0x18a0] sm:$0xff]
    %v3958 = vld [vmem:[#allocation3 + $0x18a8] sm:$0xff]
    %v3959 = vld [vmem:[#allocation3 + $0x18b0] sm:$0xff]
    %v3960 = vld [vmem:[#allocation3 + $0x18b8] sm:$0xff]
    %v3961 = vld [vmem:[#allocation3 + $0x18c0] sm:$0xff]
    %v3962 = vld [vmem:[#allocation3 + $0x18c8] sm:$0xff]
    %v3963 = vld [vmem:[#allocation3 + $0x18d0] sm:$0xff]
    %v3964 = vld [vmem:[#allocation3 + $0x18d8] sm:$0xff]
    %v3965 = vld [vmem:[#allocation3 + $0x18e0] sm:$0xff]
    %v3966 = vld [vmem:[#allocation3 + $0x18e8] sm:$0xff]
    %v3967 = vld [vmem:[#allocation3 + $0x18f0] sm:$0xff]
    %v3968 = vld [vmem:[#allocation3 + $0x18f8] sm:$0xff]
    %v3969 = vld [vmem:[#allocation3 + $0x1900] sm:$0xff]
    %v3970 = vld [vmem:[#allocation3 + $0x1908] sm:$0xff]
    %v3971 = vld [vmem:[#allocation3 + $0x1910] sm:$0xff]
    %v3972 = vld [vmem:[#allocation3 + $0x1918] sm:$0xff]
    %v3973 = vld [vmem:[#allocation3 + $0x1920] sm:$0xff]
    %v3974 = vld [vmem:[#allocation3 + $0x1928] sm:$0xff]
    %v3975 = vld [vmem:[#allocation3 + $0x1930] sm:$0xff]
    %v3976 = vld [vmem:[#allocation3 + $0x1938] sm:$0xff]
    %v3977 = vld [vmem:[#allocation3 + $0x1940] sm:$0xff]
    %v3978 = vld [vmem:[#allocation3 + $0x1948] sm:$0xff]
    %v3979 = vld [vmem:[#allocation3 + $0x1950] sm:$0xff]
    %v3980 = vld [vmem:[#allocation3 + $0x1958] sm:$0xff]
    %v3981 = vld [vmem:[#allocation3 + $0x1960] sm:$0xff]
    %v3982 = vld [vmem:[#allocation3 + $0x1968] sm:$0xff]
    %v3983 = vld [vmem:[#allocation3 + $0x1970] sm:$0xff]
    %v3984 = vld [vmem:[#allocation3 + $0x1978] sm:$0xff]
    %v3985 = vld [vmem:[#allocation3 + $0x1980] sm:$0xff]
    %v3986 = vld [vmem:[#allocation3 + $0x1988] sm:$0xff]
    %v3987 = vld [vmem:[#allocation3 + $0x1990] sm:$0xff]
    %v3988 = vld [vmem:[#allocation3 + $0x1998] sm:$0xff]
    %v3989 = vld [vmem:[#allocation3 + $0x19a0] sm:$0xff]
    %v3990 = vld [vmem:[#allocation3 + $0x19a8] sm:$0xff]
    %v3991 = vld [vmem:[#allocation3 + $0x19b0] sm:$0xff]
    %v3992 = vld [vmem:[#allocation3 + $0x19b8] sm:$0xff]
    %v3993 = vld [vmem:[#allocation3 + $0x19c0] sm:$0xff]
    %v3994 = vld [vmem:[#allocation3 + $0x19c8] sm:$0xff]
    %v3995 = vld [vmem:[#allocation3 + $0x19d0] sm:$0xff]
    %v3996 = vld [vmem:[#allocation3 + $0x19d8] sm:$0xff]
    %v3997 = vld [vmem:[#allocation3 + $0x19e0] sm:$0xff]
    %v3998 = vld [vmem:[#allocation3 + $0x19e8] sm:$0xff]
    %v3999 = vld [vmem:[#allocation3 + $0x19f0] sm:$0xff]
    %v4000 = vld [vmem:[#allocation3 + $0x19f8] sm:$0xff]
    %v4001 = vld [vmem:[#allocation3 + $0x1a00] sm:$0xff]
    %v4002 = vld [vmem:[#allocation3 + $0x1a08] sm:$0xff]
    %v4003 = vld [vmem:[#allocation3 + $0x1a10] sm:$0xff]
    %v4004 = vld [vmem:[#allocation3 + $0x1a18] sm:$0xff]
    %v4005 = vld [vmem:[#allocation3 + $0x1a20] sm:$0xff]
    %v4006 = vld [vmem:[#allocation3 + $0x1a28] sm:$0xff]
    %v4007 = vld [vmem:[#allocation3 + $0x1a30] sm:$0xff]
    %v4008 = vld [vmem:[#allocation3 + $0x1a38] sm:$0xff]
    %v4009 = vld [vmem:[#allocation3 + $0x1a40] sm:$0xff]
    %v4010 = vld [vmem:[#allocation3 + $0x1a48] sm:$0xff]
    %v4011 = vld [vmem:[#allocation3 + $0x1a50] sm:$0xff]
    %v4012 = vld [vmem:[#allocation3 + $0x1a58] sm:$0xff]
    %v4013 = vld [vmem:[#allocation3 + $0x1a60] sm:$0xff]
    %v4014 = vld [vmem:[#allocation3 + $0x1a68] sm:$0xff]
    %v4015 = vld [vmem:[#allocation3 + $0x1a70] sm:$0xff]
    %v4016 = vld [vmem:[#allocation3 + $0x1a78] sm:$0xff]
    %v4017 = vld [vmem:[#allocation3 + $0x1a80] sm:$0xff]
    %v4018 = vld [vmem:[#allocation3 + $0x1a88] sm:$0xff]
    %v4019 = vld [vmem:[#allocation3 + $0x1a90] sm:$0xff]
    %v4020 = vld [vmem:[#allocation3 + $0x1a98] sm:$0xff]
    %v4021 = vld [vmem:[#allocation3 + $0x1aa0] sm:$0xff]
    %v4022 = vld [vmem:[#allocation3 + $0x1aa8] sm:$0xff]
    %v4023 = vld [vmem:[#allocation3 + $0x1ab0] sm:$0xff]
    %v4024 = vld [vmem:[#allocation3 + $0x1ab8] sm:$0xff]
    %v4025 = vld [vmem:[#allocation3 + $0x1ac0] sm:$0xff]
    %v4026 = vld [vmem:[#allocation3 + $0x1ac8] sm:$0xff]
    %v4027 = vld [vmem:[#allocation3 + $0x1ad0] sm:$0xff]
    %v4028 = vld [vmem:[#allocation3 + $0x1ad8] sm:$0xff]
    %v4029 = vld [vmem:[#allocation3 + $0x1ae0] sm:$0xff]
    %v4030 = vld [vmem:[#allocation3 + $0x1ae8] sm:$0xff]
    %v4031 = vld [vmem:[#allocation3 + $0x1af0] sm:$0xff]
    %v4032 = vld [vmem:[#allocation3 + $0x1af8] sm:$0xff]
    %v4033 = vld [vmem:[#allocation3 + $0x1b00] sm:$0xff]
    %v4034 = vld [vmem:[#allocation3 + $0x1b08] sm:$0xff]
    %v4035 = vld [vmem:[#allocation3 + $0x1b10] sm:$0xff]
    %v4036 = vld [vmem:[#allocation3 + $0x1b18] sm:$0xff]
    %v4037 = vld [vmem:[#allocation3 + $0x1b20] sm:$0xff]
    %v4038 = vld [vmem:[#allocation3 + $0x1b28] sm:$0xff]
    %v4039 = vld [vmem:[#allocation3 + $0x1b30] sm:$0xff]
    %v4040 = vld [vmem:[#allocation3 + $0x1b38] sm:$0xff]
    %v4041 = vld [vmem:[#allocation3 + $0x1b40] sm:$0xff]
    %v4042 = vld [vmem:[#allocation3 + $0x1b48] sm:$0xff]
    %v4043 = vld [vmem:[#allocation3 + $0x1b50] sm:$0xff]
    %v4044 = vld [vmem:[#allocation3 + $0x1b58] sm:$0xff]
    %v4045 = vld [vmem:[#allocation3 + $0x1b60] sm:$0xff]
    %v4046 = vld [vmem:[#allocation3 + $0x1b68] sm:$0xff]
    %v4047 = vld [vmem:[#allocation3 + $0x1b70] sm:$0xff]
    %v4048 = vld [vmem:[#allocation3 + $0x1b78] sm:$0xff]
    %v4049 = vld [vmem:[#allocation3 + $0x1b80] sm:$0xff]
    %v4050 = vld [vmem:[#allocation3 + $0x1b88] sm:$0xff]
    %v4051 = vld [vmem:[#allocation3 + $0x1b90] sm:$0xff]
    %v4052 = vld [vmem:[#allocation3 + $0x1b98] sm:$0xff]
    %v4053 = vld [vmem:[#allocation3 + $0x1ba0] sm:$0xff]
    %v4054 = vld [vmem:[#allocation3 + $0x1ba8] sm:$0xff]
    %v4055 = vld [vmem:[#allocation3 + $0x1bb0] sm:$0xff]
    %v4056 = vld [vmem:[#allocation3 + $0x1bb8] sm:$0xff]
    %v4057 = vld [vmem:[#allocation3 + $0x1bc0] sm:$0xff]
    %v4058 = vld [vmem:[#allocation3 + $0x1bc8] sm:$0xff]
    %v4059 = vld [vmem:[#allocation3 + $0x1bd0] sm:$0xff]
    %v4060 = vld [vmem:[#allocation3 + $0x1bd8] sm:$0xff]
    %v4061 = vld [vmem:[#allocation3 + $0x1be0] sm:$0xff]
    %v4062 = vld [vmem:[#allocation3 + $0x1be8] sm:$0xff]
    %v4063 = vld [vmem:[#allocation3 + $0x1bf0] sm:$0xff]
    %v4064 = vld [vmem:[#allocation3 + $0x1bf8] sm:$0xff]
    %v4065 = vld [vmem:[#allocation3 + $0x1c00] sm:$0xff]
    %v4066 = vld [vmem:[#allocation3 + $0x1c08] sm:$0xff]
    %v4067 = vld [vmem:[#allocation3 + $0x1c10] sm:$0xff]
    %v4068 = vld [vmem:[#allocation3 + $0x1c18] sm:$0xff]
    %v4069 = vld [vmem:[#allocation3 + $0x1c20] sm:$0xff]
    %v4070 = vld [vmem:[#allocation3 + $0x1c28] sm:$0xff]
    %v4071 = vld [vmem:[#allocation3 + $0x1c30] sm:$0xff]
    %v4072 = vld [vmem:[#allocation3 + $0x1c38] sm:$0xff]
    %v4073 = vld [vmem:[#allocation3 + $0x1c40] sm:$0xff]
    %v4074 = vld [vmem:[#allocation3 + $0x1c48] sm:$0xff]
    %v4075 = vld [vmem:[#allocation3 + $0x1c50] sm:$0xff]
    %v4076 = vld [vmem:[#allocation3 + $0x1c58] sm:$0xff]
    %v4077 = vld [vmem:[#allocation3 + $0x1c60] sm:$0xff]
    %v4078 = vld [vmem:[#allocation3 + $0x1c68] sm:$0xff]
    %v4079 = vld [vmem:[#allocation3 + $0x1c70] sm:$0xff]
    %v4080 = vld [vmem:[#allocation3 + $0x1c78] sm:$0xff]
    %v4081 = vld [vmem:[#allocation3 + $0x1c80] sm:$0xff]
    %v4082 = vld [vmem:[#allocation3 + $0x1c88] sm:$0xff]
    %v4083 = vld [vmem:[#allocation3 + $0x1c90] sm:$0xff]
    %v4084 = vld [vmem:[#allocation3 + $0x1c98] sm:$0xff]
    %v4085 = vld [vmem:[#allocation3 + $0x1ca0] sm:$0xff]
    %v4086 = vld [vmem:[#allocation3 + $0x1ca8] sm:$0xff]
    %v4087 = vld [vmem:[#allocation3 + $0x1cb0] sm:$0xff]
    %v4088 = vld [vmem:[#allocation3 + $0x1cb8] sm:$0xff]
    %v4089 = vld [vmem:[#allocation3 + $0x1cc0] sm:$0xff]
    %v4090 = vld [vmem:[#allocation3 + $0x1cc8] sm:$0xff]
    %v4091 = vld [vmem:[#allocation3 + $0x1cd0] sm:$0xff]
    %v4092 = vld [vmem:[#allocation3 + $0x1cd8] sm:$0xff]
    %v4093 = vld [vmem:[#allocation3 + $0x1ce0] sm:$0xff]
    %v4094 = vld [vmem:[#allocation3 + $0x1ce8] sm:$0xff]
    %v4095 = vld [vmem:[#allocation3 + $0x1cf0] sm:$0xff]
    %v4096 = vld [vmem:[#allocation3 + $0x1cf8] sm:$0xff]
    %v4097 = vld [vmem:[#allocation3 + $0x1d00] sm:$0xff]
    %v4098 = vld [vmem:[#allocation3 + $0x1d08] sm:$0xff]
    %v4099 = vld [vmem:[#allocation3 + $0x1d10] sm:$0xff]
    %v4100 = vld [vmem:[#allocation3 + $0x1d18] sm:$0xff]
    %v4101 = vld [vmem:[#allocation3 + $0x1d20] sm:$0xff]
    %v4102 = vld [vmem:[#allocation3 + $0x1d28] sm:$0xff]
    %v4103 = vld [vmem:[#allocation3 + $0x1d30] sm:$0xff]
    %v4104 = vld [vmem:[#allocation3 + $0x1d38] sm:$0xff]
    %v4105 = vld [vmem:[#allocation3 + $0x1d40] sm:$0xff]
    %v4106 = vld [vmem:[#allocation3 + $0x1d48] sm:$0xff]
    %v4107 = vld [vmem:[#allocation3 + $0x1d50] sm:$0xff]
    %v4108 = vld [vmem:[#allocation3 + $0x1d58] sm:$0xff]
    %v4109 = vld [vmem:[#allocation3 + $0x1d60] sm:$0xff]
    %v4110 = vld [vmem:[#allocation3 + $0x1d68] sm:$0xff]
    %v4111 = vld [vmem:[#allocation3 + $0x1d70] sm:$0xff]
    %v4112 = vld [vmem:[#allocation3 + $0x1d78] sm:$0xff]
    %v4113 = vld [vmem:[#allocation3 + $0x1d80] sm:$0xff]
    %v4114 = vld [vmem:[#allocation3 + $0x1d88] sm:$0xff]
    %v4115 = vld [vmem:[#allocation3 + $0x1d90] sm:$0xff]
    %v4116 = vld [vmem:[#allocation3 + $0x1d98] sm:$0xff]
    %v4117 = vld [vmem:[#allocation3 + $0x1da0] sm:$0xff]
    %v4118 = vld [vmem:[#allocation3 + $0x1da8] sm:$0xff]
    %v4119 = vld [vmem:[#allocation3 + $0x1db0] sm:$0xff]
    %v4120 = vld [vmem:[#allocation3 + $0x1db8] sm:$0xff]
    %v4121 = vld [vmem:[#allocation3 + $0x1dc0] sm:$0xff]
    %v4122 = vld [vmem:[#allocation3 + $0x1dc8] sm:$0xff]
    %v4123 = vld [vmem:[#allocation3 + $0x1dd0] sm:$0xff]
    %v4124 = vld [vmem:[#allocation3 + $0x1dd8] sm:$0xff]
    %v4125 = vld [vmem:[#allocation3 + $0x1de0] sm:$0xff]
    %v4126 = vld [vmem:[#allocation3 + $0x1de8] sm:$0xff]
    %v4127 = vld [vmem:[#allocation3 + $0x1df0] sm:$0xff]
    %v4128 = vld [vmem:[#allocation3 + $0x1df8] sm:$0xff]
    %v4129 = vld [vmem:[#allocation3 + $0x1e00] sm:$0xff]
    %v4130 = vld [vmem:[#allocation3 + $0x1e08] sm:$0xff]
    %v4131 = vld [vmem:[#allocation3 + $0x1e10] sm:$0xff]
    %v4132 = vld [vmem:[#allocation3 + $0x1e18] sm:$0xff]
    %v4133 = vld [vmem:[#allocation3 + $0x1e20] sm:$0xff]
    %v4134 = vld [vmem:[#allocation3 + $0x1e28] sm:$0xff]
    %v4135 = vld [vmem:[#allocation3 + $0x1e30] sm:$0xff]
    %v4136 = vld [vmem:[#allocation3 + $0x1e38] sm:$0xff]
    %v4137 = vld [vmem:[#allocation3 + $0x1e40] sm:$0xff]
    %v4138 = vld [vmem:[#allocation3 + $0x1e48] sm:$0xff]
    %v4139 = vld [vmem:[#allocation3 + $0x1e50] sm:$0xff]
    %v4140 = vld [vmem:[#allocation3 + $0x1e58] sm:$0xff]
    %v4141 = vld [vmem:[#allocation3 + $0x1e60] sm:$0xff]
    %v4142 = vld [vmem:[#allocation3 + $0x1e68] sm:$0xff]
    %v4143 = vld [vmem:[#allocation3 + $0x1e70] sm:$0xff]
    %v4144 = vld [vmem:[#allocation3 + $0x1e78] sm:$0xff]
    %v4145 = vld [vmem:[#allocation3 + $0x1e80] sm:$0xff]
    %v4146 = vld [vmem:[#allocation3 + $0x1e88] sm:$0xff]
    %v4147 = vld [vmem:[#allocation3 + $0x1e90] sm:$0xff]
    %v4148 = vld [vmem:[#allocation3 + $0x1e98] sm:$0xff]
    %v4149 = vld [vmem:[#allocation3 + $0x1ea0] sm:$0xff]
    %v4150 = vld [vmem:[#allocation3 + $0x1ea8] sm:$0xff]
    %v4151 = vld [vmem:[#allocation3 + $0x1eb0] sm:$0xff]
    %v4152 = vld [vmem:[#allocation3 + $0x1eb8] sm:$0xff]
    %v4153 = vld [vmem:[#allocation3 + $0x1ec0] sm:$0xff]
    %v4154 = vld [vmem:[#allocation3 + $0x1ec8] sm:$0xff]
    %v4155 = vld [vmem:[#allocation3 + $0x1ed0] sm:$0xff]
    %v4156 = vld [vmem:[#allocation3 + $0x1ed8] sm:$0xff]
    %v4157 = vld [vmem:[#allocation3 + $0x1ee0] sm:$0xff]
    %v4158 = vld [vmem:[#allocation3 + $0x1ee8] sm:$0xff]
    %v4159 = vld [vmem:[#allocation3 + $0x1ef0] sm:$0xff]
    %v4160 = vld [vmem:[#allocation3 + $0x1ef8] sm:$0xff]
    %v4161 = vld [vmem:[#allocation3 + $0x1f00] sm:$0xff]
    %v4162 = vld [vmem:[#allocation3 + $0x1f08] sm:$0xff]
    %v4163 = vld [vmem:[#allocation3 + $0x1f10] sm:$0xff]
    %v4164 = vld [vmem:[#allocation3 + $0x1f18] sm:$0xff]
    %v4165 = vld [vmem:[#allocation3 + $0x1f20] sm:$0xff]
    %v4166 = vld [vmem:[#allocation3 + $0x1f28] sm:$0xff]
    %v4167 = vld [vmem:[#allocation3 + $0x1f30] sm:$0xff]
    %v4168 = vld [vmem:[#allocation3 + $0x1f38] sm:$0xff]
    %v4169 = vld [vmem:[#allocation3 + $0x1f40] sm:$0xff]
    %v4170 = vld [vmem:[#allocation3 + $0x1f48] sm:$0xff]
    %v4171 = vld [vmem:[#allocation3 + $0x1f50] sm:$0xff]
    %v4172 = vld [vmem:[#allocation3 + $0x1f58] sm:$0xff]
    %v4173 = vld [vmem:[#allocation3 + $0x1f60] sm:$0xff]
    %v4174 = vld [vmem:[#allocation3 + $0x1f68] sm:$0xff]
    %v4175 = vld [vmem:[#allocation3 + $0x1f70] sm:$0xff]
    %v4176 = vld [vmem:[#allocation3 + $0x1f78] sm:$0xff]
    %v4177 = vld [vmem:[#allocation3 + $0x1f80] sm:$0xff]
    %v4178 = vld [vmem:[#allocation3 + $0x1f88] sm:$0xff]
    %v4179 = vld [vmem:[#allocation3 + $0x1f90] sm:$0xff]
    %v4180 = vld [vmem:[#allocation3 + $0x1f98] sm:$0xff]
    %v4181 = vld [vmem:[#allocation3 + $0x1fa0] sm:$0xff]
    %v4182 = vld [vmem:[#allocation3 + $0x1fa8] sm:$0xff]
    %v4183 = vld [vmem:[#allocation3 + $0x1fb0] sm:$0xff]
    %v4184 = vld [vmem:[#allocation3 + $0x1fb8] sm:$0xff]
    %v4185 = vld [vmem:[#allocation3 + $0x1fc0] sm:$0xff]
    %v4186 = vld [vmem:[#allocation3 + $0x1fc8] sm:$0xff]
    %v4187 = vld [vmem:[#allocation3 + $0x1fd0] sm:$0xff]
    %v4188 = vld [vmem:[#allocation3 + $0x1fd8] sm:$0xff]
    %v4189 = vld [vmem:[#allocation3 + $0x1fe0] sm:$0xff]
    %v4190 = vld [vmem:[#allocation3 + $0x1fe8] sm:$0xff]
    %v4191 = vld [vmem:[#allocation3 + $0x1ff0] sm:$0xff]
    %v4192 = vld [vmem:[#allocation3 + $0x1ff8] sm:$0xff]
    %v4193 = vpack.c.bf16 %v3153, %v3153
    %v4194 = vpack.c.bf16 %v3154, %v3154
    %v4195 = vpack.c.bf16 %v3155, %v3155
    %v4196 = vpack.c.bf16 %v3156, %v3156
    %v4197 = vpack.c.bf16 %v3157, %v3157
    %v4198 = vpack.c.bf16 %v3158, %v3158
    %v4199 = vpack.c.bf16 %v3159, %v3159
    %v4200 = vpack.c.bf16 %v3160, %v3160
    %v4201 = vld [vmem:[#allocation29] sm:$0xff]
    %v4202 = vld [vmem:[#allocation29 + $0x8] sm:$0xff]
    %v4205 = vperm.slane %v4201, 0
    %v4206 = vperm.slane %v4201, 1
    %v4207 = vperm.slane %v4201, 2
    %v4208 = vperm.slane %v4201, 3
    %v4209 = vperm.slane %v4201, 4
    %v4210 = vperm.slane %v4201, 5
    %v4211 = vperm.slane %v4201, 6
    %v4212 = vperm.slane %v4201, 7
    %v4213 = vperm.slane %v4202, 0
    %v4214 = vperm.slane %v4202, 1
    %v4215 = vperm.slane %v4202, 2
    %v4216 = vperm.slane %v4202, 3
    %v4217 = vperm.slane %v4202, 4
    %v4218 = vperm.slane %v4202, 5
    %v4219 = vperm.slane %v4202, 6
    %v4220 = vperm.slane %v4202, 7
    %v5261 = vunpack.c.l.b16 %v3169
    %v5262 = vunpack.c.h.b16 %v3169
    %v5263 = vunpack.c.l.b16 %v3170
    %v5264 = vunpack.c.h.b16 %v3170
    %v5265 = vunpack.c.l.b16 %v3171
    %v5266 = vunpack.c.h.b16 %v3171
    %v5267 = vunpack.c.l.b16 %v3172
    %v5268 = vunpack.c.h.b16 %v3172
    %v5269 = vunpack.c.l.b16 %v3173
    %v5270 = vunpack.c.h.b16 %v3173
    %v5271 = vunpack.c.l.b16 %v3174
    %v5272 = vunpack.c.h.b16 %v3174
    %v5273 = vunpack.c.l.b16 %v3175
    %v5274 = vunpack.c.h.b16 %v3175
    %v5275 = vunpack.c.l.b16 %v3176
    %v5276 = vunpack.c.h.b16 %v3176
    %v5277 = vunpack.c.l.b16 %v3177
    %v5278 = vunpack.c.h.b16 %v3177
    %v5279 = vunpack.c.l.b16 %v3178
    %v5280 = vunpack.c.h.b16 %v3178
    %v5281 = vunpack.c.l.b16 %v3179
    %v5282 = vunpack.c.h.b16 %v3179
    %v5283 = vunpack.c.l.b16 %v3180
    %v5284 = vunpack.c.h.b16 %v3180
    %v5285 = vunpack.c.l.b16 %v3181
    %v5286 = vunpack.c.h.b16 %v3181
    %v5287 = vunpack.c.l.b16 %v3182
    %v5288 = vunpack.c.h.b16 %v3182
    %v5289 = vunpack.c.l.b16 %v3183
    %v5290 = vunpack.c.h.b16 %v3183
    %v5291 = vunpack.c.l.b16 %v3184
    %v5292 = vunpack.c.h.b16 %v3184
    %v5293 = vunpack.c.l.b16 %v3185
    %v5294 = vunpack.c.h.b16 %v3185
    %v5295 = vunpack.c.l.b16 %v3186
    %v5296 = vunpack.c.h.b16 %v3186
    %v5297 = vunpack.c.l.b16 %v3187
    %v5298 = vunpack.c.h.b16 %v3187
    %v5299 = vunpack.c.l.b16 %v3188
    %v5300 = vunpack.c.h.b16 %v3188
    %v5301 = vunpack.c.l.b16 %v3189
    %v5302 = vunpack.c.h.b16 %v3189
    %v5303 = vunpack.c.l.b16 %v3190
    %v5304 = vunpack.c.h.b16 %v3190
    %v5305 = vunpack.c.l.b16 %v3191
    %v5306 = vunpack.c.h.b16 %v3191
    %v5307 = vunpack.c.l.b16 %v3192
    %v5308 = vunpack.c.h.b16 %v3192
    %v5309 = vunpack.c.l.b16 %v3193
    %v5310 = vunpack.c.h.b16 %v3193
    %v5311 = vunpack.c.l.b16 %v3194
    %v5312 = vunpack.c.h.b16 %v3194
    %v5313 = vunpack.c.l.b16 %v3195
    %v5314 = vunpack.c.h.b16 %v3195
    %v5315 = vunpack.c.l.b16 %v3196
    %v5316 = vunpack.c.h.b16 %v3196
    %v5317 = vunpack.c.l.b16 %v3197
    %v5318 = vunpack.c.h.b16 %v3197
    %v5319 = vunpack.c.l.b16 %v3198
    %v5320 = vunpack.c.h.b16 %v3198
    %v5321 = vunpack.c.l.b16 %v3199
    %v5322 = vunpack.c.h.b16 %v3199
    %v5323 = vunpack.c.l.b16 %v3200
    %v5324 = vunpack.c.h.b16 %v3200
    %v5325 = vunpack.c.l.b16 %v3201
    %v5326 = vunpack.c.h.b16 %v3201
    %v5327 = vunpack.c.l.b16 %v3202
    %v5328 = vunpack.c.h.b16 %v3202
    %v5329 = vunpack.c.l.b16 %v3203
    %v5330 = vunpack.c.h.b16 %v3203
    %v5331 = vunpack.c.l.b16 %v3204
    %v5332 = vunpack.c.h.b16 %v3204
    %v5333 = vunpack.c.l.b16 %v3205
    %v5334 = vunpack.c.h.b16 %v3205
    %v5335 = vunpack.c.l.b16 %v3206
    %v5336 = vunpack.c.h.b16 %v3206
    %v5337 = vunpack.c.l.b16 %v3207
    %v5338 = vunpack.c.h.b16 %v3207
    %v5339 = vunpack.c.l.b16 %v3208
    %v5340 = vunpack.c.h.b16 %v3208
    %v5341 = vunpack.c.l.b16 %v3209
    %v5342 = vunpack.c.h.b16 %v3209
    %v5343 = vunpack.c.l.b16 %v3210
    %v5344 = vunpack.c.h.b16 %v3210
    %v5345 = vunpack.c.l.b16 %v3211
    %v5346 = vunpack.c.h.b16 %v3211
    %v5347 = vunpack.c.l.b16 %v3212
    %v5348 = vunpack.c.h.b16 %v3212
    %v5349 = vunpack.c.l.b16 %v3213
    %v5350 = vunpack.c.h.b16 %v3213
    %v5351 = vunpack.c.l.b16 %v3214
    %v5352 = vunpack.c.h.b16 %v3214
    %v5353 = vunpack.c.l.b16 %v3215
    %v5354 = vunpack.c.h.b16 %v3215
    %v5355 = vunpack.c.l.b16 %v3216
    %v5356 = vunpack.c.h.b16 %v3216
    %v5357 = vunpack.c.l.b16 %v3217
    %v5358 = vunpack.c.h.b16 %v3217
    %v5359 = vunpack.c.l.b16 %v3218
    %v5360 = vunpack.c.h.b16 %v3218
    %v5361 = vunpack.c.l.b16 %v3219
    %v5362 = vunpack.c.h.b16 %v3219
    %v5363 = vunpack.c.l.b16 %v3220
    %v5364 = vunpack.c.h.b16 %v3220
    %v5365 = vunpack.c.l.b16 %v3221
    %v5366 = vunpack.c.h.b16 %v3221
    %v5367 = vunpack.c.l.b16 %v3222
    %v5368 = vunpack.c.h.b16 %v3222
    %v5369 = vunpack.c.l.b16 %v3223
    %v5370 = vunpack.c.h.b16 %v3223
    %v5371 = vunpack.c.l.b16 %v3224
    %v5372 = vunpack.c.h.b16 %v3224
    %v5373 = vunpack.c.l.b16 %v3225
    %v5374 = vunpack.c.h.b16 %v3225
    %v5375 = vunpack.c.l.b16 %v3226
    %v5376 = vunpack.c.h.b16 %v3226
    %v5377 = vunpack.c.l.b16 %v3227
    %v5378 = vunpack.c.h.b16 %v3227
    %v5379 = vunpack.c.l.b16 %v3228
    %v5380 = vunpack.c.h.b16 %v3228
    %v5381 = vunpack.c.l.b16 %v3229
    %v5382 = vunpack.c.h.b16 %v3229
    %v5383 = vunpack.c.l.b16 %v3230
    %v5384 = vunpack.c.h.b16 %v3230
    %v5385 = vunpack.c.l.b16 %v3231
    %v5386 = vunpack.c.h.b16 %v3231
    %v5387 = vunpack.c.l.b16 %v3232
    %v5388 = vunpack.c.h.b16 %v3232
    %v5389 = vunpack.c.l.b16 %v3233
    %v5390 = vunpack.c.h.b16 %v3233
    %v5391 = vunpack.c.l.b16 %v3234
    %v5392 = vunpack.c.h.b16 %v3234
    %v5393 = vunpack.c.l.b16 %v3235
    %v5394 = vunpack.c.h.b16 %v3235
    %v5395 = vunpack.c.l.b16 %v3236
    %v5396 = vunpack.c.h.b16 %v3236
    %v5397 = vunpack.c.l.b16 %v3237
    %v5398 = vunpack.c.h.b16 %v3237
    %v5399 = vunpack.c.l.b16 %v3238
    %v5400 = vunpack.c.h.b16 %v3238
    %v5401 = vunpack.c.l.b16 %v3239
    %v5402 = vunpack.c.h.b16 %v3239
    %v5403 = vunpack.c.l.b16 %v3240
    %v5404 = vunpack.c.h.b16 %v3240
    %v5405 = vunpack.c.l.b16 %v3241
    %v5406 = vunpack.c.h.b16 %v3241
    %v5407 = vunpack.c.l.b16 %v3242
    %v5408 = vunpack.c.h.b16 %v3242
    %v5409 = vunpack.c.l.b16 %v3243
    %v5410 = vunpack.c.h.b16 %v3243
    %v5411 = vunpack.c.l.b16 %v3244
    %v5412 = vunpack.c.h.b16 %v3244
    %v5413 = vunpack.c.l.b16 %v3245
    %v5414 = vunpack.c.h.b16 %v3245
    %v5415 = vunpack.c.l.b16 %v3246
    %v5416 = vunpack.c.h.b16 %v3246
    %v5417 = vunpack.c.l.b16 %v3247
    %v5418 = vunpack.c.h.b16 %v3247
    %v5419 = vunpack.c.l.b16 %v3248
    %v5420 = vunpack.c.h.b16 %v3248
    %v5421 = vunpack.c.l.b16 %v3249
    %v5422 = vunpack.c.h.b16 %v3249
    %v5423 = vunpack.c.l.b16 %v3250
    %v5424 = vunpack.c.h.b16 %v3250
    %v5425 = vunpack.c.l.b16 %v3251
    %v5426 = vunpack.c.h.b16 %v3251
    %v5427 = vunpack.c.l.b16 %v3252
    %v5428 = vunpack.c.h.b16 %v3252
    %v5429 = vunpack.c.l.b16 %v3253
    %v5430 = vunpack.c.h.b16 %v3253
    %v5431 = vunpack.c.l.b16 %v3254
    %v5432 = vunpack.c.h.b16 %v3254
    %v5433 = vunpack.c.l.b16 %v3255
    %v5434 = vunpack.c.h.b16 %v3255
    %v5435 = vunpack.c.l.b16 %v3256
    %v5436 = vunpack.c.h.b16 %v3256
    %v5437 = vunpack.c.l.b16 %v3257
    %v5438 = vunpack.c.h.b16 %v3257
    %v5439 = vunpack.c.l.b16 %v3258
    %v5440 = vunpack.c.h.b16 %v3258
    %v5441 = vunpack.c.l.b16 %v3259
    %v5442 = vunpack.c.h.b16 %v3259
    %v5443 = vunpack.c.l.b16 %v3260
    %v5444 = vunpack.c.h.b16 %v3260
    %v5445 = vunpack.c.l.b16 %v3261
    %v5446 = vunpack.c.h.b16 %v3261
    %v5447 = vunpack.c.l.b16 %v3262
    %v5448 = vunpack.c.h.b16 %v3262
    %v5449 = vunpack.c.l.b16 %v3263
    %v5450 = vunpack.c.h.b16 %v3263
    %v5451 = vunpack.c.l.b16 %v3264
    %v5452 = vunpack.c.h.b16 %v3264
    %v5453 = vunpack.c.l.b16 %v3265
    %v5454 = vunpack.c.h.b16 %v3265
    %v5455 = vunpack.c.l.b16 %v3266
    %v5456 = vunpack.c.h.b16 %v3266
    %v5457 = vunpack.c.l.b16 %v3267
    %v5458 = vunpack.c.h.b16 %v3267
    %v5459 = vunpack.c.l.b16 %v3268
    %v5460 = vunpack.c.h.b16 %v3268
    %v5461 = vunpack.c.l.b16 %v3269
    %v5462 = vunpack.c.h.b16 %v3269
    %v5463 = vunpack.c.l.b16 %v3270
    %v5464 = vunpack.c.h.b16 %v3270
    %v5465 = vunpack.c.l.b16 %v3271
    %v5466 = vunpack.c.h.b16 %v3271
    %v5467 = vunpack.c.l.b16 %v3272
    %v5468 = vunpack.c.h.b16 %v3272
    %v5469 = vunpack.c.l.b16 %v3273
    %v5470 = vunpack.c.h.b16 %v3273
    %v5471 = vunpack.c.l.b16 %v3274
    %v5472 = vunpack.c.h.b16 %v3274
    %v5473 = vunpack.c.l.b16 %v3275
    %v5474 = vunpack.c.h.b16 %v3275
    %v5475 = vunpack.c.l.b16 %v3276
    %v5476 = vunpack.c.h.b16 %v3276
    %v5477 = vunpack.c.l.b16 %v3277
    %v5478 = vunpack.c.h.b16 %v3277
    %v5479 = vunpack.c.l.b16 %v3278
    %v5480 = vunpack.c.h.b16 %v3278
    %v5481 = vunpack.c.l.b16 %v3279
    %v5482 = vunpack.c.h.b16 %v3279
    %v5483 = vunpack.c.l.b16 %v3280
    %v5484 = vunpack.c.h.b16 %v3280
    %v5485 = vunpack.c.l.b16 %v3281
    %v5486 = vunpack.c.h.b16 %v3281
    %v5487 = vunpack.c.l.b16 %v3282
    %v5488 = vunpack.c.h.b16 %v3282
    %v5489 = vunpack.c.l.b16 %v3283
    %v5490 = vunpack.c.h.b16 %v3283
    %v5491 = vunpack.c.l.b16 %v3284
    %v5492 = vunpack.c.h.b16 %v3284
    %v5493 = vunpack.c.l.b16 %v3285
    %v5494 = vunpack.c.h.b16 %v3285
    %v5495 = vunpack.c.l.b16 %v3286
    %v5496 = vunpack.c.h.b16 %v3286
    %v5497 = vunpack.c.l.b16 %v3287
    %v5498 = vunpack.c.h.b16 %v3287
    %v5499 = vunpack.c.l.b16 %v3288
    %v5500 = vunpack.c.h.b16 %v3288
    %v5501 = vunpack.c.l.b16 %v3289
    %v5502 = vunpack.c.h.b16 %v3289
    %v5503 = vunpack.c.l.b16 %v3290
    %v5504 = vunpack.c.h.b16 %v3290
    %v5505 = vunpack.c.l.b16 %v3291
    %v5506 = vunpack.c.h.b16 %v3291
    %v5507 = vunpack.c.l.b16 %v3292
    %v5508 = vunpack.c.h.b16 %v3292
    %v5509 = vunpack.c.l.b16 %v3293
    %v5510 = vunpack.c.h.b16 %v3293
    %v5511 = vunpack.c.l.b16 %v3294
    %v5512 = vunpack.c.h.b16 %v3294
    %v5513 = vunpack.c.l.b16 %v3295
    %v5514 = vunpack.c.h.b16 %v3295
    %v5515 = vunpack.c.l.b16 %v3296
    %v5516 = vunpack.c.h.b16 %v3296
    %v5517 = vunpack.c.l.b16 %v3297
    %v5518 = vunpack.c.h.b16 %v3297
    %v5519 = vunpack.c.l.b16 %v3298
    %v5520 = vunpack.c.h.b16 %v3298
    %v5521 = vunpack.c.l.b16 %v3299
    %v5522 = vunpack.c.h.b16 %v3299
    %v5523 = vunpack.c.l.b16 %v3300
    %v5524 = vunpack.c.h.b16 %v3300
    %v5525 = vunpack.c.l.b16 %v3301
    %v5526 = vunpack.c.h.b16 %v3301
    %v5527 = vunpack.c.l.b16 %v3302
    %v5528 = vunpack.c.h.b16 %v3302
    %v5529 = vunpack.c.l.b16 %v3303
    %v5530 = vunpack.c.h.b16 %v3303
    %v5531 = vunpack.c.l.b16 %v3304
    %v5532 = vunpack.c.h.b16 %v3304
    %v5533 = vunpack.c.l.b16 %v3305
    %v5534 = vunpack.c.h.b16 %v3305
    %v5535 = vunpack.c.l.b16 %v3306
    %v5536 = vunpack.c.h.b16 %v3306
    %v5537 = vunpack.c.l.b16 %v3307
    %v5538 = vunpack.c.h.b16 %v3307
    %v5539 = vunpack.c.l.b16 %v3308
    %v5540 = vunpack.c.h.b16 %v3308
    %v5541 = vunpack.c.l.b16 %v3309
    %v5542 = vunpack.c.h.b16 %v3309
    %v5543 = vunpack.c.l.b16 %v3310
    %v5544 = vunpack.c.h.b16 %v3310
    %v5545 = vunpack.c.l.b16 %v3311
    %v5546 = vunpack.c.h.b16 %v3311
    %v5547 = vunpack.c.l.b16 %v3312
    %v5548 = vunpack.c.h.b16 %v3312
    %v5549 = vunpack.c.l.b16 %v3313
    %v5550 = vunpack.c.h.b16 %v3313
    %v5551 = vunpack.c.l.b16 %v3314
    %v5552 = vunpack.c.h.b16 %v3314
    %v5553 = vunpack.c.l.b16 %v3315
    %v5554 = vunpack.c.h.b16 %v3315
    %v5555 = vunpack.c.l.b16 %v3316
    %v5556 = vunpack.c.h.b16 %v3316
    %v5557 = vunpack.c.l.b16 %v3317
    %v5558 = vunpack.c.h.b16 %v3317
    %v5559 = vunpack.c.l.b16 %v3318
    %v5560 = vunpack.c.h.b16 %v3318
    %v5561 = vunpack.c.l.b16 %v3319
    %v5562 = vunpack.c.h.b16 %v3319
    %v5563 = vunpack.c.l.b16 %v3320
    %v5564 = vunpack.c.h.b16 %v3320
    %v5565 = vunpack.c.l.b16 %v3321
    %v5566 = vunpack.c.h.b16 %v3321
    %v5567 = vunpack.c.l.b16 %v3322
    %v5568 = vunpack.c.h.b16 %v3322
    %v5569 = vunpack.c.l.b16 %v3323
    %v5570 = vunpack.c.h.b16 %v3323
    %v5571 = vunpack.c.l.b16 %v3324
    %v5572 = vunpack.c.h.b16 %v3324
    %v5573 = vunpack.c.l.b16 %v3325
    %v5574 = vunpack.c.h.b16 %v3325
    %v5575 = vunpack.c.l.b16 %v3326
    %v5576 = vunpack.c.h.b16 %v3326
    %v5577 = vunpack.c.l.b16 %v3327
    %v5578 = vunpack.c.h.b16 %v3327
    %v5579 = vunpack.c.l.b16 %v3328
    %v5580 = vunpack.c.h.b16 %v3328
    %v5581 = vunpack.c.l.b16 %v3329
    %v5582 = vunpack.c.h.b16 %v3329
    %v5583 = vunpack.c.l.b16 %v3330
    %v5584 = vunpack.c.h.b16 %v3330
    %v5585 = vunpack.c.l.b16 %v3331
    %v5586 = vunpack.c.h.b16 %v3331
    %v5587 = vunpack.c.l.b16 %v3332
    %v5588 = vunpack.c.h.b16 %v3332
    %v5589 = vunpack.c.l.b16 %v3333
    %v5590 = vunpack.c.h.b16 %v3333
    %v5591 = vunpack.c.l.b16 %v3334
    %v5592 = vunpack.c.h.b16 %v3334
    %v5593 = vunpack.c.l.b16 %v3335
    %v5594 = vunpack.c.h.b16 %v3335
    %v5595 = vunpack.c.l.b16 %v3336
    %v5596 = vunpack.c.h.b16 %v3336
    %v5597 = vunpack.c.l.b16 %v3337
    %v5598 = vunpack.c.h.b16 %v3337
    %v5599 = vunpack.c.l.b16 %v3338
    %v5600 = vunpack.c.h.b16 %v3338
    %v5601 = vunpack.c.l.b16 %v3339
    %v5602 = vunpack.c.h.b16 %v3339
    %v5603 = vunpack.c.l.b16 %v3340
    %v5604 = vunpack.c.h.b16 %v3340
    %v5605 = vunpack.c.l.b16 %v3341
    %v5606 = vunpack.c.h.b16 %v3341
    %v5607 = vunpack.c.l.b16 %v3342
    %v5608 = vunpack.c.h.b16 %v3342
    %v5609 = vunpack.c.l.b16 %v3343
    %v5610 = vunpack.c.h.b16 %v3343
    %v5611 = vunpack.c.l.b16 %v3344
    %v5612 = vunpack.c.h.b16 %v3344
    %v5613 = vunpack.c.l.b16 %v3345
    %v5614 = vunpack.c.h.b16 %v3345
    %v5615 = vunpack.c.l.b16 %v3346
    %v5616 = vunpack.c.h.b16 %v3346
    %v5617 = vunpack.c.l.b16 %v3347
    %v5618 = vunpack.c.h.b16 %v3347
    %v5619 = vunpack.c.l.b16 %v3348
    %v5620 = vunpack.c.h.b16 %v3348
    %v5621 = vunpack.c.l.b16 %v3349
    %v5622 = vunpack.c.h.b16 %v3349
    %v5623 = vunpack.c.l.b16 %v3350
    %v5624 = vunpack.c.h.b16 %v3350
    %v5625 = vunpack.c.l.b16 %v3351
    %v5626 = vunpack.c.h.b16 %v3351
    %v5627 = vunpack.c.l.b16 %v3352
    %v5628 = vunpack.c.h.b16 %v3352
    %v5629 = vunpack.c.l.b16 %v3353
    %v5630 = vunpack.c.h.b16 %v3353
    %v5631 = vunpack.c.l.b16 %v3354
    %v5632 = vunpack.c.h.b16 %v3354
    %v5633 = vunpack.c.l.b16 %v3355
    %v5634 = vunpack.c.h.b16 %v3355
    %v5635 = vunpack.c.l.b16 %v3356
    %v5636 = vunpack.c.h.b16 %v3356
    %v5637 = vunpack.c.l.b16 %v3357
    %v5638 = vunpack.c.h.b16 %v3357
    %v5639 = vunpack.c.l.b16 %v3358
    %v5640 = vunpack.c.h.b16 %v3358
    %v5641 = vunpack.c.l.b16 %v3359
    %v5642 = vunpack.c.h.b16 %v3359
    %v5643 = vunpack.c.l.b16 %v3360
    %v5644 = vunpack.c.h.b16 %v3360
    %v5645 = vunpack.c.l.b16 %v3361
    %v5646 = vunpack.c.h.b16 %v3361
    %v5647 = vunpack.c.l.b16 %v3362
    %v5648 = vunpack.c.h.b16 %v3362
    %v5649 = vunpack.c.l.b16 %v3363
    %v5650 = vunpack.c.h.b16 %v3363
    %v5651 = vunpack.c.l.b16 %v3364
    %v5652 = vunpack.c.h.b16 %v3364
    %v5653 = vunpack.c.l.b16 %v3365
    %v5654 = vunpack.c.h.b16 %v3365
    %v5655 = vunpack.c.l.b16 %v3366
    %v5656 = vunpack.c.h.b16 %v3366
    %v5657 = vunpack.c.l.b16 %v3367
    %v5658 = vunpack.c.h.b16 %v3367
    %v5659 = vunpack.c.l.b16 %v3368
    %v5660 = vunpack.c.h.b16 %v3368
    %v5661 = vunpack.c.l.b16 %v3369
    %v5662 = vunpack.c.h.b16 %v3369
    %v5663 = vunpack.c.l.b16 %v3370
    %v5664 = vunpack.c.h.b16 %v3370
    %v5665 = vunpack.c.l.b16 %v3371
    %v5666 = vunpack.c.h.b16 %v3371
    %v5667 = vunpack.c.l.b16 %v3372
    %v5668 = vunpack.c.h.b16 %v3372
    %v5669 = vunpack.c.l.b16 %v3373
    %v5670 = vunpack.c.h.b16 %v3373
    %v5671 = vunpack.c.l.b16 %v3374
    %v5672 = vunpack.c.h.b16 %v3374
    %v5673 = vunpack.c.l.b16 %v3375
    %v5674 = vunpack.c.h.b16 %v3375
    %v5675 = vunpack.c.l.b16 %v3376
    %v5676 = vunpack.c.h.b16 %v3376
    %v5677 = vunpack.c.l.b16 %v3377
    %v5678 = vunpack.c.h.b16 %v3377
    %v5679 = vunpack.c.l.b16 %v3378
    %v5680 = vunpack.c.h.b16 %v3378
    %v5681 = vunpack.c.l.b16 %v3379
    %v5682 = vunpack.c.h.b16 %v3379
    %v5683 = vunpack.c.l.b16 %v3380
    %v5684 = vunpack.c.h.b16 %v3380
    %v5685 = vunpack.c.l.b16 %v3381
    %v5686 = vunpack.c.h.b16 %v3381
    %v5687 = vunpack.c.l.b16 %v3382
    %v5688 = vunpack.c.h.b16 %v3382
    %v5689 = vunpack.c.l.b16 %v3383
    %v5690 = vunpack.c.h.b16 %v3383
    %v5691 = vunpack.c.l.b16 %v3384
    %v5692 = vunpack.c.h.b16 %v3384
    %v5693 = vunpack.c.l.b16 %v3385
    %v5694 = vunpack.c.h.b16 %v3385
    %v5695 = vunpack.c.l.b16 %v3386
    %v5696 = vunpack.c.h.b16 %v3386
    %v5697 = vunpack.c.l.b16 %v3387
    %v5698 = vunpack.c.h.b16 %v3387
    %v5699 = vunpack.c.l.b16 %v3388
    %v5700 = vunpack.c.h.b16 %v3388
    %v5701 = vunpack.c.l.b16 %v3389
    %v5702 = vunpack.c.h.b16 %v3389
    %v5703 = vunpack.c.l.b16 %v3390
    %v5704 = vunpack.c.h.b16 %v3390
    %v5705 = vunpack.c.l.b16 %v3391
    %v5706 = vunpack.c.h.b16 %v3391
    %v5707 = vunpack.c.l.b16 %v3392
    %v5708 = vunpack.c.h.b16 %v3392
    %v5709 = vunpack.c.l.b16 %v3393
    %v5710 = vunpack.c.h.b16 %v3393
    %v5711 = vunpack.c.l.b16 %v3394
    %v5712 = vunpack.c.h.b16 %v3394
    %v5713 = vunpack.c.l.b16 %v3395
    %v5714 = vunpack.c.h.b16 %v3395
    %v5715 = vunpack.c.l.b16 %v3396
    %v5716 = vunpack.c.h.b16 %v3396
    %v5717 = vunpack.c.l.b16 %v3397
    %v5718 = vunpack.c.h.b16 %v3397
    %v5719 = vunpack.c.l.b16 %v3398
    %v5720 = vunpack.c.h.b16 %v3398
    %v5721 = vunpack.c.l.b16 %v3399
    %v5722 = vunpack.c.h.b16 %v3399
    %v5723 = vunpack.c.l.b16 %v3400
    %v5724 = vunpack.c.h.b16 %v3400
    %v5725 = vunpack.c.l.b16 %v3401
    %v5726 = vunpack.c.h.b16 %v3401
    %v5727 = vunpack.c.l.b16 %v3402
    %v5728 = vunpack.c.h.b16 %v3402
    %v5729 = vunpack.c.l.b16 %v3403
    %v5730 = vunpack.c.h.b16 %v3403
    %v5731 = vunpack.c.l.b16 %v3404
    %v5732 = vunpack.c.h.b16 %v3404
    %v5733 = vunpack.c.l.b16 %v3405
    %v5734 = vunpack.c.h.b16 %v3405
    %v5735 = vunpack.c.l.b16 %v3406
    %v5736 = vunpack.c.h.b16 %v3406
    %v5737 = vunpack.c.l.b16 %v3407
    %v5738 = vunpack.c.h.b16 %v3407
    %v5739 = vunpack.c.l.b16 %v3408
    %v5740 = vunpack.c.h.b16 %v3408
    %v5741 = vunpack.c.l.b16 %v3409
    %v5742 = vunpack.c.h.b16 %v3409
    %v5743 = vunpack.c.l.b16 %v3410
    %v5744 = vunpack.c.h.b16 %v3410
    %v5745 = vunpack.c.l.b16 %v3411
    %v5746 = vunpack.c.h.b16 %v3411
    %v5747 = vunpack.c.l.b16 %v3412
    %v5748 = vunpack.c.h.b16 %v3412
    %v5749 = vunpack.c.l.b16 %v3413
    %v5750 = vunpack.c.h.b16 %v3413
    %v5751 = vunpack.c.l.b16 %v3414
    %v5752 = vunpack.c.h.b16 %v3414
    %v5753 = vunpack.c.l.b16 %v3415
    %v5754 = vunpack.c.h.b16 %v3415
    %v5755 = vunpack.c.l.b16 %v3416
    %v5756 = vunpack.c.h.b16 %v3416
    %v5757 = vunpack.c.l.b16 %v3417
    %v5758 = vunpack.c.h.b16 %v3417
    %v5759 = vunpack.c.l.b16 %v3418
    %v5760 = vunpack.c.h.b16 %v3418
    %v5761 = vunpack.c.l.b16 %v3419
    %v5762 = vunpack.c.h.b16 %v3419
    %v5763 = vunpack.c.l.b16 %v3420
    %v5764 = vunpack.c.h.b16 %v3420
    %v5765 = vunpack.c.l.b16 %v3421
    %v5766 = vunpack.c.h.b16 %v3421
    %v5767 = vunpack.c.l.b16 %v3422
    %v5768 = vunpack.c.h.b16 %v3422
    %v5769 = vunpack.c.l.b16 %v3423
    %v5770 = vunpack.c.h.b16 %v3423
    %v5771 = vunpack.c.l.b16 %v3424
    %v5772 = vunpack.c.h.b16 %v3424
    %v5773 = vunpack.c.l.b16 %v3425
    %v5774 = vunpack.c.h.b16 %v3425
    %v5775 = vunpack.c.l.b16 %v3426
    %v5776 = vunpack.c.h.b16 %v3426
    %v5777 = vunpack.c.l.b16 %v3427
    %v5778 = vunpack.c.h.b16 %v3427
    %v5779 = vunpack.c.l.b16 %v3428
    %v5780 = vunpack.c.h.b16 %v3428
    %v5781 = vunpack.c.l.b16 %v3429
    %v5782 = vunpack.c.h.b16 %v3429
    %v5783 = vunpack.c.l.b16 %v3430
    %v5784 = vunpack.c.h.b16 %v3430
    %v5785 = vunpack.c.l.b16 %v3431
    %v5786 = vunpack.c.h.b16 %v3431
    %v5787 = vunpack.c.l.b16 %v3432
    %v5788 = vunpack.c.h.b16 %v3432
    %v5789 = vunpack.c.l.b16 %v3433
    %v5790 = vunpack.c.h.b16 %v3433
    %v5791 = vunpack.c.l.b16 %v3434
    %v5792 = vunpack.c.h.b16 %v3434
    %v5793 = vunpack.c.l.b16 %v3435
    %v5794 = vunpack.c.h.b16 %v3435
    %v5795 = vunpack.c.l.b16 %v3436
    %v5796 = vunpack.c.h.b16 %v3436
    %v5797 = vunpack.c.l.b16 %v3437
    %v5798 = vunpack.c.h.b16 %v3437
    %v5799 = vunpack.c.l.b16 %v3438
    %v5800 = vunpack.c.h.b16 %v3438
    %v5801 = vunpack.c.l.b16 %v3439
    %v5802 = vunpack.c.h.b16 %v3439
    %v5803 = vunpack.c.l.b16 %v3440
    %v5804 = vunpack.c.h.b16 %v3440
    %v5805 = vunpack.c.l.b16 %v3441
    %v5806 = vunpack.c.h.b16 %v3441
    %v5807 = vunpack.c.l.b16 %v3442
    %v5808 = vunpack.c.h.b16 %v3442
    %v5809 = vunpack.c.l.b16 %v3443
    %v5810 = vunpack.c.h.b16 %v3443
    %v5811 = vunpack.c.l.b16 %v3444
    %v5812 = vunpack.c.h.b16 %v3444
    %v5813 = vunpack.c.l.b16 %v3445
    %v5814 = vunpack.c.h.b16 %v3445
    %v5815 = vunpack.c.l.b16 %v3446
    %v5816 = vunpack.c.h.b16 %v3446
    %v5817 = vunpack.c.l.b16 %v3447
    %v5818 = vunpack.c.h.b16 %v3447
    %v5819 = vunpack.c.l.b16 %v3448
    %v5820 = vunpack.c.h.b16 %v3448
    %v5821 = vunpack.c.l.b16 %v3449
    %v5822 = vunpack.c.h.b16 %v3449
    %v5823 = vunpack.c.l.b16 %v3450
    %v5824 = vunpack.c.h.b16 %v3450
    %v5825 = vunpack.c.l.b16 %v3451
    %v5826 = vunpack.c.h.b16 %v3451
    %v5827 = vunpack.c.l.b16 %v3452
    %v5828 = vunpack.c.h.b16 %v3452
    %v5829 = vunpack.c.l.b16 %v3453
    %v5830 = vunpack.c.h.b16 %v3453
    %v5831 = vunpack.c.l.b16 %v3454
    %v5832 = vunpack.c.h.b16 %v3454
    %v5833 = vunpack.c.l.b16 %v3455
    %v5834 = vunpack.c.h.b16 %v3455
    %v5835 = vunpack.c.l.b16 %v3456
    %v5836 = vunpack.c.h.b16 %v3456
    %v5837 = vunpack.c.l.b16 %v3457
    %v5838 = vunpack.c.h.b16 %v3457
    %v5839 = vunpack.c.l.b16 %v3458
    %v5840 = vunpack.c.h.b16 %v3458
    %v5841 = vunpack.c.l.b16 %v3459
    %v5842 = vunpack.c.h.b16 %v3459
    %v5843 = vunpack.c.l.b16 %v3460
    %v5844 = vunpack.c.h.b16 %v3460
    %v5845 = vunpack.c.l.b16 %v3461
    %v5846 = vunpack.c.h.b16 %v3461
    %v5847 = vunpack.c.l.b16 %v3462
    %v5848 = vunpack.c.h.b16 %v3462
    %v5849 = vunpack.c.l.b16 %v3463
    %v5850 = vunpack.c.h.b16 %v3463
    %v5851 = vunpack.c.l.b16 %v3464
    %v5852 = vunpack.c.h.b16 %v3464
    %v5853 = vunpack.c.l.b16 %v3465
    %v5854 = vunpack.c.h.b16 %v3465
    %v5855 = vunpack.c.l.b16 %v3466
    %v5856 = vunpack.c.h.b16 %v3466
    %v5857 = vunpack.c.l.b16 %v3467
    %v5858 = vunpack.c.h.b16 %v3467
    %v5859 = vunpack.c.l.b16 %v3468
    %v5860 = vunpack.c.h.b16 %v3468
    %v5861 = vunpack.c.l.b16 %v3469
    %v5862 = vunpack.c.h.b16 %v3469
    %v5863 = vunpack.c.l.b16 %v3470
    %v5864 = vunpack.c.h.b16 %v3470
    %v5865 = vunpack.c.l.b16 %v3471
    %v5866 = vunpack.c.h.b16 %v3471
    %v5867 = vunpack.c.l.b16 %v3472
    %v5868 = vunpack.c.h.b16 %v3472
    %v5869 = vunpack.c.l.b16 %v3473
    %v5870 = vunpack.c.h.b16 %v3473
    %v5871 = vunpack.c.l.b16 %v3474
    %v5872 = vunpack.c.h.b16 %v3474
    %v5873 = vunpack.c.l.b16 %v3475
    %v5874 = vunpack.c.h.b16 %v3475
    %v5875 = vunpack.c.l.b16 %v3476
    %v5876 = vunpack.c.h.b16 %v3476
    %v5877 = vunpack.c.l.b16 %v3477
    %v5878 = vunpack.c.h.b16 %v3477
    %v5879 = vunpack.c.l.b16 %v3478
    %v5880 = vunpack.c.h.b16 %v3478
    %v5881 = vunpack.c.l.b16 %v3479
    %v5882 = vunpack.c.h.b16 %v3479
    %v5883 = vunpack.c.l.b16 %v3480
    %v5884 = vunpack.c.h.b16 %v3480
    %v5885 = vunpack.c.l.b16 %v3481
    %v5886 = vunpack.c.h.b16 %v3481
    %v5887 = vunpack.c.l.b16 %v3482
    %v5888 = vunpack.c.h.b16 %v3482
    %v5889 = vunpack.c.l.b16 %v3483
    %v5890 = vunpack.c.h.b16 %v3483
    %v5891 = vunpack.c.l.b16 %v3484
    %v5892 = vunpack.c.h.b16 %v3484
    %v5893 = vunpack.c.l.b16 %v3485
    %v5894 = vunpack.c.h.b16 %v3485
    %v5895 = vunpack.c.l.b16 %v3486
    %v5896 = vunpack.c.h.b16 %v3486
    %v5897 = vunpack.c.l.b16 %v3487
    %v5898 = vunpack.c.h.b16 %v3487
    %v5899 = vunpack.c.l.b16 %v3488
    %v5900 = vunpack.c.h.b16 %v3488
    %v5901 = vunpack.c.l.b16 %v3489
    %v5902 = vunpack.c.h.b16 %v3489
    %v5903 = vunpack.c.l.b16 %v3490
    %v5904 = vunpack.c.h.b16 %v3490
    %v5905 = vunpack.c.l.b16 %v3491
    %v5906 = vunpack.c.h.b16 %v3491
    %v5907 = vunpack.c.l.b16 %v3492
    %v5908 = vunpack.c.h.b16 %v3492
    %v5909 = vunpack.c.l.b16 %v3493
    %v5910 = vunpack.c.h.b16 %v3493
    %v5911 = vunpack.c.l.b16 %v3494
    %v5912 = vunpack.c.h.b16 %v3494
    %v5913 = vunpack.c.l.b16 %v3495
    %v5914 = vunpack.c.h.b16 %v3495
    %v5915 = vunpack.c.l.b16 %v3496
    %v5916 = vunpack.c.h.b16 %v3496
    %v5917 = vunpack.c.l.b16 %v3497
    %v5918 = vunpack.c.h.b16 %v3497
    %v5919 = vunpack.c.l.b16 %v3498
    %v5920 = vunpack.c.h.b16 %v3498
    %v5921 = vunpack.c.l.b16 %v3499
    %v5922 = vunpack.c.h.b16 %v3499
    %v5923 = vunpack.c.l.b16 %v3500
    %v5924 = vunpack.c.h.b16 %v3500
    %v5925 = vunpack.c.l.b16 %v3501
    %v5926 = vunpack.c.h.b16 %v3501
    %v5927 = vunpack.c.l.b16 %v3502
    %v5928 = vunpack.c.h.b16 %v3502
    %v5929 = vunpack.c.l.b16 %v3503
    %v5930 = vunpack.c.h.b16 %v3503
    %v5931 = vunpack.c.l.b16 %v3504
    %v5932 = vunpack.c.h.b16 %v3504
    %v5933 = vunpack.c.l.b16 %v3505
    %v5934 = vunpack.c.h.b16 %v3505
    %v5935 = vunpack.c.l.b16 %v3506
    %v5936 = vunpack.c.h.b16 %v3506
    %v5937 = vunpack.c.l.b16 %v3507
    %v5938 = vunpack.c.h.b16 %v3507
    %v5939 = vunpack.c.l.b16 %v3508
    %v5940 = vunpack.c.h.b16 %v3508
    %v5941 = vunpack.c.l.b16 %v3509
    %v5942 = vunpack.c.h.b16 %v3509
    %v5943 = vunpack.c.l.b16 %v3510
    %v5944 = vunpack.c.h.b16 %v3510
    %v5945 = vunpack.c.l.b16 %v3511
    %v5946 = vunpack.c.h.b16 %v3511
    %v5947 = vunpack.c.l.b16 %v3512
    %v5948 = vunpack.c.h.b16 %v3512
    %v5949 = vunpack.c.l.b16 %v3513
    %v5950 = vunpack.c.h.b16 %v3513
    %v5951 = vunpack.c.l.b16 %v3514
    %v5952 = vunpack.c.h.b16 %v3514
    %v5953 = vunpack.c.l.b16 %v3515
    %v5954 = vunpack.c.h.b16 %v3515
    %v5955 = vunpack.c.l.b16 %v3516
    %v5956 = vunpack.c.h.b16 %v3516
    %v5957 = vunpack.c.l.b16 %v3517
    %v5958 = vunpack.c.h.b16 %v3517
    %v5959 = vunpack.c.l.b16 %v3518
    %v5960 = vunpack.c.h.b16 %v3518
    %v5961 = vunpack.c.l.b16 %v3519
    %v5962 = vunpack.c.h.b16 %v3519
    %v5963 = vunpack.c.l.b16 %v3520
    %v5964 = vunpack.c.h.b16 %v3520
    %v5965 = vunpack.c.l.b16 %v3521
    %v5966 = vunpack.c.h.b16 %v3521
    %v5967 = vunpack.c.l.b16 %v3522
    %v5968 = vunpack.c.h.b16 %v3522
    %v5969 = vunpack.c.l.b16 %v3523
    %v5970 = vunpack.c.h.b16 %v3523
    %v5971 = vunpack.c.l.b16 %v3524
    %v5972 = vunpack.c.h.b16 %v3524
    %v5973 = vunpack.c.l.b16 %v3525
    %v5974 = vunpack.c.h.b16 %v3525
    %v5975 = vunpack.c.l.b16 %v3526
    %v5976 = vunpack.c.h.b16 %v3526
    %v5977 = vunpack.c.l.b16 %v3527
    %v5978 = vunpack.c.h.b16 %v3527
    %v5979 = vunpack.c.l.b16 %v3528
    %v5980 = vunpack.c.h.b16 %v3528
    %v5981 = vunpack.c.l.b16 %v3529
    %v5982 = vunpack.c.h.b16 %v3529
    %v5983 = vunpack.c.l.b16 %v3530
    %v5984 = vunpack.c.h.b16 %v3530
    %v5985 = vunpack.c.l.b16 %v3531
    %v5986 = vunpack.c.h.b16 %v3531
    %v5987 = vunpack.c.l.b16 %v3532
    %v5988 = vunpack.c.h.b16 %v3532
    %v5989 = vunpack.c.l.b16 %v3533
    %v5990 = vunpack.c.h.b16 %v3533
    %v5991 = vunpack.c.l.b16 %v3534
    %v5992 = vunpack.c.h.b16 %v3534
    %v5993 = vunpack.c.l.b16 %v3535
    %v5994 = vunpack.c.h.b16 %v3535
    %v5995 = vunpack.c.l.b16 %v3536
    %v5996 = vunpack.c.h.b16 %v3536
    %v5997 = vunpack.c.l.b16 %v3537
    %v5998 = vunpack.c.h.b16 %v3537
    %v5999 = vunpack.c.l.b16 %v3538
    %v6000 = vunpack.c.h.b16 %v3538
    %v6001 = vunpack.c.l.b16 %v3539
    %v6002 = vunpack.c.h.b16 %v3539
    %v6003 = vunpack.c.l.b16 %v3540
    %v6004 = vunpack.c.h.b16 %v3540
    %v6005 = vunpack.c.l.b16 %v3541
    %v6006 = vunpack.c.h.b16 %v3541
    %v6007 = vunpack.c.l.b16 %v3542
    %v6008 = vunpack.c.h.b16 %v3542
    %v6009 = vunpack.c.l.b16 %v3543
    %v6010 = vunpack.c.h.b16 %v3543
    %v6011 = vunpack.c.l.b16 %v3544
    %v6012 = vunpack.c.h.b16 %v3544
    %v6013 = vunpack.c.l.b16 %v3545
    %v6014 = vunpack.c.h.b16 %v3545
    %v6015 = vunpack.c.l.b16 %v3546
    %v6016 = vunpack.c.h.b16 %v3546
    %v6017 = vunpack.c.l.b16 %v3547
    %v6018 = vunpack.c.h.b16 %v3547
    %v6019 = vunpack.c.l.b16 %v3548
    %v6020 = vunpack.c.h.b16 %v3548
    %v6021 = vunpack.c.l.b16 %v3549
    %v6022 = vunpack.c.h.b16 %v3549
    %v6023 = vunpack.c.l.b16 %v3550
    %v6024 = vunpack.c.h.b16 %v3550
    %v6025 = vunpack.c.l.b16 %v3551
    %v6026 = vunpack.c.h.b16 %v3551
    %v6027 = vunpack.c.l.b16 %v3552
    %v6028 = vunpack.c.h.b16 %v3552
    %v6029 = vunpack.c.l.b16 %v3553
    %v6030 = vunpack.c.h.b16 %v3553
    %v6031 = vunpack.c.l.b16 %v3554
    %v6032 = vunpack.c.h.b16 %v3554
    %v6033 = vunpack.c.l.b16 %v3555
    %v6034 = vunpack.c.h.b16 %v3555
    %v6035 = vunpack.c.l.b16 %v3556
    %v6036 = vunpack.c.h.b16 %v3556
    %v6037 = vunpack.c.l.b16 %v3557
    %v6038 = vunpack.c.h.b16 %v3557
    %v6039 = vunpack.c.l.b16 %v3558
    %v6040 = vunpack.c.h.b16 %v3558
    %v6041 = vunpack.c.l.b16 %v3559
    %v6042 = vunpack.c.h.b16 %v3559
    %v6043 = vunpack.c.l.b16 %v3560
    %v6044 = vunpack.c.h.b16 %v3560
    %v6045 = vunpack.c.l.b16 %v3561
    %v6046 = vunpack.c.h.b16 %v3561
    %v6047 = vunpack.c.l.b16 %v3562
    %v6048 = vunpack.c.h.b16 %v3562
    %v6049 = vunpack.c.l.b16 %v3563
    %v6050 = vunpack.c.h.b16 %v3563
    %v6051 = vunpack.c.l.b16 %v3564
    %v6052 = vunpack.c.h.b16 %v3564
    %v6053 = vunpack.c.l.b16 %v3565
    %v6054 = vunpack.c.h.b16 %v3565
    %v6055 = vunpack.c.l.b16 %v3566
    %v6056 = vunpack.c.h.b16 %v3566
    %v6057 = vunpack.c.l.b16 %v3567
    %v6058 = vunpack.c.h.b16 %v3567
    %v6059 = vunpack.c.l.b16 %v3568
    %v6060 = vunpack.c.h.b16 %v3568
    %v6061 = vunpack.c.l.b16 %v3569
    %v6062 = vunpack.c.h.b16 %v3569
    %v6063 = vunpack.c.l.b16 %v3570
    %v6064 = vunpack.c.h.b16 %v3570
    %v6065 = vunpack.c.l.b16 %v3571
    %v6066 = vunpack.c.h.b16 %v3571
    %v6067 = vunpack.c.l.b16 %v3572
    %v6068 = vunpack.c.h.b16 %v3572
    %v6069 = vunpack.c.l.b16 %v3573
    %v6070 = vunpack.c.h.b16 %v3573
    %v6071 = vunpack.c.l.b16 %v3574
    %v6072 = vunpack.c.h.b16 %v3574
    %v6073 = vunpack.c.l.b16 %v3575
    %v6074 = vunpack.c.h.b16 %v3575
    %v6075 = vunpack.c.l.b16 %v3576
    %v6076 = vunpack.c.h.b16 %v3576
    %v6077 = vunpack.c.l.b16 %v3577
    %v6078 = vunpack.c.h.b16 %v3577
    %v6079 = vunpack.c.l.b16 %v3578
    %v6080 = vunpack.c.h.b16 %v3578
    %v6081 = vunpack.c.l.b16 %v3579
    %v6082 = vunpack.c.h.b16 %v3579
    %v6083 = vunpack.c.l.b16 %v3580
    %v6084 = vunpack.c.h.b16 %v3580
    %v6085 = vunpack.c.l.b16 %v3581
    %v6086 = vunpack.c.h.b16 %v3581
    %v6087 = vunpack.c.l.b16 %v3582
    %v6088 = vunpack.c.h.b16 %v3582
    %v6089 = vunpack.c.l.b16 %v3583
    %v6090 = vunpack.c.h.b16 %v3583
    %v6091 = vunpack.c.l.b16 %v3584
    %v6092 = vunpack.c.h.b16 %v3584
    %v6093 = vunpack.c.l.b16 %v3585
    %v6094 = vunpack.c.h.b16 %v3585
    %v6095 = vunpack.c.l.b16 %v3586
    %v6096 = vunpack.c.h.b16 %v3586
    %v6097 = vunpack.c.l.b16 %v3587
    %v6098 = vunpack.c.h.b16 %v3587
    %v6099 = vunpack.c.l.b16 %v3588
    %v6100 = vunpack.c.h.b16 %v3588
    %v6101 = vunpack.c.l.b16 %v3589
    %v6102 = vunpack.c.h.b16 %v3589
    %v6103 = vunpack.c.l.b16 %v3590
    %v6104 = vunpack.c.h.b16 %v3590
    %v6105 = vunpack.c.l.b16 %v3591
    %v6106 = vunpack.c.h.b16 %v3591
    %v6107 = vunpack.c.l.b16 %v3592
    %v6108 = vunpack.c.h.b16 %v3592
    %v6109 = vunpack.c.l.b16 %v3593
    %v6110 = vunpack.c.h.b16 %v3593
    %v6111 = vunpack.c.l.b16 %v3594
    %v6112 = vunpack.c.h.b16 %v3594
    %v6113 = vunpack.c.l.b16 %v3595
    %v6114 = vunpack.c.h.b16 %v3595
    %v6115 = vunpack.c.l.b16 %v3596
    %v6116 = vunpack.c.h.b16 %v3596
    %v6117 = vunpack.c.l.b16 %v3597
    %v6118 = vunpack.c.h.b16 %v3597
    %v6119 = vunpack.c.l.b16 %v3598
    %v6120 = vunpack.c.h.b16 %v3598
    %v6121 = vunpack.c.l.b16 %v3599
    %v6122 = vunpack.c.h.b16 %v3599
    %v6123 = vunpack.c.l.b16 %v3600
    %v6124 = vunpack.c.h.b16 %v3600
    %v6125 = vunpack.c.l.b16 %v3601
    %v6126 = vunpack.c.h.b16 %v3601
    %v6127 = vunpack.c.l.b16 %v3602
    %v6128 = vunpack.c.h.b16 %v3602
    %v6129 = vunpack.c.l.b16 %v3603
    %v6130 = vunpack.c.h.b16 %v3603
    %v6131 = vunpack.c.l.b16 %v3604
    %v6132 = vunpack.c.h.b16 %v3604
    %v6133 = vunpack.c.l.b16 %v3605
    %v6134 = vunpack.c.h.b16 %v3605
    %v6135 = vunpack.c.l.b16 %v3606
    %v6136 = vunpack.c.h.b16 %v3606
    %v6137 = vunpack.c.l.b16 %v3607
    %v6138 = vunpack.c.h.b16 %v3607
    %v6139 = vunpack.c.l.b16 %v3608
    %v6140 = vunpack.c.h.b16 %v3608
    %v6141 = vunpack.c.l.b16 %v3609
    %v6142 = vunpack.c.h.b16 %v3609
    %v6143 = vunpack.c.l.b16 %v3610
    %v6144 = vunpack.c.h.b16 %v3610
    %v6145 = vunpack.c.l.b16 %v3611
    %v6146 = vunpack.c.h.b16 %v3611
    %v6147 = vunpack.c.l.b16 %v3612
    %v6148 = vunpack.c.h.b16 %v3612
    %v6149 = vunpack.c.l.b16 %v3613
    %v6150 = vunpack.c.h.b16 %v3613
    %v6151 = vunpack.c.l.b16 %v3614
    %v6152 = vunpack.c.h.b16 %v3614
    %v6153 = vunpack.c.l.b16 %v3615
    %v6154 = vunpack.c.h.b16 %v3615
    %v6155 = vunpack.c.l.b16 %v3616
    %v6156 = vunpack.c.h.b16 %v3616
    %v6157 = vunpack.c.l.b16 %v3617
    %v6158 = vunpack.c.h.b16 %v3617
    %v6159 = vunpack.c.l.b16 %v3618
    %v6160 = vunpack.c.h.b16 %v3618
    %v6161 = vunpack.c.l.b16 %v3619
    %v6162 = vunpack.c.h.b16 %v3619
    %v6163 = vunpack.c.l.b16 %v3620
    %v6164 = vunpack.c.h.b16 %v3620
    %v6165 = vunpack.c.l.b16 %v3621
    %v6166 = vunpack.c.h.b16 %v3621
    %v6167 = vunpack.c.l.b16 %v3622
    %v6168 = vunpack.c.h.b16 %v3622
    %v6169 = vunpack.c.l.b16 %v3623
    %v6170 = vunpack.c.h.b16 %v3623
    %v6171 = vunpack.c.l.b16 %v3624
    %v6172 = vunpack.c.h.b16 %v3624
    %v6173 = vunpack.c.l.b16 %v3625
    %v6174 = vunpack.c.h.b16 %v3625
    %v6175 = vunpack.c.l.b16 %v3626
    %v6176 = vunpack.c.h.b16 %v3626
    %v6177 = vunpack.c.l.b16 %v3627
    %v6178 = vunpack.c.h.b16 %v3627
    %v6179 = vunpack.c.l.b16 %v3628
    %v6180 = vunpack.c.h.b16 %v3628
    %v6181 = vunpack.c.l.b16 %v3629
    %v6182 = vunpack.c.h.b16 %v3629
    %v6183 = vunpack.c.l.b16 %v3630
    %v6184 = vunpack.c.h.b16 %v3630
    %v6185 = vunpack.c.l.b16 %v3631
    %v6186 = vunpack.c.h.b16 %v3631
    %v6187 = vunpack.c.l.b16 %v3632
    %v6188 = vunpack.c.h.b16 %v3632
    %v6189 = vunpack.c.l.b16 %v3633
    %v6190 = vunpack.c.h.b16 %v3633
    %v6191 = vunpack.c.l.b16 %v3634
    %v6192 = vunpack.c.h.b16 %v3634
    %v6193 = vunpack.c.l.b16 %v3635
    %v6194 = vunpack.c.h.b16 %v3635
    %v6195 = vunpack.c.l.b16 %v3636
    %v6196 = vunpack.c.h.b16 %v3636
    %v6197 = vunpack.c.l.b16 %v3637
    %v6198 = vunpack.c.h.b16 %v3637
    %v6199 = vunpack.c.l.b16 %v3638
    %v6200 = vunpack.c.h.b16 %v3638
    %v6201 = vunpack.c.l.b16 %v3639
    %v6202 = vunpack.c.h.b16 %v3639
    %v6203 = vunpack.c.l.b16 %v3640
    %v6204 = vunpack.c.h.b16 %v3640
    %v6205 = vunpack.c.l.b16 %v3641
    %v6206 = vunpack.c.h.b16 %v3641
    %v6207 = vunpack.c.l.b16 %v3642
    %v6208 = vunpack.c.h.b16 %v3642
    %v6209 = vunpack.c.l.b16 %v3643
    %v6210 = vunpack.c.h.b16 %v3643
    %v6211 = vunpack.c.l.b16 %v3644
    %v6212 = vunpack.c.h.b16 %v3644
    %v6213 = vunpack.c.l.b16 %v3645
    %v6214 = vunpack.c.h.b16 %v3645
    %v6215 = vunpack.c.l.b16 %v3646
    %v6216 = vunpack.c.h.b16 %v3646
    %v6217 = vunpack.c.l.b16 %v3647
    %v6218 = vunpack.c.h.b16 %v3647
    %v6219 = vunpack.c.l.b16 %v3648
    %v6220 = vunpack.c.h.b16 %v3648
    %v6221 = vunpack.c.l.b16 %v3649
    %v6222 = vunpack.c.h.b16 %v3649
    %v6223 = vunpack.c.l.b16 %v3650
    %v6224 = vunpack.c.h.b16 %v3650
    %v6225 = vunpack.c.l.b16 %v3651
    %v6226 = vunpack.c.h.b16 %v3651
    %v6227 = vunpack.c.l.b16 %v3652
    %v6228 = vunpack.c.h.b16 %v3652
    %v6229 = vunpack.c.l.b16 %v3653
    %v6230 = vunpack.c.h.b16 %v3653
    %v6231 = vunpack.c.l.b16 %v3654
    %v6232 = vunpack.c.h.b16 %v3654
    %v6233 = vunpack.c.l.b16 %v3655
    %v6234 = vunpack.c.h.b16 %v3655
    %v6235 = vunpack.c.l.b16 %v3656
    %v6236 = vunpack.c.h.b16 %v3656
    %v6237 = vunpack.c.l.b16 %v3657
    %v6238 = vunpack.c.h.b16 %v3657
    %v6239 = vunpack.c.l.b16 %v3658
    %v6240 = vunpack.c.h.b16 %v3658
    %v6241 = vunpack.c.l.b16 %v3659
    %v6242 = vunpack.c.h.b16 %v3659
    %v6243 = vunpack.c.l.b16 %v3660
    %v6244 = vunpack.c.h.b16 %v3660
    %v6245 = vunpack.c.l.b16 %v3661
    %v6246 = vunpack.c.h.b16 %v3661
    %v6247 = vunpack.c.l.b16 %v3662
    %v6248 = vunpack.c.h.b16 %v3662
    %v6249 = vunpack.c.l.b16 %v3663
    %v6250 = vunpack.c.h.b16 %v3663
    %v6251 = vunpack.c.l.b16 %v3664
    %v6252 = vunpack.c.h.b16 %v3664
    %v6253 = vunpack.c.l.b16 %v3665
    %v6254 = vunpack.c.h.b16 %v3665
    %v6255 = vunpack.c.l.b16 %v3666
    %v6256 = vunpack.c.h.b16 %v3666
    %v6257 = vunpack.c.l.b16 %v3667
    %v6258 = vunpack.c.h.b16 %v3667
    %v6259 = vunpack.c.l.b16 %v3668
    %v6260 = vunpack.c.h.b16 %v3668
    %v6261 = vunpack.c.l.b16 %v3669
    %v6262 = vunpack.c.h.b16 %v3669
    %v6263 = vunpack.c.l.b16 %v3670
    %v6264 = vunpack.c.h.b16 %v3670
    %v6265 = vunpack.c.l.b16 %v3671
    %v6266 = vunpack.c.h.b16 %v3671
    %v6267 = vunpack.c.l.b16 %v3672
    %v6268 = vunpack.c.h.b16 %v3672
    %v6269 = vunpack.c.l.b16 %v3673
    %v6270 = vunpack.c.h.b16 %v3673
    %v6271 = vunpack.c.l.b16 %v3674
    %v6272 = vunpack.c.h.b16 %v3674
    %v6273 = vunpack.c.l.b16 %v3675
    %v6274 = vunpack.c.h.b16 %v3675
    %v6275 = vunpack.c.l.b16 %v3676
    %v6276 = vunpack.c.h.b16 %v3676
    %v6277 = vunpack.c.l.b16 %v3677
    %v6278 = vunpack.c.h.b16 %v3677
    %v6279 = vunpack.c.l.b16 %v3678
    %v6280 = vunpack.c.h.b16 %v3678
    %v6281 = vunpack.c.l.b16 %v3679
    %v6282 = vunpack.c.h.b16 %v3679
    %v6283 = vunpack.c.l.b16 %v3680
    %v6284 = vunpack.c.h.b16 %v3680
    %v6285 = vunpack.c.l.b16 %v3681
    %v6286 = vunpack.c.h.b16 %v3681
    %v6287 = vunpack.c.l.b16 %v3682
    %v6288 = vunpack.c.h.b16 %v3682
    %v6289 = vunpack.c.l.b16 %v3683
    %v6290 = vunpack.c.h.b16 %v3683
    %v6291 = vunpack.c.l.b16 %v3684
    %v6292 = vunpack.c.h.b16 %v3684
    %v6293 = vunpack.c.l.b16 %v3685
    %v6294 = vunpack.c.h.b16 %v3685
    %v6295 = vunpack.c.l.b16 %v3686
    %v6296 = vunpack.c.h.b16 %v3686
    %v6297 = vunpack.c.l.b16 %v3687
    %v6298 = vunpack.c.h.b16 %v3687
    %v6299 = vunpack.c.l.b16 %v3688
    %v6300 = vunpack.c.h.b16 %v3688
    %v6301 = vunpack.c.l.b16 %v3689
    %v6302 = vunpack.c.h.b16 %v3689
    %v6303 = vunpack.c.l.b16 %v3690
    %v6304 = vunpack.c.h.b16 %v3690
    %v6305 = vunpack.c.l.b16 %v3691
    %v6306 = vunpack.c.h.b16 %v3691
    %v6307 = vunpack.c.l.b16 %v3692
    %v6308 = vunpack.c.h.b16 %v3692
    %v6309 = vunpack.c.l.b16 %v3693
    %v6310 = vunpack.c.h.b16 %v3693
    %v6311 = vunpack.c.l.b16 %v3694
    %v6312 = vunpack.c.h.b16 %v3694
    %v6313 = vunpack.c.l.b16 %v3695
    %v6314 = vunpack.c.h.b16 %v3695
    %v6315 = vunpack.c.l.b16 %v3696
    %v6316 = vunpack.c.h.b16 %v3696
    %v6317 = vunpack.c.l.b16 %v3697
    %v6318 = vunpack.c.h.b16 %v3697
    %v6319 = vunpack.c.l.b16 %v3698
    %v6320 = vunpack.c.h.b16 %v3698
    %v6321 = vunpack.c.l.b16 %v3699
    %v6322 = vunpack.c.h.b16 %v3699
    %v6323 = vunpack.c.l.b16 %v3700
    %v6324 = vunpack.c.h.b16 %v3700
    %v6325 = vunpack.c.l.b16 %v3701
    %v6326 = vunpack.c.h.b16 %v3701
    %v6327 = vunpack.c.l.b16 %v3702
    %v6328 = vunpack.c.h.b16 %v3702
    %v6329 = vunpack.c.l.b16 %v3703
    %v6330 = vunpack.c.h.b16 %v3703
    %v6331 = vunpack.c.l.b16 %v3704
    %v6332 = vunpack.c.h.b16 %v3704
    %v6333 = vunpack.c.l.b16 %v3705
    %v6334 = vunpack.c.h.b16 %v3705
    %v6335 = vunpack.c.l.b16 %v3706
    %v6336 = vunpack.c.h.b16 %v3706
    %v6337 = vunpack.c.l.b16 %v3707
    %v6338 = vunpack.c.h.b16 %v3707
    %v6339 = vunpack.c.l.b16 %v3708
    %v6340 = vunpack.c.h.b16 %v3708
    %v6341 = vunpack.c.l.b16 %v3709
    %v6342 = vunpack.c.h.b16 %v3709
    %v6343 = vunpack.c.l.b16 %v3710
    %v6344 = vunpack.c.h.b16 %v3710
    %v6345 = vunpack.c.l.b16 %v3711
    %v6346 = vunpack.c.h.b16 %v3711
    %v6347 = vunpack.c.l.b16 %v3712
    %v6348 = vunpack.c.h.b16 %v3712
    %v6349 = vunpack.c.l.b16 %v3713
    %v6350 = vunpack.c.h.b16 %v3713
    %v6351 = vunpack.c.l.b16 %v3714
    %v6352 = vunpack.c.h.b16 %v3714
    %v6353 = vunpack.c.l.b16 %v3715
    %v6354 = vunpack.c.h.b16 %v3715
    %v6355 = vunpack.c.l.b16 %v3716
    %v6356 = vunpack.c.h.b16 %v3716
    %v6357 = vunpack.c.l.b16 %v3717
    %v6358 = vunpack.c.h.b16 %v3717
    %v6359 = vunpack.c.l.b16 %v3718
    %v6360 = vunpack.c.h.b16 %v3718
    %v6361 = vunpack.c.l.b16 %v3719
    %v6362 = vunpack.c.h.b16 %v3719
    %v6363 = vunpack.c.l.b16 %v3720
    %v6364 = vunpack.c.h.b16 %v3720
    %v6365 = vunpack.c.l.b16 %v3721
    %v6366 = vunpack.c.h.b16 %v3721
    %v6367 = vunpack.c.l.b16 %v3722
    %v6368 = vunpack.c.h.b16 %v3722
    %v6369 = vunpack.c.l.b16 %v3723
    %v6370 = vunpack.c.h.b16 %v3723
    %v6371 = vunpack.c.l.b16 %v3724
    %v6372 = vunpack.c.h.b16 %v3724
    %v6373 = vunpack.c.l.b16 %v3725
    %v6374 = vunpack.c.h.b16 %v3725
    %v6375 = vunpack.c.l.b16 %v3726
    %v6376 = vunpack.c.h.b16 %v3726
    %v6377 = vunpack.c.l.b16 %v3727
    %v6378 = vunpack.c.h.b16 %v3727
    %v6379 = vunpack.c.l.b16 %v3728
    %v6380 = vunpack.c.h.b16 %v3728
    %v6381 = vunpack.c.l.b16 %v3729
    %v6382 = vunpack.c.h.b16 %v3729
    %v6383 = vunpack.c.l.b16 %v3730
    %v6384 = vunpack.c.h.b16 %v3730
    %v6385 = vunpack.c.l.b16 %v3731
    %v6386 = vunpack.c.h.b16 %v3731
    %v6387 = vunpack.c.l.b16 %v3732
    %v6388 = vunpack.c.h.b16 %v3732
    %v6389 = vunpack.c.l.b16 %v3733
    %v6390 = vunpack.c.h.b16 %v3733
    %v6391 = vunpack.c.l.b16 %v3734
    %v6392 = vunpack.c.h.b16 %v3734
    %v6393 = vunpack.c.l.b16 %v3735
    %v6394 = vunpack.c.h.b16 %v3735
    %v6395 = vunpack.c.l.b16 %v3736
    %v6396 = vunpack.c.h.b16 %v3736
    %v6397 = vunpack.c.l.b16 %v3737
    %v6398 = vunpack.c.h.b16 %v3737
    %v6399 = vunpack.c.l.b16 %v3738
    %v6400 = vunpack.c.h.b16 %v3738
    %v6401 = vunpack.c.l.b16 %v3739
    %v6402 = vunpack.c.h.b16 %v3739
    %v6403 = vunpack.c.l.b16 %v3740
    %v6404 = vunpack.c.h.b16 %v3740
    %v6405 = vunpack.c.l.b16 %v3741
    %v6406 = vunpack.c.h.b16 %v3741
    %v6407 = vunpack.c.l.b16 %v3742
    %v6408 = vunpack.c.h.b16 %v3742
    %v6409 = vunpack.c.l.b16 %v3743
    %v6410 = vunpack.c.h.b16 %v3743
    %v6411 = vunpack.c.l.b16 %v3744
    %v6412 = vunpack.c.h.b16 %v3744
    %v6413 = vunpack.c.l.b16 %v3745
    %v6414 = vunpack.c.h.b16 %v3745
    %v6415 = vunpack.c.l.b16 %v3746
    %v6416 = vunpack.c.h.b16 %v3746
    %v6417 = vunpack.c.l.b16 %v3747
    %v6418 = vunpack.c.h.b16 %v3747
    %v6419 = vunpack.c.l.b16 %v3748
    %v6420 = vunpack.c.h.b16 %v3748
    %v6421 = vunpack.c.l.b16 %v3749
    %v6422 = vunpack.c.h.b16 %v3749
    %v6423 = vunpack.c.l.b16 %v3750
    %v6424 = vunpack.c.h.b16 %v3750
    %v6425 = vunpack.c.l.b16 %v3751
    %v6426 = vunpack.c.h.b16 %v3751
    %v6427 = vunpack.c.l.b16 %v3752
    %v6428 = vunpack.c.h.b16 %v3752
    %v6429 = vunpack.c.l.b16 %v3753
    %v6430 = vunpack.c.h.b16 %v3753
    %v6431 = vunpack.c.l.b16 %v3754
    %v6432 = vunpack.c.h.b16 %v3754
    %v6433 = vunpack.c.l.b16 %v3755
    %v6434 = vunpack.c.h.b16 %v3755
    %v6435 = vunpack.c.l.b16 %v3756
    %v6436 = vunpack.c.h.b16 %v3756
    %v6437 = vunpack.c.l.b16 %v3757
    %v6438 = vunpack.c.h.b16 %v3757
    %v6439 = vunpack.c.l.b16 %v3758
    %v6440 = vunpack.c.h.b16 %v3758
    %v6441 = vunpack.c.l.b16 %v3759
    %v6442 = vunpack.c.h.b16 %v3759
    %v6443 = vunpack.c.l.b16 %v3760
    %v6444 = vunpack.c.h.b16 %v3760
    %v6445 = vunpack.c.l.b16 %v3761
    %v6446 = vunpack.c.h.b16 %v3761
    %v6447 = vunpack.c.l.b16 %v3762
    %v6448 = vunpack.c.h.b16 %v3762
    %v6449 = vunpack.c.l.b16 %v3763
    %v6450 = vunpack.c.h.b16 %v3763
    %v6451 = vunpack.c.l.b16 %v3764
    %v6452 = vunpack.c.h.b16 %v3764
    %v6453 = vunpack.c.l.b16 %v3765
    %v6454 = vunpack.c.h.b16 %v3765
    %v6455 = vunpack.c.l.b16 %v3766
    %v6456 = vunpack.c.h.b16 %v3766
    %v6457 = vunpack.c.l.b16 %v3767
    %v6458 = vunpack.c.h.b16 %v3767
    %v6459 = vunpack.c.l.b16 %v3768
    %v6460 = vunpack.c.h.b16 %v3768
    %v6461 = vunpack.c.l.b16 %v3769
    %v6462 = vunpack.c.h.b16 %v3769
    %v6463 = vunpack.c.l.b16 %v3770
    %v6464 = vunpack.c.h.b16 %v3770
    %v6465 = vunpack.c.l.b16 %v3771
    %v6466 = vunpack.c.h.b16 %v3771
    %v6467 = vunpack.c.l.b16 %v3772
    %v6468 = vunpack.c.h.b16 %v3772
    %v6469 = vunpack.c.l.b16 %v3773
    %v6470 = vunpack.c.h.b16 %v3773
    %v6471 = vunpack.c.l.b16 %v3774
    %v6472 = vunpack.c.h.b16 %v3774
    %v6473 = vunpack.c.l.b16 %v3775
    %v6474 = vunpack.c.h.b16 %v3775
    %v6475 = vunpack.c.l.b16 %v3776
    %v6476 = vunpack.c.h.b16 %v3776
    %v6477 = vunpack.c.l.b16 %v3777
    %v6478 = vunpack.c.h.b16 %v3777
    %v6479 = vunpack.c.l.b16 %v3778
    %v6480 = vunpack.c.h.b16 %v3778
    %v6481 = vunpack.c.l.b16 %v3779
    %v6482 = vunpack.c.h.b16 %v3779
    %v6483 = vunpack.c.l.b16 %v3780
    %v6484 = vunpack.c.h.b16 %v3780
    %v6485 = vunpack.c.l.b16 %v3781
    %v6486 = vunpack.c.h.b16 %v3781
    %v6487 = vunpack.c.l.b16 %v3782
    %v6488 = vunpack.c.h.b16 %v3782
    %v6489 = vunpack.c.l.b16 %v3783
    %v6490 = vunpack.c.h.b16 %v3783
    %v6491 = vunpack.c.l.b16 %v3784
    %v6492 = vunpack.c.h.b16 %v3784
    %v6493 = vunpack.c.l.b16 %v3785
    %v6494 = vunpack.c.h.b16 %v3785
    %v6495 = vunpack.c.l.b16 %v3786
    %v6496 = vunpack.c.h.b16 %v3786
    %v6497 = vunpack.c.l.b16 %v3787
    %v6498 = vunpack.c.h.b16 %v3787
    %v6499 = vunpack.c.l.b16 %v3788
    %v6500 = vunpack.c.h.b16 %v3788
    %v6501 = vunpack.c.l.b16 %v3789
    %v6502 = vunpack.c.h.b16 %v3789
    %v6503 = vunpack.c.l.b16 %v3790
    %v6504 = vunpack.c.h.b16 %v3790
    %v6505 = vunpack.c.l.b16 %v3791
    %v6506 = vunpack.c.h.b16 %v3791
    %v6507 = vunpack.c.l.b16 %v3792
    %v6508 = vunpack.c.h.b16 %v3792
    %v6509 = vunpack.c.l.b16 %v3793
    %v6510 = vunpack.c.h.b16 %v3793
    %v6511 = vunpack.c.l.b16 %v3794
    %v6512 = vunpack.c.h.b16 %v3794
    %v6513 = vunpack.c.l.b16 %v3795
    %v6514 = vunpack.c.h.b16 %v3795
    %v6515 = vunpack.c.l.b16 %v3796
    %v6516 = vunpack.c.h.b16 %v3796
    %v6517 = vunpack.c.l.b16 %v3797
    %v6518 = vunpack.c.h.b16 %v3797
    %v6519 = vunpack.c.l.b16 %v3798
    %v6520 = vunpack.c.h.b16 %v3798
    %v6521 = vunpack.c.l.b16 %v3799
    %v6522 = vunpack.c.h.b16 %v3799
    %v6523 = vunpack.c.l.b16 %v3800
    %v6524 = vunpack.c.h.b16 %v3800
    %v6525 = vunpack.c.l.b16 %v3801
    %v6526 = vunpack.c.h.b16 %v3801
    %v6527 = vunpack.c.l.b16 %v3802
    %v6528 = vunpack.c.h.b16 %v3802
    %v6529 = vunpack.c.l.b16 %v3803
    %v6530 = vunpack.c.h.b16 %v3803
    %v6531 = vunpack.c.l.b16 %v3804
    %v6532 = vunpack.c.h.b16 %v3804
    %v6533 = vunpack.c.l.b16 %v3805
    %v6534 = vunpack.c.h.b16 %v3805
    %v6535 = vunpack.c.l.b16 %v3806
    %v6536 = vunpack.c.h.b16 %v3806
    %v6537 = vunpack.c.l.b16 %v3807
    %v6538 = vunpack.c.h.b16 %v3807
    %v6539 = vunpack.c.l.b16 %v3808
    %v6540 = vunpack.c.h.b16 %v3808
    %v6541 = vunpack.c.l.b16 %v3809
    %v6542 = vunpack.c.h.b16 %v3809
    %v6543 = vunpack.c.l.b16 %v3810
    %v6544 = vunpack.c.h.b16 %v3810
    %v6545 = vunpack.c.l.b16 %v3811
    %v6546 = vunpack.c.h.b16 %v3811
    %v6547 = vunpack.c.l.b16 %v3812
    %v6548 = vunpack.c.h.b16 %v3812
    %v6549 = vunpack.c.l.b16 %v3813
    %v6550 = vunpack.c.h.b16 %v3813
    %v6551 = vunpack.c.l.b16 %v3814
    %v6552 = vunpack.c.h.b16 %v3814
    %v6553 = vunpack.c.l.b16 %v3815
    %v6554 = vunpack.c.h.b16 %v3815
    %v6555 = vunpack.c.l.b16 %v3816
    %v6556 = vunpack.c.h.b16 %v3816
    %v6557 = vunpack.c.l.b16 %v3817
    %v6558 = vunpack.c.h.b16 %v3817
    %v6559 = vunpack.c.l.b16 %v3818
    %v6560 = vunpack.c.h.b16 %v3818
    %v6561 = vunpack.c.l.b16 %v3819
    %v6562 = vunpack.c.h.b16 %v3819
    %v6563 = vunpack.c.l.b16 %v3820
    %v6564 = vunpack.c.h.b16 %v3820
    %v6565 = vunpack.c.l.b16 %v3821
    %v6566 = vunpack.c.h.b16 %v3821
    %v6567 = vunpack.c.l.b16 %v3822
    %v6568 = vunpack.c.h.b16 %v3822
    %v6569 = vunpack.c.l.b16 %v3823
    %v6570 = vunpack.c.h.b16 %v3823
    %v6571 = vunpack.c.l.b16 %v3824
    %v6572 = vunpack.c.h.b16 %v3824
    %v6573 = vunpack.c.l.b16 %v3825
    %v6574 = vunpack.c.h.b16 %v3825
    %v6575 = vunpack.c.l.b16 %v3826
    %v6576 = vunpack.c.h.b16 %v3826
    %v6577 = vunpack.c.l.b16 %v3827
    %v6578 = vunpack.c.h.b16 %v3827
    %v6579 = vunpack.c.l.b16 %v3828
    %v6580 = vunpack.c.h.b16 %v3828
    %v6581 = vunpack.c.l.b16 %v3829
    %v6582 = vunpack.c.h.b16 %v3829
    %v6583 = vunpack.c.l.b16 %v3830
    %v6584 = vunpack.c.h.b16 %v3830
    %v6585 = vunpack.c.l.b16 %v3831
    %v6586 = vunpack.c.h.b16 %v3831
    %v6587 = vunpack.c.l.b16 %v3832
    %v6588 = vunpack.c.h.b16 %v3832
    %v6589 = vunpack.c.l.b16 %v3833
    %v6590 = vunpack.c.h.b16 %v3833
    %v6591 = vunpack.c.l.b16 %v3834
    %v6592 = vunpack.c.h.b16 %v3834
    %v6593 = vunpack.c.l.b16 %v3835
    %v6594 = vunpack.c.h.b16 %v3835
    %v6595 = vunpack.c.l.b16 %v3836
    %v6596 = vunpack.c.h.b16 %v3836
    %v6597 = vunpack.c.l.b16 %v3837
    %v6598 = vunpack.c.h.b16 %v3837
    %v6599 = vunpack.c.l.b16 %v3838
    %v6600 = vunpack.c.h.b16 %v3838
    %v6601 = vunpack.c.l.b16 %v3839
    %v6602 = vunpack.c.h.b16 %v3839
    %v6603 = vunpack.c.l.b16 %v3840
    %v6604 = vunpack.c.h.b16 %v3840
    %v6605 = vunpack.c.l.b16 %v3841
    %v6606 = vunpack.c.h.b16 %v3841
    %v6607 = vunpack.c.l.b16 %v3842
    %v6608 = vunpack.c.h.b16 %v3842
    %v6609 = vunpack.c.l.b16 %v3843
    %v6610 = vunpack.c.h.b16 %v3843
    %v6611 = vunpack.c.l.b16 %v3844
    %v6612 = vunpack.c.h.b16 %v3844
    %v6613 = vunpack.c.l.b16 %v3845
    %v6614 = vunpack.c.h.b16 %v3845
    %v6615 = vunpack.c.l.b16 %v3846
    %v6616 = vunpack.c.h.b16 %v3846
    %v6617 = vunpack.c.l.b16 %v3847
    %v6618 = vunpack.c.h.b16 %v3847
    %v6619 = vunpack.c.l.b16 %v3848
    %v6620 = vunpack.c.h.b16 %v3848
    %v6621 = vunpack.c.l.b16 %v3849
    %v6622 = vunpack.c.h.b16 %v3849
    %v6623 = vunpack.c.l.b16 %v3850
    %v6624 = vunpack.c.h.b16 %v3850
    %v6625 = vunpack.c.l.b16 %v3851
    %v6626 = vunpack.c.h.b16 %v3851
    %v6627 = vunpack.c.l.b16 %v3852
    %v6628 = vunpack.c.h.b16 %v3852
    %v6629 = vunpack.c.l.b16 %v3853
    %v6630 = vunpack.c.h.b16 %v3853
    %v6631 = vunpack.c.l.b16 %v3854
    %v6632 = vunpack.c.h.b16 %v3854
    %v6633 = vunpack.c.l.b16 %v3855
    %v6634 = vunpack.c.h.b16 %v3855
    %v6635 = vunpack.c.l.b16 %v3856
    %v6636 = vunpack.c.h.b16 %v3856
    %v6637 = vunpack.c.l.b16 %v3857
    %v6638 = vunpack.c.h.b16 %v3857
    %v6639 = vunpack.c.l.b16 %v3858
    %v6640 = vunpack.c.h.b16 %v3858
    %v6641 = vunpack.c.l.b16 %v3859
    %v6642 = vunpack.c.h.b16 %v3859
    %v6643 = vunpack.c.l.b16 %v3860
    %v6644 = vunpack.c.h.b16 %v3860
    %v6645 = vunpack.c.l.b16 %v3861
    %v6646 = vunpack.c.h.b16 %v3861
    %v6647 = vunpack.c.l.b16 %v3862
    %v6648 = vunpack.c.h.b16 %v3862
    %v6649 = vunpack.c.l.b16 %v3863
    %v6650 = vunpack.c.h.b16 %v3863
    %v6651 = vunpack.c.l.b16 %v3864
    %v6652 = vunpack.c.h.b16 %v3864
    %v6653 = vunpack.c.l.b16 %v3865
    %v6654 = vunpack.c.h.b16 %v3865
    %v6655 = vunpack.c.l.b16 %v3866
    %v6656 = vunpack.c.h.b16 %v3866
    %v6657 = vunpack.c.l.b16 %v3867
    %v6658 = vunpack.c.h.b16 %v3867
    %v6659 = vunpack.c.l.b16 %v3868
    %v6660 = vunpack.c.h.b16 %v3868
    %v6661 = vunpack.c.l.b16 %v3869
    %v6662 = vunpack.c.h.b16 %v3869
    %v6663 = vunpack.c.l.b16 %v3870
    %v6664 = vunpack.c.h.b16 %v3870
    %v6665 = vunpack.c.l.b16 %v3871
    %v6666 = vunpack.c.h.b16 %v3871
    %v6667 = vunpack.c.l.b16 %v3872
    %v6668 = vunpack.c.h.b16 %v3872
    %v6669 = vunpack.c.l.b16 %v3873
    %v6670 = vunpack.c.h.b16 %v3873
    %v6671 = vunpack.c.l.b16 %v3874
    %v6672 = vunpack.c.h.b16 %v3874
    %v6673 = vunpack.c.l.b16 %v3875
    %v6674 = vunpack.c.h.b16 %v3875
    %v6675 = vunpack.c.l.b16 %v3876
    %v6676 = vunpack.c.h.b16 %v3876
    %v6677 = vunpack.c.l.b16 %v3877
    %v6678 = vunpack.c.h.b16 %v3877
    %v6679 = vunpack.c.l.b16 %v3878
    %v6680 = vunpack.c.h.b16 %v3878
    %v6681 = vunpack.c.l.b16 %v3879
    %v6682 = vunpack.c.h.b16 %v3879
    %v6683 = vunpack.c.l.b16 %v3880
    %v6684 = vunpack.c.h.b16 %v3880
    %v6685 = vunpack.c.l.b16 %v3881
    %v6686 = vunpack.c.h.b16 %v3881
    %v6687 = vunpack.c.l.b16 %v3882
    %v6688 = vunpack.c.h.b16 %v3882
    %v6689 = vunpack.c.l.b16 %v3883
    %v6690 = vunpack.c.h.b16 %v3883
    %v6691 = vunpack.c.l.b16 %v3884
    %v6692 = vunpack.c.h.b16 %v3884
    %v6693 = vunpack.c.l.b16 %v3885
    %v6694 = vunpack.c.h.b16 %v3885
    %v6695 = vunpack.c.l.b16 %v3886
    %v6696 = vunpack.c.h.b16 %v3886
    %v6697 = vunpack.c.l.b16 %v3887
    %v6698 = vunpack.c.h.b16 %v3887
    %v6699 = vunpack.c.l.b16 %v3888
    %v6700 = vunpack.c.h.b16 %v3888
    %v6701 = vunpack.c.l.b16 %v3889
    %v6702 = vunpack.c.h.b16 %v3889
    %v6703 = vunpack.c.l.b16 %v3890
    %v6704 = vunpack.c.h.b16 %v3890
    %v6705 = vunpack.c.l.b16 %v3891
    %v6706 = vunpack.c.h.b16 %v3891
    %v6707 = vunpack.c.l.b16 %v3892
    %v6708 = vunpack.c.h.b16 %v3892
    %v6709 = vunpack.c.l.b16 %v3893
    %v6710 = vunpack.c.h.b16 %v3893
    %v6711 = vunpack.c.l.b16 %v3894
    %v6712 = vunpack.c.h.b16 %v3894
    %v6713 = vunpack.c.l.b16 %v3895
    %v6714 = vunpack.c.h.b16 %v3895
    %v6715 = vunpack.c.l.b16 %v3896
    %v6716 = vunpack.c.h.b16 %v3896
    %v6717 = vunpack.c.l.b16 %v3897
    %v6718 = vunpack.c.h.b16 %v3897
    %v6719 = vunpack.c.l.b16 %v3898
    %v6720 = vunpack.c.h.b16 %v3898
    %v6721 = vunpack.c.l.b16 %v3899
    %v6722 = vunpack.c.h.b16 %v3899
    %v6723 = vunpack.c.l.b16 %v3900
    %v6724 = vunpack.c.h.b16 %v3900
    %v6725 = vunpack.c.l.b16 %v3901
    %v6726 = vunpack.c.h.b16 %v3901
    %v6727 = vunpack.c.l.b16 %v3902
    %v6728 = vunpack.c.h.b16 %v3902
    %v6729 = vunpack.c.l.b16 %v3903
    %v6730 = vunpack.c.h.b16 %v3903
    %v6731 = vunpack.c.l.b16 %v3904
    %v6732 = vunpack.c.h.b16 %v3904
    %v6733 = vunpack.c.l.b16 %v3905
    %v6734 = vunpack.c.h.b16 %v3905
    %v6735 = vunpack.c.l.b16 %v3906
    %v6736 = vunpack.c.h.b16 %v3906
    %v6737 = vunpack.c.l.b16 %v3907
    %v6738 = vunpack.c.h.b16 %v3907
    %v6739 = vunpack.c.l.b16 %v3908
    %v6740 = vunpack.c.h.b16 %v3908
    %v6741 = vunpack.c.l.b16 %v3909
    %v6742 = vunpack.c.h.b16 %v3909
    %v6743 = vunpack.c.l.b16 %v3910
    %v6744 = vunpack.c.h.b16 %v3910
    %v6745 = vunpack.c.l.b16 %v3911
    %v6746 = vunpack.c.h.b16 %v3911
    %v6747 = vunpack.c.l.b16 %v3912
    %v6748 = vunpack.c.h.b16 %v3912
    %v6749 = vunpack.c.l.b16 %v3913
    %v6750 = vunpack.c.h.b16 %v3913
    %v6751 = vunpack.c.l.b16 %v3914
    %v6752 = vunpack.c.h.b16 %v3914
    %v6753 = vunpack.c.l.b16 %v3915
    %v6754 = vunpack.c.h.b16 %v3915
    %v6755 = vunpack.c.l.b16 %v3916
    %v6756 = vunpack.c.h.b16 %v3916
    %v6757 = vunpack.c.l.b16 %v3917
    %v6758 = vunpack.c.h.b16 %v3917
    %v6759 = vunpack.c.l.b16 %v3918
    %v6760 = vunpack.c.h.b16 %v3918
    %v6761 = vunpack.c.l.b16 %v3919
    %v6762 = vunpack.c.h.b16 %v3919
    %v6763 = vunpack.c.l.b16 %v3920
    %v6764 = vunpack.c.h.b16 %v3920
    %v6765 = vunpack.c.l.b16 %v3921
    %v6766 = vunpack.c.h.b16 %v3921
    %v6767 = vunpack.c.l.b16 %v3922
    %v6768 = vunpack.c.h.b16 %v3922
    %v6769 = vunpack.c.l.b16 %v3923
    %v6770 = vunpack.c.h.b16 %v3923
    %v6771 = vunpack.c.l.b16 %v3924
    %v6772 = vunpack.c.h.b16 %v3924
    %v6773 = vunpack.c.l.b16 %v3925
    %v6774 = vunpack.c.h.b16 %v3925
    %v6775 = vunpack.c.l.b16 %v3926
    %v6776 = vunpack.c.h.b16 %v3926
    %v6777 = vunpack.c.l.b16 %v3927
    %v6778 = vunpack.c.h.b16 %v3927
    %v6779 = vunpack.c.l.b16 %v3928
    %v6780 = vunpack.c.h.b16 %v3928
    %v6781 = vunpack.c.l.b16 %v3929
    %v6782 = vunpack.c.h.b16 %v3929
    %v6783 = vunpack.c.l.b16 %v3930
    %v6784 = vunpack.c.h.b16 %v3930
    %v6785 = vunpack.c.l.b16 %v3931
    %v6786 = vunpack.c.h.b16 %v3931
    %v6787 = vunpack.c.l.b16 %v3932
    %v6788 = vunpack.c.h.b16 %v3932
    %v6789 = vunpack.c.l.b16 %v3933
    %v6790 = vunpack.c.h.b16 %v3933
    %v6791 = vunpack.c.l.b16 %v3934
    %v6792 = vunpack.c.h.b16 %v3934
    %v6793 = vunpack.c.l.b16 %v3935
    %v6794 = vunpack.c.h.b16 %v3935
    %v6795 = vunpack.c.l.b16 %v3936
    %v6796 = vunpack.c.h.b16 %v3936
    %v6797 = vunpack.c.l.b16 %v3937
    %v6798 = vunpack.c.h.b16 %v3937
    %v6799 = vunpack.c.l.b16 %v3938
    %v6800 = vunpack.c.h.b16 %v3938
    %v6801 = vunpack.c.l.b16 %v3939
    %v6802 = vunpack.c.h.b16 %v3939
    %v6803 = vunpack.c.l.b16 %v3940
    %v6804 = vunpack.c.h.b16 %v3940
    %v6805 = vunpack.c.l.b16 %v3941
    %v6806 = vunpack.c.h.b16 %v3941
    %v6807 = vunpack.c.l.b16 %v3942
    %v6808 = vunpack.c.h.b16 %v3942
    %v6809 = vunpack.c.l.b16 %v3943
    %v6810 = vunpack.c.h.b16 %v3943
    %v6811 = vunpack.c.l.b16 %v3944
    %v6812 = vunpack.c.h.b16 %v3944
    %v6813 = vunpack.c.l.b16 %v3945
    %v6814 = vunpack.c.h.b16 %v3945
    %v6815 = vunpack.c.l.b16 %v3946
    %v6816 = vunpack.c.h.b16 %v3946
    %v6817 = vunpack.c.l.b16 %v3947
    %v6818 = vunpack.c.h.b16 %v3947
    %v6819 = vunpack.c.l.b16 %v3948
    %v6820 = vunpack.c.h.b16 %v3948
    %v6821 = vunpack.c.l.b16 %v3949
    %v6822 = vunpack.c.h.b16 %v3949
    %v6823 = vunpack.c.l.b16 %v3950
    %v6824 = vunpack.c.h.b16 %v3950
    %v6825 = vunpack.c.l.b16 %v3951
    %v6826 = vunpack.c.h.b16 %v3951
    %v6827 = vunpack.c.l.b16 %v3952
    %v6828 = vunpack.c.h.b16 %v3952
    %v6829 = vunpack.c.l.b16 %v3953
    %v6830 = vunpack.c.h.b16 %v3953
    %v6831 = vunpack.c.l.b16 %v3954
    %v6832 = vunpack.c.h.b16 %v3954
    %v6833 = vunpack.c.l.b16 %v3955
    %v6834 = vunpack.c.h.b16 %v3955
    %v6835 = vunpack.c.l.b16 %v3956
    %v6836 = vunpack.c.h.b16 %v3956
    %v6837 = vunpack.c.l.b16 %v3957
    %v6838 = vunpack.c.h.b16 %v3957
    %v6839 = vunpack.c.l.b16 %v3958
    %v6840 = vunpack.c.h.b16 %v3958
    %v6841 = vunpack.c.l.b16 %v3959
    %v6842 = vunpack.c.h.b16 %v3959
    %v6843 = vunpack.c.l.b16 %v3960
    %v6844 = vunpack.c.h.b16 %v3960
    %v6845 = vunpack.c.l.b16 %v3961
    %v6846 = vunpack.c.h.b16 %v3961
    %v6847 = vunpack.c.l.b16 %v3962
    %v6848 = vunpack.c.h.b16 %v3962
    %v6849 = vunpack.c.l.b16 %v3963
    %v6850 = vunpack.c.h.b16 %v3963
    %v6851 = vunpack.c.l.b16 %v3964
    %v6852 = vunpack.c.h.b16 %v3964
    %v6853 = vunpack.c.l.b16 %v3965
    %v6854 = vunpack.c.h.b16 %v3965
    %v6855 = vunpack.c.l.b16 %v3966
    %v6856 = vunpack.c.h.b16 %v3966
    %v6857 = vunpack.c.l.b16 %v3967
    %v6858 = vunpack.c.h.b16 %v3967
    %v6859 = vunpack.c.l.b16 %v3968
    %v6860 = vunpack.c.h.b16 %v3968
    %v6861 = vunpack.c.l.b16 %v3969
    %v6862 = vunpack.c.h.b16 %v3969
    %v6863 = vunpack.c.l.b16 %v3970
    %v6864 = vunpack.c.h.b16 %v3970
    %v6865 = vunpack.c.l.b16 %v3971
    %v6866 = vunpack.c.h.b16 %v3971
    %v6867 = vunpack.c.l.b16 %v3972
    %v6868 = vunpack.c.h.b16 %v3972
    %v6869 = vunpack.c.l.b16 %v3973
    %v6870 = vunpack.c.h.b16 %v3973
    %v6871 = vunpack.c.l.b16 %v3974
    %v6872 = vunpack.c.h.b16 %v3974
    %v6873 = vunpack.c.l.b16 %v3975
    %v6874 = vunpack.c.h.b16 %v3975
    %v6875 = vunpack.c.l.b16 %v3976
    %v6876 = vunpack.c.h.b16 %v3976
    %v6877 = vunpack.c.l.b16 %v3977
    %v6878 = vunpack.c.h.b16 %v3977
    %v6879 = vunpack.c.l.b16 %v3978
    %v6880 = vunpack.c.h.b16 %v3978
    %v6881 = vunpack.c.l.b16 %v3979
    %v6882 = vunpack.c.h.b16 %v3979
    %v6883 = vunpack.c.l.b16 %v3980
    %v6884 = vunpack.c.h.b16 %v3980
    %v6885 = vunpack.c.l.b16 %v3981
    %v6886 = vunpack.c.h.b16 %v3981
    %v6887 = vunpack.c.l.b16 %v3982
    %v6888 = vunpack.c.h.b16 %v3982
    %v6889 = vunpack.c.l.b16 %v3983
    %v6890 = vunpack.c.h.b16 %v3983
    %v6891 = vunpack.c.l.b16 %v3984
    %v6892 = vunpack.c.h.b16 %v3984
    %v6893 = vunpack.c.l.b16 %v3985
    %v6894 = vunpack.c.h.b16 %v3985
    %v6895 = vunpack.c.l.b16 %v3986
    %v6896 = vunpack.c.h.b16 %v3986
    %v6897 = vunpack.c.l.b16 %v3987
    %v6898 = vunpack.c.h.b16 %v3987
    %v6899 = vunpack.c.l.b16 %v3988
    %v6900 = vunpack.c.h.b16 %v3988
    %v6901 = vunpack.c.l.b16 %v3989
    %v6902 = vunpack.c.h.b16 %v3989
    %v6903 = vunpack.c.l.b16 %v3990
    %v6904 = vunpack.c.h.b16 %v3990
    %v6905 = vunpack.c.l.b16 %v3991
    %v6906 = vunpack.c.h.b16 %v3991
    %v6907 = vunpack.c.l.b16 %v3992
    %v6908 = vunpack.c.h.b16 %v3992
    %v6909 = vunpack.c.l.b16 %v3993
    %v6910 = vunpack.c.h.b16 %v3993
    %v6911 = vunpack.c.l.b16 %v3994
    %v6912 = vunpack.c.h.b16 %v3994
    %v6913 = vunpack.c.l.b16 %v3995
    %v6914 = vunpack.c.h.b16 %v3995
    %v6915 = vunpack.c.l.b16 %v3996
    %v6916 = vunpack.c.h.b16 %v3996
    %v6917 = vunpack.c.l.b16 %v3997
    %v6918 = vunpack.c.h.b16 %v3997
    %v6919 = vunpack.c.l.b16 %v3998
    %v6920 = vunpack.c.h.b16 %v3998
    %v6921 = vunpack.c.l.b16 %v3999
    %v6922 = vunpack.c.h.b16 %v3999
    %v6923 = vunpack.c.l.b16 %v4000
    %v6924 = vunpack.c.h.b16 %v4000
    %v6925 = vunpack.c.l.b16 %v4001
    %v6926 = vunpack.c.h.b16 %v4001
    %v6927 = vunpack.c.l.b16 %v4002
    %v6928 = vunpack.c.h.b16 %v4002
    %v6929 = vunpack.c.l.b16 %v4003
    %v6930 = vunpack.c.h.b16 %v4003
    %v6931 = vunpack.c.l.b16 %v4004
    %v6932 = vunpack.c.h.b16 %v4004
    %v6933 = vunpack.c.l.b16 %v4005
    %v6934 = vunpack.c.h.b16 %v4005
    %v6935 = vunpack.c.l.b16 %v4006
    %v6936 = vunpack.c.h.b16 %v4006
    %v6937 = vunpack.c.l.b16 %v4007
    %v6938 = vunpack.c.h.b16 %v4007
    %v6939 = vunpack.c.l.b16 %v4008
    %v6940 = vunpack.c.h.b16 %v4008
    %v6941 = vunpack.c.l.b16 %v4009
    %v6942 = vunpack.c.h.b16 %v4009
    %v6943 = vunpack.c.l.b16 %v4010
    %v6944 = vunpack.c.h.b16 %v4010
    %v6945 = vunpack.c.l.b16 %v4011
    %v6946 = vunpack.c.h.b16 %v4011
    %v6947 = vunpack.c.l.b16 %v4012
    %v6948 = vunpack.c.h.b16 %v4012
    %v6949 = vunpack.c.l.b16 %v4013
    %v6950 = vunpack.c.h.b16 %v4013
    %v6951 = vunpack.c.l.b16 %v4014
    %v6952 = vunpack.c.h.b16 %v4014
    %v6953 = vunpack.c.l.b16 %v4015
    %v6954 = vunpack.c.h.b16 %v4015
    %v6955 = vunpack.c.l.b16 %v4016
    %v6956 = vunpack.c.h.b16 %v4016
    %v6957 = vunpack.c.l.b16 %v4017
    %v6958 = vunpack.c.h.b16 %v4017
    %v6959 = vunpack.c.l.b16 %v4018
    %v6960 = vunpack.c.h.b16 %v4018
    %v6961 = vunpack.c.l.b16 %v4019
    %v6962 = vunpack.c.h.b16 %v4019
    %v6963 = vunpack.c.l.b16 %v4020
    %v6964 = vunpack.c.h.b16 %v4020
    %v6965 = vunpack.c.l.b16 %v4021
    %v6966 = vunpack.c.h.b16 %v4021
    %v6967 = vunpack.c.l.b16 %v4022
    %v6968 = vunpack.c.h.b16 %v4022
    %v6969 = vunpack.c.l.b16 %v4023
    %v6970 = vunpack.c.h.b16 %v4023
    %v6971 = vunpack.c.l.b16 %v4024
    %v6972 = vunpack.c.h.b16 %v4024
    %v6973 = vunpack.c.l.b16 %v4025
    %v6974 = vunpack.c.h.b16 %v4025
    %v6975 = vunpack.c.l.b16 %v4026
    %v6976 = vunpack.c.h.b16 %v4026
    %v6977 = vunpack.c.l.b16 %v4027
    %v6978 = vunpack.c.h.b16 %v4027
    %v6979 = vunpack.c.l.b16 %v4028
    %v6980 = vunpack.c.h.b16 %v4028
    %v6981 = vunpack.c.l.b16 %v4029
    %v6982 = vunpack.c.h.b16 %v4029
    %v6983 = vunpack.c.l.b16 %v4030
    %v6984 = vunpack.c.h.b16 %v4030
    %v6985 = vunpack.c.l.b16 %v4031
    %v6986 = vunpack.c.h.b16 %v4031
    %v6987 = vunpack.c.l.b16 %v4032
    %v6988 = vunpack.c.h.b16 %v4032
    %v6989 = vunpack.c.l.b16 %v4033
    %v6990 = vunpack.c.h.b16 %v4033
    %v6991 = vunpack.c.l.b16 %v4034
    %v6992 = vunpack.c.h.b16 %v4034
    %v6993 = vunpack.c.l.b16 %v4035
    %v6994 = vunpack.c.h.b16 %v4035
    %v6995 = vunpack.c.l.b16 %v4036
    %v6996 = vunpack.c.h.b16 %v4036
    %v6997 = vunpack.c.l.b16 %v4037
    %v6998 = vunpack.c.h.b16 %v4037
    %v6999 = vunpack.c.l.b16 %v4038
    %v7000 = vunpack.c.h.b16 %v4038
    %v7001 = vunpack.c.l.b16 %v4039
    %v7002 = vunpack.c.h.b16 %v4039
    %v7003 = vunpack.c.l.b16 %v4040
    %v7004 = vunpack.c.h.b16 %v4040
    %v7005 = vunpack.c.l.b16 %v4041
    %v7006 = vunpack.c.h.b16 %v4041
    %v7007 = vunpack.c.l.b16 %v4042
    %v7008 = vunpack.c.h.b16 %v4042
    %v7009 = vunpack.c.l.b16 %v4043
    %v7010 = vunpack.c.h.b16 %v4043
    %v7011 = vunpack.c.l.b16 %v4044
    %v7012 = vunpack.c.h.b16 %v4044
    %v7013 = vunpack.c.l.b16 %v4045
    %v7014 = vunpack.c.h.b16 %v4045
    %v7015 = vunpack.c.l.b16 %v4046
    %v7016 = vunpack.c.h.b16 %v4046
    %v7017 = vunpack.c.l.b16 %v4047
    %v7018 = vunpack.c.h.b16 %v4047
    %v7019 = vunpack.c.l.b16 %v4048
    %v7020 = vunpack.c.h.b16 %v4048
    %v7021 = vunpack.c.l.b16 %v4049
    %v7022 = vunpack.c.h.b16 %v4049
    %v7023 = vunpack.c.l.b16 %v4050
    %v7024 = vunpack.c.h.b16 %v4050
    %v7025 = vunpack.c.l.b16 %v4051
    %v7026 = vunpack.c.h.b16 %v4051
    %v7027 = vunpack.c.l.b16 %v4052
    %v7028 = vunpack.c.h.b16 %v4052
    %v7029 = vunpack.c.l.b16 %v4053
    %v7030 = vunpack.c.h.b16 %v4053
    %v7031 = vunpack.c.l.b16 %v4054
    %v7032 = vunpack.c.h.b16 %v4054
    %v7033 = vunpack.c.l.b16 %v4055
    %v7034 = vunpack.c.h.b16 %v4055
    %v7035 = vunpack.c.l.b16 %v4056
    %v7036 = vunpack.c.h.b16 %v4056
    %v7037 = vunpack.c.l.b16 %v4057
    %v7038 = vunpack.c.h.b16 %v4057
    %v7039 = vunpack.c.l.b16 %v4058
    %v7040 = vunpack.c.h.b16 %v4058
    %v7041 = vunpack.c.l.b16 %v4059
    %v7042 = vunpack.c.h.b16 %v4059
    %v7043 = vunpack.c.l.b16 %v4060
    %v7044 = vunpack.c.h.b16 %v4060
    %v7045 = vunpack.c.l.b16 %v4061
    %v7046 = vunpack.c.h.b16 %v4061
    %v7047 = vunpack.c.l.b16 %v4062
    %v7048 = vunpack.c.h.b16 %v4062
    %v7049 = vunpack.c.l.b16 %v4063
    %v7050 = vunpack.c.h.b16 %v4063
    %v7051 = vunpack.c.l.b16 %v4064
    %v7052 = vunpack.c.h.b16 %v4064
    %v7053 = vunpack.c.l.b16 %v4065
    %v7054 = vunpack.c.h.b16 %v4065
    %v7055 = vunpack.c.l.b16 %v4066
    %v7056 = vunpack.c.h.b16 %v4066
    %v7057 = vunpack.c.l.b16 %v4067
    %v7058 = vunpack.c.h.b16 %v4067
    %v7059 = vunpack.c.l.b16 %v4068
    %v7060 = vunpack.c.h.b16 %v4068
    %v7061 = vunpack.c.l.b16 %v4069
    %v7062 = vunpack.c.h.b16 %v4069
    %v7063 = vunpack.c.l.b16 %v4070
    %v7064 = vunpack.c.h.b16 %v4070
    %v7065 = vunpack.c.l.b16 %v4071
    %v7066 = vunpack.c.h.b16 %v4071
    %v7067 = vunpack.c.l.b16 %v4072
    %v7068 = vunpack.c.h.b16 %v4072
    %v7069 = vunpack.c.l.b16 %v4073
    %v7070 = vunpack.c.h.b16 %v4073
    %v7071 = vunpack.c.l.b16 %v4074
    %v7072 = vunpack.c.h.b16 %v4074
    %v7073 = vunpack.c.l.b16 %v4075
    %v7074 = vunpack.c.h.b16 %v4075
    %v7075 = vunpack.c.l.b16 %v4076
    %v7076 = vunpack.c.h.b16 %v4076
    %v7077 = vunpack.c.l.b16 %v4077
    %v7078 = vunpack.c.h.b16 %v4077
    %v7079 = vunpack.c.l.b16 %v4078
    %v7080 = vunpack.c.h.b16 %v4078
    %v7081 = vunpack.c.l.b16 %v4079
    %v7082 = vunpack.c.h.b16 %v4079
    %v7083 = vunpack.c.l.b16 %v4080
    %v7084 = vunpack.c.h.b16 %v4080
    %v7085 = vunpack.c.l.b16 %v4081
    %v7086 = vunpack.c.h.b16 %v4081
    %v7087 = vunpack.c.l.b16 %v4082
    %v7088 = vunpack.c.h.b16 %v4082
    %v7089 = vunpack.c.l.b16 %v4083
    %v7090 = vunpack.c.h.b16 %v4083
    %v7091 = vunpack.c.l.b16 %v4084
    %v7092 = vunpack.c.h.b16 %v4084
    %v7093 = vunpack.c.l.b16 %v4085
    %v7094 = vunpack.c.h.b16 %v4085
    %v7095 = vunpack.c.l.b16 %v4086
    %v7096 = vunpack.c.h.b16 %v4086
    %v7097 = vunpack.c.l.b16 %v4087
    %v7098 = vunpack.c.h.b16 %v4087
    %v7099 = vunpack.c.l.b16 %v4088
    %v7100 = vunpack.c.h.b16 %v4088
    %v7101 = vunpack.c.l.b16 %v4089
    %v7102 = vunpack.c.h.b16 %v4089
    %v7103 = vunpack.c.l.b16 %v4090
    %v7104 = vunpack.c.h.b16 %v4090
    %v7105 = vunpack.c.l.b16 %v4091
    %v7106 = vunpack.c.h.b16 %v4091
    %v7107 = vunpack.c.l.b16 %v4092
    %v7108 = vunpack.c.h.b16 %v4092
    %v7109 = vunpack.c.l.b16 %v4093
    %v7110 = vunpack.c.h.b16 %v4093
    %v7111 = vunpack.c.l.b16 %v4094
    %v7112 = vunpack.c.h.b16 %v4094
    %v7113 = vunpack.c.l.b16 %v4095
    %v7114 = vunpack.c.h.b16 %v4095
    %v7115 = vunpack.c.l.b16 %v4096
    %v7116 = vunpack.c.h.b16 %v4096
    %v7117 = vunpack.c.l.b16 %v4097
    %v7118 = vunpack.c.h.b16 %v4097
    %v7119 = vunpack.c.l.b16 %v4098
    %v7120 = vunpack.c.h.b16 %v4098
    %v7121 = vunpack.c.l.b16 %v4099
    %v7122 = vunpack.c.h.b16 %v4099
    %v7123 = vunpack.c.l.b16 %v4100
    %v7124 = vunpack.c.h.b16 %v4100
    %v7125 = vunpack.c.l.b16 %v4101
    %v7126 = vunpack.c.h.b16 %v4101
    %v7127 = vunpack.c.l.b16 %v4102
    %v7128 = vunpack.c.h.b16 %v4102
    %v7129 = vunpack.c.l.b16 %v4103
    %v7130 = vunpack.c.h.b16 %v4103
    %v7131 = vunpack.c.l.b16 %v4104
    %v7132 = vunpack.c.h.b16 %v4104
    %v7133 = vunpack.c.l.b16 %v4105
    %v7134 = vunpack.c.h.b16 %v4105
    %v7135 = vunpack.c.l.b16 %v4106
    %v7136 = vunpack.c.h.b16 %v4106
    %v7137 = vunpack.c.l.b16 %v4107
    %v7138 = vunpack.c.h.b16 %v4107
    %v7139 = vunpack.c.l.b16 %v4108
    %v7140 = vunpack.c.h.b16 %v4108
    %v7141 = vunpack.c.l.b16 %v4109
    %v7142 = vunpack.c.h.b16 %v4109
    %v7143 = vunpack.c.l.b16 %v4110
    %v7144 = vunpack.c.h.b16 %v4110
    %v7145 = vunpack.c.l.b16 %v4111
    %v7146 = vunpack.c.h.b16 %v4111
    %v7147 = vunpack.c.l.b16 %v4112
    %v7148 = vunpack.c.h.b16 %v4112
    %v7149 = vunpack.c.l.b16 %v4113
    %v7150 = vunpack.c.h.b16 %v4113
    %v7151 = vunpack.c.l.b16 %v4114
    %v7152 = vunpack.c.h.b16 %v4114
    %v7153 = vunpack.c.l.b16 %v4115
    %v7154 = vunpack.c.h.b16 %v4115
    %v7155 = vunpack.c.l.b16 %v4116
    %v7156 = vunpack.c.h.b16 %v4116
    %v7157 = vunpack.c.l.b16 %v4117
    %v7158 = vunpack.c.h.b16 %v4117
    %v7159 = vunpack.c.l.b16 %v4118
    %v7160 = vunpack.c.h.b16 %v4118
    %v7161 = vunpack.c.l.b16 %v4119
    %v7162 = vunpack.c.h.b16 %v4119
    %v7163 = vunpack.c.l.b16 %v4120
    %v7164 = vunpack.c.h.b16 %v4120
    %v7165 = vunpack.c.l.b16 %v4121
    %v7166 = vunpack.c.h.b16 %v4121
    %v7167 = vunpack.c.l.b16 %v4122
    %v7168 = vunpack.c.h.b16 %v4122
    %v7169 = vunpack.c.l.b16 %v4123
    %v7170 = vunpack.c.h.b16 %v4123
    %v7171 = vunpack.c.l.b16 %v4124
    %v7172 = vunpack.c.h.b16 %v4124
    %v7173 = vunpack.c.l.b16 %v4125
    %v7174 = vunpack.c.h.b16 %v4125
    %v7175 = vunpack.c.l.b16 %v4126
    %v7176 = vunpack.c.h.b16 %v4126
    %v7177 = vunpack.c.l.b16 %v4127
    %v7178 = vunpack.c.h.b16 %v4127
    %v7179 = vunpack.c.l.b16 %v4128
    %v7180 = vunpack.c.h.b16 %v4128
    %v7181 = vunpack.c.l.b16 %v4129
    %v7182 = vunpack.c.h.b16 %v4129
    %v7183 = vunpack.c.l.b16 %v4130
    %v7184 = vunpack.c.h.b16 %v4130
    %v7185 = vunpack.c.l.b16 %v4131
    %v7186 = vunpack.c.h.b16 %v4131
    %v7187 = vunpack.c.l.b16 %v4132
    %v7188 = vunpack.c.h.b16 %v4132
    %v7189 = vunpack.c.l.b16 %v4133
    %v7190 = vunpack.c.h.b16 %v4133
    %v7191 = vunpack.c.l.b16 %v4134
    %v7192 = vunpack.c.h.b16 %v4134
    %v7193 = vunpack.c.l.b16 %v4135
    %v7194 = vunpack.c.h.b16 %v4135
    %v7195 = vunpack.c.l.b16 %v4136
    %v7196 = vunpack.c.h.b16 %v4136
    %v7197 = vunpack.c.l.b16 %v4137
    %v7198 = vunpack.c.h.b16 %v4137
    %v7199 = vunpack.c.l.b16 %v4138
    %v7200 = vunpack.c.h.b16 %v4138
    %v7201 = vunpack.c.l.b16 %v4139
    %v7202 = vunpack.c.h.b16 %v4139
    %v7203 = vunpack.c.l.b16 %v4140
    %v7204 = vunpack.c.h.b16 %v4140
    %v7205 = vunpack.c.l.b16 %v4141
    %v7206 = vunpack.c.h.b16 %v4141
    %v7207 = vunpack.c.l.b16 %v4142
    %v7208 = vunpack.c.h.b16 %v4142
    %v7209 = vunpack.c.l.b16 %v4143
    %v7210 = vunpack.c.h.b16 %v4143
    %v7211 = vunpack.c.l.b16 %v4144
    %v7212 = vunpack.c.h.b16 %v4144
    %v7213 = vunpack.c.l.b16 %v4145
    %v7214 = vunpack.c.h.b16 %v4145
    %v7215 = vunpack.c.l.b16 %v4146
    %v7216 = vunpack.c.h.b16 %v4146
    %v7217 = vunpack.c.l.b16 %v4147
    %v7218 = vunpack.c.h.b16 %v4147
    %v7219 = vunpack.c.l.b16 %v4148
    %v7220 = vunpack.c.h.b16 %v4148
    %v7221 = vunpack.c.l.b16 %v4149
    %v7222 = vunpack.c.h.b16 %v4149
    %v7223 = vunpack.c.l.b16 %v4150
    %v7224 = vunpack.c.h.b16 %v4150
    %v7225 = vunpack.c.l.b16 %v4151
    %v7226 = vunpack.c.h.b16 %v4151
    %v7227 = vunpack.c.l.b16 %v4152
    %v7228 = vunpack.c.h.b16 %v4152
    %v7229 = vunpack.c.l.b16 %v4153
    %v7230 = vunpack.c.h.b16 %v4153
    %v7231 = vunpack.c.l.b16 %v4154
    %v7232 = vunpack.c.h.b16 %v4154
    %v7233 = vunpack.c.l.b16 %v4155
    %v7234 = vunpack.c.h.b16 %v4155
    %v7235 = vunpack.c.l.b16 %v4156
    %v7236 = vunpack.c.h.b16 %v4156
    %v7237 = vunpack.c.l.b16 %v4157
    %v7238 = vunpack.c.h.b16 %v4157
    %v7239 = vunpack.c.l.b16 %v4158
    %v7240 = vunpack.c.h.b16 %v4158
    %v7241 = vunpack.c.l.b16 %v4159
    %v7242 = vunpack.c.h.b16 %v4159
    %v7243 = vunpack.c.l.b16 %v4160
    %v7244 = vunpack.c.h.b16 %v4160
    %v7245 = vunpack.c.l.b16 %v4161
    %v7246 = vunpack.c.h.b16 %v4161
    %v7247 = vunpack.c.l.b16 %v4162
    %v7248 = vunpack.c.h.b16 %v4162
    %v7249 = vunpack.c.l.b16 %v4163
    %v7250 = vunpack.c.h.b16 %v4163
    %v7251 = vunpack.c.l.b16 %v4164
    %v7252 = vunpack.c.h.b16 %v4164
    %v7253 = vunpack.c.l.b16 %v4165
    %v7254 = vunpack.c.h.b16 %v4165
    %v7255 = vunpack.c.l.b16 %v4166
    %v7256 = vunpack.c.h.b16 %v4166
    %v7257 = vunpack.c.l.b16 %v4167
    %v7258 = vunpack.c.h.b16 %v4167
    %v7259 = vunpack.c.l.b16 %v4168
    %v7260 = vunpack.c.h.b16 %v4168
    %v7261 = vunpack.c.l.b16 %v4169
    %v7262 = vunpack.c.h.b16 %v4169
    %v7263 = vunpack.c.l.b16 %v4170
    %v7264 = vunpack.c.h.b16 %v4170
    %v7265 = vunpack.c.l.b16 %v4171
    %v7266 = vunpack.c.h.b16 %v4171
    %v7267 = vunpack.c.l.b16 %v4172
    %v7268 = vunpack.c.h.b16 %v4172
    %v7269 = vunpack.c.l.b16 %v4173
    %v7270 = vunpack.c.h.b16 %v4173
    %v7271 = vunpack.c.l.b16 %v4174
    %v7272 = vunpack.c.h.b16 %v4174
    %v7273 = vunpack.c.l.b16 %v4175
    %v7274 = vunpack.c.h.b16 %v4175
    %v7275 = vunpack.c.l.b16 %v4176
    %v7276 = vunpack.c.h.b16 %v4176
    %v7277 = vunpack.c.l.b16 %v4177
    %v7278 = vunpack.c.h.b16 %v4177
    %v7279 = vunpack.c.l.b16 %v4178
    %v7280 = vunpack.c.h.b16 %v4178
    %v7281 = vunpack.c.l.b16 %v4179
    %v7282 = vunpack.c.h.b16 %v4179
    %v7283 = vunpack.c.l.b16 %v4180
    %v7284 = vunpack.c.h.b16 %v4180
    %v7285 = vunpack.c.l.b16 %v4181
    %v7286 = vunpack.c.h.b16 %v4181
    %v7287 = vunpack.c.l.b16 %v4182
    %v7288 = vunpack.c.h.b16 %v4182
    %v7289 = vunpack.c.l.b16 %v4183
    %v7290 = vunpack.c.h.b16 %v4183
    %v7291 = vunpack.c.l.b16 %v4184
    %v7292 = vunpack.c.h.b16 %v4184
    %v7293 = vunpack.c.l.b16 %v4185
    %v7294 = vunpack.c.h.b16 %v4185
    %v7295 = vunpack.c.l.b16 %v4186
    %v7296 = vunpack.c.h.b16 %v4186
    %v7297 = vunpack.c.l.b16 %v4187
    %v7298 = vunpack.c.h.b16 %v4187
    %v7299 = vunpack.c.l.b16 %v4188
    %v7300 = vunpack.c.h.b16 %v4188
    %v7301 = vunpack.c.l.b16 %v4189
    %v7302 = vunpack.c.h.b16 %v4189
    %v7303 = vunpack.c.l.b16 %v4190
    %v7304 = vunpack.c.h.b16 %v4190
    %v7305 = vunpack.c.l.b16 %v4191
    %v7306 = vunpack.c.h.b16 %v4191
    %v7307 = vunpack.c.l.b16 %v4192
    %v7308 = vunpack.c.h.b16 %v4192
    %v7309 = vpack.c.b16 %v5277, %v5261
    %v7310 = vpack.c.b16 %v5278, %v5262
    %v7311 = vpack.c.b16 %v5279, %v5263
    %v7312 = vpack.c.b16 %v5280, %v5264
    %v7313 = vpack.c.b16 %v5281, %v5265
    %v7314 = vpack.c.b16 %v5282, %v5266
    %v7315 = vpack.c.b16 %v5283, %v5267
    %v7316 = vpack.c.b16 %v5284, %v5268
    %v7317 = vpack.c.b16 %v5285, %v5269
    %v7318 = vpack.c.b16 %v5286, %v5270
    %v7319 = vpack.c.b16 %v5287, %v5271
    %v7320 = vpack.c.b16 %v5288, %v5272
    %v7321 = vpack.c.b16 %v5289, %v5273
    %v7322 = vpack.c.b16 %v5290, %v5274
    %v7323 = vpack.c.b16 %v5291, %v5275
    %v7324 = vpack.c.b16 %v5292, %v5276
    %v7325 = vpack.c.b16 %v5309, %v5293
    %v7326 = vpack.c.b16 %v5310, %v5294
    %v7327 = vpack.c.b16 %v5311, %v5295
    %v7328 = vpack.c.b16 %v5312, %v5296
    %v7329 = vpack.c.b16 %v5313, %v5297
    %v7330 = vpack.c.b16 %v5314, %v5298
    %v7331 = vpack.c.b16 %v5315, %v5299
    %v7332 = vpack.c.b16 %v5316, %v5300
    %v7333 = vpack.c.b16 %v5317, %v5301
    %v7334 = vpack.c.b16 %v5318, %v5302
    %v7335 = vpack.c.b16 %v5319, %v5303
    %v7336 = vpack.c.b16 %v5320, %v5304
    %v7337 = vpack.c.b16 %v5321, %v5305
    %v7338 = vpack.c.b16 %v5322, %v5306
    %v7339 = vpack.c.b16 %v5323, %v5307
    %v7340 = vpack.c.b16 %v5324, %v5308
    %v7341 = vpack.c.b16 %v5341, %v5325
    %v7342 = vpack.c.b16 %v5342, %v5326
    %v7343 = vpack.c.b16 %v5343, %v5327
    %v7344 = vpack.c.b16 %v5344, %v5328
    %v7345 = vpack.c.b16 %v5345, %v5329
    %v7346 = vpack.c.b16 %v5346, %v5330
    %v7347 = vpack.c.b16 %v5347, %v5331
    %v7348 = vpack.c.b16 %v5348, %v5332
    %v7349 = vpack.c.b16 %v5349, %v5333
    %v7350 = vpack.c.b16 %v5350, %v5334
    %v7351 = vpack.c.b16 %v5351, %v5335
    %v7352 = vpack.c.b16 %v5352, %v5336
    %v7353 = vpack.c.b16 %v5353, %v5337
    %v7354 = vpack.c.b16 %v5354, %v5338
    %v7355 = vpack.c.b16 %v5355, %v5339
    %v7356 = vpack.c.b16 %v5356, %v5340
    %v7357 = vpack.c.b16 %v5373, %v5357
    %v7358 = vpack.c.b16 %v5374, %v5358
    %v7359 = vpack.c.b16 %v5375, %v5359
    %v7360 = vpack.c.b16 %v5376, %v5360
    %v7361 = vpack.c.b16 %v5377, %v5361
    %v7362 = vpack.c.b16 %v5378, %v5362
    %v7363 = vpack.c.b16 %v5379, %v5363
    %v7364 = vpack.c.b16 %v5380, %v5364
    %v7365 = vpack.c.b16 %v5381, %v5365
    %v7366 = vpack.c.b16 %v5382, %v5366
    %v7367 = vpack.c.b16 %v5383, %v5367
    %v7368 = vpack.c.b16 %v5384, %v5368
    %v7369 = vpack.c.b16 %v5385, %v5369
    %v7370 = vpack.c.b16 %v5386, %v5370
    %v7371 = vpack.c.b16 %v5387, %v5371
    %v7372 = vpack.c.b16 %v5388, %v5372
    %v7373 = vpack.c.b16 %v5405, %v5389
    %v7374 = vpack.c.b16 %v5406, %v5390
    %v7375 = vpack.c.b16 %v5407, %v5391
    %v7376 = vpack.c.b16 %v5408, %v5392
    %v7377 = vpack.c.b16 %v5409, %v5393
    %v7378 = vpack.c.b16 %v5410, %v5394
    %v7379 = vpack.c.b16 %v5411, %v5395
    %v7380 = vpack.c.b16 %v5412, %v5396
    %v7381 = vpack.c.b16 %v5413, %v5397
    %v7382 = vpack.c.b16 %v5414, %v5398
    %v7383 = vpack.c.b16 %v5415, %v5399
    %v7384 = vpack.c.b16 %v5416, %v5400
    %v7385 = vpack.c.b16 %v5417, %v5401
    %v7386 = vpack.c.b16 %v5418, %v5402
    %v7387 = vpack.c.b16 %v5419, %v5403
    %v7388 = vpack.c.b16 %v5420, %v5404
    %v7389 = vpack.c.b16 %v5437, %v5421
    %v7390 = vpack.c.b16 %v5438, %v5422
    %v7391 = vpack.c.b16 %v5439, %v5423
    %v7392 = vpack.c.b16 %v5440, %v5424
    %v7393 = vpack.c.b16 %v5441, %v5425
    %v7394 = vpack.c.b16 %v5442, %v5426
    %v7395 = vpack.c.b16 %v5443, %v5427
    %v7396 = vpack.c.b16 %v5444, %v5428
    %v7397 = vpack.c.b16 %v5445, %v5429
    %v7398 = vpack.c.b16 %v5446, %v5430
    %v7399 = vpack.c.b16 %v5447, %v5431
    %v7400 = vpack.c.b16 %v5448, %v5432
    %v7401 = vpack.c.b16 %v5449, %v5433
    %v7402 = vpack.c.b16 %v5450, %v5434
    %v7403 = vpack.c.b16 %v5451, %v5435
    %v7404 = vpack.c.b16 %v5452, %v5436
    %v7405 = vpack.c.b16 %v5469, %v5453
    %v7406 = vpack.c.b16 %v5470, %v5454
    %v7407 = vpack.c.b16 %v5471, %v5455
    %v7408 = vpack.c.b16 %v5472, %v5456
    %v7409 = vpack.c.b16 %v5473, %v5457
    %v7410 = vpack.c.b16 %v5474, %v5458
    %v7411 = vpack.c.b16 %v5475, %v5459
    %v7412 = vpack.c.b16 %v5476, %v5460
    %v7413 = vpack.c.b16 %v5477, %v5461
    %v7414 = vpack.c.b16 %v5478, %v5462
    %v7415 = vpack.c.b16 %v5479, %v5463
    %v7416 = vpack.c.b16 %v5480, %v5464
    %v7417 = vpack.c.b16 %v5481, %v5465
    %v7418 = vpack.c.b16 %v5482, %v5466
    %v7419 = vpack.c.b16 %v5483, %v5467
    %v7420 = vpack.c.b16 %v5484, %v5468
    %v7421 = vpack.c.b16 %v5501, %v5485
    %v7422 = vpack.c.b16 %v5502, %v5486
    %v7423 = vpack.c.b16 %v5503, %v5487
    %v7424 = vpack.c.b16 %v5504, %v5488
    %v7425 = vpack.c.b16 %v5505, %v5489
    %v7426 = vpack.c.b16 %v5506, %v5490
    %v7427 = vpack.c.b16 %v5507, %v5491
    %v7428 = vpack.c.b16 %v5508, %v5492
    %v7429 = vpack.c.b16 %v5509, %v5493
    %v7430 = vpack.c.b16 %v5510, %v5494
    %v7431 = vpack.c.b16 %v5511, %v5495
    %v7432 = vpack.c.b16 %v5512, %v5496
    %v7433 = vpack.c.b16 %v5513, %v5497
    %v7434 = vpack.c.b16 %v5514, %v5498
    %v7435 = vpack.c.b16 %v5515, %v5499
    %v7436 = vpack.c.b16 %v5516, %v5500
    %v7437 = vpack.c.b16 %v5533, %v5517
    %v7438 = vpack.c.b16 %v5534, %v5518
    %v7439 = vpack.c.b16 %v5535, %v5519
    %v7440 = vpack.c.b16 %v5536, %v5520
    %v7441 = vpack.c.b16 %v5537, %v5521
    %v7442 = vpack.c.b16 %v5538, %v5522
    %v7443 = vpack.c.b16 %v5539, %v5523
    %v7444 = vpack.c.b16 %v5540, %v5524
    %v7445 = vpack.c.b16 %v5541, %v5525
    %v7446 = vpack.c.b16 %v5542, %v5526
    %v7447 = vpack.c.b16 %v5543, %v5527
    %v7448 = vpack.c.b16 %v5544, %v5528
    %v7449 = vpack.c.b16 %v5545, %v5529
    %v7450 = vpack.c.b16 %v5546, %v5530
    %v7451 = vpack.c.b16 %v5547, %v5531
    %v7452 = vpack.c.b16 %v5548, %v5532
    %v7453 = vpack.c.b16 %v5565, %v5549
    %v7454 = vpack.c.b16 %v5566, %v5550
    %v7455 = vpack.c.b16 %v5567, %v5551
    %v7456 = vpack.c.b16 %v5568, %v5552
    %v7457 = vpack.c.b16 %v5569, %v5553
    %v7458 = vpack.c.b16 %v5570, %v5554
    %v7459 = vpack.c.b16 %v5571, %v5555
    %v7460 = vpack.c.b16 %v5572, %v5556
    %v7461 = vpack.c.b16 %v5573, %v5557
    %v7462 = vpack.c.b16 %v5574, %v5558
    %v7463 = vpack.c.b16 %v5575, %v5559
    %v7464 = vpack.c.b16 %v5576, %v5560
    %v7465 = vpack.c.b16 %v5577, %v5561
    %v7466 = vpack.c.b16 %v5578, %v5562
    %v7467 = vpack.c.b16 %v5579, %v5563
    %v7468 = vpack.c.b16 %v5580, %v5564
    %v7469 = vpack.c.b16 %v5597, %v5581
    %v7470 = vpack.c.b16 %v5598, %v5582
    %v7471 = vpack.c.b16 %v5599, %v5583
    %v7472 = vpack.c.b16 %v5600, %v5584
    %v7473 = vpack.c.b16 %v5601, %v5585
    %v7474 = vpack.c.b16 %v5602, %v5586
    %v7475 = vpack.c.b16 %v5603, %v5587
    %v7476 = vpack.c.b16 %v5604, %v5588
    %v7477 = vpack.c.b16 %v5605, %v5589
    %v7478 = vpack.c.b16 %v5606, %v5590
    %v7479 = vpack.c.b16 %v5607, %v5591
    %v7480 = vpack.c.b16 %v5608, %v5592
    %v7481 = vpack.c.b16 %v5609, %v5593
    %v7482 = vpack.c.b16 %v5610, %v5594
    %v7483 = vpack.c.b16 %v5611, %v5595
    %v7484 = vpack.c.b16 %v5612, %v5596
    %v7485 = vpack.c.b16 %v5629, %v5613
    %v7486 = vpack.c.b16 %v5630, %v5614
    %v7487 = vpack.c.b16 %v5631, %v5615
    %v7488 = vpack.c.b16 %v5632, %v5616
    %v7489 = vpack.c.b16 %v5633, %v5617
    %v7490 = vpack.c.b16 %v5634, %v5618
    %v7491 = vpack.c.b16 %v5635, %v5619
    %v7492 = vpack.c.b16 %v5636, %v5620
    %v7493 = vpack.c.b16 %v5637, %v5621
    %v7494 = vpack.c.b16 %v5638, %v5622
    %v7495 = vpack.c.b16 %v5639, %v5623
    %v7496 = vpack.c.b16 %v5640, %v5624
    %v7497 = vpack.c.b16 %v5641, %v5625
    %v7498 = vpack.c.b16 %v5642, %v5626
    %v7499 = vpack.c.b16 %v5643, %v5627
    %v7500 = vpack.c.b16 %v5644, %v5628
    %v7501 = vpack.c.b16 %v5661, %v5645
    %v7502 = vpack.c.b16 %v5662, %v5646
    %v7503 = vpack.c.b16 %v5663, %v5647
    %v7504 = vpack.c.b16 %v5664, %v5648
    %v7505 = vpack.c.b16 %v5665, %v5649
    %v7506 = vpack.c.b16 %v5666, %v5650
    %v7507 = vpack.c.b16 %v5667, %v5651
    %v7508 = vpack.c.b16 %v5668, %v5652
    %v7509 = vpack.c.b16 %v5669, %v5653
    %v7510 = vpack.c.b16 %v5670, %v5654
    %v7511 = vpack.c.b16 %v5671, %v5655
    %v7512 = vpack.c.b16 %v5672, %v5656
    %v7513 = vpack.c.b16 %v5673, %v5657
    %v7514 = vpack.c.b16 %v5674, %v5658
    %v7515 = vpack.c.b16 %v5675, %v5659
    %v7516 = vpack.c.b16 %v5676, %v5660
    %v7517 = vpack.c.b16 %v5693, %v5677
    %v7518 = vpack.c.b16 %v5694, %v5678
    %v7519 = vpack.c.b16 %v5695, %v5679
    %v7520 = vpack.c.b16 %v5696, %v5680
    %v7521 = vpack.c.b16 %v5697, %v5681
    %v7522 = vpack.c.b16 %v5698, %v5682
    %v7523 = vpack.c.b16 %v5699, %v5683
    %v7524 = vpack.c.b16 %v5700, %v5684
    %v7525 = vpack.c.b16 %v5701, %v5685
    %v7526 = vpack.c.b16 %v5702, %v5686
    %v7527 = vpack.c.b16 %v5703, %v5687
    %v7528 = vpack.c.b16 %v5704, %v5688
    %v7529 = vpack.c.b16 %v5705, %v5689
    %v7530 = vpack.c.b16 %v5706, %v5690
    %v7531 = vpack.c.b16 %v5707, %v5691
    %v7532 = vpack.c.b16 %v5708, %v5692
    %v7533 = vpack.c.b16 %v5725, %v5709
    %v7534 = vpack.c.b16 %v5726, %v5710
    %v7535 = vpack.c.b16 %v5727, %v5711
    %v7536 = vpack.c.b16 %v5728, %v5712
    %v7537 = vpack.c.b16 %v5729, %v5713
    %v7538 = vpack.c.b16 %v5730, %v5714
    %v7539 = vpack.c.b16 %v5731, %v5715
    %v7540 = vpack.c.b16 %v5732, %v5716
    %v7541 = vpack.c.b16 %v5733, %v5717
    %v7542 = vpack.c.b16 %v5734, %v5718
    %v7543 = vpack.c.b16 %v5735, %v5719
    %v7544 = vpack.c.b16 %v5736, %v5720
    %v7545 = vpack.c.b16 %v5737, %v5721
    %v7546 = vpack.c.b16 %v5738, %v5722
    %v7547 = vpack.c.b16 %v5739, %v5723
    %v7548 = vpack.c.b16 %v5740, %v5724
    %v7549 = vpack.c.b16 %v5757, %v5741
    %v7550 = vpack.c.b16 %v5758, %v5742
    %v7551 = vpack.c.b16 %v5759, %v5743
    %v7552 = vpack.c.b16 %v5760, %v5744
    %v7553 = vpack.c.b16 %v5761, %v5745
    %v7554 = vpack.c.b16 %v5762, %v5746
    %v7555 = vpack.c.b16 %v5763, %v5747
    %v7556 = vpack.c.b16 %v5764, %v5748
    %v7557 = vpack.c.b16 %v5765, %v5749
    %v7558 = vpack.c.b16 %v5766, %v5750
    %v7559 = vpack.c.b16 %v5767, %v5751
    %v7560 = vpack.c.b16 %v5768, %v5752
    %v7561 = vpack.c.b16 %v5769, %v5753
    %v7562 = vpack.c.b16 %v5770, %v5754
    %v7563 = vpack.c.b16 %v5771, %v5755
    %v7564 = vpack.c.b16 %v5772, %v5756
    %v7565 = vpack.c.b16 %v5789, %v5773
    %v7566 = vpack.c.b16 %v5790, %v5774
    %v7567 = vpack.c.b16 %v5791, %v5775
    %v7568 = vpack.c.b16 %v5792, %v5776
    %v7569 = vpack.c.b16 %v5793, %v5777
    %v7570 = vpack.c.b16 %v5794, %v5778
    %v7571 = vpack.c.b16 %v5795, %v5779
    %v7572 = vpack.c.b16 %v5796, %v5780
    %v7573 = vpack.c.b16 %v5797, %v5781
    %v7574 = vpack.c.b16 %v5798, %v5782
    %v7575 = vpack.c.b16 %v5799, %v5783
    %v7576 = vpack.c.b16 %v5800, %v5784
    %v7577 = vpack.c.b16 %v5801, %v5785
    %v7578 = vpack.c.b16 %v5802, %v5786
    %v7579 = vpack.c.b16 %v5803, %v5787
    %v7580 = vpack.c.b16 %v5804, %v5788
    %v7581 = vpack.c.b16 %v5821, %v5805
    %v7582 = vpack.c.b16 %v5822, %v5806
    %v7583 = vpack.c.b16 %v5823, %v5807
    %v7584 = vpack.c.b16 %v5824, %v5808
    %v7585 = vpack.c.b16 %v5825, %v5809
    %v7586 = vpack.c.b16 %v5826, %v5810
    %v7587 = vpack.c.b16 %v5827, %v5811
    %v7588 = vpack.c.b16 %v5828, %v5812
    %v7589 = vpack.c.b16 %v5829, %v5813
    %v7590 = vpack.c.b16 %v5830, %v5814
    %v7591 = vpack.c.b16 %v5831, %v5815
    %v7592 = vpack.c.b16 %v5832, %v5816
    %v7593 = vpack.c.b16 %v5833, %v5817
    %v7594 = vpack.c.b16 %v5834, %v5818
    %v7595 = vpack.c.b16 %v5835, %v5819
    %v7596 = vpack.c.b16 %v5836, %v5820
    %v7597 = vpack.c.b16 %v5853, %v5837
    %v7598 = vpack.c.b16 %v5854, %v5838
    %v7599 = vpack.c.b16 %v5855, %v5839
    %v7600 = vpack.c.b16 %v5856, %v5840
    %v7601 = vpack.c.b16 %v5857, %v5841
    %v7602 = vpack.c.b16 %v5858, %v5842
    %v7603 = vpack.c.b16 %v5859, %v5843
    %v7604 = vpack.c.b16 %v5860, %v5844
    %v7605 = vpack.c.b16 %v5861, %v5845
    %v7606 = vpack.c.b16 %v5862, %v5846
    %v7607 = vpack.c.b16 %v5863, %v5847
    %v7608 = vpack.c.b16 %v5864, %v5848
    %v7609 = vpack.c.b16 %v5865, %v5849
    %v7610 = vpack.c.b16 %v5866, %v5850
    %v7611 = vpack.c.b16 %v5867, %v5851
    %v7612 = vpack.c.b16 %v5868, %v5852
    %v7613 = vpack.c.b16 %v5885, %v5869
    %v7614 = vpack.c.b16 %v5886, %v5870
    %v7615 = vpack.c.b16 %v5887, %v5871
    %v7616 = vpack.c.b16 %v5888, %v5872
    %v7617 = vpack.c.b16 %v5889, %v5873
    %v7618 = vpack.c.b16 %v5890, %v5874
    %v7619 = vpack.c.b16 %v5891, %v5875
    %v7620 = vpack.c.b16 %v5892, %v5876
    %v7621 = vpack.c.b16 %v5893, %v5877
    %v7622 = vpack.c.b16 %v5894, %v5878
    %v7623 = vpack.c.b16 %v5895, %v5879
    %v7624 = vpack.c.b16 %v5896, %v5880
    %v7625 = vpack.c.b16 %v5897, %v5881
    %v7626 = vpack.c.b16 %v5898, %v5882
    %v7627 = vpack.c.b16 %v5899, %v5883
    %v7628 = vpack.c.b16 %v5900, %v5884
    %v7629 = vpack.c.b16 %v5917, %v5901
    %v7630 = vpack.c.b16 %v5918, %v5902
    %v7631 = vpack.c.b16 %v5919, %v5903
    %v7632 = vpack.c.b16 %v5920, %v5904
    %v7633 = vpack.c.b16 %v5921, %v5905
    %v7634 = vpack.c.b16 %v5922, %v5906
    %v7635 = vpack.c.b16 %v5923, %v5907
    %v7636 = vpack.c.b16 %v5924, %v5908
    %v7637 = vpack.c.b16 %v5925, %v5909
    %v7638 = vpack.c.b16 %v5926, %v5910
    %v7639 = vpack.c.b16 %v5927, %v5911
    %v7640 = vpack.c.b16 %v5928, %v5912
    %v7641 = vpack.c.b16 %v5929, %v5913
    %v7642 = vpack.c.b16 %v5930, %v5914
    %v7643 = vpack.c.b16 %v5931, %v5915
    %v7644 = vpack.c.b16 %v5932, %v5916
    %v7645 = vpack.c.b16 %v5949, %v5933
    %v7646 = vpack.c.b16 %v5950, %v5934
    %v7647 = vpack.c.b16 %v5951, %v5935
    %v7648 = vpack.c.b16 %v5952, %v5936
    %v7649 = vpack.c.b16 %v5953, %v5937
    %v7650 = vpack.c.b16 %v5954, %v5938
    %v7651 = vpack.c.b16 %v5955, %v5939
    %v7652 = vpack.c.b16 %v5956, %v5940
    %v7653 = vpack.c.b16 %v5957, %v5941
    %v7654 = vpack.c.b16 %v5958, %v5942
    %v7655 = vpack.c.b16 %v5959, %v5943
    %v7656 = vpack.c.b16 %v5960, %v5944
    %v7657 = vpack.c.b16 %v5961, %v5945
    %v7658 = vpack.c.b16 %v5962, %v5946
    %v7659 = vpack.c.b16 %v5963, %v5947
    %v7660 = vpack.c.b16 %v5964, %v5948
    %v7661 = vpack.c.b16 %v5981, %v5965
    %v7662 = vpack.c.b16 %v5982, %v5966
    %v7663 = vpack.c.b16 %v5983, %v5967
    %v7664 = vpack.c.b16 %v5984, %v5968
    %v7665 = vpack.c.b16 %v5985, %v5969
    %v7666 = vpack.c.b16 %v5986, %v5970
    %v7667 = vpack.c.b16 %v5987, %v5971
    %v7668 = vpack.c.b16 %v5988, %v5972
    %v7669 = vpack.c.b16 %v5989, %v5973
    %v7670 = vpack.c.b16 %v5990, %v5974
    %v7671 = vpack.c.b16 %v5991, %v5975
    %v7672 = vpack.c.b16 %v5992, %v5976
    %v7673 = vpack.c.b16 %v5993, %v5977
    %v7674 = vpack.c.b16 %v5994, %v5978
    %v7675 = vpack.c.b16 %v5995, %v5979
    %v7676 = vpack.c.b16 %v5996, %v5980
    %v7677 = vpack.c.b16 %v6013, %v5997
    %v7678 = vpack.c.b16 %v6014, %v5998
    %v7679 = vpack.c.b16 %v6015, %v5999
    %v7680 = vpack.c.b16 %v6016, %v6000
    %v7681 = vpack.c.b16 %v6017, %v6001
    %v7682 = vpack.c.b16 %v6018, %v6002
    %v7683 = vpack.c.b16 %v6019, %v6003
    %v7684 = vpack.c.b16 %v6020, %v6004
    %v7685 = vpack.c.b16 %v6021, %v6005
    %v7686 = vpack.c.b16 %v6022, %v6006
    %v7687 = vpack.c.b16 %v6023, %v6007
    %v7688 = vpack.c.b16 %v6024, %v6008
    %v7689 = vpack.c.b16 %v6025, %v6009
    %v7690 = vpack.c.b16 %v6026, %v6010
    %v7691 = vpack.c.b16 %v6027, %v6011
    %v7692 = vpack.c.b16 %v6028, %v6012
    %v7693 = vpack.c.b16 %v6045, %v6029
    %v7694 = vpack.c.b16 %v6046, %v6030
    %v7695 = vpack.c.b16 %v6047, %v6031
    %v7696 = vpack.c.b16 %v6048, %v6032
    %v7697 = vpack.c.b16 %v6049, %v6033
    %v7698 = vpack.c.b16 %v6050, %v6034
    %v7699 = vpack.c.b16 %v6051, %v6035
    %v7700 = vpack.c.b16 %v6052, %v6036
    %v7701 = vpack.c.b16 %v6053, %v6037
    %v7702 = vpack.c.b16 %v6054, %v6038
    %v7703 = vpack.c.b16 %v6055, %v6039
    %v7704 = vpack.c.b16 %v6056, %v6040
    %v7705 = vpack.c.b16 %v6057, %v6041
    %v7706 = vpack.c.b16 %v6058, %v6042
    %v7707 = vpack.c.b16 %v6059, %v6043
    %v7708 = vpack.c.b16 %v6060, %v6044
    %v7709 = vpack.c.b16 %v6077, %v6061
    %v7710 = vpack.c.b16 %v6078, %v6062
    %v7711 = vpack.c.b16 %v6079, %v6063
    %v7712 = vpack.c.b16 %v6080, %v6064
    %v7713 = vpack.c.b16 %v6081, %v6065
    %v7714 = vpack.c.b16 %v6082, %v6066
    %v7715 = vpack.c.b16 %v6083, %v6067
    %v7716 = vpack.c.b16 %v6084, %v6068
    %v7717 = vpack.c.b16 %v6085, %v6069
    %v7718 = vpack.c.b16 %v6086, %v6070
    %v7719 = vpack.c.b16 %v6087, %v6071
    %v7720 = vpack.c.b16 %v6088, %v6072
    %v7721 = vpack.c.b16 %v6089, %v6073
    %v7722 = vpack.c.b16 %v6090, %v6074
    %v7723 = vpack.c.b16 %v6091, %v6075
    %v7724 = vpack.c.b16 %v6092, %v6076
    %v7725 = vpack.c.b16 %v6109, %v6093
    %v7726 = vpack.c.b16 %v6110, %v6094
    %v7727 = vpack.c.b16 %v6111, %v6095
    %v7728 = vpack.c.b16 %v6112, %v6096
    %v7729 = vpack.c.b16 %v6113, %v6097
    %v7730 = vpack.c.b16 %v6114, %v6098
    %v7731 = vpack.c.b16 %v6115, %v6099
    %v7732 = vpack.c.b16 %v6116, %v6100
    %v7733 = vpack.c.b16 %v6117, %v6101
    %v7734 = vpack.c.b16 %v6118, %v6102
    %v7735 = vpack.c.b16 %v6119, %v6103
    %v7736 = vpack.c.b16 %v6120, %v6104
    %v7737 = vpack.c.b16 %v6121, %v6105
    %v7738 = vpack.c.b16 %v6122, %v6106
    %v7739 = vpack.c.b16 %v6123, %v6107
    %v7740 = vpack.c.b16 %v6124, %v6108
    %v7741 = vpack.c.b16 %v6141, %v6125
    %v7742 = vpack.c.b16 %v6142, %v6126
    %v7743 = vpack.c.b16 %v6143, %v6127
    %v7744 = vpack.c.b16 %v6144, %v6128
    %v7745 = vpack.c.b16 %v6145, %v6129
    %v7746 = vpack.c.b16 %v6146, %v6130
    %v7747 = vpack.c.b16 %v6147, %v6131
    %v7748 = vpack.c.b16 %v6148, %v6132
    %v7749 = vpack.c.b16 %v6149, %v6133
    %v7750 = vpack.c.b16 %v6150, %v6134
    %v7751 = vpack.c.b16 %v6151, %v6135
    %v7752 = vpack.c.b16 %v6152, %v6136
    %v7753 = vpack.c.b16 %v6153, %v6137
    %v7754 = vpack.c.b16 %v6154, %v6138
    %v7755 = vpack.c.b16 %v6155, %v6139
    %v7756 = vpack.c.b16 %v6156, %v6140
    %v7757 = vpack.c.b16 %v6173, %v6157
    %v7758 = vpack.c.b16 %v6174, %v6158
    %v7759 = vpack.c.b16 %v6175, %v6159
    %v7760 = vpack.c.b16 %v6176, %v6160
    %v7761 = vpack.c.b16 %v6177, %v6161
    %v7762 = vpack.c.b16 %v6178, %v6162
    %v7763 = vpack.c.b16 %v6179, %v6163
    %v7764 = vpack.c.b16 %v6180, %v6164
    %v7765 = vpack.c.b16 %v6181, %v6165
    %v7766 = vpack.c.b16 %v6182, %v6166
    %v7767 = vpack.c.b16 %v6183, %v6167
    %v7768 = vpack.c.b16 %v6184, %v6168
    %v7769 = vpack.c.b16 %v6185, %v6169
    %v7770 = vpack.c.b16 %v6186, %v6170
    %v7771 = vpack.c.b16 %v6187, %v6171
    %v7772 = vpack.c.b16 %v6188, %v6172
    %v7773 = vpack.c.b16 %v6205, %v6189
    %v7774 = vpack.c.b16 %v6206, %v6190
    %v7775 = vpack.c.b16 %v6207, %v6191
    %v7776 = vpack.c.b16 %v6208, %v6192
    %v7777 = vpack.c.b16 %v6209, %v6193
    %v7778 = vpack.c.b16 %v6210, %v6194
    %v7779 = vpack.c.b16 %v6211, %v6195
    %v7780 = vpack.c.b16 %v6212, %v6196
    %v7781 = vpack.c.b16 %v6213, %v6197
    %v7782 = vpack.c.b16 %v6214, %v6198
    %v7783 = vpack.c.b16 %v6215, %v6199
    %v7784 = vpack.c.b16 %v6216, %v6200
    %v7785 = vpack.c.b16 %v6217, %v6201
    %v7786 = vpack.c.b16 %v6218, %v6202
    %v7787 = vpack.c.b16 %v6219, %v6203
    %v7788 = vpack.c.b16 %v6220, %v6204
    %v7789 = vpack.c.b16 %v6237, %v6221
    %v7790 = vpack.c.b16 %v6238, %v6222
    %v7791 = vpack.c.b16 %v6239, %v6223
    %v7792 = vpack.c.b16 %v6240, %v6224
    %v7793 = vpack.c.b16 %v6241, %v6225
    %v7794 = vpack.c.b16 %v6242, %v6226
    %v7795 = vpack.c.b16 %v6243, %v6227
    %v7796 = vpack.c.b16 %v6244, %v6228
    %v7797 = vpack.c.b16 %v6245, %v6229
    %v7798 = vpack.c.b16 %v6246, %v6230
    %v7799 = vpack.c.b16 %v6247, %v6231
    %v7800 = vpack.c.b16 %v6248, %v6232
    %v7801 = vpack.c.b16 %v6249, %v6233
    %v7802 = vpack.c.b16 %v6250, %v6234
    %v7803 = vpack.c.b16 %v6251, %v6235
    %v7804 = vpack.c.b16 %v6252, %v6236
    %v7805 = vpack.c.b16 %v6269, %v6253
    %v7806 = vpack.c.b16 %v6270, %v6254
    %v7807 = vpack.c.b16 %v6271, %v6255
    %v7808 = vpack.c.b16 %v6272, %v6256
    %v7809 = vpack.c.b16 %v6273, %v6257
    %v7810 = vpack.c.b16 %v6274, %v6258
    %v7811 = vpack.c.b16 %v6275, %v6259
    %v7812 = vpack.c.b16 %v6276, %v6260
    %v7813 = vpack.c.b16 %v6277, %v6261
    %v7814 = vpack.c.b16 %v6278, %v6262
    %v7815 = vpack.c.b16 %v6279, %v6263
    %v7816 = vpack.c.b16 %v6280, %v6264
    %v7817 = vpack.c.b16 %v6281, %v6265
    %v7818 = vpack.c.b16 %v6282, %v6266
    %v7819 = vpack.c.b16 %v6283, %v6267
    %v7820 = vpack.c.b16 %v6284, %v6268
    %v7821 = vpack.c.b16 %v6301, %v6285
    %v7822 = vpack.c.b16 %v6302, %v6286
    %v7823 = vpack.c.b16 %v6303, %v6287
    %v7824 = vpack.c.b16 %v6304, %v6288
    %v7825 = vpack.c.b16 %v6305, %v6289
    %v7826 = vpack.c.b16 %v6306, %v6290
    %v7827 = vpack.c.b16 %v6307, %v6291
    %v7828 = vpack.c.b16 %v6308, %v6292
    %v7829 = vpack.c.b16 %v6309, %v6293
    %v7830 = vpack.c.b16 %v6310, %v6294
    %v7831 = vpack.c.b16 %v6311, %v6295
    %v7832 = vpack.c.b16 %v6312, %v6296
    %v7833 = vpack.c.b16 %v6313, %v6297
    %v7834 = vpack.c.b16 %v6314, %v6298
    %v7835 = vpack.c.b16 %v6315, %v6299
    %v7836 = vpack.c.b16 %v6316, %v6300
    %v7837 = vpack.c.b16 %v6333, %v6317
    %v7838 = vpack.c.b16 %v6334, %v6318
    %v7839 = vpack.c.b16 %v6335, %v6319
    %v7840 = vpack.c.b16 %v6336, %v6320
    %v7841 = vpack.c.b16 %v6337, %v6321
    %v7842 = vpack.c.b16 %v6338, %v6322
    %v7843 = vpack.c.b16 %v6339, %v6323
    %v7844 = vpack.c.b16 %v6340, %v6324
    %v7845 = vpack.c.b16 %v6341, %v6325
    %v7846 = vpack.c.b16 %v6342, %v6326
    %v7847 = vpack.c.b16 %v6343, %v6327
    %v7848 = vpack.c.b16 %v6344, %v6328
    %v7849 = vpack.c.b16 %v6345, %v6329
    %v7850 = vpack.c.b16 %v6346, %v6330
    %v7851 = vpack.c.b16 %v6347, %v6331
    %v7852 = vpack.c.b16 %v6348, %v6332
    %v7853 = vpack.c.b16 %v6365, %v6349
    %v7854 = vpack.c.b16 %v6366, %v6350
    %v7855 = vpack.c.b16 %v6367, %v6351
    %v7856 = vpack.c.b16 %v6368, %v6352
    %v7857 = vpack.c.b16 %v6369, %v6353
    %v7858 = vpack.c.b16 %v6370, %v6354
    %v7859 = vpack.c.b16 %v6371, %v6355
    %v7860 = vpack.c.b16 %v6372, %v6356
    %v7861 = vpack.c.b16 %v6373, %v6357
    %v7862 = vpack.c.b16 %v6374, %v6358
    %v7863 = vpack.c.b16 %v6375, %v6359
    %v7864 = vpack.c.b16 %v6376, %v6360
    %v7865 = vpack.c.b16 %v6377, %v6361
    %v7866 = vpack.c.b16 %v6378, %v6362
    %v7867 = vpack.c.b16 %v6379, %v6363
    %v7868 = vpack.c.b16 %v6380, %v6364
    %v7869 = vpack.c.b16 %v6397, %v6381
    %v7870 = vpack.c.b16 %v6398, %v6382
    %v7871 = vpack.c.b16 %v6399, %v6383
    %v7872 = vpack.c.b16 %v6400, %v6384
    %v7873 = vpack.c.b16 %v6401, %v6385
    %v7874 = vpack.c.b16 %v6402, %v6386
    %v7875 = vpack.c.b16 %v6403, %v6387
    %v7876 = vpack.c.b16 %v6404, %v6388
    %v7877 = vpack.c.b16 %v6405, %v6389
    %v7878 = vpack.c.b16 %v6406, %v6390
    %v7879 = vpack.c.b16 %v6407, %v6391
    %v7880 = vpack.c.b16 %v6408, %v6392
    %v7881 = vpack.c.b16 %v6409, %v6393
    %v7882 = vpack.c.b16 %v6410, %v6394
    %v7883 = vpack.c.b16 %v6411, %v6395
    %v7884 = vpack.c.b16 %v6412, %v6396
    %v7885 = vpack.c.b16 %v6429, %v6413
    %v7886 = vpack.c.b16 %v6430, %v6414
    %v7887 = vpack.c.b16 %v6431, %v6415
    %v7888 = vpack.c.b16 %v6432, %v6416
    %v7889 = vpack.c.b16 %v6433, %v6417
    %v7890 = vpack.c.b16 %v6434, %v6418
    %v7891 = vpack.c.b16 %v6435, %v6419
    %v7892 = vpack.c.b16 %v6436, %v6420
    %v7893 = vpack.c.b16 %v6437, %v6421
    %v7894 = vpack.c.b16 %v6438, %v6422
    %v7895 = vpack.c.b16 %v6439, %v6423
    %v7896 = vpack.c.b16 %v6440, %v6424
    %v7897 = vpack.c.b16 %v6441, %v6425
    %v7898 = vpack.c.b16 %v6442, %v6426
    %v7899 = vpack.c.b16 %v6443, %v6427
    %v7900 = vpack.c.b16 %v6444, %v6428
    %v7901 = vpack.c.b16 %v6461, %v6445
    %v7902 = vpack.c.b16 %v6462, %v6446
    %v7903 = vpack.c.b16 %v6463, %v6447
    %v7904 = vpack.c.b16 %v6464, %v6448
    %v7905 = vpack.c.b16 %v6465, %v6449
    %v7906 = vpack.c.b16 %v6466, %v6450
    %v7907 = vpack.c.b16 %v6467, %v6451
    %v7908 = vpack.c.b16 %v6468, %v6452
    %v7909 = vpack.c.b16 %v6469, %v6453
    %v7910 = vpack.c.b16 %v6470, %v6454
    %v7911 = vpack.c.b16 %v6471, %v6455
    %v7912 = vpack.c.b16 %v6472, %v6456
    %v7913 = vpack.c.b16 %v6473, %v6457
    %v7914 = vpack.c.b16 %v6474, %v6458
    %v7915 = vpack.c.b16 %v6475, %v6459
    %v7916 = vpack.c.b16 %v6476, %v6460
    %v7917 = vpack.c.b16 %v6493, %v6477
    %v7918 = vpack.c.b16 %v6494, %v6478
    %v7919 = vpack.c.b16 %v6495, %v6479
    %v7920 = vpack.c.b16 %v6496, %v6480
    %v7921 = vpack.c.b16 %v6497, %v6481
    %v7922 = vpack.c.b16 %v6498, %v6482
    %v7923 = vpack.c.b16 %v6499, %v6483
    %v7924 = vpack.c.b16 %v6500, %v6484
    %v7925 = vpack.c.b16 %v6501, %v6485
    %v7926 = vpack.c.b16 %v6502, %v6486
    %v7927 = vpack.c.b16 %v6503, %v6487
    %v7928 = vpack.c.b16 %v6504, %v6488
    %v7929 = vpack.c.b16 %v6505, %v6489
    %v7930 = vpack.c.b16 %v6506, %v6490
    %v7931 = vpack.c.b16 %v6507, %v6491
    %v7932 = vpack.c.b16 %v6508, %v6492
    %v7933 = vpack.c.b16 %v6525, %v6509
    %v7934 = vpack.c.b16 %v6526, %v6510
    %v7935 = vpack.c.b16 %v6527, %v6511
    %v7936 = vpack.c.b16 %v6528, %v6512
    %v7937 = vpack.c.b16 %v6529, %v6513
    %v7938 = vpack.c.b16 %v6530, %v6514
    %v7939 = vpack.c.b16 %v6531, %v6515
    %v7940 = vpack.c.b16 %v6532, %v6516
    %v7941 = vpack.c.b16 %v6533, %v6517
    %v7942 = vpack.c.b16 %v6534, %v6518
    %v7943 = vpack.c.b16 %v6535, %v6519
    %v7944 = vpack.c.b16 %v6536, %v6520
    %v7945 = vpack.c.b16 %v6537, %v6521
    %v7946 = vpack.c.b16 %v6538, %v6522
    %v7947 = vpack.c.b16 %v6539, %v6523
    %v7948 = vpack.c.b16 %v6540, %v6524
    %v7949 = vpack.c.b16 %v6557, %v6541
    %v7950 = vpack.c.b16 %v6558, %v6542
    %v7951 = vpack.c.b16 %v6559, %v6543
    %v7952 = vpack.c.b16 %v6560, %v6544
    %v7953 = vpack.c.b16 %v6561, %v6545
    %v7954 = vpack.c.b16 %v6562, %v6546
    %v7955 = vpack.c.b16 %v6563, %v6547
    %v7956 = vpack.c.b16 %v6564, %v6548
    %v7957 = vpack.c.b16 %v6565, %v6549
    %v7958 = vpack.c.b16 %v6566, %v6550
    %v7959 = vpack.c.b16 %v6567, %v6551
    %v7960 = vpack.c.b16 %v6568, %v6552
    %v7961 = vpack.c.b16 %v6569, %v6553
    %v7962 = vpack.c.b16 %v6570, %v6554
    %v7963 = vpack.c.b16 %v6571, %v6555
    %v7964 = vpack.c.b16 %v6572, %v6556
    %v7965 = vpack.c.b16 %v6589, %v6573
    %v7966 = vpack.c.b16 %v6590, %v6574
    %v7967 = vpack.c.b16 %v6591, %v6575
    %v7968 = vpack.c.b16 %v6592, %v6576
    %v7969 = vpack.c.b16 %v6593, %v6577
    %v7970 = vpack.c.b16 %v6594, %v6578
    %v7971 = vpack.c.b16 %v6595, %v6579
    %v7972 = vpack.c.b16 %v6596, %v6580
    %v7973 = vpack.c.b16 %v6597, %v6581
    %v7974 = vpack.c.b16 %v6598, %v6582
    %v7975 = vpack.c.b16 %v6599, %v6583
    %v7976 = vpack.c.b16 %v6600, %v6584
    %v7977 = vpack.c.b16 %v6601, %v6585
    %v7978 = vpack.c.b16 %v6602, %v6586
    %v7979 = vpack.c.b16 %v6603, %v6587
    %v7980 = vpack.c.b16 %v6604, %v6588
    %v7981 = vpack.c.b16 %v6621, %v6605
    %v7982 = vpack.c.b16 %v6622, %v6606
    %v7983 = vpack.c.b16 %v6623, %v6607
    %v7984 = vpack.c.b16 %v6624, %v6608
    %v7985 = vpack.c.b16 %v6625, %v6609
    %v7986 = vpack.c.b16 %v6626, %v6610
    %v7987 = vpack.c.b16 %v6627, %v6611
    %v7988 = vpack.c.b16 %v6628, %v6612
    %v7989 = vpack.c.b16 %v6629, %v6613
    %v7990 = vpack.c.b16 %v6630, %v6614
    %v7991 = vpack.c.b16 %v6631, %v6615
    %v7992 = vpack.c.b16 %v6632, %v6616
    %v7993 = vpack.c.b16 %v6633, %v6617
    %v7994 = vpack.c.b16 %v6634, %v6618
    %v7995 = vpack.c.b16 %v6635, %v6619
    %v7996 = vpack.c.b16 %v6636, %v6620
    %v7997 = vpack.c.b16 %v6653, %v6637
    %v7998 = vpack.c.b16 %v6654, %v6638
    %v7999 = vpack.c.b16 %v6655, %v6639
    %v8000 = vpack.c.b16 %v6656, %v6640
    %v8001 = vpack.c.b16 %v6657, %v6641
    %v8002 = vpack.c.b16 %v6658, %v6642
    %v8003 = vpack.c.b16 %v6659, %v6643
    %v8004 = vpack.c.b16 %v6660, %v6644
    %v8005 = vpack.c.b16 %v6661, %v6645
    %v8006 = vpack.c.b16 %v6662, %v6646
    %v8007 = vpack.c.b16 %v6663, %v6647
    %v8008 = vpack.c.b16 %v6664, %v6648
    %v8009 = vpack.c.b16 %v6665, %v6649
    %v8010 = vpack.c.b16 %v6666, %v6650
    %v8011 = vpack.c.b16 %v6667, %v6651
    %v8012 = vpack.c.b16 %v6668, %v6652
    %v8013 = vpack.c.b16 %v6685, %v6669
    %v8014 = vpack.c.b16 %v6686, %v6670
    %v8015 = vpack.c.b16 %v6687, %v6671
    %v8016 = vpack.c.b16 %v6688, %v6672
    %v8017 = vpack.c.b16 %v6689, %v6673
    %v8018 = vpack.c.b16 %v6690, %v6674
    %v8019 = vpack.c.b16 %v6691, %v6675
    %v8020 = vpack.c.b16 %v6692, %v6676
    %v8021 = vpack.c.b16 %v6693, %v6677
    %v8022 = vpack.c.b16 %v6694, %v6678
    %v8023 = vpack.c.b16 %v6695, %v6679
    %v8024 = vpack.c.b16 %v6696, %v6680
    %v8025 = vpack.c.b16 %v6697, %v6681
    %v8026 = vpack.c.b16 %v6698, %v6682
    %v8027 = vpack.c.b16 %v6699, %v6683
    %v8028 = vpack.c.b16 %v6700, %v6684
    %v8029 = vpack.c.b16 %v6717, %v6701
    %v8030 = vpack.c.b16 %v6718, %v6702
    %v8031 = vpack.c.b16 %v6719, %v6703
    %v8032 = vpack.c.b16 %v6720, %v6704
    %v8033 = vpack.c.b16 %v6721, %v6705
    %v8034 = vpack.c.b16 %v6722, %v6706
    %v8035 = vpack.c.b16 %v6723, %v6707
    %v8036 = vpack.c.b16 %v6724, %v6708
    %v8037 = vpack.c.b16 %v6725, %v6709
    %v8038 = vpack.c.b16 %v6726, %v6710
    %v8039 = vpack.c.b16 %v6727, %v6711
    %v8040 = vpack.c.b16 %v6728, %v6712
    %v8041 = vpack.c.b16 %v6729, %v6713
    %v8042 = vpack.c.b16 %v6730, %v6714
    %v8043 = vpack.c.b16 %v6731, %v6715
    %v8044 = vpack.c.b16 %v6732, %v6716
    %v8045 = vpack.c.b16 %v6749, %v6733
    %v8046 = vpack.c.b16 %v6750, %v6734
    %v8047 = vpack.c.b16 %v6751, %v6735
    %v8048 = vpack.c.b16 %v6752, %v6736
    %v8049 = vpack.c.b16 %v6753, %v6737
    %v8050 = vpack.c.b16 %v6754, %v6738
    %v8051 = vpack.c.b16 %v6755, %v6739
    %v8052 = vpack.c.b16 %v6756, %v6740
    %v8053 = vpack.c.b16 %v6757, %v6741
    %v8054 = vpack.c.b16 %v6758, %v6742
    %v8055 = vpack.c.b16 %v6759, %v6743
    %v8056 = vpack.c.b16 %v6760, %v6744
    %v8057 = vpack.c.b16 %v6761, %v6745
    %v8058 = vpack.c.b16 %v6762, %v6746
    %v8059 = vpack.c.b16 %v6763, %v6747
    %v8060 = vpack.c.b16 %v6764, %v6748
    %v8061 = vpack.c.b16 %v6781, %v6765
    %v8062 = vpack.c.b16 %v6782, %v6766
    %v8063 = vpack.c.b16 %v6783, %v6767
    %v8064 = vpack.c.b16 %v6784, %v6768
    %v8065 = vpack.c.b16 %v6785, %v6769
    %v8066 = vpack.c.b16 %v6786, %v6770
    %v8067 = vpack.c.b16 %v6787, %v6771
    %v8068 = vpack.c.b16 %v6788, %v6772
    %v8069 = vpack.c.b16 %v6789, %v6773
    %v8070 = vpack.c.b16 %v6790, %v6774
    %v8071 = vpack.c.b16 %v6791, %v6775
    %v8072 = vpack.c.b16 %v6792, %v6776
    %v8073 = vpack.c.b16 %v6793, %v6777
    %v8074 = vpack.c.b16 %v6794, %v6778
    %v8075 = vpack.c.b16 %v6795, %v6779
    %v8076 = vpack.c.b16 %v6796, %v6780
    %v8077 = vpack.c.b16 %v6813, %v6797
    %v8078 = vpack.c.b16 %v6814, %v6798
    %v8079 = vpack.c.b16 %v6815, %v6799
    %v8080 = vpack.c.b16 %v6816, %v6800
    %v8081 = vpack.c.b16 %v6817, %v6801
    %v8082 = vpack.c.b16 %v6818, %v6802
    %v8083 = vpack.c.b16 %v6819, %v6803
    %v8084 = vpack.c.b16 %v6820, %v6804
    %v8085 = vpack.c.b16 %v6821, %v6805
    %v8086 = vpack.c.b16 %v6822, %v6806
    %v8087 = vpack.c.b16 %v6823, %v6807
    %v8088 = vpack.c.b16 %v6824, %v6808
    %v8089 = vpack.c.b16 %v6825, %v6809
    %v8090 = vpack.c.b16 %v6826, %v6810
    %v8091 = vpack.c.b16 %v6827, %v6811
    %v8092 = vpack.c.b16 %v6828, %v6812
    %v8093 = vpack.c.b16 %v6845, %v6829
    %v8094 = vpack.c.b16 %v6846, %v6830
    %v8095 = vpack.c.b16 %v6847, %v6831
    %v8096 = vpack.c.b16 %v6848, %v6832
    %v8097 = vpack.c.b16 %v6849, %v6833
    %v8098 = vpack.c.b16 %v6850, %v6834
    %v8099 = vpack.c.b16 %v6851, %v6835
    %v8100 = vpack.c.b16 %v6852, %v6836
    %v8101 = vpack.c.b16 %v6853, %v6837
    %v8102 = vpack.c.b16 %v6854, %v6838
    %v8103 = vpack.c.b16 %v6855, %v6839
    %v8104 = vpack.c.b16 %v6856, %v6840
    %v8105 = vpack.c.b16 %v6857, %v6841
    %v8106 = vpack.c.b16 %v6858, %v6842
    %v8107 = vpack.c.b16 %v6859, %v6843
    %v8108 = vpack.c.b16 %v6860, %v6844
    %v8109 = vpack.c.b16 %v6877, %v6861
    %v8110 = vpack.c.b16 %v6878, %v6862
    %v8111 = vpack.c.b16 %v6879, %v6863
    %v8112 = vpack.c.b16 %v6880, %v6864
    %v8113 = vpack.c.b16 %v6881, %v6865
    %v8114 = vpack.c.b16 %v6882, %v6866
    %v8115 = vpack.c.b16 %v6883, %v6867
    %v8116 = vpack.c.b16 %v6884, %v6868
    %v8117 = vpack.c.b16 %v6885, %v6869
    %v8118 = vpack.c.b16 %v6886, %v6870
    %v8119 = vpack.c.b16 %v6887, %v6871
    %v8120 = vpack.c.b16 %v6888, %v6872
    %v8121 = vpack.c.b16 %v6889, %v6873
    %v8122 = vpack.c.b16 %v6890, %v6874
    %v8123 = vpack.c.b16 %v6891, %v6875
    %v8124 = vpack.c.b16 %v6892, %v6876
    %v8125 = vpack.c.b16 %v6909, %v6893
    %v8126 = vpack.c.b16 %v6910, %v6894
    %v8127 = vpack.c.b16 %v6911, %v6895
    %v8128 = vpack.c.b16 %v6912, %v6896
    %v8129 = vpack.c.b16 %v6913, %v6897
    %v8130 = vpack.c.b16 %v6914, %v6898
    %v8131 = vpack.c.b16 %v6915, %v6899
    %v8132 = vpack.c.b16 %v6916, %v6900
    %v8133 = vpack.c.b16 %v6917, %v6901
    %v8134 = vpack.c.b16 %v6918, %v6902
    %v8135 = vpack.c.b16 %v6919, %v6903
    %v8136 = vpack.c.b16 %v6920, %v6904
    %v8137 = vpack.c.b16 %v6921, %v6905
    %v8138 = vpack.c.b16 %v6922, %v6906
    %v8139 = vpack.c.b16 %v6923, %v6907
    %v8140 = vpack.c.b16 %v6924, %v6908
    %v8141 = vpack.c.b16 %v6941, %v6925
    %v8142 = vpack.c.b16 %v6942, %v6926
    %v8143 = vpack.c.b16 %v6943, %v6927
    %v8144 = vpack.c.b16 %v6944, %v6928
    %v8145 = vpack.c.b16 %v6945, %v6929
    %v8146 = vpack.c.b16 %v6946, %v6930
    %v8147 = vpack.c.b16 %v6947, %v6931
    %v8148 = vpack.c.b16 %v6948, %v6932
    %v8149 = vpack.c.b16 %v6949, %v6933
    %v8150 = vpack.c.b16 %v6950, %v6934
    %v8151 = vpack.c.b16 %v6951, %v6935
    %v8152 = vpack.c.b16 %v6952, %v6936
    %v8153 = vpack.c.b16 %v6953, %v6937
    %v8154 = vpack.c.b16 %v6954, %v6938
    %v8155 = vpack.c.b16 %v6955, %v6939
    %v8156 = vpack.c.b16 %v6956, %v6940
    %v8157 = vpack.c.b16 %v6973, %v6957
    %v8158 = vpack.c.b16 %v6974, %v6958
    %v8159 = vpack.c.b16 %v6975, %v6959
    %v8160 = vpack.c.b16 %v6976, %v6960
    %v8161 = vpack.c.b16 %v6977, %v6961
    %v8162 = vpack.c.b16 %v6978, %v6962
    %v8163 = vpack.c.b16 %v6979, %v6963
    %v8164 = vpack.c.b16 %v6980, %v6964
    %v8165 = vpack.c.b16 %v6981, %v6965
    %v8166 = vpack.c.b16 %v6982, %v6966
    %v8167 = vpack.c.b16 %v6983, %v6967
    %v8168 = vpack.c.b16 %v6984, %v6968
    %v8169 = vpack.c.b16 %v6985, %v6969
    %v8170 = vpack.c.b16 %v6986, %v6970
    %v8171 = vpack.c.b16 %v6987, %v6971
    %v8172 = vpack.c.b16 %v6988, %v6972
    %v8173 = vpack.c.b16 %v7005, %v6989
    %v8174 = vpack.c.b16 %v7006, %v6990
    %v8175 = vpack.c.b16 %v7007, %v6991
    %v8176 = vpack.c.b16 %v7008, %v6992
    %v8177 = vpack.c.b16 %v7009, %v6993
    %v8178 = vpack.c.b16 %v7010, %v6994
    %v8179 = vpack.c.b16 %v7011, %v6995
    %v8180 = vpack.c.b16 %v7012, %v6996
    %v8181 = vpack.c.b16 %v7013, %v6997
    %v8182 = vpack.c.b16 %v7014, %v6998
    %v8183 = vpack.c.b16 %v7015, %v6999
    %v8184 = vpack.c.b16 %v7016, %v7000
    %v8185 = vpack.c.b16 %v7017, %v7001
    %v8186 = vpack.c.b16 %v7018, %v7002
    %v8187 = vpack.c.b16 %v7019, %v7003
    %v8188 = vpack.c.b16 %v7020, %v7004
    %v8189 = vpack.c.b16 %v7037, %v7021
    %v8190 = vpack.c.b16 %v7038, %v7022
    %v8191 = vpack.c.b16 %v7039, %v7023
    %v8192 = vpack.c.b16 %v7040, %v7024
    %v8193 = vpack.c.b16 %v7041, %v7025
    %v8194 = vpack.c.b16 %v7042, %v7026
    %v8195 = vpack.c.b16 %v7043, %v7027
    %v8196 = vpack.c.b16 %v7044, %v7028
    %v8197 = vpack.c.b16 %v7045, %v7029
    %v8198 = vpack.c.b16 %v7046, %v7030
    %v8199 = vpack.c.b16 %v7047, %v7031
    %v8200 = vpack.c.b16 %v7048, %v7032
    %v8201 = vpack.c.b16 %v7049, %v7033
    %v8202 = vpack.c.b16 %v7050, %v7034
    %v8203 = vpack.c.b16 %v7051, %v7035
    %v8204 = vpack.c.b16 %v7052, %v7036
    %v8205 = vpack.c.b16 %v7069, %v7053
    %v8206 = vpack.c.b16 %v7070, %v7054
    %v8207 = vpack.c.b16 %v7071, %v7055
    %v8208 = vpack.c.b16 %v7072, %v7056
    %v8209 = vpack.c.b16 %v7073, %v7057
    %v8210 = vpack.c.b16 %v7074, %v7058
    %v8211 = vpack.c.b16 %v7075, %v7059
    %v8212 = vpack.c.b16 %v7076, %v7060
    %v8213 = vpack.c.b16 %v7077, %v7061
    %v8214 = vpack.c.b16 %v7078, %v7062
    %v8215 = vpack.c.b16 %v7079, %v7063
    %v8216 = vpack.c.b16 %v7080, %v7064
    %v8217 = vpack.c.b16 %v7081, %v7065
    %v8218 = vpack.c.b16 %v7082, %v7066
    %v8219 = vpack.c.b16 %v7083, %v7067
    %v8220 = vpack.c.b16 %v7084, %v7068
    %v8221 = vpack.c.b16 %v7101, %v7085
    %v8222 = vpack.c.b16 %v7102, %v7086
    %v8223 = vpack.c.b16 %v7103, %v7087
    %v8224 = vpack.c.b16 %v7104, %v7088
    %v8225 = vpack.c.b16 %v7105, %v7089
    %v8226 = vpack.c.b16 %v7106, %v7090
    %v8227 = vpack.c.b16 %v7107, %v7091
    %v8228 = vpack.c.b16 %v7108, %v7092
    %v8229 = vpack.c.b16 %v7109, %v7093
    %v8230 = vpack.c.b16 %v7110, %v7094
    %v8231 = vpack.c.b16 %v7111, %v7095
    %v8232 = vpack.c.b16 %v7112, %v7096
    %v8233 = vpack.c.b16 %v7113, %v7097
    %v8234 = vpack.c.b16 %v7114, %v7098
    %v8235 = vpack.c.b16 %v7115, %v7099
    %v8236 = vpack.c.b16 %v7116, %v7100
    %v8237 = vpack.c.b16 %v7133, %v7117
    %v8238 = vpack.c.b16 %v7134, %v7118
    %v8239 = vpack.c.b16 %v7135, %v7119
    %v8240 = vpack.c.b16 %v7136, %v7120
    %v8241 = vpack.c.b16 %v7137, %v7121
    %v8242 = vpack.c.b16 %v7138, %v7122
    %v8243 = vpack.c.b16 %v7139, %v7123
    %v8244 = vpack.c.b16 %v7140, %v7124
    %v8245 = vpack.c.b16 %v7141, %v7125
    %v8246 = vpack.c.b16 %v7142, %v7126
    %v8247 = vpack.c.b16 %v7143, %v7127
    %v8248 = vpack.c.b16 %v7144, %v7128
    %v8249 = vpack.c.b16 %v7145, %v7129
    %v8250 = vpack.c.b16 %v7146, %v7130
    %v8251 = vpack.c.b16 %v7147, %v7131
    %v8252 = vpack.c.b16 %v7148, %v7132
    %v8253 = vpack.c.b16 %v7165, %v7149
    %v8254 = vpack.c.b16 %v7166, %v7150
    %v8255 = vpack.c.b16 %v7167, %v7151
    %v8256 = vpack.c.b16 %v7168, %v7152
    %v8257 = vpack.c.b16 %v7169, %v7153
    %v8258 = vpack.c.b16 %v7170, %v7154
    %v8259 = vpack.c.b16 %v7171, %v7155
    %v8260 = vpack.c.b16 %v7172, %v7156
    %v8261 = vpack.c.b16 %v7173, %v7157
    %v8262 = vpack.c.b16 %v7174, %v7158
    %v8263 = vpack.c.b16 %v7175, %v7159
    %v8264 = vpack.c.b16 %v7176, %v7160
    %v8265 = vpack.c.b16 %v7177, %v7161
    %v8266 = vpack.c.b16 %v7178, %v7162
    %v8267 = vpack.c.b16 %v7179, %v7163
    %v8268 = vpack.c.b16 %v7180, %v7164
    %v8269 = vpack.c.b16 %v7197, %v7181
    %v8270 = vpack.c.b16 %v7198, %v7182
    %v8271 = vpack.c.b16 %v7199, %v7183
    %v8272 = vpack.c.b16 %v7200, %v7184
    %v8273 = vpack.c.b16 %v7201, %v7185
    %v8274 = vpack.c.b16 %v7202, %v7186
    %v8275 = vpack.c.b16 %v7203, %v7187
    %v8276 = vpack.c.b16 %v7204, %v7188
    %v8277 = vpack.c.b16 %v7205, %v7189
    %v8278 = vpack.c.b16 %v7206, %v7190
    %v8279 = vpack.c.b16 %v7207, %v7191
    %v8280 = vpack.c.b16 %v7208, %v7192
    %v8281 = vpack.c.b16 %v7209, %v7193
    %v8282 = vpack.c.b16 %v7210, %v7194
    %v8283 = vpack.c.b16 %v7211, %v7195
    %v8284 = vpack.c.b16 %v7212, %v7196
    %v8285 = vpack.c.b16 %v7229, %v7213
    %v8286 = vpack.c.b16 %v7230, %v7214
    %v8287 = vpack.c.b16 %v7231, %v7215
    %v8288 = vpack.c.b16 %v7232, %v7216
    %v8289 = vpack.c.b16 %v7233, %v7217
    %v8290 = vpack.c.b16 %v7234, %v7218
    %v8291 = vpack.c.b16 %v7235, %v7219
    %v8292 = vpack.c.b16 %v7236, %v7220
    %v8293 = vpack.c.b16 %v7237, %v7221
    %v8294 = vpack.c.b16 %v7238, %v7222
    %v8295 = vpack.c.b16 %v7239, %v7223
    %v8296 = vpack.c.b16 %v7240, %v7224
    %v8297 = vpack.c.b16 %v7241, %v7225
    %v8298 = vpack.c.b16 %v7242, %v7226
    %v8299 = vpack.c.b16 %v7243, %v7227
    %v8300 = vpack.c.b16 %v7244, %v7228
    %v8301 = vpack.c.b16 %v7261, %v7245
    %v8302 = vpack.c.b16 %v7262, %v7246
    %v8303 = vpack.c.b16 %v7263, %v7247
    %v8304 = vpack.c.b16 %v7264, %v7248
    %v8305 = vpack.c.b16 %v7265, %v7249
    %v8306 = vpack.c.b16 %v7266, %v7250
    %v8307 = vpack.c.b16 %v7267, %v7251
    %v8308 = vpack.c.b16 %v7268, %v7252
    %v8309 = vpack.c.b16 %v7269, %v7253
    %v8310 = vpack.c.b16 %v7270, %v7254
    %v8311 = vpack.c.b16 %v7271, %v7255
    %v8312 = vpack.c.b16 %v7272, %v7256
    %v8313 = vpack.c.b16 %v7273, %v7257
    %v8314 = vpack.c.b16 %v7274, %v7258
    %v8315 = vpack.c.b16 %v7275, %v7259
    %v8316 = vpack.c.b16 %v7276, %v7260
    %v8317 = vpack.c.b16 %v7293, %v7277
    %v8318 = vpack.c.b16 %v7294, %v7278
    %v8319 = vpack.c.b16 %v7295, %v7279
    %v8320 = vpack.c.b16 %v7296, %v7280
    %v8321 = vpack.c.b16 %v7297, %v7281
    %v8322 = vpack.c.b16 %v7298, %v7282
    %v8323 = vpack.c.b16 %v7299, %v7283
    %v8324 = vpack.c.b16 %v7300, %v7284
    %v8325 = vpack.c.b16 %v7301, %v7285
    %v8326 = vpack.c.b16 %v7302, %v7286
    %v8327 = vpack.c.b16 %v7303, %v7287
    %v8328 = vpack.c.b16 %v7304, %v7288
    %v8329 = vpack.c.b16 %v7305, %v7289
    %v8330 = vpack.c.b16 %v7306, %v7290
    %v8331 = vpack.c.b16 %v7307, %v7291
    %v8332 = vpack.c.b16 %v7308, %v7292
    %9357 = vmatpush.bf16.msra.mxu0 %v7421
    %9358 = vmatpush.bf16.msra.mxu0 %v7405
    %9359 = vmatpush.bf16.msra.mxu0 %v7389
    %9360 = vmatpush.bf16.msra.mxu0 %v7373
    %9361 = vmatpush.bf16.msra.mxu0 %v7357
    %9362 = vmatpush.bf16.msra.mxu0 %v7341
    %9363 = vmatpush.bf16.msra.mxu0 %v7325
    %9364 = vmatpush.bf16.msra.mxu0 %v7309
    %9365 = vmatmul.bf16.gmra.mxu0 %v4193
    %v9366 = vpop.f32.mrf.mxu0
    %v9367 = vadd.f32 %v4205, %v9366
    %v9368 = vpop.f32.mrf.mxu0
    %9369 = vdwg.mxu0
    %9370 = vmatpush.bf16.msra.mxu0 %v7549
    %9371 = vmatpush.bf16.msra.mxu0 %v7533
    %9372 = vmatpush.bf16.msra.mxu0 %v7517
    %9373 = vmatpush.bf16.msra.mxu0 %v7501
    %9374 = vmatpush.bf16.msra.mxu0 %v7485
    %9375 = vmatpush.bf16.msra.mxu0 %v7469
    %9376 = vmatpush.bf16.msra.mxu0 %v7453
    %9377 = vmatpush.bf16.msra.mxu0 %v7437
    %9378 = vmatmul.bf16.gmra.mxu0 %v4194
    %v9379 = vpop.f32.mrf.mxu0
    %v9380 = vadd.f32 %v9367, %v9379
    %v9381 = vpop.f32.mrf.mxu0
    %9382 = vdwg.mxu0
    %9383 = vmatpush.bf16.msra.mxu0 %v7677
    %9384 = vmatpush.bf16.msra.mxu0 %v7661
    %9385 = vmatpush.bf16.msra.mxu0 %v7645
    %9386 = vmatpush.bf16.msra.mxu0 %v7629
    %9387 = vmatpush.bf16.msra.mxu0 %v7613
    %9388 = vmatpush.bf16.msra.mxu0 %v7597
    %9389 = vmatpush.bf16.msra.mxu0 %v7581
    %9390 = vmatpush.bf16.msra.mxu0 %v7565
    %9391 = vmatmul.bf16.gmra.mxu0 %v4195
    %v9392 = vpop.f32.mrf.mxu0
    %v9393 = vadd.f32 %v9380, %v9392
    %v9394 = vpop.f32.mrf.mxu0
    %9395 = vdwg.mxu0
    %9396 = vmatpush.bf16.msra.mxu0 %v7805
    %9397 = vmatpush.bf16.msra.mxu0 %v7789
    %9398 = vmatpush.bf16.msra.mxu0 %v7773
    %9399 = vmatpush.bf16.msra.mxu0 %v7757
    %9400 = vmatpush.bf16.msra.mxu0 %v7741
    %9401 = vmatpush.bf16.msra.mxu0 %v7725
    %9402 = vmatpush.bf16.msra.mxu0 %v7709
    %9403 = vmatpush.bf16.msra.mxu0 %v7693
    %9404 = vmatmul.bf16.gmra.mxu0 %v4196
    %v9405 = vpop.f32.mrf.mxu0
    %v9406 = vadd.f32 %v9393, %v9405
    %v9407 = vpop.f32.mrf.mxu0
    %9408 = vdwg.mxu0
    %9409 = vmatpush.bf16.msra.mxu0 %v7933
    %9410 = vmatpush.bf16.msra.mxu0 %v7917
    %9411 = vmatpush.bf16.msra.mxu0 %v7901
    %9412 = vmatpush.bf16.msra.mxu0 %v7885
    %9413 = vmatpush.bf16.msra.mxu0 %v7869
    %9414 = vmatpush.bf16.msra.mxu0 %v7853
    %9415 = vmatpush.bf16.msra.mxu0 %v7837
    %9416 = vmatpush.bf16.msra.mxu0 %v7821
    %9417 = vmatmul.bf16.gmra.mxu0 %v4197
    %v9418 = vpop.f32.mrf.mxu0
    %v9419 = vadd.f32 %v9406, %v9418
    %v9420 = vpop.f32.mrf.mxu0
    %9421 = vdwg.mxu0
    %9422 = vmatpush.bf16.msra.mxu0 %v8061
    %9423 = vmatpush.bf16.msra.mxu0 %v8045
    %9424 = vmatpush.bf16.msra.mxu0 %v8029
    %9425 = vmatpush.bf16.msra.mxu0 %v8013
    %9426 = vmatpush.bf16.msra.mxu0 %v7997
    %9427 = vmatpush.bf16.msra.mxu0 %v7981
    %9428 = vmatpush.bf16.msra.mxu0 %v7965
    %9429 = vmatpush.bf16.msra.mxu0 %v7949
    %9430 = vmatmul.bf16.gmra.mxu0 %v4198
    %v9431 = vpop.f32.mrf.mxu0
    %v9432 = vadd.f32 %v9419, %v9431
    %v9433 = vpop.f32.mrf.mxu0
    %9434 = vdwg.mxu0
    %9435 = vmatpush.bf16.msra.mxu0 %v8189
    %9436 = vmatpush.bf16.msra.mxu0 %v8173
    %9437 = vmatpush.bf16.msra.mxu0 %v8157
    %9438 = vmatpush.bf16.msra.mxu0 %v8141
    %9439 = vmatpush.bf16.msra.mxu0 %v8125
    %9440 = vmatpush.bf16.msra.mxu0 %v8109
    %9441 = vmatpush.bf16.msra.mxu0 %v8093
    %9442 = vmatpush.bf16.msra.mxu0 %v8077
    %9443 = vmatmul.bf16.gmra.mxu0 %v4199
    %v9444 = vpop.f32.mrf.mxu0
    %v9445 = vadd.f32 %v9432, %v9444
    %v9446 = vpop.f32.mrf.mxu0
    %9447 = vdwg.mxu0
    %9448 = vmatpush.bf16.msra.mxu0 %v8317
    %9449 = vmatpush.bf16.msra.mxu0 %v8301
    %9450 = vmatpush.bf16.msra.mxu0 %v8285
    %9451 = vmatpush.bf16.msra.mxu0 %v8269
    %9452 = vmatpush.bf16.msra.mxu0 %v8253
    %9453 = vmatpush.bf16.msra.mxu0 %v8237
    %9454 = vmatpush.bf16.msra.mxu0 %v8221
    %9455 = vmatpush.bf16.msra.mxu0 %v8205
    %9456 = vmatmul.bf16.gmra.mxu0 %v4200
    %v9457 = vpop.f32.mrf.mxu0
    %v9458 = vadd.f32 %v9445, %v9457
    %v9459 = vpop.f32.mrf.mxu0
    %9460 = vdwg.mxu0
    %9461 = vmatpush.bf16.msra.mxu0 %v7422
    %9462 = vmatpush.bf16.msra.mxu0 %v7406
    %9463 = vmatpush.bf16.msra.mxu0 %v7390
    %9464 = vmatpush.bf16.msra.mxu0 %v7374
    %9465 = vmatpush.bf16.msra.mxu0 %v7358
    %9466 = vmatpush.bf16.msra.mxu0 %v7342
    %9467 = vmatpush.bf16.msra.mxu0 %v7326
    %9468 = vmatpush.bf16.msra.mxu0 %v7310
    %9469 = vmatmul.bf16.gmra.mxu0 %v4193
    %v9470 = vpop.f32.mrf.mxu0
    %v9471 = vadd.f32 %v4206, %v9470
    %v9472 = vpop.f32.mrf.mxu0
    %9473 = vdwg.mxu0
    %9474 = vmatpush.bf16.msra.mxu0 %v7550
    %9475 = vmatpush.bf16.msra.mxu0 %v7534
    %9476 = vmatpush.bf16.msra.mxu0 %v7518
    %9477 = vmatpush.bf16.msra.mxu0 %v7502
    %9478 = vmatpush.bf16.msra.mxu0 %v7486
    %9479 = vmatpush.bf16.msra.mxu0 %v7470
    %9480 = vmatpush.bf16.msra.mxu0 %v7454
    %9481 = vmatpush.bf16.msra.mxu0 %v7438
    %9482 = vmatmul.bf16.gmra.mxu0 %v4194
    %v9483 = vpop.f32.mrf.mxu0
    %v9484 = vadd.f32 %v9471, %v9483
    %v9485 = vpop.f32.mrf.mxu0
    %9486 = vdwg.mxu0
    %9487 = vmatpush.bf16.msra.mxu0 %v7678
    %9488 = vmatpush.bf16.msra.mxu0 %v7662
    %9489 = vmatpush.bf16.msra.mxu0 %v7646
    %9490 = vmatpush.bf16.msra.mxu0 %v7630
    %9491 = vmatpush.bf16.msra.mxu0 %v7614
    %9492 = vmatpush.bf16.msra.mxu0 %v7598
    %9493 = vmatpush.bf16.msra.mxu0 %v7582
    %9494 = vmatpush.bf16.msra.mxu0 %v7566
    %9495 = vmatmul.bf16.gmra.mxu0 %v4195
    %v9496 = vpop.f32.mrf.mxu0
    %v9497 = vadd.f32 %v9484, %v9496
    %v9498 = vpop.f32.mrf.mxu0
    %9499 = vdwg.mxu0
    %9500 = vmatpush.bf16.msra.mxu0 %v7806
    %9501 = vmatpush.bf16.msra.mxu0 %v7790
    %9502 = vmatpush.bf16.msra.mxu0 %v7774
    %9503 = vmatpush.bf16.msra.mxu0 %v7758
    %9504 = vmatpush.bf16.msra.mxu0 %v7742
    %9505 = vmatpush.bf16.msra.mxu0 %v7726
    %9506 = vmatpush.bf16.msra.mxu0 %v7710
    %9507 = vmatpush.bf16.msra.mxu0 %v7694
    %9508 = vmatmul.bf16.gmra.mxu0 %v4196
    %v9509 = vpop.f32.mrf.mxu0
    %v9510 = vadd.f32 %v9497, %v9509
    %v9511 = vpop.f32.mrf.mxu0
    %9512 = vdwg.mxu0
    %9513 = vmatpush.bf16.msra.mxu0 %v7934
    %9514 = vmatpush.bf16.msra.mxu0 %v7918
    %9515 = vmatpush.bf16.msra.mxu0 %v7902
    %9516 = vmatpush.bf16.msra.mxu0 %v7886
    %9517 = vmatpush.bf16.msra.mxu0 %v7870
    %9518 = vmatpush.bf16.msra.mxu0 %v7854
    %9519 = vmatpush.bf16.msra.mxu0 %v7838
    %9520 = vmatpush.bf16.msra.mxu0 %v7822
    %9521 = vmatmul.bf16.gmra.mxu0 %v4197
    %v9522 = vpop.f32.mrf.mxu0
    %v9523 = vadd.f32 %v9510, %v9522
    %v9524 = vpop.f32.mrf.mxu0
    %9525 = vdwg.mxu0
    %9526 = vmatpush.bf16.msra.mxu0 %v8062
    %9527 = vmatpush.bf16.msra.mxu0 %v8046
    %9528 = vmatpush.bf16.msra.mxu0 %v8030
    %9529 = vmatpush.bf16.msra.mxu0 %v8014
    %9530 = vmatpush.bf16.msra.mxu0 %v7998
    %9531 = vmatpush.bf16.msra.mxu0 %v7982
    %9532 = vmatpush.bf16.msra.mxu0 %v7966
    %9533 = vmatpush.bf16.msra.mxu0 %v7950
    %9534 = vmatmul.bf16.gmra.mxu0 %v4198
    %v9535 = vpop.f32.mrf.mxu0
    %v9536 = vadd.f32 %v9523, %v9535
    %v9537 = vpop.f32.mrf.mxu0
    %9538 = vdwg.mxu0
    %9539 = vmatpush.bf16.msra.mxu0 %v8190
    %9540 = vmatpush.bf16.msra.mxu0 %v8174
    %9541 = vmatpush.bf16.msra.mxu0 %v8158
    %9542 = vmatpush.bf16.msra.mxu0 %v8142
    %9543 = vmatpush.bf16.msra.mxu0 %v8126
    %9544 = vmatpush.bf16.msra.mxu0 %v8110
    %9545 = vmatpush.bf16.msra.mxu0 %v8094
    %9546 = vmatpush.bf16.msra.mxu0 %v8078
    %9547 = vmatmul.bf16.gmra.mxu0 %v4199
    %v9548 = vpop.f32.mrf.mxu0
    %v9549 = vadd.f32 %v9536, %v9548
    %v9550 = vpop.f32.mrf.mxu0
    %9551 = vdwg.mxu0
    %9552 = vmatpush.bf16.msra.mxu0 %v8318
    %9553 = vmatpush.bf16.msra.mxu0 %v8302
    %9554 = vmatpush.bf16.msra.mxu0 %v8286
    %9555 = vmatpush.bf16.msra.mxu0 %v8270
    %9556 = vmatpush.bf16.msra.mxu0 %v8254
    %9557 = vmatpush.bf16.msra.mxu0 %v8238
    %9558 = vmatpush.bf16.msra.mxu0 %v8222
    %9559 = vmatpush.bf16.msra.mxu0 %v8206
    %9560 = vmatmul.bf16.gmra.mxu0 %v4200
    %v9561 = vpop.f32.mrf.mxu0
    %v9562 = vadd.f32 %v9549, %v9561
    %v9563 = vpop.f32.mrf.mxu0
    %9564 = vdwg.mxu0
    %9565 = vmatpush.bf16.msra.mxu0 %v7423
    %9566 = vmatpush.bf16.msra.mxu0 %v7407
    %9567 = vmatpush.bf16.msra.mxu0 %v7391
    %9568 = vmatpush.bf16.msra.mxu0 %v7375
    %9569 = vmatpush.bf16.msra.mxu0 %v7359
    %9570 = vmatpush.bf16.msra.mxu0 %v7343
    %9571 = vmatpush.bf16.msra.mxu0 %v7327
    %9572 = vmatpush.bf16.msra.mxu0 %v7311
    %9573 = vmatmul.bf16.gmra.mxu0 %v4193
    %v9574 = vpop.f32.mrf.mxu0
    %v9575 = vadd.f32 %v4207, %v9574
    %v9576 = vpop.f32.mrf.mxu0
    %9577 = vdwg.mxu0
    %9578 = vmatpush.bf16.msra.mxu0 %v7551
    %9579 = vmatpush.bf16.msra.mxu0 %v7535
    %9580 = vmatpush.bf16.msra.mxu0 %v7519
    %9581 = vmatpush.bf16.msra.mxu0 %v7503
    %9582 = vmatpush.bf16.msra.mxu0 %v7487
    %9583 = vmatpush.bf16.msra.mxu0 %v7471
    %9584 = vmatpush.bf16.msra.mxu0 %v7455
    %9585 = vmatpush.bf16.msra.mxu0 %v7439
    %9586 = vmatmul.bf16.gmra.mxu0 %v4194
    %v9587 = vpop.f32.mrf.mxu0
    %v9588 = vadd.f32 %v9575, %v9587
    %v9589 = vpop.f32.mrf.mxu0
    %9590 = vdwg.mxu0
    %9591 = vmatpush.bf16.msra.mxu0 %v7679
    %9592 = vmatpush.bf16.msra.mxu0 %v7663
    %9593 = vmatpush.bf16.msra.mxu0 %v7647
    %9594 = vmatpush.bf16.msra.mxu0 %v7631
    %9595 = vmatpush.bf16.msra.mxu0 %v7615
    %9596 = vmatpush.bf16.msra.mxu0 %v7599
    %9597 = vmatpush.bf16.msra.mxu0 %v7583
    %9598 = vmatpush.bf16.msra.mxu0 %v7567
    %9599 = vmatmul.bf16.gmra.mxu0 %v4195
    %v9600 = vpop.f32.mrf.mxu0
    %v9601 = vadd.f32 %v9588, %v9600
    %v9602 = vpop.f32.mrf.mxu0
    %9603 = vdwg.mxu0
    %9604 = vmatpush.bf16.msra.mxu0 %v7807
    %9605 = vmatpush.bf16.msra.mxu0 %v7791
    %9606 = vmatpush.bf16.msra.mxu0 %v7775
    %9607 = vmatpush.bf16.msra.mxu0 %v7759
    %9608 = vmatpush.bf16.msra.mxu0 %v7743
    %9609 = vmatpush.bf16.msra.mxu0 %v7727
    %9610 = vmatpush.bf16.msra.mxu0 %v7711
    %9611 = vmatpush.bf16.msra.mxu0 %v7695
    %9612 = vmatmul.bf16.gmra.mxu0 %v4196
    %v9613 = vpop.f32.mrf.mxu0
    %v9614 = vadd.f32 %v9601, %v9613
    %v9615 = vpop.f32.mrf.mxu0
    %9616 = vdwg.mxu0
    %9617 = vmatpush.bf16.msra.mxu0 %v7935
    %9618 = vmatpush.bf16.msra.mxu0 %v7919
    %9619 = vmatpush.bf16.msra.mxu0 %v7903
    %9620 = vmatpush.bf16.msra.mxu0 %v7887
    %9621 = vmatpush.bf16.msra.mxu0 %v7871
    %9622 = vmatpush.bf16.msra.mxu0 %v7855
    %9623 = vmatpush.bf16.msra.mxu0 %v7839
    %9624 = vmatpush.bf16.msra.mxu0 %v7823
    %9625 = vmatmul.bf16.gmra.mxu0 %v4197
    %v9626 = vpop.f32.mrf.mxu0
    %v9627 = vadd.f32 %v9614, %v9626
    %v9628 = vpop.f32.mrf.mxu0
    %9629 = vdwg.mxu0
    %9630 = vmatpush.bf16.msra.mxu0 %v8063
    %9631 = vmatpush.bf16.msra.mxu0 %v8047
    %9632 = vmatpush.bf16.msra.mxu0 %v8031
    %9633 = vmatpush.bf16.msra.mxu0 %v8015
    %9634 = vmatpush.bf16.msra.mxu0 %v7999
    %9635 = vmatpush.bf16.msra.mxu0 %v7983
    %9636 = vmatpush.bf16.msra.mxu0 %v7967
    %9637 = vmatpush.bf16.msra.mxu0 %v7951
    %9638 = vmatmul.bf16.gmra.mxu0 %v4198
    %v9639 = vpop.f32.mrf.mxu0
    %v9640 = vadd.f32 %v9627, %v9639
    %v9641 = vpop.f32.mrf.mxu0
    %9642 = vdwg.mxu0
    %9643 = vmatpush.bf16.msra.mxu0 %v8191
    %9644 = vmatpush.bf16.msra.mxu0 %v8175
    %9645 = vmatpush.bf16.msra.mxu0 %v8159
    %9646 = vmatpush.bf16.msra.mxu0 %v8143
    %9647 = vmatpush.bf16.msra.mxu0 %v8127
    %9648 = vmatpush.bf16.msra.mxu0 %v8111
    %9649 = vmatpush.bf16.msra.mxu0 %v8095
    %9650 = vmatpush.bf16.msra.mxu0 %v8079
    %9651 = vmatmul.bf16.gmra.mxu0 %v4199
    %v9652 = vpop.f32.mrf.mxu0
    %v9653 = vadd.f32 %v9640, %v9652
    %v9654 = vpop.f32.mrf.mxu0
    %9655 = vdwg.mxu0
    %9656 = vmatpush.bf16.msra.mxu0 %v8319
    %9657 = vmatpush.bf16.msra.mxu0 %v8303
    %9658 = vmatpush.bf16.msra.mxu0 %v8287
    %9659 = vmatpush.bf16.msra.mxu0 %v8271
    %9660 = vmatpush.bf16.msra.mxu0 %v8255
    %9661 = vmatpush.bf16.msra.mxu0 %v8239
    %9662 = vmatpush.bf16.msra.mxu0 %v8223
    %9663 = vmatpush.bf16.msra.mxu0 %v8207
    %9664 = vmatmul.bf16.gmra.mxu0 %v4200
    %v9665 = vpop.f32.mrf.mxu0
    %v9666 = vadd.f32 %v9653, %v9665
    %v9667 = vpop.f32.mrf.mxu0
    %9668 = vdwg.mxu0
    %9669 = vmatpush.bf16.msra.mxu0 %v7424
    %9670 = vmatpush.bf16.msra.mxu0 %v7408
    %9671 = vmatpush.bf16.msra.mxu0 %v7392
    %9672 = vmatpush.bf16.msra.mxu0 %v7376
    %9673 = vmatpush.bf16.msra.mxu0 %v7360
    %9674 = vmatpush.bf16.msra.mxu0 %v7344
    %9675 = vmatpush.bf16.msra.mxu0 %v7328
    %9676 = vmatpush.bf16.msra.mxu0 %v7312
    %9677 = vmatmul.bf16.gmra.mxu0 %v4193
    %v9678 = vpop.f32.mrf.mxu0
    %v9679 = vadd.f32 %v4208, %v9678
    %v9680 = vpop.f32.mrf.mxu0
    %9681 = vdwg.mxu0
    %9682 = vmatpush.bf16.msra.mxu0 %v7552
    %9683 = vmatpush.bf16.msra.mxu0 %v7536
    %9684 = vmatpush.bf16.msra.mxu0 %v7520
    %9685 = vmatpush.bf16.msra.mxu0 %v7504
    %9686 = vmatpush.bf16.msra.mxu0 %v7488
    %9687 = vmatpush.bf16.msra.mxu0 %v7472
    %9688 = vmatpush.bf16.msra.mxu0 %v7456
    %9689 = vmatpush.bf16.msra.mxu0 %v7440
    %9690 = vmatmul.bf16.gmra.mxu0 %v4194
    %v9691 = vpop.f32.mrf.mxu0
    %v9692 = vadd.f32 %v9679, %v9691
    %v9693 = vpop.f32.mrf.mxu0
    %9694 = vdwg.mxu0
    %9695 = vmatpush.bf16.msra.mxu0 %v7680
    %9696 = vmatpush.bf16.msra.mxu0 %v7664
    %9697 = vmatpush.bf16.msra.mxu0 %v7648
    %9698 = vmatpush.bf16.msra.mxu0 %v7632
    %9699 = vmatpush.bf16.msra.mxu0 %v7616
    %9700 = vmatpush.bf16.msra.mxu0 %v7600
    %9701 = vmatpush.bf16.msra.mxu0 %v7584
    %9702 = vmatpush.bf16.msra.mxu0 %v7568
    %9703 = vmatmul.bf16.gmra.mxu0 %v4195
    %v9704 = vpop.f32.mrf.mxu0
    %v9705 = vadd.f32 %v9692, %v9704
    %v9706 = vpop.f32.mrf.mxu0
    %9707 = vdwg.mxu0
    %9708 = vmatpush.bf16.msra.mxu0 %v7808
    %9709 = vmatpush.bf16.msra.mxu0 %v7792
    %9710 = vmatpush.bf16.msra.mxu0 %v7776
    %9711 = vmatpush.bf16.msra.mxu0 %v7760
    %9712 = vmatpush.bf16.msra.mxu0 %v7744
    %9713 = vmatpush.bf16.msra.mxu0 %v7728
    %9714 = vmatpush.bf16.msra.mxu0 %v7712
    %9715 = vmatpush.bf16.msra.mxu0 %v7696
    %9716 = vmatmul.bf16.gmra.mxu0 %v4196
    %v9717 = vpop.f32.mrf.mxu0
    %v9718 = vadd.f32 %v9705, %v9717
    %v9719 = vpop.f32.mrf.mxu0
    %9720 = vdwg.mxu0
    %9721 = vmatpush.bf16.msra.mxu0 %v7936
    %9722 = vmatpush.bf16.msra.mxu0 %v7920
    %9723 = vmatpush.bf16.msra.mxu0 %v7904
    %9724 = vmatpush.bf16.msra.mxu0 %v7888
    %9725 = vmatpush.bf16.msra.mxu0 %v7872
    %9726 = vmatpush.bf16.msra.mxu0 %v7856
    %9727 = vmatpush.bf16.msra.mxu0 %v7840
    %9728 = vmatpush.bf16.msra.mxu0 %v7824
    %9729 = vmatmul.bf16.gmra.mxu0 %v4197
    %v9730 = vpop.f32.mrf.mxu0
    %v9731 = vadd.f32 %v9718, %v9730
    %v9732 = vpop.f32.mrf.mxu0
    %9733 = vdwg.mxu0
    %9734 = vmatpush.bf16.msra.mxu0 %v8064
    %9735 = vmatpush.bf16.msra.mxu0 %v8048
    %9736 = vmatpush.bf16.msra.mxu0 %v8032
    %9737 = vmatpush.bf16.msra.mxu0 %v8016
    %9738 = vmatpush.bf16.msra.mxu0 %v8000
    %9739 = vmatpush.bf16.msra.mxu0 %v7984
    %9740 = vmatpush.bf16.msra.mxu0 %v7968
    %9741 = vmatpush.bf16.msra.mxu0 %v7952
    %9742 = vmatmul.bf16.gmra.mxu0 %v4198
    %v9743 = vpop.f32.mrf.mxu0
    %v9744 = vadd.f32 %v9731, %v9743
    %v9745 = vpop.f32.mrf.mxu0
    %9746 = vdwg.mxu0
    %9747 = vmatpush.bf16.msra.mxu0 %v8192
    %9748 = vmatpush.bf16.msra.mxu0 %v8176
    %9749 = vmatpush.bf16.msra.mxu0 %v8160
    %9750 = vmatpush.bf16.msra.mxu0 %v8144
    %9751 = vmatpush.bf16.msra.mxu0 %v8128
    %9752 = vmatpush.bf16.msra.mxu0 %v8112
    %9753 = vmatpush.bf16.msra.mxu0 %v8096
    %9754 = vmatpush.bf16.msra.mxu0 %v8080
    %9755 = vmatmul.bf16.gmra.mxu0 %v4199
    %v9756 = vpop.f32.mrf.mxu0
    %v9757 = vadd.f32 %v9744, %v9756
    %v9758 = vpop.f32.mrf.mxu0
    %9759 = vdwg.mxu0
    %9760 = vmatpush.bf16.msra.mxu0 %v8320
    %9761 = vmatpush.bf16.msra.mxu0 %v8304
    %9762 = vmatpush.bf16.msra.mxu0 %v8288
    %9763 = vmatpush.bf16.msra.mxu0 %v8272
    %9764 = vmatpush.bf16.msra.mxu0 %v8256
    %9765 = vmatpush.bf16.msra.mxu0 %v8240
    %9766 = vmatpush.bf16.msra.mxu0 %v8224
    %9767 = vmatpush.bf16.msra.mxu0 %v8208
    %9768 = vmatmul.bf16.gmra.mxu0 %v4200
    %v9769 = vpop.f32.mrf.mxu0
    %v9770 = vadd.f32 %v9757, %v9769
    %v9771 = vpop.f32.mrf.mxu0
    %9772 = vdwg.mxu0
    %9773 = vmatpush.bf16.msra.mxu0 %v7425
    %9774 = vmatpush.bf16.msra.mxu0 %v7409
    %9775 = vmatpush.bf16.msra.mxu0 %v7393
    %9776 = vmatpush.bf16.msra.mxu0 %v7377
    %9777 = vmatpush.bf16.msra.mxu0 %v7361
    %9778 = vmatpush.bf16.msra.mxu0 %v7345
    %9779 = vmatpush.bf16.msra.mxu0 %v7329
    %9780 = vmatpush.bf16.msra.mxu0 %v7313
    %9781 = vmatmul.bf16.gmra.mxu0 %v4193
    %v9782 = vpop.f32.mrf.mxu0
    %v9783 = vadd.f32 %v4209, %v9782
    %v9784 = vpop.f32.mrf.mxu0
    %9785 = vdwg.mxu0
    %9786 = vmatpush.bf16.msra.mxu0 %v7553
    %9787 = vmatpush.bf16.msra.mxu0 %v7537
    %9788 = vmatpush.bf16.msra.mxu0 %v7521
    %9789 = vmatpush.bf16.msra.mxu0 %v7505
    %9790 = vmatpush.bf16.msra.mxu0 %v7489
    %9791 = vmatpush.bf16.msra.mxu0 %v7473
    %9792 = vmatpush.bf16.msra.mxu0 %v7457
    %9793 = vmatpush.bf16.msra.mxu0 %v7441
    %9794 = vmatmul.bf16.gmra.mxu0 %v4194
    %v9795 = vpop.f32.mrf.mxu0
    %v9796 = vadd.f32 %v9783, %v9795
    %v9797 = vpop.f32.mrf.mxu0
    %9798 = vdwg.mxu0
    %9799 = vmatpush.bf16.msra.mxu0 %v7681
    %9800 = vmatpush.bf16.msra.mxu0 %v7665
    %9801 = vmatpush.bf16.msra.mxu0 %v7649
    %9802 = vmatpush.bf16.msra.mxu0 %v7633
    %9803 = vmatpush.bf16.msra.mxu0 %v7617
    %9804 = vmatpush.bf16.msra.mxu0 %v7601
    %9805 = vmatpush.bf16.msra.mxu0 %v7585
    %9806 = vmatpush.bf16.msra.mxu0 %v7569
    %9807 = vmatmul.bf16.gmra.mxu0 %v4195
    %v9808 = vpop.f32.mrf.mxu0
    %v9809 = vadd.f32 %v9796, %v9808
    %v9810 = vpop.f32.mrf.mxu0
    %9811 = vdwg.mxu0
    %9812 = vmatpush.bf16.msra.mxu0 %v7809
    %9813 = vmatpush.bf16.msra.mxu0 %v7793
    %9814 = vmatpush.bf16.msra.mxu0 %v7777
    %9815 = vmatpush.bf16.msra.mxu0 %v7761
    %9816 = vmatpush.bf16.msra.mxu0 %v7745
    %9817 = vmatpush.bf16.msra.mxu0 %v7729
    %9818 = vmatpush.bf16.msra.mxu0 %v7713
    %9819 = vmatpush.bf16.msra.mxu0 %v7697
    %9820 = vmatmul.bf16.gmra.mxu0 %v4196
    %v9821 = vpop.f32.mrf.mxu0
    %v9822 = vadd.f32 %v9809, %v9821
    %v9823 = vpop.f32.mrf.mxu0
    %9824 = vdwg.mxu0
    %9825 = vmatpush.bf16.msra.mxu0 %v7937
    %9826 = vmatpush.bf16.msra.mxu0 %v7921
    %9827 = vmatpush.bf16.msra.mxu0 %v7905
    %9828 = vmatpush.bf16.msra.mxu0 %v7889
    %9829 = vmatpush.bf16.msra.mxu0 %v7873
    %9830 = vmatpush.bf16.msra.mxu0 %v7857
    %9831 = vmatpush.bf16.msra.mxu0 %v7841
    %9832 = vmatpush.bf16.msra.mxu0 %v7825
    %9833 = vmatmul.bf16.gmra.mxu0 %v4197
    %v9834 = vpop.f32.mrf.mxu0
    %v9835 = vadd.f32 %v9822, %v9834
    %v9836 = vpop.f32.mrf.mxu0
    %9837 = vdwg.mxu0
    %9838 = vmatpush.bf16.msra.mxu0 %v8065
    %9839 = vmatpush.bf16.msra.mxu0 %v8049
    %9840 = vmatpush.bf16.msra.mxu0 %v8033
    %9841 = vmatpush.bf16.msra.mxu0 %v8017
    %9842 = vmatpush.bf16.msra.mxu0 %v8001
    %9843 = vmatpush.bf16.msra.mxu0 %v7985
    %9844 = vmatpush.bf16.msra.mxu0 %v7969
    %9845 = vmatpush.bf16.msra.mxu0 %v7953
    %9846 = vmatmul.bf16.gmra.mxu0 %v4198
    %v9847 = vpop.f32.mrf.mxu0
    %v9848 = vadd.f32 %v9835, %v9847
    %v9849 = vpop.f32.mrf.mxu0
    %9850 = vdwg.mxu0
    %9851 = vmatpush.bf16.msra.mxu0 %v8193
    %9852 = vmatpush.bf16.msra.mxu0 %v8177
    %9853 = vmatpush.bf16.msra.mxu0 %v8161
    %9854 = vmatpush.bf16.msra.mxu0 %v8145
    %9855 = vmatpush.bf16.msra.mxu0 %v8129
    %9856 = vmatpush.bf16.msra.mxu0 %v8113
    %9857 = vmatpush.bf16.msra.mxu0 %v8097
    %9858 = vmatpush.bf16.msra.mxu0 %v8081
    %9859 = vmatmul.bf16.gmra.mxu0 %v4199
    %v9860 = vpop.f32.mrf.mxu0
    %v9861 = vadd.f32 %v9848, %v9860
    %v9862 = vpop.f32.mrf.mxu0
    %9863 = vdwg.mxu0
    %9864 = vmatpush.bf16.msra.mxu0 %v8321
    %9865 = vmatpush.bf16.msra.mxu0 %v8305
    %9866 = vmatpush.bf16.msra.mxu0 %v8289
    %9867 = vmatpush.bf16.msra.mxu0 %v8273
    %9868 = vmatpush.bf16.msra.mxu0 %v8257
    %9869 = vmatpush.bf16.msra.mxu0 %v8241
    %9870 = vmatpush.bf16.msra.mxu0 %v8225
    %9871 = vmatpush.bf16.msra.mxu0 %v8209
    %9872 = vmatmul.bf16.gmra.mxu0 %v4200
    %v9873 = vpop.f32.mrf.mxu0
    %v9874 = vadd.f32 %v9861, %v9873
    %v9875 = vpop.f32.mrf.mxu0
    %9876 = vdwg.mxu0
    %9877 = vmatpush.bf16.msra.mxu0 %v7426
    %9878 = vmatpush.bf16.msra.mxu0 %v7410
    %9879 = vmatpush.bf16.msra.mxu0 %v7394
    %9880 = vmatpush.bf16.msra.mxu0 %v7378
    %9881 = vmatpush.bf16.msra.mxu0 %v7362
    %9882 = vmatpush.bf16.msra.mxu0 %v7346
    %9883 = vmatpush.bf16.msra.mxu0 %v7330
    %9884 = vmatpush.bf16.msra.mxu0 %v7314
    %9885 = vmatmul.bf16.gmra.mxu0 %v4193
    %v9886 = vpop.f32.mrf.mxu0
    %v9887 = vadd.f32 %v4210, %v9886
    %v9888 = vpop.f32.mrf.mxu0
    %9889 = vdwg.mxu0
    %9890 = vmatpush.bf16.msra.mxu0 %v7554
    %9891 = vmatpush.bf16.msra.mxu0 %v7538
    %9892 = vmatpush.bf16.msra.mxu0 %v7522
    %9893 = vmatpush.bf16.msra.mxu0 %v7506
    %9894 = vmatpush.bf16.msra.mxu0 %v7490
    %9895 = vmatpush.bf16.msra.mxu0 %v7474
    %9896 = vmatpush.bf16.msra.mxu0 %v7458
    %9897 = vmatpush.bf16.msra.mxu0 %v7442
    %9898 = vmatmul.bf16.gmra.mxu0 %v4194
    %v9899 = vpop.f32.mrf.mxu0
    %v9900 = vadd.f32 %v9887, %v9899
    %v9901 = vpop.f32.mrf.mxu0
    %9902 = vdwg.mxu0
    %9903 = vmatpush.bf16.msra.mxu0 %v7682
    %9904 = vmatpush.bf16.msra.mxu0 %v7666
    %9905 = vmatpush.bf16.msra.mxu0 %v7650
    %9906 = vmatpush.bf16.msra.mxu0 %v7634
    %9907 = vmatpush.bf16.msra.mxu0 %v7618
    %9908 = vmatpush.bf16.msra.mxu0 %v7602
    %9909 = vmatpush.bf16.msra.mxu0 %v7586
    %9910 = vmatpush.bf16.msra.mxu0 %v7570
    %9911 = vmatmul.bf16.gmra.mxu0 %v4195
    %v9912 = vpop.f32.mrf.mxu0
    %v9913 = vadd.f32 %v9900, %v9912
    %v9914 = vpop.f32.mrf.mxu0
    %9915 = vdwg.mxu0
    %9916 = vmatpush.bf16.msra.mxu0 %v7810
    %9917 = vmatpush.bf16.msra.mxu0 %v7794
    %9918 = vmatpush.bf16.msra.mxu0 %v7778
    %9919 = vmatpush.bf16.msra.mxu0 %v7762
    %9920 = vmatpush.bf16.msra.mxu0 %v7746
    %9921 = vmatpush.bf16.msra.mxu0 %v7730
    %9922 = vmatpush.bf16.msra.mxu0 %v7714
    %9923 = vmatpush.bf16.msra.mxu0 %v7698
    %9924 = vmatmul.bf16.gmra.mxu0 %v4196
    %v9925 = vpop.f32.mrf.mxu0
    %v9926 = vadd.f32 %v9913, %v9925
    %v9927 = vpop.f32.mrf.mxu0
    %9928 = vdwg.mxu0
    %9929 = vmatpush.bf16.msra.mxu0 %v7938
    %9930 = vmatpush.bf16.msra.mxu0 %v7922
    %9931 = vmatpush.bf16.msra.mxu0 %v7906
    %9932 = vmatpush.bf16.msra.mxu0 %v7890
    %9933 = vmatpush.bf16.msra.mxu0 %v7874
    %9934 = vmatpush.bf16.msra.mxu0 %v7858
    %9935 = vmatpush.bf16.msra.mxu0 %v7842
    %9936 = vmatpush.bf16.msra.mxu0 %v7826
    %9937 = vmatmul.bf16.gmra.mxu0 %v4197
    %v9938 = vpop.f32.mrf.mxu0
    %v9939 = vadd.f32 %v9926, %v9938
    %v9940 = vpop.f32.mrf.mxu0
    %9941 = vdwg.mxu0
    %9942 = vmatpush.bf16.msra.mxu0 %v8066
    %9943 = vmatpush.bf16.msra.mxu0 %v8050
    %9944 = vmatpush.bf16.msra.mxu0 %v8034
    %9945 = vmatpush.bf16.msra.mxu0 %v8018
    %9946 = vmatpush.bf16.msra.mxu0 %v8002
    %9947 = vmatpush.bf16.msra.mxu0 %v7986
    %9948 = vmatpush.bf16.msra.mxu0 %v7970
    %9949 = vmatpush.bf16.msra.mxu0 %v7954
    %9950 = vmatmul.bf16.gmra.mxu0 %v4198
    %v9951 = vpop.f32.mrf.mxu0
    %v9952 = vadd.f32 %v9939, %v9951
    %v9953 = vpop.f32.mrf.mxu0
    %9954 = vdwg.mxu0
    %9955 = vmatpush.bf16.msra.mxu0 %v8194
    %9956 = vmatpush.bf16.msra.mxu0 %v8178
    %9957 = vmatpush.bf16.msra.mxu0 %v8162
    %9958 = vmatpush.bf16.msra.mxu0 %v8146
    %9959 = vmatpush.bf16.msra.mxu0 %v8130
    %9960 = vmatpush.bf16.msra.mxu0 %v8114
    %9961 = vmatpush.bf16.msra.mxu0 %v8098
    %9962 = vmatpush.bf16.msra.mxu0 %v8082
    %9963 = vmatmul.bf16.gmra.mxu0 %v4199
    %v9964 = vpop.f32.mrf.mxu0
    %v9965 = vadd.f32 %v9952, %v9964
    %v9966 = vpop.f32.mrf.mxu0
    %9967 = vdwg.mxu0
    %9968 = vmatpush.bf16.msra.mxu0 %v8322
    %9969 = vmatpush.bf16.msra.mxu0 %v8306
    %9970 = vmatpush.bf16.msra.mxu0 %v8290
    %9971 = vmatpush.bf16.msra.mxu0 %v8274
    %9972 = vmatpush.bf16.msra.mxu0 %v8258
    %9973 = vmatpush.bf16.msra.mxu0 %v8242
    %9974 = vmatpush.bf16.msra.mxu0 %v8226
    %9975 = vmatpush.bf16.msra.mxu0 %v8210
    %9976 = vmatmul.bf16.gmra.mxu0 %v4200
    %v9977 = vpop.f32.mrf.mxu0
    %v9978 = vadd.f32 %v9965, %v9977
    %v9979 = vpop.f32.mrf.mxu0
    %9980 = vdwg.mxu0
    %9981 = vmatpush.bf16.msra.mxu0 %v7427
    %9982 = vmatpush.bf16.msra.mxu0 %v7411
    %9983 = vmatpush.bf16.msra.mxu0 %v7395
    %9984 = vmatpush.bf16.msra.mxu0 %v7379
    %9985 = vmatpush.bf16.msra.mxu0 %v7363
    %9986 = vmatpush.bf16.msra.mxu0 %v7347
    %9987 = vmatpush.bf16.msra.mxu0 %v7331
    %9988 = vmatpush.bf16.msra.mxu0 %v7315
    %9989 = vmatmul.bf16.gmra.mxu0 %v4193
    %v9990 = vpop.f32.mrf.mxu0
    %v9991 = vadd.f32 %v4211, %v9990
    %v9992 = vpop.f32.mrf.mxu0
    %9993 = vdwg.mxu0
    %9994 = vmatpush.bf16.msra.mxu0 %v7555
    %9995 = vmatpush.bf16.msra.mxu0 %v7539
    %9996 = vmatpush.bf16.msra.mxu0 %v7523
    %9997 = vmatpush.bf16.msra.mxu0 %v7507
    %9998 = vmatpush.bf16.msra.mxu0 %v7491
    %9999 = vmatpush.bf16.msra.mxu0 %v7475
    %10000 = vmatpush.bf16.msra.mxu0 %v7459
    %10001 = vmatpush.bf16.msra.mxu0 %v7443
    %10002 = vmatmul.bf16.gmra.mxu0 %v4194
    %v10003 = vpop.f32.mrf.mxu0
    %v10004 = vadd.f32 %v9991, %v10003
    %v10005 = vpop.f32.mrf.mxu0
    %10006 = vdwg.mxu0
    %10007 = vmatpush.bf16.msra.mxu0 %v7683
    %10008 = vmatpush.bf16.msra.mxu0 %v7667
    %10009 = vmatpush.bf16.msra.mxu0 %v7651
    %10010 = vmatpush.bf16.msra.mxu0 %v7635
    %10011 = vmatpush.bf16.msra.mxu0 %v7619
    %10012 = vmatpush.bf16.msra.mxu0 %v7603
    %10013 = vmatpush.bf16.msra.mxu0 %v7587
    %10014 = vmatpush.bf16.msra.mxu0 %v7571
    %10015 = vmatmul.bf16.gmra.mxu0 %v4195
    %v10016 = vpop.f32.mrf.mxu0
    %v10017 = vadd.f32 %v10004, %v10016
    %v10018 = vpop.f32.mrf.mxu0
    %10019 = vdwg.mxu0
    %10020 = vmatpush.bf16.msra.mxu0 %v7811
    %10021 = vmatpush.bf16.msra.mxu0 %v7795
    %10022 = vmatpush.bf16.msra.mxu0 %v7779
    %10023 = vmatpush.bf16.msra.mxu0 %v7763
    %10024 = vmatpush.bf16.msra.mxu0 %v7747
    %10025 = vmatpush.bf16.msra.mxu0 %v7731
    %10026 = vmatpush.bf16.msra.mxu0 %v7715
    %10027 = vmatpush.bf16.msra.mxu0 %v7699
    %10028 = vmatmul.bf16.gmra.mxu0 %v4196
    %v10029 = vpop.f32.mrf.mxu0
    %v10030 = vadd.f32 %v10017, %v10029
    %v10031 = vpop.f32.mrf.mxu0
    %10032 = vdwg.mxu0
    %10033 = vmatpush.bf16.msra.mxu0 %v7939
    %10034 = vmatpush.bf16.msra.mxu0 %v7923
    %10035 = vmatpush.bf16.msra.mxu0 %v7907
    %10036 = vmatpush.bf16.msra.mxu0 %v7891
    %10037 = vmatpush.bf16.msra.mxu0 %v7875
    %10038 = vmatpush.bf16.msra.mxu0 %v7859
    %10039 = vmatpush.bf16.msra.mxu0 %v7843
    %10040 = vmatpush.bf16.msra.mxu0 %v7827
    %10041 = vmatmul.bf16.gmra.mxu0 %v4197
    %v10042 = vpop.f32.mrf.mxu0
    %v10043 = vadd.f32 %v10030, %v10042
    %v10044 = vpop.f32.mrf.mxu0
    %10045 = vdwg.mxu0
    %10046 = vmatpush.bf16.msra.mxu0 %v8067
    %10047 = vmatpush.bf16.msra.mxu0 %v8051
    %10048 = vmatpush.bf16.msra.mxu0 %v8035
    %10049 = vmatpush.bf16.msra.mxu0 %v8019
    %10050 = vmatpush.bf16.msra.mxu0 %v8003
    %10051 = vmatpush.bf16.msra.mxu0 %v7987
    %10052 = vmatpush.bf16.msra.mxu0 %v7971
    %10053 = vmatpush.bf16.msra.mxu0 %v7955
    %10054 = vmatmul.bf16.gmra.mxu0 %v4198
    %v10055 = vpop.f32.mrf.mxu0
    %v10056 = vadd.f32 %v10043, %v10055
    %v10057 = vpop.f32.mrf.mxu0
    %10058 = vdwg.mxu0
    %10059 = vmatpush.bf16.msra.mxu0 %v8195
    %10060 = vmatpush.bf16.msra.mxu0 %v8179
    %10061 = vmatpush.bf16.msra.mxu0 %v8163
    %10062 = vmatpush.bf16.msra.mxu0 %v8147
    %10063 = vmatpush.bf16.msra.mxu0 %v8131
    %10064 = vmatpush.bf16.msra.mxu0 %v8115
    %10065 = vmatpush.bf16.msra.mxu0 %v8099
    %10066 = vmatpush.bf16.msra.mxu0 %v8083
    %10067 = vmatmul.bf16.gmra.mxu0 %v4199
    %v10068 = vpop.f32.mrf.mxu0
    %v10069 = vadd.f32 %v10056, %v10068
    %v10070 = vpop.f32.mrf.mxu0
    %10071 = vdwg.mxu0
    %10072 = vmatpush.bf16.msra.mxu0 %v8323
    %10073 = vmatpush.bf16.msra.mxu0 %v8307
    %10074 = vmatpush.bf16.msra.mxu0 %v8291
    %10075 = vmatpush.bf16.msra.mxu0 %v8275
    %10076 = vmatpush.bf16.msra.mxu0 %v8259
    %10077 = vmatpush.bf16.msra.mxu0 %v8243
    %10078 = vmatpush.bf16.msra.mxu0 %v8227
    %10079 = vmatpush.bf16.msra.mxu0 %v8211
    %10080 = vmatmul.bf16.gmra.mxu0 %v4200
    %v10081 = vpop.f32.mrf.mxu0
    %v10082 = vadd.f32 %v10069, %v10081
    %v10083 = vpop.f32.mrf.mxu0
    %10084 = vdwg.mxu0
    %10085 = vmatpush.bf16.msra.mxu0 %v7428
    %10086 = vmatpush.bf16.msra.mxu0 %v7412
    %10087 = vmatpush.bf16.msra.mxu0 %v7396
    %10088 = vmatpush.bf16.msra.mxu0 %v7380
    %10089 = vmatpush.bf16.msra.mxu0 %v7364
    %10090 = vmatpush.bf16.msra.mxu0 %v7348
    %10091 = vmatpush.bf16.msra.mxu0 %v7332
    %10092 = vmatpush.bf16.msra.mxu0 %v7316
    %10093 = vmatmul.bf16.gmra.mxu0 %v4193
    %v10094 = vpop.f32.mrf.mxu0
    %v10095 = vadd.f32 %v4212, %v10094
    %v10096 = vpop.f32.mrf.mxu0
    %10097 = vdwg.mxu0
    %10098 = vmatpush.bf16.msra.mxu0 %v7556
    %10099 = vmatpush.bf16.msra.mxu0 %v7540
    %10100 = vmatpush.bf16.msra.mxu0 %v7524
    %10101 = vmatpush.bf16.msra.mxu0 %v7508
    %10102 = vmatpush.bf16.msra.mxu0 %v7492
    %10103 = vmatpush.bf16.msra.mxu0 %v7476
    %10104 = vmatpush.bf16.msra.mxu0 %v7460
    %10105 = vmatpush.bf16.msra.mxu0 %v7444
    %10106 = vmatmul.bf16.gmra.mxu0 %v4194
    %v10107 = vpop.f32.mrf.mxu0
    %v10108 = vadd.f32 %v10095, %v10107
    %v10109 = vpop.f32.mrf.mxu0
    %10110 = vdwg.mxu0
    %10111 = vmatpush.bf16.msra.mxu0 %v7684
    %10112 = vmatpush.bf16.msra.mxu0 %v7668
    %10113 = vmatpush.bf16.msra.mxu0 %v7652
    %10114 = vmatpush.bf16.msra.mxu0 %v7636
    %10115 = vmatpush.bf16.msra.mxu0 %v7620
    %10116 = vmatpush.bf16.msra.mxu0 %v7604
    %10117 = vmatpush.bf16.msra.mxu0 %v7588
    %10118 = vmatpush.bf16.msra.mxu0 %v7572
    %10119 = vmatmul.bf16.gmra.mxu0 %v4195
    %v10120 = vpop.f32.mrf.mxu0
    %v10121 = vadd.f32 %v10108, %v10120
    %v10122 = vpop.f32.mrf.mxu0
    %10123 = vdwg.mxu0
    %10124 = vmatpush.bf16.msra.mxu0 %v7812
    %10125 = vmatpush.bf16.msra.mxu0 %v7796
    %10126 = vmatpush.bf16.msra.mxu0 %v7780
    %10127 = vmatpush.bf16.msra.mxu0 %v7764
    %10128 = vmatpush.bf16.msra.mxu0 %v7748
    %10129 = vmatpush.bf16.msra.mxu0 %v7732
    %10130 = vmatpush.bf16.msra.mxu0 %v7716
    %10131 = vmatpush.bf16.msra.mxu0 %v7700
    %10132 = vmatmul.bf16.gmra.mxu0 %v4196
    %v10133 = vpop.f32.mrf.mxu0
    %v10134 = vadd.f32 %v10121, %v10133
    %v10135 = vpop.f32.mrf.mxu0
    %10136 = vdwg.mxu0
    %10137 = vmatpush.bf16.msra.mxu0 %v7940
    %10138 = vmatpush.bf16.msra.mxu0 %v7924
    %10139 = vmatpush.bf16.msra.mxu0 %v7908
    %10140 = vmatpush.bf16.msra.mxu0 %v7892
    %10141 = vmatpush.bf16.msra.mxu0 %v7876
    %10142 = vmatpush.bf16.msra.mxu0 %v7860
    %10143 = vmatpush.bf16.msra.mxu0 %v7844
    %10144 = vmatpush.bf16.msra.mxu0 %v7828
    %10145 = vmatmul.bf16.gmra.mxu0 %v4197
    %v10146 = vpop.f32.mrf.mxu0
    %v10147 = vadd.f32 %v10134, %v10146
    %v10148 = vpop.f32.mrf.mxu0
    %10149 = vdwg.mxu0
    %10150 = vmatpush.bf16.msra.mxu0 %v8068
    %10151 = vmatpush.bf16.msra.mxu0 %v8052
    %10152 = vmatpush.bf16.msra.mxu0 %v8036
    %10153 = vmatpush.bf16.msra.mxu0 %v8020
    %10154 = vmatpush.bf16.msra.mxu0 %v8004
    %10155 = vmatpush.bf16.msra.mxu0 %v7988
    %10156 = vmatpush.bf16.msra.mxu0 %v7972
    %10157 = vmatpush.bf16.msra.mxu0 %v7956
    %10158 = vmatmul.bf16.gmra.mxu0 %v4198
    %v10159 = vpop.f32.mrf.mxu0
    %v10160 = vadd.f32 %v10147, %v10159
    %v10161 = vpop.f32.mrf.mxu0
    %10162 = vdwg.mxu0
    %10163 = vmatpush.bf16.msra.mxu0 %v8196
    %10164 = vmatpush.bf16.msra.mxu0 %v8180
    %10165 = vmatpush.bf16.msra.mxu0 %v8164
    %10166 = vmatpush.bf16.msra.mxu0 %v8148
    %10167 = vmatpush.bf16.msra.mxu0 %v8132
    %10168 = vmatpush.bf16.msra.mxu0 %v8116
    %10169 = vmatpush.bf16.msra.mxu0 %v8100
    %10170 = vmatpush.bf16.msra.mxu0 %v8084
    %10171 = vmatmul.bf16.gmra.mxu0 %v4199
    %v10172 = vpop.f32.mrf.mxu0
    %v10173 = vadd.f32 %v10160, %v10172
    %v10174 = vpop.f32.mrf.mxu0
    %10175 = vdwg.mxu0
    %10176 = vmatpush.bf16.msra.mxu0 %v8324
    %10177 = vmatpush.bf16.msra.mxu0 %v8308
    %10178 = vmatpush.bf16.msra.mxu0 %v8292
    %10179 = vmatpush.bf16.msra.mxu0 %v8276
    %10180 = vmatpush.bf16.msra.mxu0 %v8260
    %10181 = vmatpush.bf16.msra.mxu0 %v8244
    %10182 = vmatpush.bf16.msra.mxu0 %v8228
    %10183 = vmatpush.bf16.msra.mxu0 %v8212
    %10184 = vmatmul.bf16.gmra.mxu0 %v4200
    %v10185 = vpop.f32.mrf.mxu0
    %v10186 = vadd.f32 %v10173, %v10185
    %v10187 = vpop.f32.mrf.mxu0
    %10188 = vdwg.mxu0
    %10189 = vmatpush.bf16.msra.mxu0 %v7429
    %10190 = vmatpush.bf16.msra.mxu0 %v7413
    %10191 = vmatpush.bf16.msra.mxu0 %v7397
    %10192 = vmatpush.bf16.msra.mxu0 %v7381
    %10193 = vmatpush.bf16.msra.mxu0 %v7365
    %10194 = vmatpush.bf16.msra.mxu0 %v7349
    %10195 = vmatpush.bf16.msra.mxu0 %v7333
    %10196 = vmatpush.bf16.msra.mxu0 %v7317
    %10197 = vmatmul.bf16.gmra.mxu0 %v4193
    %v10198 = vpop.f32.mrf.mxu0
    %v10199 = vadd.f32 %v4213, %v10198
    %v10200 = vpop.f32.mrf.mxu0
    %10201 = vdwg.mxu0
    %10202 = vmatpush.bf16.msra.mxu0 %v7557
    %10203 = vmatpush.bf16.msra.mxu0 %v7541
    %10204 = vmatpush.bf16.msra.mxu0 %v7525
    %10205 = vmatpush.bf16.msra.mxu0 %v7509
    %10206 = vmatpush.bf16.msra.mxu0 %v7493
    %10207 = vmatpush.bf16.msra.mxu0 %v7477
    %10208 = vmatpush.bf16.msra.mxu0 %v7461
    %10209 = vmatpush.bf16.msra.mxu0 %v7445
    %10210 = vmatmul.bf16.gmra.mxu0 %v4194
    %v10211 = vpop.f32.mrf.mxu0
    %v10212 = vadd.f32 %v10199, %v10211
    %v10213 = vpop.f32.mrf.mxu0
    %10214 = vdwg.mxu0
    %10215 = vmatpush.bf16.msra.mxu0 %v7685
    %10216 = vmatpush.bf16.msra.mxu0 %v7669
    %10217 = vmatpush.bf16.msra.mxu0 %v7653
    %10218 = vmatpush.bf16.msra.mxu0 %v7637
    %10219 = vmatpush.bf16.msra.mxu0 %v7621
    %10220 = vmatpush.bf16.msra.mxu0 %v7605
    %10221 = vmatpush.bf16.msra.mxu0 %v7589
    %10222 = vmatpush.bf16.msra.mxu0 %v7573
    %10223 = vmatmul.bf16.gmra.mxu0 %v4195
    %v10224 = vpop.f32.mrf.mxu0
    %v10225 = vadd.f32 %v10212, %v10224
    %v10226 = vpop.f32.mrf.mxu0
    %10227 = vdwg.mxu0
    %10228 = vmatpush.bf16.msra.mxu0 %v7813
    %10229 = vmatpush.bf16.msra.mxu0 %v7797
    %10230 = vmatpush.bf16.msra.mxu0 %v7781
    %10231 = vmatpush.bf16.msra.mxu0 %v7765
    %10232 = vmatpush.bf16.msra.mxu0 %v7749
    %10233 = vmatpush.bf16.msra.mxu0 %v7733
    %10234 = vmatpush.bf16.msra.mxu0 %v7717
    %10235 = vmatpush.bf16.msra.mxu0 %v7701
    %10236 = vmatmul.bf16.gmra.mxu0 %v4196
    %v10237 = vpop.f32.mrf.mxu0
    %v10238 = vadd.f32 %v10225, %v10237
    %v10239 = vpop.f32.mrf.mxu0
    %10240 = vdwg.mxu0
    %10241 = vmatpush.bf16.msra.mxu0 %v7941
    %10242 = vmatpush.bf16.msra.mxu0 %v7925
    %10243 = vmatpush.bf16.msra.mxu0 %v7909
    %10244 = vmatpush.bf16.msra.mxu0 %v7893
    %10245 = vmatpush.bf16.msra.mxu0 %v7877
    %10246 = vmatpush.bf16.msra.mxu0 %v7861
    %10247 = vmatpush.bf16.msra.mxu0 %v7845
    %10248 = vmatpush.bf16.msra.mxu0 %v7829
    %10249 = vmatmul.bf16.gmra.mxu0 %v4197
    %v10250 = vpop.f32.mrf.mxu0
    %v10251 = vadd.f32 %v10238, %v10250
    %v10252 = vpop.f32.mrf.mxu0
    %10253 = vdwg.mxu0
    %10254 = vmatpush.bf16.msra.mxu0 %v8069
    %10255 = vmatpush.bf16.msra.mxu0 %v8053
    %10256 = vmatpush.bf16.msra.mxu0 %v8037
    %10257 = vmatpush.bf16.msra.mxu0 %v8021
    %10258 = vmatpush.bf16.msra.mxu0 %v8005
    %10259 = vmatpush.bf16.msra.mxu0 %v7989
    %10260 = vmatpush.bf16.msra.mxu0 %v7973
    %10261 = vmatpush.bf16.msra.mxu0 %v7957
    %10262 = vmatmul.bf16.gmra.mxu0 %v4198
    %v10263 = vpop.f32.mrf.mxu0
    %v10264 = vadd.f32 %v10251, %v10263
    %v10265 = vpop.f32.mrf.mxu0
    %10266 = vdwg.mxu0
    %10267 = vmatpush.bf16.msra.mxu0 %v8197
    %10268 = vmatpush.bf16.msra.mxu0 %v8181
    %10269 = vmatpush.bf16.msra.mxu0 %v8165
    %10270 = vmatpush.bf16.msra.mxu0 %v8149
    %10271 = vmatpush.bf16.msra.mxu0 %v8133
    %10272 = vmatpush.bf16.msra.mxu0 %v8117
    %10273 = vmatpush.bf16.msra.mxu0 %v8101
    %10274 = vmatpush.bf16.msra.mxu0 %v8085
    %10275 = vmatmul.bf16.gmra.mxu0 %v4199
    %v10276 = vpop.f32.mrf.mxu0
    %v10277 = vadd.f32 %v10264, %v10276
    %v10278 = vpop.f32.mrf.mxu0
    %10279 = vdwg.mxu0
    %10280 = vmatpush.bf16.msra.mxu0 %v8325
    %10281 = vmatpush.bf16.msra.mxu0 %v8309
    %10282 = vmatpush.bf16.msra.mxu0 %v8293
    %10283 = vmatpush.bf16.msra.mxu0 %v8277
    %10284 = vmatpush.bf16.msra.mxu0 %v8261
    %10285 = vmatpush.bf16.msra.mxu0 %v8245
    %10286 = vmatpush.bf16.msra.mxu0 %v8229
    %10287 = vmatpush.bf16.msra.mxu0 %v8213
    %10288 = vmatmul.bf16.gmra.mxu0 %v4200
    %v10289 = vpop.f32.mrf.mxu0
    %v10290 = vadd.f32 %v10277, %v10289
    %v10291 = vpop.f32.mrf.mxu0
    %10292 = vdwg.mxu0
    %10293 = vmatpush.bf16.msra.mxu0 %v7430
    %10294 = vmatpush.bf16.msra.mxu0 %v7414
    %10295 = vmatpush.bf16.msra.mxu0 %v7398
    %10296 = vmatpush.bf16.msra.mxu0 %v7382
    %10297 = vmatpush.bf16.msra.mxu0 %v7366
    %10298 = vmatpush.bf16.msra.mxu0 %v7350
    %10299 = vmatpush.bf16.msra.mxu0 %v7334
    %10300 = vmatpush.bf16.msra.mxu0 %v7318
    %10301 = vmatmul.bf16.gmra.mxu0 %v4193
    %v10302 = vpop.f32.mrf.mxu0
    %v10303 = vadd.f32 %v4214, %v10302
    %v10304 = vpop.f32.mrf.mxu0
    %10305 = vdwg.mxu0
    %10306 = vmatpush.bf16.msra.mxu0 %v7558
    %10307 = vmatpush.bf16.msra.mxu0 %v7542
    %10308 = vmatpush.bf16.msra.mxu0 %v7526
    %10309 = vmatpush.bf16.msra.mxu0 %v7510
    %10310 = vmatpush.bf16.msra.mxu0 %v7494
    %10311 = vmatpush.bf16.msra.mxu0 %v7478
    %10312 = vmatpush.bf16.msra.mxu0 %v7462
    %10313 = vmatpush.bf16.msra.mxu0 %v7446
    %10314 = vmatmul.bf16.gmra.mxu0 %v4194
    %v10315 = vpop.f32.mrf.mxu0
    %v10316 = vadd.f32 %v10303, %v10315
    %v10317 = vpop.f32.mrf.mxu0
    %10318 = vdwg.mxu0
    %10319 = vmatpush.bf16.msra.mxu0 %v7686
    %10320 = vmatpush.bf16.msra.mxu0 %v7670
    %10321 = vmatpush.bf16.msra.mxu0 %v7654
    %10322 = vmatpush.bf16.msra.mxu0 %v7638
    %10323 = vmatpush.bf16.msra.mxu0 %v7622
    %10324 = vmatpush.bf16.msra.mxu0 %v7606
    %10325 = vmatpush.bf16.msra.mxu0 %v7590
    %10326 = vmatpush.bf16.msra.mxu0 %v7574
    %10327 = vmatmul.bf16.gmra.mxu0 %v4195
    %v10328 = vpop.f32.mrf.mxu0
    %v10329 = vadd.f32 %v10316, %v10328
    %v10330 = vpop.f32.mrf.mxu0
    %10331 = vdwg.mxu0
    %10332 = vmatpush.bf16.msra.mxu0 %v7814
    %10333 = vmatpush.bf16.msra.mxu0 %v7798
    %10334 = vmatpush.bf16.msra.mxu0 %v7782
    %10335 = vmatpush.bf16.msra.mxu0 %v7766
    %10336 = vmatpush.bf16.msra.mxu0 %v7750
    %10337 = vmatpush.bf16.msra.mxu0 %v7734
    %10338 = vmatpush.bf16.msra.mxu0 %v7718
    %10339 = vmatpush.bf16.msra.mxu0 %v7702
    %10340 = vmatmul.bf16.gmra.mxu0 %v4196
    %v10341 = vpop.f32.mrf.mxu0
    %v10342 = vadd.f32 %v10329, %v10341
    %v10343 = vpop.f32.mrf.mxu0
    %10344 = vdwg.mxu0
    %10345 = vmatpush.bf16.msra.mxu0 %v7942
    %10346 = vmatpush.bf16.msra.mxu0 %v7926
    %10347 = vmatpush.bf16.msra.mxu0 %v7910
    %10348 = vmatpush.bf16.msra.mxu0 %v7894
    %10349 = vmatpush.bf16.msra.mxu0 %v7878
    %10350 = vmatpush.bf16.msra.mxu0 %v7862
    %10351 = vmatpush.bf16.msra.mxu0 %v7846
    %10352 = vmatpush.bf16.msra.mxu0 %v7830
    %10353 = vmatmul.bf16.gmra.mxu0 %v4197
    %v10354 = vpop.f32.mrf.mxu0
    %v10355 = vadd.f32 %v10342, %v10354
    %v10356 = vpop.f32.mrf.mxu0
    %10357 = vdwg.mxu0
    %10358 = vmatpush.bf16.msra.mxu0 %v8070
    %10359 = vmatpush.bf16.msra.mxu0 %v8054
    %10360 = vmatpush.bf16.msra.mxu0 %v8038
    %10361 = vmatpush.bf16.msra.mxu0 %v8022
    %10362 = vmatpush.bf16.msra.mxu0 %v8006
    %10363 = vmatpush.bf16.msra.mxu0 %v7990
    %10364 = vmatpush.bf16.msra.mxu0 %v7974
    %10365 = vmatpush.bf16.msra.mxu0 %v7958
    %10366 = vmatmul.bf16.gmra.mxu0 %v4198
    %v10367 = vpop.f32.mrf.mxu0
    %v10368 = vadd.f32 %v10355, %v10367
    %v10369 = vpop.f32.mrf.mxu0
    %10370 = vdwg.mxu0
    %10371 = vmatpush.bf16.msra.mxu0 %v8198
    %10372 = vmatpush.bf16.msra.mxu0 %v8182
    %10373 = vmatpush.bf16.msra.mxu0 %v8166
    %10374 = vmatpush.bf16.msra.mxu0 %v8150
    %10375 = vmatpush.bf16.msra.mxu0 %v8134
    %10376 = vmatpush.bf16.msra.mxu0 %v8118
    %10377 = vmatpush.bf16.msra.mxu0 %v8102
    %10378 = vmatpush.bf16.msra.mxu0 %v8086
    %10379 = vmatmul.bf16.gmra.mxu0 %v4199
    %v10380 = vpop.f32.mrf.mxu0
    %v10381 = vadd.f32 %v10368, %v10380
    %v10382 = vpop.f32.mrf.mxu0
    %10383 = vdwg.mxu0
    %10384 = vmatpush.bf16.msra.mxu0 %v8326
    %10385 = vmatpush.bf16.msra.mxu0 %v8310
    %10386 = vmatpush.bf16.msra.mxu0 %v8294
    %10387 = vmatpush.bf16.msra.mxu0 %v8278
    %10388 = vmatpush.bf16.msra.mxu0 %v8262
    %10389 = vmatpush.bf16.msra.mxu0 %v8246
    %10390 = vmatpush.bf16.msra.mxu0 %v8230
    %10391 = vmatpush.bf16.msra.mxu0 %v8214
    %10392 = vmatmul.bf16.gmra.mxu0 %v4200
    %v10393 = vpop.f32.mrf.mxu0
    %v10394 = vadd.f32 %v10381, %v10393
    %v10395 = vpop.f32.mrf.mxu0
    %10396 = vdwg.mxu0
    %10397 = vmatpush.bf16.msra.mxu0 %v7431
    %10398 = vmatpush.bf16.msra.mxu0 %v7415
    %10399 = vmatpush.bf16.msra.mxu0 %v7399
    %10400 = vmatpush.bf16.msra.mxu0 %v7383
    %10401 = vmatpush.bf16.msra.mxu0 %v7367
    %10402 = vmatpush.bf16.msra.mxu0 %v7351
    %10403 = vmatpush.bf16.msra.mxu0 %v7335
    %10404 = vmatpush.bf16.msra.mxu0 %v7319
    %10405 = vmatmul.bf16.gmra.mxu0 %v4193
    %v10406 = vpop.f32.mrf.mxu0
    %v10407 = vadd.f32 %v4215, %v10406
    %v10408 = vpop.f32.mrf.mxu0
    %10409 = vdwg.mxu0
    %10410 = vmatpush.bf16.msra.mxu0 %v7559
    %10411 = vmatpush.bf16.msra.mxu0 %v7543
    %10412 = vmatpush.bf16.msra.mxu0 %v7527
    %10413 = vmatpush.bf16.msra.mxu0 %v7511
    %10414 = vmatpush.bf16.msra.mxu0 %v7495
    %10415 = vmatpush.bf16.msra.mxu0 %v7479
    %10416 = vmatpush.bf16.msra.mxu0 %v7463
    %10417 = vmatpush.bf16.msra.mxu0 %v7447
    %10418 = vmatmul.bf16.gmra.mxu0 %v4194
    %v10419 = vpop.f32.mrf.mxu0
    %v10420 = vadd.f32 %v10407, %v10419
    %v10421 = vpop.f32.mrf.mxu0
    %10422 = vdwg.mxu0
    %10423 = vmatpush.bf16.msra.mxu0 %v7687
    %10424 = vmatpush.bf16.msra.mxu0 %v7671
    %10425 = vmatpush.bf16.msra.mxu0 %v7655
    %10426 = vmatpush.bf16.msra.mxu0 %v7639
    %10427 = vmatpush.bf16.msra.mxu0 %v7623
    %10428 = vmatpush.bf16.msra.mxu0 %v7607
    %10429 = vmatpush.bf16.msra.mxu0 %v7591
    %10430 = vmatpush.bf16.msra.mxu0 %v7575
    %10431 = vmatmul.bf16.gmra.mxu0 %v4195
    %v10432 = vpop.f32.mrf.mxu0
    %v10433 = vadd.f32 %v10420, %v10432
    %v10434 = vpop.f32.mrf.mxu0
    %10435 = vdwg.mxu0
    %10436 = vmatpush.bf16.msra.mxu0 %v7815
    %10437 = vmatpush.bf16.msra.mxu0 %v7799
    %10438 = vmatpush.bf16.msra.mxu0 %v7783
    %10439 = vmatpush.bf16.msra.mxu0 %v7767
    %10440 = vmatpush.bf16.msra.mxu0 %v7751
    %10441 = vmatpush.bf16.msra.mxu0 %v7735
    %10442 = vmatpush.bf16.msra.mxu0 %v7719
    %10443 = vmatpush.bf16.msra.mxu0 %v7703
    %10444 = vmatmul.bf16.gmra.mxu0 %v4196
    %v10445 = vpop.f32.mrf.mxu0
    %v10446 = vadd.f32 %v10433, %v10445
    %v10447 = vpop.f32.mrf.mxu0
    %10448 = vdwg.mxu0
    %10449 = vmatpush.bf16.msra.mxu0 %v7943
    %10450 = vmatpush.bf16.msra.mxu0 %v7927
    %10451 = vmatpush.bf16.msra.mxu0 %v7911
    %10452 = vmatpush.bf16.msra.mxu0 %v7895
    %10453 = vmatpush.bf16.msra.mxu0 %v7879
    %10454 = vmatpush.bf16.msra.mxu0 %v7863
    %10455 = vmatpush.bf16.msra.mxu0 %v7847
    %10456 = vmatpush.bf16.msra.mxu0 %v7831
    %10457 = vmatmul.bf16.gmra.mxu0 %v4197
    %v10458 = vpop.f32.mrf.mxu0
    %v10459 = vadd.f32 %v10446, %v10458
    %v10460 = vpop.f32.mrf.mxu0
    %10461 = vdwg.mxu0
    %10462 = vmatpush.bf16.msra.mxu0 %v8071
    %10463 = vmatpush.bf16.msra.mxu0 %v8055
    %10464 = vmatpush.bf16.msra.mxu0 %v8039
    %10465 = vmatpush.bf16.msra.mxu0 %v8023
    %10466 = vmatpush.bf16.msra.mxu0 %v8007
    %10467 = vmatpush.bf16.msra.mxu0 %v7991
    %10468 = vmatpush.bf16.msra.mxu0 %v7975
    %10469 = vmatpush.bf16.msra.mxu0 %v7959
    %10470 = vmatmul.bf16.gmra.mxu0 %v4198
    %v10471 = vpop.f32.mrf.mxu0
    %v10472 = vadd.f32 %v10459, %v10471
    %v10473 = vpop.f32.mrf.mxu0
    %10474 = vdwg.mxu0
    %10475 = vmatpush.bf16.msra.mxu0 %v8199
    %10476 = vmatpush.bf16.msra.mxu0 %v8183
    %10477 = vmatpush.bf16.msra.mxu0 %v8167
    %10478 = vmatpush.bf16.msra.mxu0 %v8151
    %10479 = vmatpush.bf16.msra.mxu0 %v8135
    %10480 = vmatpush.bf16.msra.mxu0 %v8119
    %10481 = vmatpush.bf16.msra.mxu0 %v8103
    %10482 = vmatpush.bf16.msra.mxu0 %v8087
    %10483 = vmatmul.bf16.gmra.mxu0 %v4199
    %v10484 = vpop.f32.mrf.mxu0
    %v10485 = vadd.f32 %v10472, %v10484
    %v10486 = vpop.f32.mrf.mxu0
    %10487 = vdwg.mxu0
    %10488 = vmatpush.bf16.msra.mxu0 %v8327
    %10489 = vmatpush.bf16.msra.mxu0 %v8311
    %10490 = vmatpush.bf16.msra.mxu0 %v8295
    %10491 = vmatpush.bf16.msra.mxu0 %v8279
    %10492 = vmatpush.bf16.msra.mxu0 %v8263
    %10493 = vmatpush.bf16.msra.mxu0 %v8247
    %10494 = vmatpush.bf16.msra.mxu0 %v8231
    %10495 = vmatpush.bf16.msra.mxu0 %v8215
    %10496 = vmatmul.bf16.gmra.mxu0 %v4200
    %v10497 = vpop.f32.mrf.mxu0
    %v10498 = vadd.f32 %v10485, %v10497
    %v10499 = vpop.f32.mrf.mxu0
    %10500 = vdwg.mxu0
    %10501 = vmatpush.bf16.msra.mxu0 %v7432
    %10502 = vmatpush.bf16.msra.mxu0 %v7416
    %10503 = vmatpush.bf16.msra.mxu0 %v7400
    %10504 = vmatpush.bf16.msra.mxu0 %v7384
    %10505 = vmatpush.bf16.msra.mxu0 %v7368
    %10506 = vmatpush.bf16.msra.mxu0 %v7352
    %10507 = vmatpush.bf16.msra.mxu0 %v7336
    %10508 = vmatpush.bf16.msra.mxu0 %v7320
    %10509 = vmatmul.bf16.gmra.mxu0 %v4193
    %v10510 = vpop.f32.mrf.mxu0
    %v10511 = vadd.f32 %v4216, %v10510
    %v10512 = vpop.f32.mrf.mxu0
    %10513 = vdwg.mxu0
    %10514 = vmatpush.bf16.msra.mxu0 %v7560
    %10515 = vmatpush.bf16.msra.mxu0 %v7544
    %10516 = vmatpush.bf16.msra.mxu0 %v7528
    %10517 = vmatpush.bf16.msra.mxu0 %v7512
    %10518 = vmatpush.bf16.msra.mxu0 %v7496
    %10519 = vmatpush.bf16.msra.mxu0 %v7480
    %10520 = vmatpush.bf16.msra.mxu0 %v7464
    %10521 = vmatpush.bf16.msra.mxu0 %v7448
    %10522 = vmatmul.bf16.gmra.mxu0 %v4194
    %v10523 = vpop.f32.mrf.mxu0
    %v10524 = vadd.f32 %v10511, %v10523
    %v10525 = vpop.f32.mrf.mxu0
    %10526 = vdwg.mxu0
    %10527 = vmatpush.bf16.msra.mxu0 %v7688
    %10528 = vmatpush.bf16.msra.mxu0 %v7672
    %10529 = vmatpush.bf16.msra.mxu0 %v7656
    %10530 = vmatpush.bf16.msra.mxu0 %v7640
    %10531 = vmatpush.bf16.msra.mxu0 %v7624
    %10532 = vmatpush.bf16.msra.mxu0 %v7608
    %10533 = vmatpush.bf16.msra.mxu0 %v7592
    %10534 = vmatpush.bf16.msra.mxu0 %v7576
    %10535 = vmatmul.bf16.gmra.mxu0 %v4195
    %v10536 = vpop.f32.mrf.mxu0
    %v10537 = vadd.f32 %v10524, %v10536
    %v10538 = vpop.f32.mrf.mxu0
    %10539 = vdwg.mxu0
    %10540 = vmatpush.bf16.msra.mxu0 %v7816
    %10541 = vmatpush.bf16.msra.mxu0 %v7800
    %10542 = vmatpush.bf16.msra.mxu0 %v7784
    %10543 = vmatpush.bf16.msra.mxu0 %v7768
    %10544 = vmatpush.bf16.msra.mxu0 %v7752
    %10545 = vmatpush.bf16.msra.mxu0 %v7736
    %10546 = vmatpush.bf16.msra.mxu0 %v7720
    %10547 = vmatpush.bf16.msra.mxu0 %v7704
    %10548 = vmatmul.bf16.gmra.mxu0 %v4196
    %v10549 = vpop.f32.mrf.mxu0
    %v10550 = vadd.f32 %v10537, %v10549
    %v10551 = vpop.f32.mrf.mxu0
    %10552 = vdwg.mxu0
    %10553 = vmatpush.bf16.msra.mxu0 %v7944
    %10554 = vmatpush.bf16.msra.mxu0 %v7928
    %10555 = vmatpush.bf16.msra.mxu0 %v7912
    %10556 = vmatpush.bf16.msra.mxu0 %v7896
    %10557 = vmatpush.bf16.msra.mxu0 %v7880
    %10558 = vmatpush.bf16.msra.mxu0 %v7864
    %10559 = vmatpush.bf16.msra.mxu0 %v7848
    %10560 = vmatpush.bf16.msra.mxu0 %v7832
    %10561 = vmatmul.bf16.gmra.mxu0 %v4197
    %v10562 = vpop.f32.mrf.mxu0
    %v10563 = vadd.f32 %v10550, %v10562
    %v10564 = vpop.f32.mrf.mxu0
    %10565 = vdwg.mxu0
    %10566 = vmatpush.bf16.msra.mxu0 %v8072
    %10567 = vmatpush.bf16.msra.mxu0 %v8056
    %10568 = vmatpush.bf16.msra.mxu0 %v8040
    %10569 = vmatpush.bf16.msra.mxu0 %v8024
    %10570 = vmatpush.bf16.msra.mxu0 %v8008
    %10571 = vmatpush.bf16.msra.mxu0 %v7992
    %10572 = vmatpush.bf16.msra.mxu0 %v7976
    %10573 = vmatpush.bf16.msra.mxu0 %v7960
    %10574 = vmatmul.bf16.gmra.mxu0 %v4198
    %v10575 = vpop.f32.mrf.mxu0
    %v10576 = vadd.f32 %v10563, %v10575
    %v10577 = vpop.f32.mrf.mxu0
    %10578 = vdwg.mxu0
    %10579 = vmatpush.bf16.msra.mxu0 %v8200
    %10580 = vmatpush.bf16.msra.mxu0 %v8184
    %10581 = vmatpush.bf16.msra.mxu0 %v8168
    %10582 = vmatpush.bf16.msra.mxu0 %v8152
    %10583 = vmatpush.bf16.msra.mxu0 %v8136
    %10584 = vmatpush.bf16.msra.mxu0 %v8120
    %10585 = vmatpush.bf16.msra.mxu0 %v8104
    %10586 = vmatpush.bf16.msra.mxu0 %v8088
    %10587 = vmatmul.bf16.gmra.mxu0 %v4199
    %v10588 = vpop.f32.mrf.mxu0
    %v10589 = vadd.f32 %v10576, %v10588
    %v10590 = vpop.f32.mrf.mxu0
    %10591 = vdwg.mxu0
    %10592 = vmatpush.bf16.msra.mxu0 %v8328
    %10593 = vmatpush.bf16.msra.mxu0 %v8312
    %10594 = vmatpush.bf16.msra.mxu0 %v8296
    %10595 = vmatpush.bf16.msra.mxu0 %v8280
    %10596 = vmatpush.bf16.msra.mxu0 %v8264
    %10597 = vmatpush.bf16.msra.mxu0 %v8248
    %10598 = vmatpush.bf16.msra.mxu0 %v8232
    %10599 = vmatpush.bf16.msra.mxu0 %v8216
    %10600 = vmatmul.bf16.gmra.mxu0 %v4200
    %v10601 = vpop.f32.mrf.mxu0
    %v10602 = vadd.f32 %v10589, %v10601
    %v10603 = vpop.f32.mrf.mxu0
    %10604 = vdwg.mxu0
    %10605 = vmatpush.bf16.msra.mxu0 %v7433
    %10606 = vmatpush.bf16.msra.mxu0 %v7417
    %10607 = vmatpush.bf16.msra.mxu0 %v7401
    %10608 = vmatpush.bf16.msra.mxu0 %v7385
    %10609 = vmatpush.bf16.msra.mxu0 %v7369
    %10610 = vmatpush.bf16.msra.mxu0 %v7353
    %10611 = vmatpush.bf16.msra.mxu0 %v7337
    %10612 = vmatpush.bf16.msra.mxu0 %v7321
    %10613 = vmatmul.bf16.gmra.mxu0 %v4193
    %v10614 = vpop.f32.mrf.mxu0
    %v10615 = vadd.f32 %v4217, %v10614
    %v10616 = vpop.f32.mrf.mxu0
    %10617 = vdwg.mxu0
    %10618 = vmatpush.bf16.msra.mxu0 %v7561
    %10619 = vmatpush.bf16.msra.mxu0 %v7545
    %10620 = vmatpush.bf16.msra.mxu0 %v7529
    %10621 = vmatpush.bf16.msra.mxu0 %v7513
    %10622 = vmatpush.bf16.msra.mxu0 %v7497
    %10623 = vmatpush.bf16.msra.mxu0 %v7481
    %10624 = vmatpush.bf16.msra.mxu0 %v7465
    %10625 = vmatpush.bf16.msra.mxu0 %v7449
    %10626 = vmatmul.bf16.gmra.mxu0 %v4194
    %v10627 = vpop.f32.mrf.mxu0
    %v10628 = vadd.f32 %v10615, %v10627
    %v10629 = vpop.f32.mrf.mxu0
    %10630 = vdwg.mxu0
    %10631 = vmatpush.bf16.msra.mxu0 %v7689
    %10632 = vmatpush.bf16.msra.mxu0 %v7673
    %10633 = vmatpush.bf16.msra.mxu0 %v7657
    %10634 = vmatpush.bf16.msra.mxu0 %v7641
    %10635 = vmatpush.bf16.msra.mxu0 %v7625
    %10636 = vmatpush.bf16.msra.mxu0 %v7609
    %10637 = vmatpush.bf16.msra.mxu0 %v7593
    %10638 = vmatpush.bf16.msra.mxu0 %v7577
    %10639 = vmatmul.bf16.gmra.mxu0 %v4195
    %v10640 = vpop.f32.mrf.mxu0
    %v10641 = vadd.f32 %v10628, %v10640
    %v10642 = vpop.f32.mrf.mxu0
    %10643 = vdwg.mxu0
    %10644 = vmatpush.bf16.msra.mxu0 %v7817
    %10645 = vmatpush.bf16.msra.mxu0 %v7801
    %10646 = vmatpush.bf16.msra.mxu0 %v7785
    %10647 = vmatpush.bf16.msra.mxu0 %v7769
    %10648 = vmatpush.bf16.msra.mxu0 %v7753
    %10649 = vmatpush.bf16.msra.mxu0 %v7737
    %10650 = vmatpush.bf16.msra.mxu0 %v7721
    %10651 = vmatpush.bf16.msra.mxu0 %v7705
    %10652 = vmatmul.bf16.gmra.mxu0 %v4196
    %v10653 = vpop.f32.mrf.mxu0
    %v10654 = vadd.f32 %v10641, %v10653
    %v10655 = vpop.f32.mrf.mxu0
    %10656 = vdwg.mxu0
    %10657 = vmatpush.bf16.msra.mxu0 %v7945
    %10658 = vmatpush.bf16.msra.mxu0 %v7929
    %10659 = vmatpush.bf16.msra.mxu0 %v7913
    %10660 = vmatpush.bf16.msra.mxu0 %v7897
    %10661 = vmatpush.bf16.msra.mxu0 %v7881
    %10662 = vmatpush.bf16.msra.mxu0 %v7865
    %10663 = vmatpush.bf16.msra.mxu0 %v7849
    %10664 = vmatpush.bf16.msra.mxu0 %v7833
    %10665 = vmatmul.bf16.gmra.mxu0 %v4197
    %v10666 = vpop.f32.mrf.mxu0
    %v10667 = vadd.f32 %v10654, %v10666
    %v10668 = vpop.f32.mrf.mxu0
    %10669 = vdwg.mxu0
    %10670 = vmatpush.bf16.msra.mxu0 %v8073
    %10671 = vmatpush.bf16.msra.mxu0 %v8057
    %10672 = vmatpush.bf16.msra.mxu0 %v8041
    %10673 = vmatpush.bf16.msra.mxu0 %v8025
    %10674 = vmatpush.bf16.msra.mxu0 %v8009
    %10675 = vmatpush.bf16.msra.mxu0 %v7993
    %10676 = vmatpush.bf16.msra.mxu0 %v7977
    %10677 = vmatpush.bf16.msra.mxu0 %v7961
    %10678 = vmatmul.bf16.gmra.mxu0 %v4198
    %v10679 = vpop.f32.mrf.mxu0
    %v10680 = vadd.f32 %v10667, %v10679
    %v10681 = vpop.f32.mrf.mxu0
    %10682 = vdwg.mxu0
    %10683 = vmatpush.bf16.msra.mxu0 %v8201
    %10684 = vmatpush.bf16.msra.mxu0 %v8185
    %10685 = vmatpush.bf16.msra.mxu0 %v8169
    %10686 = vmatpush.bf16.msra.mxu0 %v8153
    %10687 = vmatpush.bf16.msra.mxu0 %v8137
    %10688 = vmatpush.bf16.msra.mxu0 %v8121
    %10689 = vmatpush.bf16.msra.mxu0 %v8105
    %10690 = vmatpush.bf16.msra.mxu0 %v8089
    %10691 = vmatmul.bf16.gmra.mxu0 %v4199
    %v10692 = vpop.f32.mrf.mxu0
    %v10693 = vadd.f32 %v10680, %v10692
    %v10694 = vpop.f32.mrf.mxu0
    %10695 = vdwg.mxu0
    %10696 = vmatpush.bf16.msra.mxu0 %v8329
    %10697 = vmatpush.bf16.msra.mxu0 %v8313
    %10698 = vmatpush.bf16.msra.mxu0 %v8297
    %10699 = vmatpush.bf16.msra.mxu0 %v8281
    %10700 = vmatpush.bf16.msra.mxu0 %v8265
    %10701 = vmatpush.bf16.msra.mxu0 %v8249
    %10702 = vmatpush.bf16.msra.mxu0 %v8233
    %10703 = vmatpush.bf16.msra.mxu0 %v8217
    %10704 = vmatmul.bf16.gmra.mxu0 %v4200
    %v10705 = vpop.f32.mrf.mxu0
    %v10706 = vadd.f32 %v10693, %v10705
    %v10707 = vpop.f32.mrf.mxu0
    %10708 = vdwg.mxu0
    %10709 = vmatpush.bf16.msra.mxu0 %v7434
    %10710 = vmatpush.bf16.msra.mxu0 %v7418
    %10711 = vmatpush.bf16.msra.mxu0 %v7402
    %10712 = vmatpush.bf16.msra.mxu0 %v7386
    %10713 = vmatpush.bf16.msra.mxu0 %v7370
    %10714 = vmatpush.bf16.msra.mxu0 %v7354
    %10715 = vmatpush.bf16.msra.mxu0 %v7338
    %10716 = vmatpush.bf16.msra.mxu0 %v7322
    %10717 = vmatmul.bf16.gmra.mxu0 %v4193
    %v10718 = vpop.f32.mrf.mxu0
    %v10719 = vadd.f32 %v4218, %v10718
    %v10720 = vpop.f32.mrf.mxu0
    %10721 = vdwg.mxu0
    %10722 = vmatpush.bf16.msra.mxu0 %v7562
    %10723 = vmatpush.bf16.msra.mxu0 %v7546
    %10724 = vmatpush.bf16.msra.mxu0 %v7530
    %10725 = vmatpush.bf16.msra.mxu0 %v7514
    %10726 = vmatpush.bf16.msra.mxu0 %v7498
    %10727 = vmatpush.bf16.msra.mxu0 %v7482
    %10728 = vmatpush.bf16.msra.mxu0 %v7466
    %10729 = vmatpush.bf16.msra.mxu0 %v7450
    %10730 = vmatmul.bf16.gmra.mxu0 %v4194
    %v10731 = vpop.f32.mrf.mxu0
    %v10732 = vadd.f32 %v10719, %v10731
    %v10733 = vpop.f32.mrf.mxu0
    %10734 = vdwg.mxu0
    %10735 = vmatpush.bf16.msra.mxu0 %v7690
    %10736 = vmatpush.bf16.msra.mxu0 %v7674
    %10737 = vmatpush.bf16.msra.mxu0 %v7658
    %10738 = vmatpush.bf16.msra.mxu0 %v7642
    %10739 = vmatpush.bf16.msra.mxu0 %v7626
    %10740 = vmatpush.bf16.msra.mxu0 %v7610
    %10741 = vmatpush.bf16.msra.mxu0 %v7594
    %10742 = vmatpush.bf16.msra.mxu0 %v7578
    %10743 = vmatmul.bf16.gmra.mxu0 %v4195
    %v10744 = vpop.f32.mrf.mxu0
    %v10745 = vadd.f32 %v10732, %v10744
    %v10746 = vpop.f32.mrf.mxu0
    %10747 = vdwg.mxu0
    %10748 = vmatpush.bf16.msra.mxu0 %v7818
    %10749 = vmatpush.bf16.msra.mxu0 %v7802
    %10750 = vmatpush.bf16.msra.mxu0 %v7786
    %10751 = vmatpush.bf16.msra.mxu0 %v7770
    %10752 = vmatpush.bf16.msra.mxu0 %v7754
    %10753 = vmatpush.bf16.msra.mxu0 %v7738
    %10754 = vmatpush.bf16.msra.mxu0 %v7722
    %10755 = vmatpush.bf16.msra.mxu0 %v7706
    %10756 = vmatmul.bf16.gmra.mxu0 %v4196
    %v10757 = vpop.f32.mrf.mxu0
    %v10758 = vadd.f32 %v10745, %v10757
    %v10759 = vpop.f32.mrf.mxu0
    %10760 = vdwg.mxu0
    %10761 = vmatpush.bf16.msra.mxu0 %v7946
    %10762 = vmatpush.bf16.msra.mxu0 %v7930
    %10763 = vmatpush.bf16.msra.mxu0 %v7914
    %10764 = vmatpush.bf16.msra.mxu0 %v7898
    %10765 = vmatpush.bf16.msra.mxu0 %v7882
    %10766 = vmatpush.bf16.msra.mxu0 %v7866
    %10767 = vmatpush.bf16.msra.mxu0 %v7850
    %10768 = vmatpush.bf16.msra.mxu0 %v7834
    %10769 = vmatmul.bf16.gmra.mxu0 %v4197
    %v10770 = vpop.f32.mrf.mxu0
    %v10771 = vadd.f32 %v10758, %v10770
    %v10772 = vpop.f32.mrf.mxu0
    %10773 = vdwg.mxu0
    %10774 = vmatpush.bf16.msra.mxu0 %v8074
    %10775 = vmatpush.bf16.msra.mxu0 %v8058
    %10776 = vmatpush.bf16.msra.mxu0 %v8042
    %10777 = vmatpush.bf16.msra.mxu0 %v8026
    %10778 = vmatpush.bf16.msra.mxu0 %v8010
    %10779 = vmatpush.bf16.msra.mxu0 %v7994
    %10780 = vmatpush.bf16.msra.mxu0 %v7978
    %10781 = vmatpush.bf16.msra.mxu0 %v7962
    %10782 = vmatmul.bf16.gmra.mxu0 %v4198
    %v10783 = vpop.f32.mrf.mxu0
    %v10784 = vadd.f32 %v10771, %v10783
    %v10785 = vpop.f32.mrf.mxu0
    %10786 = vdwg.mxu0
    %10787 = vmatpush.bf16.msra.mxu0 %v8202
    %10788 = vmatpush.bf16.msra.mxu0 %v8186
    %10789 = vmatpush.bf16.msra.mxu0 %v8170
    %10790 = vmatpush.bf16.msra.mxu0 %v8154
    %10791 = vmatpush.bf16.msra.mxu0 %v8138
    %10792 = vmatpush.bf16.msra.mxu0 %v8122
    %10793 = vmatpush.bf16.msra.mxu0 %v8106
    %10794 = vmatpush.bf16.msra.mxu0 %v8090
    %10795 = vmatmul.bf16.gmra.mxu0 %v4199
    %v10796 = vpop.f32.mrf.mxu0
    %v10797 = vadd.f32 %v10784, %v10796
    %v10798 = vpop.f32.mrf.mxu0
    %10799 = vdwg.mxu0
    %10800 = vmatpush.bf16.msra.mxu0 %v8330
    %10801 = vmatpush.bf16.msra.mxu0 %v8314
    %10802 = vmatpush.bf16.msra.mxu0 %v8298
    %10803 = vmatpush.bf16.msra.mxu0 %v8282
    %10804 = vmatpush.bf16.msra.mxu0 %v8266
    %10805 = vmatpush.bf16.msra.mxu0 %v8250
    %10806 = vmatpush.bf16.msra.mxu0 %v8234
    %10807 = vmatpush.bf16.msra.mxu0 %v8218
    %10808 = vmatmul.bf16.gmra.mxu0 %v4200
    %v10809 = vpop.f32.mrf.mxu0
    %v10810 = vadd.f32 %v10797, %v10809
    %v10811 = vpop.f32.mrf.mxu0
    %10812 = vdwg.mxu0
    %10813 = vmatpush.bf16.msra.mxu0 %v7435
    %10814 = vmatpush.bf16.msra.mxu0 %v7419
    %10815 = vmatpush.bf16.msra.mxu0 %v7403
    %10816 = vmatpush.bf16.msra.mxu0 %v7387
    %10817 = vmatpush.bf16.msra.mxu0 %v7371
    %10818 = vmatpush.bf16.msra.mxu0 %v7355
    %10819 = vmatpush.bf16.msra.mxu0 %v7339
    %10820 = vmatpush.bf16.msra.mxu0 %v7323
    %10821 = vmatmul.bf16.gmra.mxu0 %v4193
    %v10822 = vpop.f32.mrf.mxu0
    %v10823 = vadd.f32 %v4219, %v10822
    %v10824 = vpop.f32.mrf.mxu0
    %10825 = vdwg.mxu0
    %10826 = vmatpush.bf16.msra.mxu0 %v7563
    %10827 = vmatpush.bf16.msra.mxu0 %v7547
    %10828 = vmatpush.bf16.msra.mxu0 %v7531
    %10829 = vmatpush.bf16.msra.mxu0 %v7515
    %10830 = vmatpush.bf16.msra.mxu0 %v7499
    %10831 = vmatpush.bf16.msra.mxu0 %v7483
    %10832 = vmatpush.bf16.msra.mxu0 %v7467
    %10833 = vmatpush.bf16.msra.mxu0 %v7451
    %10834 = vmatmul.bf16.gmra.mxu0 %v4194
    %v10835 = vpop.f32.mrf.mxu0
    %v10836 = vadd.f32 %v10823, %v10835
    %v10837 = vpop.f32.mrf.mxu0
    %10838 = vdwg.mxu0
    %10839 = vmatpush.bf16.msra.mxu0 %v7691
    %10840 = vmatpush.bf16.msra.mxu0 %v7675
    %10841 = vmatpush.bf16.msra.mxu0 %v7659
    %10842 = vmatpush.bf16.msra.mxu0 %v7643
    %10843 = vmatpush.bf16.msra.mxu0 %v7627
    %10844 = vmatpush.bf16.msra.mxu0 %v7611
    %10845 = vmatpush.bf16.msra.mxu0 %v7595
    %10846 = vmatpush.bf16.msra.mxu0 %v7579
    %10847 = vmatmul.bf16.gmra.mxu0 %v4195
    %v10848 = vpop.f32.mrf.mxu0
    %v10849 = vadd.f32 %v10836, %v10848
    %v10850 = vpop.f32.mrf.mxu0
    %10851 = vdwg.mxu0
    %10852 = vmatpush.bf16.msra.mxu0 %v7819
    %10853 = vmatpush.bf16.msra.mxu0 %v7803
    %10854 = vmatpush.bf16.msra.mxu0 %v7787
    %10855 = vmatpush.bf16.msra.mxu0 %v7771
    %10856 = vmatpush.bf16.msra.mxu0 %v7755
    %10857 = vmatpush.bf16.msra.mxu0 %v7739
    %10858 = vmatpush.bf16.msra.mxu0 %v7723
    %10859 = vmatpush.bf16.msra.mxu0 %v7707
    %10860 = vmatmul.bf16.gmra.mxu0 %v4196
    %v10861 = vpop.f32.mrf.mxu0
    %v10862 = vadd.f32 %v10849, %v10861
    %v10863 = vpop.f32.mrf.mxu0
    %10864 = vdwg.mxu0
    %10865 = vmatpush.bf16.msra.mxu0 %v7947
    %10866 = vmatpush.bf16.msra.mxu0 %v7931
    %10867 = vmatpush.bf16.msra.mxu0 %v7915
    %10868 = vmatpush.bf16.msra.mxu0 %v7899
    %10869 = vmatpush.bf16.msra.mxu0 %v7883
    %10870 = vmatpush.bf16.msra.mxu0 %v7867
    %10871 = vmatpush.bf16.msra.mxu0 %v7851
    %10872 = vmatpush.bf16.msra.mxu0 %v7835
    %10873 = vmatmul.bf16.gmra.mxu0 %v4197
    %v10874 = vpop.f32.mrf.mxu0
    %v10875 = vadd.f32 %v10862, %v10874
    %v10876 = vpop.f32.mrf.mxu0
    %10877 = vdwg.mxu0
    %10878 = vmatpush.bf16.msra.mxu0 %v8075
    %10879 = vmatpush.bf16.msra.mxu0 %v8059
    %10880 = vmatpush.bf16.msra.mxu0 %v8043
    %10881 = vmatpush.bf16.msra.mxu0 %v8027
    %10882 = vmatpush.bf16.msra.mxu0 %v8011
    %10883 = vmatpush.bf16.msra.mxu0 %v7995
    %10884 = vmatpush.bf16.msra.mxu0 %v7979
    %10885 = vmatpush.bf16.msra.mxu0 %v7963
    %10886 = vmatmul.bf16.gmra.mxu0 %v4198
    %v10887 = vpop.f32.mrf.mxu0
    %v10888 = vadd.f32 %v10875, %v10887
    %v10889 = vpop.f32.mrf.mxu0
    %10890 = vdwg.mxu0
    %10891 = vmatpush.bf16.msra.mxu0 %v8203
    %10892 = vmatpush.bf16.msra.mxu0 %v8187
    %10893 = vmatpush.bf16.msra.mxu0 %v8171
    %10894 = vmatpush.bf16.msra.mxu0 %v8155
    %10895 = vmatpush.bf16.msra.mxu0 %v8139
    %10896 = vmatpush.bf16.msra.mxu0 %v8123
    %10897 = vmatpush.bf16.msra.mxu0 %v8107
    %10898 = vmatpush.bf16.msra.mxu0 %v8091
    %10899 = vmatmul.bf16.gmra.mxu0 %v4199
    %v10900 = vpop.f32.mrf.mxu0
    %v10901 = vadd.f32 %v10888, %v10900
    %v10902 = vpop.f32.mrf.mxu0
    %10903 = vdwg.mxu0
    %10904 = vmatpush.bf16.msra.mxu0 %v8331
    %10905 = vmatpush.bf16.msra.mxu0 %v8315
    %10906 = vmatpush.bf16.msra.mxu0 %v8299
    %10907 = vmatpush.bf16.msra.mxu0 %v8283
    %10908 = vmatpush.bf16.msra.mxu0 %v8267
    %10909 = vmatpush.bf16.msra.mxu0 %v8251
    %10910 = vmatpush.bf16.msra.mxu0 %v8235
    %10911 = vmatpush.bf16.msra.mxu0 %v8219
    %10912 = vmatmul.bf16.gmra.mxu0 %v4200
    %v10913 = vpop.f32.mrf.mxu0
    %v10914 = vadd.f32 %v10901, %v10913
    %v10915 = vpop.f32.mrf.mxu0
    %10916 = vdwg.mxu0
    %10917 = vmatpush.bf16.msra.mxu0 %v7436
    %10918 = vmatpush.bf16.msra.mxu0 %v7420
    %10919 = vmatpush.bf16.msra.mxu0 %v7404
    %10920 = vmatpush.bf16.msra.mxu0 %v7388
    %10921 = vmatpush.bf16.msra.mxu0 %v7372
    %10922 = vmatpush.bf16.msra.mxu0 %v7356
    %10923 = vmatpush.bf16.msra.mxu0 %v7340
    %10924 = vmatpush.bf16.msra.mxu0 %v7324
    %10925 = vmatmul.bf16.gmra.mxu0 %v4193
    %v10926 = vpop.f32.mrf.mxu0
    %v10927 = vadd.f32 %v4220, %v10926
    %v10928 = vpop.f32.mrf.mxu0
    %10929 = vdwg.mxu0
    %10930 = vmatpush.bf16.msra.mxu0 %v7564
    %10931 = vmatpush.bf16.msra.mxu0 %v7548
    %10932 = vmatpush.bf16.msra.mxu0 %v7532
    %10933 = vmatpush.bf16.msra.mxu0 %v7516
    %10934 = vmatpush.bf16.msra.mxu0 %v7500
    %10935 = vmatpush.bf16.msra.mxu0 %v7484
    %10936 = vmatpush.bf16.msra.mxu0 %v7468
    %10937 = vmatpush.bf16.msra.mxu0 %v7452
    %10938 = vmatmul.bf16.gmra.mxu0 %v4194
    %v10939 = vpop.f32.mrf.mxu0
    %v10940 = vadd.f32 %v10927, %v10939
    %v10941 = vpop.f32.mrf.mxu0
    %10942 = vdwg.mxu0
    %10943 = vmatpush.bf16.msra.mxu0 %v7692
    %10944 = vmatpush.bf16.msra.mxu0 %v7676
    %10945 = vmatpush.bf16.msra.mxu0 %v7660
    %10946 = vmatpush.bf16.msra.mxu0 %v7644
    %10947 = vmatpush.bf16.msra.mxu0 %v7628
    %10948 = vmatpush.bf16.msra.mxu0 %v7612
    %10949 = vmatpush.bf16.msra.mxu0 %v7596
    %10950 = vmatpush.bf16.msra.mxu0 %v7580
    %10951 = vmatmul.bf16.gmra.mxu0 %v4195
    %v10952 = vpop.f32.mrf.mxu0
    %v10953 = vadd.f32 %v10940, %v10952
    %v10954 = vpop.f32.mrf.mxu0
    %10955 = vdwg.mxu0
    %10956 = vmatpush.bf16.msra.mxu0 %v7820
    %10957 = vmatpush.bf16.msra.mxu0 %v7804
    %10958 = vmatpush.bf16.msra.mxu0 %v7788
    %10959 = vmatpush.bf16.msra.mxu0 %v7772
    %10960 = vmatpush.bf16.msra.mxu0 %v7756
    %10961 = vmatpush.bf16.msra.mxu0 %v7740
    %10962 = vmatpush.bf16.msra.mxu0 %v7724
    %10963 = vmatpush.bf16.msra.mxu0 %v7708
    %10964 = vmatmul.bf16.gmra.mxu0 %v4196
    %v10965 = vpop.f32.mrf.mxu0
    %v10966 = vadd.f32 %v10953, %v10965
    %v10967 = vpop.f32.mrf.mxu0
    %10968 = vdwg.mxu0
    %10969 = vmatpush.bf16.msra.mxu0 %v7948
    %10970 = vmatpush.bf16.msra.mxu0 %v7932
    %10971 = vmatpush.bf16.msra.mxu0 %v7916
    %10972 = vmatpush.bf16.msra.mxu0 %v7900
    %10973 = vmatpush.bf16.msra.mxu0 %v7884
    %10974 = vmatpush.bf16.msra.mxu0 %v7868
    %10975 = vmatpush.bf16.msra.mxu0 %v7852
    %10976 = vmatpush.bf16.msra.mxu0 %v7836
    %10977 = vmatmul.bf16.gmra.mxu0 %v4197
    %v10978 = vpop.f32.mrf.mxu0
    %v10979 = vadd.f32 %v10966, %v10978
    %v10980 = vpop.f32.mrf.mxu0
    %10981 = vdwg.mxu0
    %10982 = vmatpush.bf16.msra.mxu0 %v8076
    %10983 = vmatpush.bf16.msra.mxu0 %v8060
    %10984 = vmatpush.bf16.msra.mxu0 %v8044
    %10985 = vmatpush.bf16.msra.mxu0 %v8028
    %10986 = vmatpush.bf16.msra.mxu0 %v8012
    %10987 = vmatpush.bf16.msra.mxu0 %v7996
    %10988 = vmatpush.bf16.msra.mxu0 %v7980
    %10989 = vmatpush.bf16.msra.mxu0 %v7964
    %10990 = vmatmul.bf16.gmra.mxu0 %v4198
    %v10991 = vpop.f32.mrf.mxu0
    %v10992 = vadd.f32 %v10979, %v10991
    %v10993 = vpop.f32.mrf.mxu0
    %10994 = vdwg.mxu0
    %10995 = vmatpush.bf16.msra.mxu0 %v8204
    %10996 = vmatpush.bf16.msra.mxu0 %v8188
    %10997 = vmatpush.bf16.msra.mxu0 %v8172
    %10998 = vmatpush.bf16.msra.mxu0 %v8156
    %10999 = vmatpush.bf16.msra.mxu0 %v8140
    %11000 = vmatpush.bf16.msra.mxu0 %v8124
    %11001 = vmatpush.bf16.msra.mxu0 %v8108
    %11002 = vmatpush.bf16.msra.mxu0 %v8092
    %11003 = vmatmul.bf16.gmra.mxu0 %v4199
    %v11004 = vpop.f32.mrf.mxu0
    %v11005 = vadd.f32 %v10992, %v11004
    %v11006 = vpop.f32.mrf.mxu0
    %11007 = vdwg.mxu0
    %11008 = vmatpush.bf16.msra.mxu0 %v8332
    %11009 = vmatpush.bf16.msra.mxu0 %v8316
    %11010 = vmatpush.bf16.msra.mxu0 %v8300
    %11011 = vmatpush.bf16.msra.mxu0 %v8284
    %11012 = vmatpush.bf16.msra.mxu0 %v8268
    %11013 = vmatpush.bf16.msra.mxu0 %v8252
    %11014 = vmatpush.bf16.msra.mxu0 %v8236
    %11015 = vmatpush.bf16.msra.mxu0 %v8220
    %11016 = vmatmul.bf16.gmra.mxu0 %v4200
    %v11017 = vpop.f32.mrf.mxu0
    %v11018 = vadd.f32 %v11005, %v11017
    %v11019 = vpop.f32.mrf.mxu0
    %11020 = vdwg.mxu0
    %v11021 = vmul.f32 %v9458, 0.01
    %v11022 = vmul.f32 %v9562, 0.01
    %v11023 = vmul.f32 %v9666, 0.01
    %v11024 = vmul.f32 %v9770, 0.01
    %v11025 = vmul.f32 %v9874, 0.01
    %v11026 = vmul.f32 %v9978, 0.01
    %v11027 = vmul.f32 %v10082, 0.01
    %v11028 = vmul.f32 %v10186, 0.01
    %v11029 = vmul.f32 %v10290, 0.01
    %v11030 = vmul.f32 %v10394, 0.01
    %v11031 = vmul.f32 %v10498, 0.01
    %v11032 = vmul.f32 %v10602, 0.01
    %v11033 = vmul.f32 %v10706, 0.01
    %v11034 = vmul.f32 %v10810, 0.01
    %v11035 = vmul.f32 %v10914, 0.01
    %v11036 = vmul.f32 %v11018, 0.01
    %v11037 = vmax.f32 %v9458, %v11021
    %v11038 = vmax.f32 %v9562, %v11022
    %v11039 = vmax.f32 %v9666, %v11023
    %v11040 = vmax.f32 %v9770, %v11024
    %v11041 = vmax.f32 %v9874, %v11025
    %v11042 = vmax.f32 %v9978, %v11026
    %v11043 = vmax.f32 %v10082, %v11027
    %v11044 = vmax.f32 %v10186, %v11028
    %v11045 = vmax.f32 %v10290, %v11029
    %v11046 = vmax.f32 %v10394, %v11030
    %v11047 = vmax.f32 %v10498, %v11031
    %v11048 = vmax.f32 %v10602, %v11032
    %v11049 = vmax.f32 %v10706, %v11033
    %v11050 = vmax.f32 %v10810, %v11034
    %v11051 = vmax.f32 %v10914, %v11035
    %v11052 = vmax.f32 %v11018, %v11036
    %v11053 = vld [vmem:[%s10] sm:$0xf]
    %v11054 = vld [vmem:[%s10 + $0x4] sm:$0xf]
    %v11055 = vld [vmem:[%s10 + $0x8] sm:$0xf]
    %v11056 = vld [vmem:[%s10 + $0xc] sm:$0xf]
    %v11057 = vld [vmem:[%s10 + $0x10] sm:$0xf]
    %v11058 = vld [vmem:[%s10 + $0x14] sm:$0xf]
    %v11059 = vld [vmem:[%s10 + $0x18] sm:$0xf]
    %v11060 = vld [vmem:[%s10 + $0x1c] sm:$0xf]
    %v11061 = vld [vmem:[%s10 + $0x20] sm:$0xf]
    %v11062 = vld [vmem:[%s10 + $0x24] sm:$0xf]
    %v11063 = vld [vmem:[%s10 + $0x28] sm:$0xf]
    %v11064 = vld [vmem:[%s10 + $0x2c] sm:$0xf]
    %v11065 = vld [vmem:[%s10 + $0x30] sm:$0xf]
    %v11066 = vld [vmem:[%s10 + $0x34] sm:$0xf]
    %v11067 = vld [vmem:[%s10 + $0x38] sm:$0xf]
    %v11068 = vld [vmem:[%s10 + $0x3c] sm:$0xf]
    %v11069 = vld [vmem:[%s10 + $0x40] sm:$0xf]
    %v11070 = vld [vmem:[%s10 + $0x44] sm:$0xf]
    %v11071 = vld [vmem:[%s10 + $0x48] sm:$0xf]
    %v11072 = vld [vmem:[%s10 + $0x4c] sm:$0xf]
    %v11073 = vld [vmem:[%s10 + $0x50] sm:$0xf]
    %v11074 = vld [vmem:[%s10 + $0x54] sm:$0xf]
    %v11075 = vld [vmem:[%s10 + $0x58] sm:$0xf]
    %v11076 = vld [vmem:[%s10 + $0x5c] sm:$0xf]
    %v11077 = vld [vmem:[%s10 + $0x60] sm:$0xf]
    %v11078 = vld [vmem:[%s10 + $0x64] sm:$0xf]
    %v11079 = vld [vmem:[%s10 + $0x68] sm:$0xf]
    %v11080 = vld [vmem:[%s10 + $0x6c] sm:$0xf]
    %v11081 = vld [vmem:[%s10 + $0x70] sm:$0xf]
    %v11082 = vld [vmem:[%s10 + $0x74] sm:$0xf]
    %v11083 = vld [vmem:[%s10 + $0x78] sm:$0xf]
    %v11084 = vld [vmem:[%s10 + $0x7c] sm:$0xf]
    %v11085 = vld [vmem:[%s10 + $0x80] sm:$0xf]
    %v11086 = vld [vmem:[%s10 + $0x84] sm:$0xf]
    %v11087 = vld [vmem:[%s10 + $0x88] sm:$0xf]
    %v11088 = vld [vmem:[%s10 + $0x8c] sm:$0xf]
    %v11089 = vld [vmem:[%s10 + $0x90] sm:$0xf]
    %v11090 = vld [vmem:[%s10 + $0x94] sm:$0xf]
    %v11091 = vld [vmem:[%s10 + $0x98] sm:$0xf]
    %v11092 = vld [vmem:[%s10 + $0x9c] sm:$0xf]
    %v11093 = vld [vmem:[%s10 + $0xa0] sm:$0xf]
    %v11094 = vld [vmem:[%s10 + $0xa4] sm:$0xf]
    %v11095 = vld [vmem:[%s10 + $0xa8] sm:$0xf]
    %v11096 = vld [vmem:[%s10 + $0xac] sm:$0xf]
    %v11097 = vld [vmem:[%s10 + $0xb0] sm:$0xf]
    %v11098 = vld [vmem:[%s10 + $0xb4] sm:$0xf]
    %v11099 = vld [vmem:[%s10 + $0xb8] sm:$0xf]
    %v11100 = vld [vmem:[%s10 + $0xbc] sm:$0xf]
    %v11101 = vld [vmem:[%s10 + $0xc0] sm:$0xf]
    %v11102 = vld [vmem:[%s10 + $0xc4] sm:$0xf]
    %v11103 = vld [vmem:[%s10 + $0xc8] sm:$0xf]
    %v11104 = vld [vmem:[%s10 + $0xcc] sm:$0xf]
    %v11105 = vld [vmem:[%s10 + $0xd0] sm:$0xf]
    %v11106 = vld [vmem:[%s10 + $0xd4] sm:$0xf]
    %v11107 = vld [vmem:[%s10 + $0xd8] sm:$0xf]
    %v11108 = vld [vmem:[%s10 + $0xdc] sm:$0xf]
    %v11109 = vld [vmem:[%s10 + $0xe0] sm:$0xf]
    %v11110 = vld [vmem:[%s10 + $0xe4] sm:$0xf]
    %v11111 = vld [vmem:[%s10 + $0xe8] sm:$0xf]
    %v11112 = vld [vmem:[%s10 + $0xec] sm:$0xf]
    %v11113 = vld [vmem:[%s10 + $0xf0] sm:$0xf]
    %v11114 = vld [vmem:[%s10 + $0xf4] sm:$0xf]
    %v11115 = vld [vmem:[%s10 + $0xf8] sm:$0xf]
    %v11116 = vld [vmem:[%s10 + $0xfc] sm:$0xf]
    %v11117 = vld [vmem:[%s10 + $0x100] sm:$0xf]
    %v11118 = vld [vmem:[%s10 + $0x104] sm:$0xf]
    %v11119 = vld [vmem:[%s10 + $0x108] sm:$0xf]
    %v11120 = vld [vmem:[%s10 + $0x10c] sm:$0xf]
    %v11121 = vld [vmem:[%s10 + $0x110] sm:$0xf]
    %v11122 = vld [vmem:[%s10 + $0x114] sm:$0xf]
    %v11123 = vld [vmem:[%s10 + $0x118] sm:$0xf]
    %v11124 = vld [vmem:[%s10 + $0x11c] sm:$0xf]
    %v11125 = vld [vmem:[%s10 + $0x120] sm:$0xf]
    %v11126 = vld [vmem:[%s10 + $0x124] sm:$0xf]
    %v11127 = vld [vmem:[%s10 + $0x128] sm:$0xf]
    %v11128 = vld [vmem:[%s10 + $0x12c] sm:$0xf]
    %v11129 = vld [vmem:[%s10 + $0x130] sm:$0xf]
    %v11130 = vld [vmem:[%s10 + $0x134] sm:$0xf]
    %v11131 = vld [vmem:[%s10 + $0x138] sm:$0xf]
    %v11132 = vld [vmem:[%s10 + $0x13c] sm:$0xf]
    %v11133 = vld [vmem:[%s10 + $0x140] sm:$0xf]
    %v11134 = vld [vmem:[%s10 + $0x144] sm:$0xf]
    %v11135 = vld [vmem:[%s10 + $0x148] sm:$0xf]
    %v11136 = vld [vmem:[%s10 + $0x14c] sm:$0xf]
    %v11137 = vld [vmem:[%s10 + $0x150] sm:$0xf]
    %v11138 = vld [vmem:[%s10 + $0x154] sm:$0xf]
    %v11139 = vld [vmem:[%s10 + $0x158] sm:$0xf]
    %v11140 = vld [vmem:[%s10 + $0x15c] sm:$0xf]
    %v11141 = vld [vmem:[%s10 + $0x160] sm:$0xf]
    %v11142 = vld [vmem:[%s10 + $0x164] sm:$0xf]
    %v11143 = vld [vmem:[%s10 + $0x168] sm:$0xf]
    %v11144 = vld [vmem:[%s10 + $0x16c] sm:$0xf]
    %v11145 = vld [vmem:[%s10 + $0x170] sm:$0xf]
    %v11146 = vld [vmem:[%s10 + $0x174] sm:$0xf]
    %v11147 = vld [vmem:[%s10 + $0x178] sm:$0xf]
    %v11148 = vld [vmem:[%s10 + $0x17c] sm:$0xf]
    %v11149 = vld [vmem:[%s10 + $0x180] sm:$0xf]
    %v11150 = vld [vmem:[%s10 + $0x184] sm:$0xf]
    %v11151 = vld [vmem:[%s10 + $0x188] sm:$0xf]
    %v11152 = vld [vmem:[%s10 + $0x18c] sm:$0xf]
    %v11153 = vld [vmem:[%s10 + $0x190] sm:$0xf]
    %v11154 = vld [vmem:[%s10 + $0x194] sm:$0xf]
    %v11155 = vld [vmem:[%s10 + $0x198] sm:$0xf]
    %v11156 = vld [vmem:[%s10 + $0x19c] sm:$0xf]
    %v11157 = vld [vmem:[%s10 + $0x1a0] sm:$0xf]
    %v11158 = vld [vmem:[%s10 + $0x1a4] sm:$0xf]
    %v11159 = vld [vmem:[%s10 + $0x1a8] sm:$0xf]
    %v11160 = vld [vmem:[%s10 + $0x1ac] sm:$0xf]
    %v11161 = vld [vmem:[%s10 + $0x1b0] sm:$0xf]
    %v11162 = vld [vmem:[%s10 + $0x1b4] sm:$0xf]
    %v11163 = vld [vmem:[%s10 + $0x1b8] sm:$0xf]
    %v11164 = vld [vmem:[%s10 + $0x1bc] sm:$0xf]
    %v11165 = vld [vmem:[%s10 + $0x1c0] sm:$0xf]
    %v11166 = vld [vmem:[%s10 + $0x1c4] sm:$0xf]
    %v11167 = vld [vmem:[%s10 + $0x1c8] sm:$0xf]
    %v11168 = vld [vmem:[%s10 + $0x1cc] sm:$0xf]
    %v11169 = vld [vmem:[%s10 + $0x1d0] sm:$0xf]
    %v11170 = vld [vmem:[%s10 + $0x1d4] sm:$0xf]
    %v11171 = vld [vmem:[%s10 + $0x1d8] sm:$0xf]
    %v11172 = vld [vmem:[%s10 + $0x1dc] sm:$0xf]
    %v11173 = vld [vmem:[%s10 + $0x1e0] sm:$0xf]
    %v11174 = vld [vmem:[%s10 + $0x1e4] sm:$0xf]
    %v11175 = vld [vmem:[%s10 + $0x1e8] sm:$0xf]
    %v11176 = vld [vmem:[%s10 + $0x1ec] sm:$0xf]
    %v11177 = vld [vmem:[%s10 + $0x1f0] sm:$0xf]
    %v11178 = vld [vmem:[%s10 + $0x1f4] sm:$0xf]
    %v11179 = vld [vmem:[%s10 + $0x1f8] sm:$0xf]
    %v11180 = vld [vmem:[%s10 + $0x1fc] sm:$0xf]
    %v11181 = vld [vmem:[%s10 + $0x200] sm:$0xf]
    %v11182 = vld [vmem:[%s10 + $0x204] sm:$0xf]
    %v11183 = vld [vmem:[%s10 + $0x208] sm:$0xf]
    %v11184 = vld [vmem:[%s10 + $0x20c] sm:$0xf]
    %v11185 = vld [vmem:[%s10 + $0x210] sm:$0xf]
    %v11186 = vld [vmem:[%s10 + $0x214] sm:$0xf]
    %v11187 = vld [vmem:[%s10 + $0x218] sm:$0xf]
    %v11188 = vld [vmem:[%s10 + $0x21c] sm:$0xf]
    %v11189 = vld [vmem:[%s10 + $0x220] sm:$0xf]
    %v11190 = vld [vmem:[%s10 + $0x224] sm:$0xf]
    %v11191 = vld [vmem:[%s10 + $0x228] sm:$0xf]
    %v11192 = vld [vmem:[%s10 + $0x22c] sm:$0xf]
    %v11193 = vld [vmem:[%s10 + $0x230] sm:$0xf]
    %v11194 = vld [vmem:[%s10 + $0x234] sm:$0xf]
    %v11195 = vld [vmem:[%s10 + $0x238] sm:$0xf]
    %v11196 = vld [vmem:[%s10 + $0x23c] sm:$0xf]
    %v11197 = vld [vmem:[%s10 + $0x240] sm:$0xf]
    %v11198 = vld [vmem:[%s10 + $0x244] sm:$0xf]
    %v11199 = vld [vmem:[%s10 + $0x248] sm:$0xf]
    %v11200 = vld [vmem:[%s10 + $0x24c] sm:$0xf]
    %v11201 = vld [vmem:[%s10 + $0x250] sm:$0xf]
    %v11202 = vld [vmem:[%s10 + $0x254] sm:$0xf]
    %v11203 = vld [vmem:[%s10 + $0x258] sm:$0xf]
    %v11204 = vld [vmem:[%s10 + $0x25c] sm:$0xf]
    %v11205 = vld [vmem:[%s10 + $0x260] sm:$0xf]
    %v11206 = vld [vmem:[%s10 + $0x264] sm:$0xf]
    %v11207 = vld [vmem:[%s10 + $0x268] sm:$0xf]
    %v11208 = vld [vmem:[%s10 + $0x26c] sm:$0xf]
    %v11209 = vld [vmem:[%s10 + $0x270] sm:$0xf]
    %v11210 = vld [vmem:[%s10 + $0x274] sm:$0xf]
    %v11211 = vld [vmem:[%s10 + $0x278] sm:$0xf]
    %v11212 = vld [vmem:[%s10 + $0x27c] sm:$0xf]
    %v11213 = vld [vmem:[%s10 + $0x280] sm:$0xf]
    %v11214 = vld [vmem:[%s10 + $0x284] sm:$0xf]
    %v11215 = vld [vmem:[%s10 + $0x288] sm:$0xf]
    %v11216 = vld [vmem:[%s10 + $0x28c] sm:$0xf]
    %v11217 = vld [vmem:[%s10 + $0x290] sm:$0xf]
    %v11218 = vld [vmem:[%s10 + $0x294] sm:$0xf]
    %v11219 = vld [vmem:[%s10 + $0x298] sm:$0xf]
    %v11220 = vld [vmem:[%s10 + $0x29c] sm:$0xf]
    %v11221 = vld [vmem:[%s10 + $0x2a0] sm:$0xf]
    %v11222 = vld [vmem:[%s10 + $0x2a4] sm:$0xf]
    %v11223 = vld [vmem:[%s10 + $0x2a8] sm:$0xf]
    %v11224 = vld [vmem:[%s10 + $0x2ac] sm:$0xf]
    %v11225 = vld [vmem:[%s10 + $0x2b0] sm:$0xf]
    %v11226 = vld [vmem:[%s10 + $0x2b4] sm:$0xf]
    %v11227 = vld [vmem:[%s10 + $0x2b8] sm:$0xf]
    %v11228 = vld [vmem:[%s10 + $0x2bc] sm:$0xf]
    %v11229 = vld [vmem:[%s10 + $0x2c0] sm:$0xf]
    %v11230 = vld [vmem:[%s10 + $0x2c4] sm:$0xf]
    %v11231 = vld [vmem:[%s10 + $0x2c8] sm:$0xf]
    %v11232 = vld [vmem:[%s10 + $0x2cc] sm:$0xf]
    %v11233 = vld [vmem:[%s10 + $0x2d0] sm:$0xf]
    %v11234 = vld [vmem:[%s10 + $0x2d4] sm:$0xf]
    %v11235 = vld [vmem:[%s10 + $0x2d8] sm:$0xf]
    %v11236 = vld [vmem:[%s10 + $0x2dc] sm:$0xf]
    %v11237 = vld [vmem:[%s10 + $0x2e0] sm:$0xf]
    %v11238 = vld [vmem:[%s10 + $0x2e4] sm:$0xf]
    %v11239 = vld [vmem:[%s10 + $0x2e8] sm:$0xf]
    %v11240 = vld [vmem:[%s10 + $0x2ec] sm:$0xf]
    %v11241 = vld [vmem:[%s10 + $0x2f0] sm:$0xf]
    %v11242 = vld [vmem:[%s10 + $0x2f4] sm:$0xf]
    %v11243 = vld [vmem:[%s10 + $0x2f8] sm:$0xf]
    %v11244 = vld [vmem:[%s10 + $0x2fc] sm:$0xf]
    %v11245 = vld [vmem:[%s10 + $0x300] sm:$0xf]
    %v11246 = vld [vmem:[%s10 + $0x304] sm:$0xf]
    %v11247 = vld [vmem:[%s10 + $0x308] sm:$0xf]
    %v11248 = vld [vmem:[%s10 + $0x30c] sm:$0xf]
    %v11249 = vld [vmem:[%s10 + $0x310] sm:$0xf]
    %v11250 = vld [vmem:[%s10 + $0x314] sm:$0xf]
    %v11251 = vld [vmem:[%s10 + $0x318] sm:$0xf]
    %v11252 = vld [vmem:[%s10 + $0x31c] sm:$0xf]
    %v11253 = vld [vmem:[%s10 + $0x320] sm:$0xf]
    %v11254 = vld [vmem:[%s10 + $0x324] sm:$0xf]
    %v11255 = vld [vmem:[%s10 + $0x328] sm:$0xf]
    %v11256 = vld [vmem:[%s10 + $0x32c] sm:$0xf]
    %v11257 = vld [vmem:[%s10 + $0x330] sm:$0xf]
    %v11258 = vld [vmem:[%s10 + $0x334] sm:$0xf]
    %v11259 = vld [vmem:[%s10 + $0x338] sm:$0xf]
    %v11260 = vld [vmem:[%s10 + $0x33c] sm:$0xf]
    %v11261 = vld [vmem:[%s10 + $0x340] sm:$0xf]
    %v11262 = vld [vmem:[%s10 + $0x344] sm:$0xf]
    %v11263 = vld [vmem:[%s10 + $0x348] sm:$0xf]
    %v11264 = vld [vmem:[%s10 + $0x34c] sm:$0xf]
    %v11265 = vld [vmem:[%s10 + $0x350] sm:$0xf]
    %v11266 = vld [vmem:[%s10 + $0x354] sm:$0xf]
    %v11267 = vld [vmem:[%s10 + $0x358] sm:$0xf]
    %v11268 = vld [vmem:[%s10 + $0x35c] sm:$0xf]
    %v11269 = vld [vmem:[%s10 + $0x360] sm:$0xf]
    %v11270 = vld [vmem:[%s10 + $0x364] sm:$0xf]
    %v11271 = vld [vmem:[%s10 + $0x368] sm:$0xf]
    %v11272 = vld [vmem:[%s10 + $0x36c] sm:$0xf]
    %v11273 = vld [vmem:[%s10 + $0x370] sm:$0xf]
    %v11274 = vld [vmem:[%s10 + $0x374] sm:$0xf]
    %v11275 = vld [vmem:[%s10 + $0x378] sm:$0xf]
    %v11276 = vld [vmem:[%s10 + $0x37c] sm:$0xf]
    %v11277 = vld [vmem:[%s10 + $0x380] sm:$0xf]
    %v11278 = vld [vmem:[%s10 + $0x384] sm:$0xf]
    %v11279 = vld [vmem:[%s10 + $0x388] sm:$0xf]
    %v11280 = vld [vmem:[%s10 + $0x38c] sm:$0xf]
    %v11281 = vld [vmem:[%s10 + $0x390] sm:$0xf]
    %v11282 = vld [vmem:[%s10 + $0x394] sm:$0xf]
    %v11283 = vld [vmem:[%s10 + $0x398] sm:$0xf]
    %v11284 = vld [vmem:[%s10 + $0x39c] sm:$0xf]
    %v11285 = vld [vmem:[%s10 + $0x3a0] sm:$0xf]
    %v11286 = vld [vmem:[%s10 + $0x3a4] sm:$0xf]
    %v11287 = vld [vmem:[%s10 + $0x3a8] sm:$0xf]
    %v11288 = vld [vmem:[%s10 + $0x3ac] sm:$0xf]
    %v11289 = vld [vmem:[%s10 + $0x3b0] sm:$0xf]
    %v11290 = vld [vmem:[%s10 + $0x3b4] sm:$0xf]
    %v11291 = vld [vmem:[%s10 + $0x3b8] sm:$0xf]
    %v11292 = vld [vmem:[%s10 + $0x3bc] sm:$0xf]
    %v11293 = vld [vmem:[%s10 + $0x3c0] sm:$0xf]
    %v11294 = vld [vmem:[%s10 + $0x3c4] sm:$0xf]
    %v11295 = vld [vmem:[%s10 + $0x3c8] sm:$0xf]
    %v11296 = vld [vmem:[%s10 + $0x3cc] sm:$0xf]
    %v11297 = vld [vmem:[%s10 + $0x3d0] sm:$0xf]
    %v11298 = vld [vmem:[%s10 + $0x3d4] sm:$0xf]
    %v11299 = vld [vmem:[%s10 + $0x3d8] sm:$0xf]
    %v11300 = vld [vmem:[%s10 + $0x3dc] sm:$0xf]
    %v11301 = vld [vmem:[%s10 + $0x3e0] sm:$0xf]
    %v11302 = vld [vmem:[%s10 + $0x3e4] sm:$0xf]
    %v11303 = vld [vmem:[%s10 + $0x3e8] sm:$0xf]
    %v11304 = vld [vmem:[%s10 + $0x3ec] sm:$0xf]
    %v11305 = vld [vmem:[%s10 + $0x3f0] sm:$0xf]
    %v11306 = vld [vmem:[%s10 + $0x3f4] sm:$0xf]
    %v11307 = vld [vmem:[%s10 + $0x3f8] sm:$0xf]
    %v11308 = vld [vmem:[%s10 + $0x3fc] sm:$0xf]
    %v11309 = vpack.c.bf16 %v11037, %v11037
    %v11310 = vpack.c.bf16 %v11038, %v11038
    %v11311 = vpack.c.bf16 %v11039, %v11039
    %v11312 = vpack.c.bf16 %v11040, %v11040
    %v11313 = vpack.c.bf16 %v11041, %v11041
    %v11314 = vpack.c.bf16 %v11042, %v11042
    %v11315 = vpack.c.bf16 %v11043, %v11043
    %v11316 = vpack.c.bf16 %v11044, %v11044
    %v11317 = vpack.c.bf16 %v11045, %v11045
    %v11318 = vpack.c.bf16 %v11046, %v11046
    %v11319 = vpack.c.bf16 %v11047, %v11047
    %v11320 = vpack.c.bf16 %v11048, %v11048
    %v11321 = vpack.c.bf16 %v11049, %v11049
    %v11322 = vpack.c.bf16 %v11050, %v11050
    %v11323 = vpack.c.bf16 %v11051, %v11051
    %v11324 = vpack.c.bf16 %v11052, %v11052
    %v11325 = vld [vmem:[#allocation31] sm:$0x1]
    %v11327 = vperm.slane %v11325, 0
    %v11585 = vunpack.c.l.b16 %v11053
    %v11586 = vunpack.c.l.b16 %v11054
    %v11587 = vunpack.c.l.b16 %v11055
    %v11588 = vunpack.c.l.b16 %v11056
    %v11589 = vunpack.c.l.b16 %v11057
    %v11590 = vunpack.c.l.b16 %v11058
    %v11591 = vunpack.c.l.b16 %v11059
    %v11592 = vunpack.c.l.b16 %v11060
    %v11593 = vunpack.c.l.b16 %v11061
    %v11594 = vunpack.c.l.b16 %v11062
    %v11595 = vunpack.c.l.b16 %v11063
    %v11596 = vunpack.c.l.b16 %v11064
    %v11597 = vunpack.c.l.b16 %v11065
    %v11598 = vunpack.c.l.b16 %v11066
    %v11599 = vunpack.c.l.b16 %v11067
    %v11600 = vunpack.c.l.b16 %v11068
    %v11601 = vunpack.c.l.b16 %v11069
    %v11602 = vunpack.c.l.b16 %v11070
    %v11603 = vunpack.c.l.b16 %v11071
    %v11604 = vunpack.c.l.b16 %v11072
    %v11605 = vunpack.c.l.b16 %v11073
    %v11606 = vunpack.c.l.b16 %v11074
    %v11607 = vunpack.c.l.b16 %v11075
    %v11608 = vunpack.c.l.b16 %v11076
    %v11609 = vunpack.c.l.b16 %v11077
    %v11610 = vunpack.c.l.b16 %v11078
    %v11611 = vunpack.c.l.b16 %v11079
    %v11612 = vunpack.c.l.b16 %v11080
    %v11613 = vunpack.c.l.b16 %v11081
    %v11614 = vunpack.c.l.b16 %v11082
    %v11615 = vunpack.c.l.b16 %v11083
    %v11616 = vunpack.c.l.b16 %v11084
    %v11617 = vunpack.c.l.b16 %v11085
    %v11618 = vunpack.c.l.b16 %v11086
    %v11619 = vunpack.c.l.b16 %v11087
    %v11620 = vunpack.c.l.b16 %v11088
    %v11621 = vunpack.c.l.b16 %v11089
    %v11622 = vunpack.c.l.b16 %v11090
    %v11623 = vunpack.c.l.b16 %v11091
    %v11624 = vunpack.c.l.b16 %v11092
    %v11625 = vunpack.c.l.b16 %v11093
    %v11626 = vunpack.c.l.b16 %v11094
    %v11627 = vunpack.c.l.b16 %v11095
    %v11628 = vunpack.c.l.b16 %v11096
    %v11629 = vunpack.c.l.b16 %v11097
    %v11630 = vunpack.c.l.b16 %v11098
    %v11631 = vunpack.c.l.b16 %v11099
    %v11632 = vunpack.c.l.b16 %v11100
    %v11633 = vunpack.c.l.b16 %v11101
    %v11634 = vunpack.c.l.b16 %v11102
    %v11635 = vunpack.c.l.b16 %v11103
    %v11636 = vunpack.c.l.b16 %v11104
    %v11637 = vunpack.c.l.b16 %v11105
    %v11638 = vunpack.c.l.b16 %v11106
    %v11639 = vunpack.c.l.b16 %v11107
    %v11640 = vunpack.c.l.b16 %v11108
    %v11641 = vunpack.c.l.b16 %v11109
    %v11642 = vunpack.c.l.b16 %v11110
    %v11643 = vunpack.c.l.b16 %v11111
    %v11644 = vunpack.c.l.b16 %v11112
    %v11645 = vunpack.c.l.b16 %v11113
    %v11646 = vunpack.c.l.b16 %v11114
    %v11647 = vunpack.c.l.b16 %v11115
    %v11648 = vunpack.c.l.b16 %v11116
    %v11649 = vunpack.c.l.b16 %v11117
    %v11650 = vunpack.c.l.b16 %v11118
    %v11651 = vunpack.c.l.b16 %v11119
    %v11652 = vunpack.c.l.b16 %v11120
    %v11653 = vunpack.c.l.b16 %v11121
    %v11654 = vunpack.c.l.b16 %v11122
    %v11655 = vunpack.c.l.b16 %v11123
    %v11656 = vunpack.c.l.b16 %v11124
    %v11657 = vunpack.c.l.b16 %v11125
    %v11658 = vunpack.c.l.b16 %v11126
    %v11659 = vunpack.c.l.b16 %v11127
    %v11660 = vunpack.c.l.b16 %v11128
    %v11661 = vunpack.c.l.b16 %v11129
    %v11662 = vunpack.c.l.b16 %v11130
    %v11663 = vunpack.c.l.b16 %v11131
    %v11664 = vunpack.c.l.b16 %v11132
    %v11665 = vunpack.c.l.b16 %v11133
    %v11666 = vunpack.c.l.b16 %v11134
    %v11667 = vunpack.c.l.b16 %v11135
    %v11668 = vunpack.c.l.b16 %v11136
    %v11669 = vunpack.c.l.b16 %v11137
    %v11670 = vunpack.c.l.b16 %v11138
    %v11671 = vunpack.c.l.b16 %v11139
    %v11672 = vunpack.c.l.b16 %v11140
    %v11673 = vunpack.c.l.b16 %v11141
    %v11674 = vunpack.c.l.b16 %v11142
    %v11675 = vunpack.c.l.b16 %v11143
    %v11676 = vunpack.c.l.b16 %v11144
    %v11677 = vunpack.c.l.b16 %v11145
    %v11678 = vunpack.c.l.b16 %v11146
    %v11679 = vunpack.c.l.b16 %v11147
    %v11680 = vunpack.c.l.b16 %v11148
    %v11681 = vunpack.c.l.b16 %v11149
    %v11682 = vunpack.c.l.b16 %v11150
    %v11683 = vunpack.c.l.b16 %v11151
    %v11684 = vunpack.c.l.b16 %v11152
    %v11685 = vunpack.c.l.b16 %v11153
    %v11686 = vunpack.c.l.b16 %v11154
    %v11687 = vunpack.c.l.b16 %v11155
    %v11688 = vunpack.c.l.b16 %v11156
    %v11689 = vunpack.c.l.b16 %v11157
    %v11690 = vunpack.c.l.b16 %v11158
    %v11691 = vunpack.c.l.b16 %v11159
    %v11692 = vunpack.c.l.b16 %v11160
    %v11693 = vunpack.c.l.b16 %v11161
    %v11694 = vunpack.c.l.b16 %v11162
    %v11695 = vunpack.c.l.b16 %v11163
    %v11696 = vunpack.c.l.b16 %v11164
    %v11697 = vunpack.c.l.b16 %v11165
    %v11698 = vunpack.c.l.b16 %v11166
    %v11699 = vunpack.c.l.b16 %v11167
    %v11700 = vunpack.c.l.b16 %v11168
    %v11701 = vunpack.c.l.b16 %v11169
    %v11702 = vunpack.c.l.b16 %v11170
    %v11703 = vunpack.c.l.b16 %v11171
    %v11704 = vunpack.c.l.b16 %v11172
    %v11705 = vunpack.c.l.b16 %v11173
    %v11706 = vunpack.c.l.b16 %v11174
    %v11707 = vunpack.c.l.b16 %v11175
    %v11708 = vunpack.c.l.b16 %v11176
    %v11709 = vunpack.c.l.b16 %v11177
    %v11710 = vunpack.c.l.b16 %v11178
    %v11711 = vunpack.c.l.b16 %v11179
    %v11712 = vunpack.c.l.b16 %v11180
    %v11713 = vunpack.c.l.b16 %v11181
    %v11714 = vunpack.c.l.b16 %v11182
    %v11715 = vunpack.c.l.b16 %v11183
    %v11716 = vunpack.c.l.b16 %v11184
    %v11717 = vunpack.c.l.b16 %v11185
    %v11718 = vunpack.c.l.b16 %v11186
    %v11719 = vunpack.c.l.b16 %v11187
    %v11720 = vunpack.c.l.b16 %v11188
    %v11721 = vunpack.c.l.b16 %v11189
    %v11722 = vunpack.c.l.b16 %v11190
    %v11723 = vunpack.c.l.b16 %v11191
    %v11724 = vunpack.c.l.b16 %v11192
    %v11725 = vunpack.c.l.b16 %v11193
    %v11726 = vunpack.c.l.b16 %v11194
    %v11727 = vunpack.c.l.b16 %v11195
    %v11728 = vunpack.c.l.b16 %v11196
    %v11729 = vunpack.c.l.b16 %v11197
    %v11730 = vunpack.c.l.b16 %v11198
    %v11731 = vunpack.c.l.b16 %v11199
    %v11732 = vunpack.c.l.b16 %v11200
    %v11733 = vunpack.c.l.b16 %v11201
    %v11734 = vunpack.c.l.b16 %v11202
    %v11735 = vunpack.c.l.b16 %v11203
    %v11736 = vunpack.c.l.b16 %v11204
    %v11737 = vunpack.c.l.b16 %v11205
    %v11738 = vunpack.c.l.b16 %v11206
    %v11739 = vunpack.c.l.b16 %v11207
    %v11740 = vunpack.c.l.b16 %v11208
    %v11741 = vunpack.c.l.b16 %v11209
    %v11742 = vunpack.c.l.b16 %v11210
    %v11743 = vunpack.c.l.b16 %v11211
    %v11744 = vunpack.c.l.b16 %v11212
    %v11745 = vunpack.c.l.b16 %v11213
    %v11746 = vunpack.c.l.b16 %v11214
    %v11747 = vunpack.c.l.b16 %v11215
    %v11748 = vunpack.c.l.b16 %v11216
    %v11749 = vunpack.c.l.b16 %v11217
    %v11750 = vunpack.c.l.b16 %v11218
    %v11751 = vunpack.c.l.b16 %v11219
    %v11752 = vunpack.c.l.b16 %v11220
    %v11753 = vunpack.c.l.b16 %v11221
    %v11754 = vunpack.c.l.b16 %v11222
    %v11755 = vunpack.c.l.b16 %v11223
    %v11756 = vunpack.c.l.b16 %v11224
    %v11757 = vunpack.c.l.b16 %v11225
    %v11758 = vunpack.c.l.b16 %v11226
    %v11759 = vunpack.c.l.b16 %v11227
    %v11760 = vunpack.c.l.b16 %v11228
    %v11761 = vunpack.c.l.b16 %v11229
    %v11762 = vunpack.c.l.b16 %v11230
    %v11763 = vunpack.c.l.b16 %v11231
    %v11764 = vunpack.c.l.b16 %v11232
    %v11765 = vunpack.c.l.b16 %v11233
    %v11766 = vunpack.c.l.b16 %v11234
    %v11767 = vunpack.c.l.b16 %v11235
    %v11768 = vunpack.c.l.b16 %v11236
    %v11769 = vunpack.c.l.b16 %v11237
    %v11770 = vunpack.c.l.b16 %v11238
    %v11771 = vunpack.c.l.b16 %v11239
    %v11772 = vunpack.c.l.b16 %v11240
    %v11773 = vunpack.c.l.b16 %v11241
    %v11774 = vunpack.c.l.b16 %v11242
    %v11775 = vunpack.c.l.b16 %v11243
    %v11776 = vunpack.c.l.b16 %v11244
    %v11777 = vunpack.c.l.b16 %v11245
    %v11778 = vunpack.c.l.b16 %v11246
    %v11779 = vunpack.c.l.b16 %v11247
    %v11780 = vunpack.c.l.b16 %v11248
    %v11781 = vunpack.c.l.b16 %v11249
    %v11782 = vunpack.c.l.b16 %v11250
    %v11783 = vunpack.c.l.b16 %v11251
    %v11784 = vunpack.c.l.b16 %v11252
    %v11785 = vunpack.c.l.b16 %v11253
    %v11786 = vunpack.c.l.b16 %v11254
    %v11787 = vunpack.c.l.b16 %v11255
    %v11788 = vunpack.c.l.b16 %v11256
    %v11789 = vunpack.c.l.b16 %v11257
    %v11790 = vunpack.c.l.b16 %v11258
    %v11791 = vunpack.c.l.b16 %v11259
    %v11792 = vunpack.c.l.b16 %v11260
    %v11793 = vunpack.c.l.b16 %v11261
    %v11794 = vunpack.c.l.b16 %v11262
    %v11795 = vunpack.c.l.b16 %v11263
    %v11796 = vunpack.c.l.b16 %v11264
    %v11797 = vunpack.c.l.b16 %v11265
    %v11798 = vunpack.c.l.b16 %v11266
    %v11799 = vunpack.c.l.b16 %v11267
    %v11800 = vunpack.c.l.b16 %v11268
    %v11801 = vunpack.c.l.b16 %v11269
    %v11802 = vunpack.c.l.b16 %v11270
    %v11803 = vunpack.c.l.b16 %v11271
    %v11804 = vunpack.c.l.b16 %v11272
    %v11805 = vunpack.c.l.b16 %v11273
    %v11806 = vunpack.c.l.b16 %v11274
    %v11807 = vunpack.c.l.b16 %v11275
    %v11808 = vunpack.c.l.b16 %v11276
    %v11809 = vunpack.c.l.b16 %v11277
    %v11810 = vunpack.c.l.b16 %v11278
    %v11811 = vunpack.c.l.b16 %v11279
    %v11812 = vunpack.c.l.b16 %v11280
    %v11813 = vunpack.c.l.b16 %v11281
    %v11814 = vunpack.c.l.b16 %v11282
    %v11815 = vunpack.c.l.b16 %v11283
    %v11816 = vunpack.c.l.b16 %v11284
    %v11817 = vunpack.c.l.b16 %v11285
    %v11818 = vunpack.c.l.b16 %v11286
    %v11819 = vunpack.c.l.b16 %v11287
    %v11820 = vunpack.c.l.b16 %v11288
    %v11821 = vunpack.c.l.b16 %v11289
    %v11822 = vunpack.c.l.b16 %v11290
    %v11823 = vunpack.c.l.b16 %v11291
    %v11824 = vunpack.c.l.b16 %v11292
    %v11825 = vunpack.c.l.b16 %v11293
    %v11826 = vunpack.c.l.b16 %v11294
    %v11827 = vunpack.c.l.b16 %v11295
    %v11828 = vunpack.c.l.b16 %v11296
    %v11829 = vunpack.c.l.b16 %v11297
    %v11830 = vunpack.c.l.b16 %v11298
    %v11831 = vunpack.c.l.b16 %v11299
    %v11832 = vunpack.c.l.b16 %v11300
    %v11833 = vunpack.c.l.b16 %v11301
    %v11834 = vunpack.c.l.b16 %v11302
    %v11835 = vunpack.c.l.b16 %v11303
    %v11836 = vunpack.c.l.b16 %v11304
    %v11837 = vunpack.c.l.b16 %v11305
    %v11838 = vunpack.c.l.b16 %v11306
    %v11839 = vunpack.c.l.b16 %v11307
    %v11840 = vunpack.c.l.b16 %v11308
    %v11841 = vpack.c.b16 %v11586, %v11585
    %v11842 = vpack.c.b16 %v11588, %v11587
    %v11843 = vpack.c.b16 %v11590, %v11589
    %v11844 = vpack.c.b16 %v11592, %v11591
    %v11845 = vpack.c.b16 %v11594, %v11593
    %v11846 = vpack.c.b16 %v11596, %v11595
    %v11847 = vpack.c.b16 %v11598, %v11597
    %v11848 = vpack.c.b16 %v11600, %v11599
    %v11849 = vpack.c.b16 %v11602, %v11601
    %v11850 = vpack.c.b16 %v11604, %v11603
    %v11851 = vpack.c.b16 %v11606, %v11605
    %v11852 = vpack.c.b16 %v11608, %v11607
    %v11853 = vpack.c.b16 %v11610, %v11609
    %v11854 = vpack.c.b16 %v11612, %v11611
    %v11855 = vpack.c.b16 %v11614, %v11613
    %v11856 = vpack.c.b16 %v11616, %v11615
    %v11857 = vpack.c.b16 %v11618, %v11617
    %v11858 = vpack.c.b16 %v11620, %v11619
    %v11859 = vpack.c.b16 %v11622, %v11621
    %v11860 = vpack.c.b16 %v11624, %v11623
    %v11861 = vpack.c.b16 %v11626, %v11625
    %v11862 = vpack.c.b16 %v11628, %v11627
    %v11863 = vpack.c.b16 %v11630, %v11629
    %v11864 = vpack.c.b16 %v11632, %v11631
    %v11865 = vpack.c.b16 %v11634, %v11633
    %v11866 = vpack.c.b16 %v11636, %v11635
    %v11867 = vpack.c.b16 %v11638, %v11637
    %v11868 = vpack.c.b16 %v11640, %v11639
    %v11869 = vpack.c.b16 %v11642, %v11641
    %v11870 = vpack.c.b16 %v11644, %v11643
    %v11871 = vpack.c.b16 %v11646, %v11645
    %v11872 = vpack.c.b16 %v11648, %v11647
    %v11873 = vpack.c.b16 %v11650, %v11649
    %v11874 = vpack.c.b16 %v11652, %v11651
    %v11875 = vpack.c.b16 %v11654, %v11653
    %v11876 = vpack.c.b16 %v11656, %v11655
    %v11877 = vpack.c.b16 %v11658, %v11657
    %v11878 = vpack.c.b16 %v11660, %v11659
    %v11879 = vpack.c.b16 %v11662, %v11661
    %v11880 = vpack.c.b16 %v11664, %v11663
    %v11881 = vpack.c.b16 %v11666, %v11665
    %v11882 = vpack.c.b16 %v11668, %v11667
    %v11883 = vpack.c.b16 %v11670, %v11669
    %v11884 = vpack.c.b16 %v11672, %v11671
    %v11885 = vpack.c.b16 %v11674, %v11673
    %v11886 = vpack.c.b16 %v11676, %v11675
    %v11887 = vpack.c.b16 %v11678, %v11677
    %v11888 = vpack.c.b16 %v11680, %v11679
    %v11889 = vpack.c.b16 %v11682, %v11681
    %v11890 = vpack.c.b16 %v11684, %v11683
    %v11891 = vpack.c.b16 %v11686, %v11685
    %v11892 = vpack.c.b16 %v11688, %v11687
    %v11893 = vpack.c.b16 %v11690, %v11689
    %v11894 = vpack.c.b16 %v11692, %v11691
    %v11895 = vpack.c.b16 %v11694, %v11693
    %v11896 = vpack.c.b16 %v11696, %v11695
    %v11897 = vpack.c.b16 %v11698, %v11697
    %v11898 = vpack.c.b16 %v11700, %v11699
    %v11899 = vpack.c.b16 %v11702, %v11701
    %v11900 = vpack.c.b16 %v11704, %v11703
    %v11901 = vpack.c.b16 %v11706, %v11705
    %v11902 = vpack.c.b16 %v11708, %v11707
    %v11903 = vpack.c.b16 %v11710, %v11709
    %v11904 = vpack.c.b16 %v11712, %v11711
    %v11905 = vpack.c.b16 %v11714, %v11713
    %v11906 = vpack.c.b16 %v11716, %v11715
    %v11907 = vpack.c.b16 %v11718, %v11717
    %v11908 = vpack.c.b16 %v11720, %v11719
    %v11909 = vpack.c.b16 %v11722, %v11721
    %v11910 = vpack.c.b16 %v11724, %v11723
    %v11911 = vpack.c.b16 %v11726, %v11725
    %v11912 = vpack.c.b16 %v11728, %v11727
    %v11913 = vpack.c.b16 %v11730, %v11729
    %v11914 = vpack.c.b16 %v11732, %v11731
    %v11915 = vpack.c.b16 %v11734, %v11733
    %v11916 = vpack.c.b16 %v11736, %v11735
    %v11917 = vpack.c.b16 %v11738, %v11737
    %v11918 = vpack.c.b16 %v11740, %v11739
    %v11919 = vpack.c.b16 %v11742, %v11741
    %v11920 = vpack.c.b16 %v11744, %v11743
    %v11921 = vpack.c.b16 %v11746, %v11745
    %v11922 = vpack.c.b16 %v11748, %v11747
    %v11923 = vpack.c.b16 %v11750, %v11749
    %v11924 = vpack.c.b16 %v11752, %v11751
    %v11925 = vpack.c.b16 %v11754, %v11753
    %v11926 = vpack.c.b16 %v11756, %v11755
    %v11927 = vpack.c.b16 %v11758, %v11757
    %v11928 = vpack.c.b16 %v11760, %v11759
    %v11929 = vpack.c.b16 %v11762, %v11761
    %v11930 = vpack.c.b16 %v11764, %v11763
    %v11931 = vpack.c.b16 %v11766, %v11765
    %v11932 = vpack.c.b16 %v11768, %v11767
    %v11933 = vpack.c.b16 %v11770, %v11769
    %v11934 = vpack.c.b16 %v11772, %v11771
    %v11935 = vpack.c.b16 %v11774, %v11773
    %v11936 = vpack.c.b16 %v11776, %v11775
    %v11937 = vpack.c.b16 %v11778, %v11777
    %v11938 = vpack.c.b16 %v11780, %v11779
    %v11939 = vpack.c.b16 %v11782, %v11781
    %v11940 = vpack.c.b16 %v11784, %v11783
    %v11941 = vpack.c.b16 %v11786, %v11785
    %v11942 = vpack.c.b16 %v11788, %v11787
    %v11943 = vpack.c.b16 %v11790, %v11789
    %v11944 = vpack.c.b16 %v11792, %v11791
    %v11945 = vpack.c.b16 %v11794, %v11793
    %v11946 = vpack.c.b16 %v11796, %v11795
    %v11947 = vpack.c.b16 %v11798, %v11797
    %v11948 = vpack.c.b16 %v11800, %v11799
    %v11949 = vpack.c.b16 %v11802, %v11801
    %v11950 = vpack.c.b16 %v11804, %v11803
    %v11951 = vpack.c.b16 %v11806, %v11805
    %v11952 = vpack.c.b16 %v11808, %v11807
    %v11953 = vpack.c.b16 %v11810, %v11809
    %v11954 = vpack.c.b16 %v11812, %v11811
    %v11955 = vpack.c.b16 %v11814, %v11813
    %v11956 = vpack.c.b16 %v11816, %v11815
    %v11957 = vpack.c.b16 %v11818, %v11817
    %v11958 = vpack.c.b16 %v11820, %v11819
    %v11959 = vpack.c.b16 %v11822, %v11821
    %v11960 = vpack.c.b16 %v11824, %v11823
    %v11961 = vpack.c.b16 %v11826, %v11825
    %v11962 = vpack.c.b16 %v11828, %v11827
    %v11963 = vpack.c.b16 %v11830, %v11829
    %v11964 = vpack.c.b16 %v11832, %v11831
    %v11965 = vpack.c.b16 %v11834, %v11833
    %v11966 = vpack.c.b16 %v11836, %v11835
    %v11967 = vpack.c.b16 %v11838, %v11837
    %v11968 = vpack.c.b16 %v11840, %v11839
    %12097 = vmatpush.bf16.msra.mxu0 %v11848
    %12098 = vmatpush.bf16.msra.mxu0 %v11847
    %12099 = vmatpush.bf16.msra.mxu0 %v11846
    %12100 = vmatpush.bf16.msra.mxu0 %v11845
    %12101 = vmatpush.bf16.msra.mxu0 %v11844
    %12102 = vmatpush.bf16.msra.mxu0 %v11843
    %12103 = vmatpush.bf16.msra.mxu0 %v11842
    %12104 = vmatpush.bf16.msra.mxu0 %v11841
    %12105 = vmatmul.bf16.gmra.mxu0 %v11309
    %v12106 = vpop.f32.mrf.mxu0
    %v12107 = vadd.f32 %v11327, %v12106
    %v12108 = vpop.f32.mrf.mxu0
    %12109 = vdwg.mxu0
    %12110 = vmatpush.bf16.msra.mxu0 %v11856
    %12111 = vmatpush.bf16.msra.mxu0 %v11855
    %12112 = vmatpush.bf16.msra.mxu0 %v11854
    %12113 = vmatpush.bf16.msra.mxu0 %v11853
    %12114 = vmatpush.bf16.msra.mxu0 %v11852
    %12115 = vmatpush.bf16.msra.mxu0 %v11851
    %12116 = vmatpush.bf16.msra.mxu0 %v11850
    %12117 = vmatpush.bf16.msra.mxu0 %v11849
    %12118 = vmatmul.bf16.gmra.mxu0 %v11310
    %v12119 = vpop.f32.mrf.mxu0
    %v12120 = vadd.f32 %v12107, %v12119
    %v12121 = vpop.f32.mrf.mxu0
    %12122 = vdwg.mxu0
    %12123 = vmatpush.bf16.msra.mxu0 %v11864
    %12124 = vmatpush.bf16.msra.mxu0 %v11863
    %12125 = vmatpush.bf16.msra.mxu0 %v11862
    %12126 = vmatpush.bf16.msra.mxu0 %v11861
    %12127 = vmatpush.bf16.msra.mxu0 %v11860
    %12128 = vmatpush.bf16.msra.mxu0 %v11859
    %12129 = vmatpush.bf16.msra.mxu0 %v11858
    %12130 = vmatpush.bf16.msra.mxu0 %v11857
    %12131 = vmatmul.bf16.gmra.mxu0 %v11311
    %v12132 = vpop.f32.mrf.mxu0
    %v12133 = vadd.f32 %v12120, %v12132
    %v12134 = vpop.f32.mrf.mxu0
    %12135 = vdwg.mxu0
    %12136 = vmatpush.bf16.msra.mxu0 %v11872
    %12137 = vmatpush.bf16.msra.mxu0 %v11871
    %12138 = vmatpush.bf16.msra.mxu0 %v11870
    %12139 = vmatpush.bf16.msra.mxu0 %v11869
    %12140 = vmatpush.bf16.msra.mxu0 %v11868
    %12141 = vmatpush.bf16.msra.mxu0 %v11867
    %12142 = vmatpush.bf16.msra.mxu0 %v11866
    %12143 = vmatpush.bf16.msra.mxu0 %v11865
    %12144 = vmatmul.bf16.gmra.mxu0 %v11312
    %v12145 = vpop.f32.mrf.mxu0
    %v12146 = vadd.f32 %v12133, %v12145
    %v12147 = vpop.f32.mrf.mxu0
    %12148 = vdwg.mxu0
    %12149 = vmatpush.bf16.msra.mxu0 %v11880
    %12150 = vmatpush.bf16.msra.mxu0 %v11879
    %12151 = vmatpush.bf16.msra.mxu0 %v11878
    %12152 = vmatpush.bf16.msra.mxu0 %v11877
    %12153 = vmatpush.bf16.msra.mxu0 %v11876
    %12154 = vmatpush.bf16.msra.mxu0 %v11875
    %12155 = vmatpush.bf16.msra.mxu0 %v11874
    %12156 = vmatpush.bf16.msra.mxu0 %v11873
    %12157 = vmatmul.bf16.gmra.mxu0 %v11313
    %v12158 = vpop.f32.mrf.mxu0
    %v12159 = vadd.f32 %v12146, %v12158
    %v12160 = vpop.f32.mrf.mxu0
    %12161 = vdwg.mxu0
    %12162 = vmatpush.bf16.msra.mxu0 %v11888
    %12163 = vmatpush.bf16.msra.mxu0 %v11887
    %12164 = vmatpush.bf16.msra.mxu0 %v11886
    %12165 = vmatpush.bf16.msra.mxu0 %v11885
    %12166 = vmatpush.bf16.msra.mxu0 %v11884
    %12167 = vmatpush.bf16.msra.mxu0 %v11883
    %12168 = vmatpush.bf16.msra.mxu0 %v11882
    %12169 = vmatpush.bf16.msra.mxu0 %v11881
    %12170 = vmatmul.bf16.gmra.mxu0 %v11314
    %v12171 = vpop.f32.mrf.mxu0
    %v12172 = vadd.f32 %v12159, %v12171
    %v12173 = vpop.f32.mrf.mxu0
    %12174 = vdwg.mxu0
    %12175 = vmatpush.bf16.msra.mxu0 %v11896
    %12176 = vmatpush.bf16.msra.mxu0 %v11895
    %12177 = vmatpush.bf16.msra.mxu0 %v11894
    %12178 = vmatpush.bf16.msra.mxu0 %v11893
    %12179 = vmatpush.bf16.msra.mxu0 %v11892
    %12180 = vmatpush.bf16.msra.mxu0 %v11891
    %12181 = vmatpush.bf16.msra.mxu0 %v11890
    %12182 = vmatpush.bf16.msra.mxu0 %v11889
    %12183 = vmatmul.bf16.gmra.mxu0 %v11315
    %v12184 = vpop.f32.mrf.mxu0
    %v12185 = vadd.f32 %v12172, %v12184
    %v12186 = vpop.f32.mrf.mxu0
    %12187 = vdwg.mxu0
    %12188 = vmatpush.bf16.msra.mxu0 %v11904
    %12189 = vmatpush.bf16.msra.mxu0 %v11903
    %12190 = vmatpush.bf16.msra.mxu0 %v11902
    %12191 = vmatpush.bf16.msra.mxu0 %v11901
    %12192 = vmatpush.bf16.msra.mxu0 %v11900
    %12193 = vmatpush.bf16.msra.mxu0 %v11899
    %12194 = vmatpush.bf16.msra.mxu0 %v11898
    %12195 = vmatpush.bf16.msra.mxu0 %v11897
    %12196 = vmatmul.bf16.gmra.mxu0 %v11316
    %v12197 = vpop.f32.mrf.mxu0
    %v12198 = vadd.f32 %v12185, %v12197
    %v12199 = vpop.f32.mrf.mxu0
    %12200 = vdwg.mxu0
    %12201 = vmatpush.bf16.msra.mxu0 %v11912
    %12202 = vmatpush.bf16.msra.mxu0 %v11911
    %12203 = vmatpush.bf16.msra.mxu0 %v11910
    %12204 = vmatpush.bf16.msra.mxu0 %v11909
    %12205 = vmatpush.bf16.msra.mxu0 %v11908
    %12206 = vmatpush.bf16.msra.mxu0 %v11907
    %12207 = vmatpush.bf16.msra.mxu0 %v11906
    %12208 = vmatpush.bf16.msra.mxu0 %v11905
    %12209 = vmatmul.bf16.gmra.mxu0 %v11317
    %v12210 = vpop.f32.mrf.mxu0
    %v12211 = vadd.f32 %v12198, %v12210
    %v12212 = vpop.f32.mrf.mxu0
    %12213 = vdwg.mxu0
    %12214 = vmatpush.bf16.msra.mxu0 %v11920
    %12215 = vmatpush.bf16.msra.mxu0 %v11919
    %12216 = vmatpush.bf16.msra.mxu0 %v11918
    %12217 = vmatpush.bf16.msra.mxu0 %v11917
    %12218 = vmatpush.bf16.msra.mxu0 %v11916
    %12219 = vmatpush.bf16.msra.mxu0 %v11915
    %12220 = vmatpush.bf16.msra.mxu0 %v11914
    %12221 = vmatpush.bf16.msra.mxu0 %v11913
    %12222 = vmatmul.bf16.gmra.mxu0 %v11318
    %v12223 = vpop.f32.mrf.mxu0
    %v12224 = vadd.f32 %v12211, %v12223
    %v12225 = vpop.f32.mrf.mxu0
    %12226 = vdwg.mxu0
    %12227 = vmatpush.bf16.msra.mxu0 %v11928
    %12228 = vmatpush.bf16.msra.mxu0 %v11927
    %12229 = vmatpush.bf16.msra.mxu0 %v11926
    %12230 = vmatpush.bf16.msra.mxu0 %v11925
    %12231 = vmatpush.bf16.msra.mxu0 %v11924
    %12232 = vmatpush.bf16.msra.mxu0 %v11923
    %12233 = vmatpush.bf16.msra.mxu0 %v11922
    %12234 = vmatpush.bf16.msra.mxu0 %v11921
    %12235 = vmatmul.bf16.gmra.mxu0 %v11319
    %v12236 = vpop.f32.mrf.mxu0
    %v12237 = vadd.f32 %v12224, %v12236
    %v12238 = vpop.f32.mrf.mxu0
    %12239 = vdwg.mxu0
    %12240 = vmatpush.bf16.msra.mxu0 %v11936
    %12241 = vmatpush.bf16.msra.mxu0 %v11935
    %12242 = vmatpush.bf16.msra.mxu0 %v11934
    %12243 = vmatpush.bf16.msra.mxu0 %v11933
    %12244 = vmatpush.bf16.msra.mxu0 %v11932
    %12245 = vmatpush.bf16.msra.mxu0 %v11931
    %12246 = vmatpush.bf16.msra.mxu0 %v11930
    %12247 = vmatpush.bf16.msra.mxu0 %v11929
    %12248 = vmatmul.bf16.gmra.mxu0 %v11320
    %v12249 = vpop.f32.mrf.mxu0
    %v12250 = vadd.f32 %v12237, %v12249
    %v12251 = vpop.f32.mrf.mxu0
    %12252 = vdwg.mxu0
    %12253 = vmatpush.bf16.msra.mxu0 %v11944
    %12254 = vmatpush.bf16.msra.mxu0 %v11943
    %12255 = vmatpush.bf16.msra.mxu0 %v11942
    %12256 = vmatpush.bf16.msra.mxu0 %v11941
    %12257 = vmatpush.bf16.msra.mxu0 %v11940
    %12258 = vmatpush.bf16.msra.mxu0 %v11939
    %12259 = vmatpush.bf16.msra.mxu0 %v11938
    %12260 = vmatpush.bf16.msra.mxu0 %v11937
    %12261 = vmatmul.bf16.gmra.mxu0 %v11321
    %v12262 = vpop.f32.mrf.mxu0
    %v12263 = vadd.f32 %v12250, %v12262
    %v12264 = vpop.f32.mrf.mxu0
    %12265 = vdwg.mxu0
    %12266 = vmatpush.bf16.msra.mxu0 %v11952
    %12267 = vmatpush.bf16.msra.mxu0 %v11951
    %12268 = vmatpush.bf16.msra.mxu0 %v11950
    %12269 = vmatpush.bf16.msra.mxu0 %v11949
    %12270 = vmatpush.bf16.msra.mxu0 %v11948
    %12271 = vmatpush.bf16.msra.mxu0 %v11947
    %12272 = vmatpush.bf16.msra.mxu0 %v11946
    %12273 = vmatpush.bf16.msra.mxu0 %v11945
    %12274 = vmatmul.bf16.gmra.mxu0 %v11322
    %v12275 = vpop.f32.mrf.mxu0
    %v12276 = vadd.f32 %v12263, %v12275
    %v12277 = vpop.f32.mrf.mxu0
    %12278 = vdwg.mxu0
    %12279 = vmatpush.bf16.msra.mxu0 %v11960
    %12280 = vmatpush.bf16.msra.mxu0 %v11959
    %12281 = vmatpush.bf16.msra.mxu0 %v11958
    %12282 = vmatpush.bf16.msra.mxu0 %v11957
    %12283 = vmatpush.bf16.msra.mxu0 %v11956
    %12284 = vmatpush.bf16.msra.mxu0 %v11955
    %12285 = vmatpush.bf16.msra.mxu0 %v11954
    %12286 = vmatpush.bf16.msra.mxu0 %v11953
    %12287 = vmatmul.bf16.gmra.mxu0 %v11323
    %v12288 = vpop.f32.mrf.mxu0
    %v12289 = vadd.f32 %v12276, %v12288
    %v12290 = vpop.f32.mrf.mxu0
    %12291 = vdwg.mxu0
    %12292 = vmatpush.bf16.msra.mxu0 %v11968
    %12293 = vmatpush.bf16.msra.mxu0 %v11967
    %12294 = vmatpush.bf16.msra.mxu0 %v11966
    %12295 = vmatpush.bf16.msra.mxu0 %v11965
    %12296 = vmatpush.bf16.msra.mxu0 %v11964
    %12297 = vmatpush.bf16.msra.mxu0 %v11963
    %12298 = vmatpush.bf16.msra.mxu0 %v11962
    %12299 = vmatpush.bf16.msra.mxu0 %v11961
    %12300 = vmatmul.bf16.gmra.mxu0 %v11324
    %v12301 = vpop.f32.mrf.mxu0
    %v12302 = vadd.f32 %v12289, %v12301
    %v12303 = vpop.f32.mrf.mxu0
    %12304 = vdwg.mxu0
    %vm12305 = vcmp.gt.f32.partialorder %v12302, 20.0
    %v12306 = vmin.f32 %v12302, 20.0
    %v12307 = vmul.f32 %v12306, 1.442695
    %v12308 = vpow.pop %v12307
    %v12309 = vadd.f32 %v12308, 1.0
    %v12310 = vlog2.pop %v12309
    %v12311 = vmul.f32 %v12310, 0.6931472
    %v12312 = vmul.f32 -0.5, %v12308
    %v12313 = vadd.f32 %v12312, 1.0
    %v12314 = vmul.f32 %v12313, %v12308
    %v12315 = vand.u32 2147483647, %v12308
    %vm12316 = vcmp.lt.f32.partialorder %v12315, 0.0004427343
    %v12317 = vsel %vm12316, %v12314, %v12311
    %v12318 = vsel %vm12305, %v12302, %v12317
    %12319 = vst.msk [vmem:[#allocation32] sm:$0xff] %vm408, %v12318
    // Predicated region
    $region166: #{tpu_custom_call.1} parent=1 // pred_check
      _
    $region167: #{tpu_custom_call.1} parent=1 // pred_check_branch
      %12321 = sbr.rel (0) target = $region169
    $region168: #{tpu_custom_call.1} parent=1 // pred_region
      %12323 = vsyncadd [#allocation7], 0
      %s12325 = sshll.u32 [#allocation32], 4
      %s12326 = int_to_ptr.vmem [resolvable:$true] %s12325
      %s12327 = sshll.u32 %s21, 4
      %s12328 = int_to_ptr.hbm [resolvable:$true] %s12327
      %12330 = dma.vmem_to_hbm [thread:$0]  %s12326, 128, %s12328, [#allocation7]
    $region169: #{tpu_custom_call.1} parent=1 // pred_fallthru
      _
    // Predicated region
    $region170: #{tpu_custom_call.1} parent=1 // pred_check
      _
    $region171: #{tpu_custom_call.1} parent=1 // pred_check_branch
      %12332 = sbr.rel (0) target = $region173
    $region172: #{tpu_custom_call.1} parent=1 // pred_region
      %12334 = dma.done [#allocation7], 128
    $region173: #{tpu_custom_call.1} parent=1 // pred_fallthru
      _
    %12335 = vsyncpa [#allocation6], 1
    %12336 = vsyncpa [#allocation9], 1
    %12337 = vsyncpa [#allocation12], 1
    %12338 = vsyncpa [#allocation15], 1
    %12339 = vsyncpa [#allocation18], 1
    %12340 = vsyncpa [#allocation21], 1
    %12341 = vsyncpa [#allocation24], 1
    %12342 = vsyncpa [#allocation27], 1
    %12343 = vsyncpa [#allocation30], 1
    %12344 = vsyncpa [#allocation7], 1
  %12345 = vsyncmov [#allocation4]
  %s12346 = vpop.sfrf %12345
  %p12347 = scmp.eq.s32.totalorder %s12346, 0
  %p12348 = pneg %p12347
  %12350 = shalt.err (%p12348)
  %s12351 = scalar_lea.sflag [#allocation4], 1
  %12352 = vsyncmov %s12351
  %s12353 = vpop.sfrf %12352
  %p12354 = scmp.eq.s32.totalorder %s12353, 0
  %p12355 = pneg %p12354
  %12357 = shalt.err (%p12355)

</llo_original>
